<compile_context>
chip_gen: v6e
topology: v6e:2x2x1
jax: 0.10.0
libtpu: 0.0.40
codegen_flags: <defaults>
</compile_context>

<pallas_src>
import functools

import jax
import jax.numpy as jnp
from jax.experimental import pallas as pl
from jax.experimental.pallas import tpu as pltpu


# ----------------------------- Pallas kernel --------------------------------
def _conv_bn_relu_kernel(x_ref, w_ref, shift_ref, o_ref, patch_ref, *,
                         k, stride, TH, Wo, C, O, KK, KK_pad, apply_relu):
    """One (batch image n, output-row block hb) grid step.

    x_ref:     (th_in, Wp, C)   bf16 padded input rows for this block (halo incl.)
    w_ref:     (KK_pad, O_pad)  bf16 im2col weight matrix (BN scale folded, 0-padded)
    shift_ref: (1, O_pad)       f32 BN shift / bias
    o_ref:     (TH, Wo, O)      bf16 output tile (last dim = true O, no padding)
    patch_ref: (TH*Wo, KK_pad)  bf16 VMEM scratch holding the im2col patch
    """
    # The KK..KK_pad padding columns multiply zero weight rows, but 0 * garbage
    # could be 0 * NaN -> NaN, so make sure the padding lanes are clean.
    if KK_pad > KK:
        patch_ref[...] = jnp.zeros_like(patch_ref)

    # Build the (TH*Wo, k*k*C) im2col patch with k*k shifted copies, slicing the
    # input ref per tap (no (th_in, Wp, C) window value is materialized).
    for i in range(k):
        for j in range(k):
            tap = i * k + j
            if stride == 1:
                win = x_ref[pl.ds(i, TH), pl.ds(j, Wo), :]          # (TH, Wo, C)
            else:
                # TODO(synk): strided-ds ref slice path is untested on HW here
                # (the test below uses stride=1).
                win = x_ref[pl.ds(i, TH, stride), pl.ds(j, Wo, stride), :]
            patch_ref[:, tap * C:(tap + 1) * C] = win.reshape(TH * Wo, C)

    # Single MXU matmul per grid step: K = k*k*C (padded), f32 accumulation.
    acc = jnp.dot(patch_ref[...], w_ref[...],
                  preferred_element_type=jnp.float32)               # (TH*Wo, O_pad)

    out = acc + shift_ref[...]                                      # f32 epilogue
    if apply_relu:
        out = jnp.maximum(out, 0.0)

    # Store only the true O channels (bf16) -> ~16-32x fewer HBM writeback bytes
    # than an O_pad=128 f32 store for small-O layers.
    o_ref[...] = out[:, :O].reshape(TH, Wo, O).astype(o_ref.dtype)


# ------------------------------- helpers -------------------------------------
def _blk_vmem_bytes(shape, itemsize):
    """Approximate physical VMEM footprint of one block ((8,128) minor padding)."""
    if len(shape) < 2:
        shape = (1,) + tuple(shape)
    lead = 1
    for d in shape[:-2]:
        lead *= d
    s = -(-shape[-2] // 8) * 8
    l = -(-shape[-1] // 128) * 128
    return lead * s * l * itemsize


# ------------------------------- wrapper -------------------------------------
def conv_layer_forward(x, final_activation, params, *, kernel_size, stride,
                       batch_norm, row_tile_target=1024):
    """Forward pass of ConvLayer. x: (N, C, H, W) float32 -> (N, O, Ho, Wo) f32."""
    N, C, H, W = x.shape
    w = params["weight"]                               # (O, C, k, k)
    O = w.shape[0]
    k = kernel_size
    pad = (k - 1) // 2

    Ho = (H + 2 * pad - k) // stride + 1
    Wo = (W + 2 * pad - k) // stride + 1

    # ---- BN folding (eval mode); fold the scale into the weights ----
    if batch_norm:
        eps = 1e-5
        inv_std = 1.0 / jnp.sqrt(params["running_var"] + eps)
        scale = params["gamma"] * inv_std                          # (O,)
        shift = params["beta"] - params["running_mean"] * scale    # (O,)
    else:
        scale = jnp.ones((O,), jnp.float32)
        shift = params["bias"].astype(jnp.float32)

    # ---- im2col weight matrix: (k*k*C, O), BN scale folded, padded ----
    KK = k * k * C
    KK_pad = -(-KK // 128) * 128                       # matmul K, lane-dense LHS
    O_pad = -(-O // 128) * 128                         # lane-dense accumulator
    w2 = jnp.transpose(w, (2, 3, 1, 0)).reshape(KK, O)         # rows = (i*k+j)*C + c
    w2 = w2 * scale.reshape(1, O)                              # fold BN scale (f32)
    w2 = jnp.pad(w2, ((0, KK_pad - KK), (0, O_pad - O))).astype(jnp.bfloat16)
    shift_p = jnp.pad(shift.astype(jnp.float32), (0, O_pad - O)).reshape(1, O_pad)

    # ---- output-row tiling: TH rows (>= row_tile_target output pixels) ----
    TH = max(1, min(Ho, -(-row_tile_target // Wo)))
    num_hb = -(-Ho // TH)
    Ho_pad = num_hb * TH
    th_in = (TH - 1) * stride + k                      # input rows incl. halo

    # ---- NHWC bf16 + spatial zero padding, then overlapping row blocks ----
    # Only th_in rows are VMEM-resident per grid step (v7x: 64 MiB/TC), and the
    # row blocks are pipelined/prefetched by the standard BlockSpec machinery.
    x_nhwc = jnp.transpose(x, (0, 2, 3, 1)).astype(jnp.bfloat16)
    h_need = (Ho_pad - 1) * stride + k
    pad_bottom = pad + max(0, h_need - (H + 2 * pad))
    xp = jnp.pad(x_nhwc, ((0, 0), (pad, pad_bottom), (pad, pad), (0, 0)))
    Wp = xp.shape[2]
    xb = jnp.stack([xp[:, hb * TH * stride: hb * TH * stride + th_in]
                    for hb in range(num_hb)], axis=1)  # (N, num_hb, th_in, Wp, C)

    kernel = functools.partial(
        _conv_bn_relu_kernel, k=k, stride=stride, TH=TH, Wo=Wo, C=C, O=O,
        KK=KK, KK_pad=KK_pad, apply_relu=bool(final_activation))

    # VMEM budget from the actual blocks (weights counted double-buffered to be
    # conservative).  Ceiling 64 MiB keeps us inside v7x's per-TC physical VMEM;
    # v5e/v6e (128 MiB) could raise this if larger row tiles are ever needed.
    vmem_est = (2 * _blk_vmem_bytes((th_in, Wp, C), 2)
                + 2 * _blk_vmem_bytes((TH, Wo, O), 2)
                + 2 * _blk_vmem_bytes((KK_pad, O_pad), 2)
                + 2 * _blk_vmem_bytes((1, O_pad), 4)
                + _blk_vmem_bytes((TH * Wo, KK_pad), 2))
    vmem_limit = int(min(max(2 * vmem_est, 32 << 20), 64 << 20))

    cost = pl.CostEstimate(
        flops=int(2 * N * num_hb * (TH * Wo) * KK_pad * O_pad),
        transcendentals=0,
        bytes_accessed=int(xb.size * 2 + w2.size * 2 + shift_p.size * 4
                           + N * Ho_pad * Wo * O * 2))

    def build(single_buffer_consts):
        # Weight / shift block indices are constant over the whole grid; request
        # single buffering so no useless second VMEM copy is allocated.
        const_kw = dict(pipeline_mode=pl.Buffered(1)) if single_buffer_consts else {}
        return pl.pallas_call(
            kernel,
            out_shape=jax.ShapeDtypeStruct((N, Ho_pad, Wo, O), jnp.bfloat16),
            grid=(N, num_hb),
            in_specs=[
                pl.BlockSpec((None, None, th_in, Wp, C),
                             lambda n, hb: (n, hb, 0, 0, 0)),
                pl.BlockSpec((KK_pad, O_pad), lambda n, hb: (0, 0), **const_kw),
                pl.BlockSpec((1, O_pad), lambda n, hb: (0, 0), **const_kw),
            ],
            out_specs=pl.BlockSpec((None, TH, Wo, O), lambda n, hb: (n, hb, 0, 0)),
            scratch_shapes=[pltpu.VMEM((TH * Wo, KK_pad), jnp.bfloat16)],
            compiler_params=pltpu.CompilerParams(
                dimension_semantics=("parallel", "parallel"),
                vmem_limit_bytes=vmem_limit),
            cost_estimate=cost,
        )

    try:
        out_nhwc = build(True)(xb, w2, shift_p)
    except Exception:
        # pl.Buffered(1) is a pipelining hint; if this jax build rejects it,
        # fall back to default double buffering (weights/shift are small).
        out_nhwc = build(False)(xb, w2, shift_p)

    # Slice off the Ho padding rows and return NCHW f32 (PyTorch semantics).
    out = out_nhwc[:, :Ho, :, :].transpose(0, 3, 1, 2).astype(jnp.float32)
    return out


# --------------------------- reference (plain JAX) ---------------------------
def _reference(x, final_activation, params, *, kernel_size, stride, batch_norm):
    pad = (kernel_size - 1) // 2
    out = jax.lax.conv_general_dilated(
        x, params["weight"], window_strides=(stride, stride),
        padding=[(pad, pad), (pad, pad)],
        dimension_numbers=("NCHW", "OIHW", "NCHW"))
    if batch_norm:
        eps = 1e-5
        inv_std = 1.0 / jnp.sqrt(params["running_var"] + eps)
        scale = (params["gamma"] * inv_std).reshape(1, -1, 1, 1)
        shift = (params["beta"] - params["running_mean"] * params["gamma"] * inv_std
                 ).reshape(1, -1, 1, 1)
        out = out * scale + shift
    else:
        out = out + params["bias"].reshape(1, -1, 1, 1)
    if final_activation:
        out = jnp.maximum(out, 0.0)
    return out


if __name__ == "__main__":
    # ConvLayer(input_ch=4, output_ch=8, kernel_size=3), batch=2, 16x16 spatial
    N, C, H, W = 2, 4, 16, 16
    O, ksize, stride, batch_norm = 8, 3, 1, True

    key = jax.random.PRNGKey(0)
    k_x, k_w, k_g, k_b, k_m, k_v = jax.random.split(key, 6)

    x = jax.random.normal(k_x, (N, C, H, W), jnp.float32)
    params = {
        "weight": jax.random.normal(k_w, (O, C, ksize, ksize), jnp.float32) * 0.1,
        "gamma": 1.0 + 0.1 * jax.random.normal(k_g, (O,), jnp.float32),
        "beta": 0.1 * jax.random.normal(k_b, (O,), jnp.float32),
        "running_mean": 0.05 * jax.random.normal(k_m, (O,), jnp.float32),
        "running_var": jnp.abs(1.0 + 0.1 * jax.random.normal(k_v, (O,), jnp.float32)),
        "bias": jnp.zeros((O,), jnp.float32),  # unused when batch_norm=True
    }

    final_activation = True  # second element of the input tuple in the PyTorch forward

    out = conv_layer_forward(x, final_activation, params,
                             kernel_size=ksize, stride=stride, batch_norm=batch_norm)
    out = jax.block_until_ready(out)

    ref = _reference(x, final_activation, params,
                     kernel_size=ksize, stride=stride, batch_norm=batch_norm)
    assert out.shape == (N, O, H, W), out.shape
    # bf16 matmul operands + bf16 output storage (f32 accumulation) -> loosened
    # tolerance vs the f32 reference; fine for inference.
    max_err = float(jnp.max(jnp.abs(out - ref)))
    assert jnp.allclose(out, ref, atol=5e-2, rtol=5e-2), max_err

    print("KERNEL_OK")
</pallas_src>

<mosaic_0001>
module attributes {stable_mosaic.version = 11 : i64} {
  func.func @_conv_bn_relu_kernel(%arg0: i32, %arg1: i32, %arg2: memref<1x1x18x18x4xbf16, #tpu.memory_space<vmem>>, %arg3: memref<128x128xbf16, #tpu.memory_space<vmem>>, %arg4: memref<1x128xf32, #tpu.memory_space<vmem>>, %arg5: memref<1x16x16x8xbf16, #tpu.memory_space<vmem>>, %arg6: memref<256x128xbf16, #tpu.memory_space<vmem>>) attributes {dimension_semantics = [#tpu.dimension_semantics<parallel>, #tpu.dimension_semantics<parallel>], iteration_bounds = array<i64: 2, 1>, scalar_prefetch = 0 : i64, scratch_operands = 1 : i64, tpu.core_type = #tpu.core_type<tc>, window_params = [{transform_indices = @transform_0, window_bounds = array<i64: 1, 1, 18, 18, 4>}, {pipeline_mode = #tpu.pipeline_mode<synchronous>, transform_indices = @transform_1, window_bounds = array<i64: 128, 128>}, {pipeline_mode = #tpu.pipeline_mode<synchronous>, transform_indices = @transform_2, window_bounds = array<i64: 1, 128>}, {transform_indices = @transform_3, window_bounds = array<i64: 1, 16, 16, 8>}]} {
    %cst = arith.constant 0.000000e+00 : bf16
    %0 = vector.broadcast %cst : bf16 to vector<256x128xbf16>
    %c0 = arith.constant 0 : index
    %c0_0 = arith.constant 0 : index
    %1 = vector.load %arg6[%c0, %c0_0] : memref<256x128xbf16, #tpu.memory_space<vmem>>, vector<256x128xbf16>
    tpu.vector_store %arg6[%c0, %c0_0], %0 {strides = array<i32>} : memref<256x128xbf16, #tpu.memory_space<vmem>>, vector<256x128xbf16>,
    %c0_1 = arith.constant 0 : index
    %c0_2 = arith.constant 0 : index
    %c0_3 = arith.constant 0 : index
    %c0_4 = arith.constant 0 : index
    %c0_5 = arith.constant 0 : index
    %2 = vector.load %arg2[%c0_1, %c0_2, %c0_3, %c0_4, %c0_5] : memref<1x1x18x18x4xbf16, #tpu.memory_space<vmem>>, vector<1x1x16x16x4xbf16>
    %3 = vector.shape_cast %2 : vector<1x1x16x16x4xbf16> to vector<16x16x4xbf16>
    %4 = vector.shape_cast %3 : vector<16x16x4xbf16> to vector<256x4xbf16>
    %c0_6 = arith.constant 0 : index
    %c0_7 = arith.constant 0 : index
    %5 = vector.load %arg6[%c0_6, %c0_7] : memref<256x128xbf16, #tpu.memory_space<vmem>>, vector<256x4xbf16>
    tpu.vector_store %arg6[%c0_6, %c0_7], %4 {strides = array<i32>} : memref<256x128xbf16, #tpu.memory_space<vmem>>, vector<256x4xbf16>,
    %c0_8 = arith.constant 0 : index
    %c0_9 = arith.constant 0 : index
    %c0_10 = arith.constant 0 : index
    %c1 = arith.constant 1 : index
    %c0_11 = arith.constant 0 : index
    %6 = vector.load %arg2[%c0_8, %c0_9, %c0_10, %c1, %c0_11] : memref<1x1x18x18x4xbf16, #tpu.memory_space<vmem>>, vector<1x1x16x16x4xbf16>
    %7 = vector.shape_cast %6 : vector<1x1x16x16x4xbf16> to vector<16x16x4xbf16>
    %8 = vector.shape_cast %7 : vector<16x16x4xbf16> to vector<256x4xbf16>
    %c0_12 = arith.constant 0 : index
    %c4 = arith.constant 4 : index
    %9 = vector.load %arg6[%c0_12, %c4] : memref<256x128xbf16, #tpu.memory_space<vmem>>, vector<256x4xbf16>
    tpu.vector_store %arg6[%c0_12, %c4], %8 {strides = array<i32>} : memref<256x128xbf16, #tpu.memory_space<vmem>>, vector<256x4xbf16>,
    %c0_13 = arith.constant 0 : index
    %c0_14 = arith.constant 0 : index
    %c0_15 = arith.constant 0 : index
    %c2 = arith.constant 2 : index
    %c0_16 = arith.constant 0 : index
    %10 = vector.load %arg2[%c0_13, %c0_14, %c0_15, %c2, %c0_16] : memref<1x1x18x18x4xbf16, #tpu.memory_space<vmem>>, vector<1x1x16x16x4xbf16>
    %11 = vector.shape_cast %10 : vector<1x1x16x16x4xbf16> to vector<16x16x4xbf16>
    %12 = vector.shape_cast %11 : vector<16x16x4xbf16> to vector<256x4xbf16>
    %c0_17 = arith.constant 0 : index
    %c8 = arith.constant 8 : index
    %13 = vector.load %arg6[%c0_17, %c8] : memref<256x128xbf16, #tpu.memory_space<vmem>>, vector<256x4xbf16>
    tpu.vector_store %arg6[%c0_17, %c8], %12 {strides = array<i32>} : memref<256x128xbf16, #tpu.memory_space<vmem>>, vector<256x4xbf16>,
    %c0_18 = arith.constant 0 : index
    %c0_19 = arith.constant 0 : index
    %c1_20 = arith.constant 1 : index
    %c0_21 = arith.constant 0 : index
    %c0_22 = arith.constant 0 : index
    %14 = vector.load %arg2[%c0_18, %c0_19, %c1_20, %c0_21, %c0_22] : memref<1x1x18x18x4xbf16, #tpu.memory_space<vmem>>, vector<1x1x16x16x4xbf16>
    %15 = vector.shape_cast %14 : vector<1x1x16x16x4xbf16> to vector<16x16x4xbf16>
    %16 = vector.shape_cast %15 : vector<16x16x4xbf16> to vector<256x4xbf16>
    %c0_23 = arith.constant 0 : index
    %c12 = arith.constant 12 : index
    %17 = vector.load %arg6[%c0_23, %c12] : memref<256x128xbf16, #tpu.memory_space<vmem>>, vector<256x4xbf16>
    tpu.vector_store %arg6[%c0_23, %c12], %16 {strides = array<i32>} : memref<256x128xbf16, #tpu.memory_space<vmem>>, vector<256x4xbf16>,
    %c0_24 = arith.constant 0 : index
    %c0_25 = arith.constant 0 : index
    %c1_26 = arith.constant 1 : index
    %c1_27 = arith.constant 1 : index
    %c0_28 = arith.constant 0 : index
    %18 = vector.load %arg2[%c0_24, %c0_25, %c1_26, %c1_27, %c0_28] : memref<1x1x18x18x4xbf16, #tpu.memory_space<vmem>>, vector<1x1x16x16x4xbf16>
    %19 = vector.shape_cast %18 : vector<1x1x16x16x4xbf16> to vector<16x16x4xbf16>
    %20 = vector.shape_cast %19 : vector<16x16x4xbf16> to vector<256x4xbf16>
    %c0_29 = arith.constant 0 : index
    %c16 = arith.constant 16 : index
    %21 = vector.load %arg6[%c0_29, %c16] : memref<256x128xbf16, #tpu.memory_space<vmem>>, vector<256x4xbf16>
    tpu.vector_store %arg6[%c0_29, %c16], %20 {strides = array<i32>} : memref<256x128xbf16, #tpu.memory_space<vmem>>, vector<256x4xbf16>,
    %c0_30 = arith.constant 0 : index
    %c0_31 = arith.constant 0 : index
    %c1_32 = arith.constant 1 : index
    %c2_33 = arith.constant 2 : index
    %c0_34 = arith.constant 0 : index
    %22 = vector.load %arg2[%c0_30, %c0_31, %c1_32, %c2_33, %c0_34] : memref<1x1x18x18x4xbf16, #tpu.memory_space<vmem>>, vector<1x1x16x16x4xbf16>
    %23 = vector.shape_cast %22 : vector<1x1x16x16x4xbf16> to vector<16x16x4xbf16>
    %24 = vector.shape_cast %23 : vector<16x16x4xbf16> to vector<256x4xbf16>
    %c0_35 = arith.constant 0 : index
    %c20 = arith.constant 20 : index
    %25 = vector.load %arg6[%c0_35, %c20] : memref<256x128xbf16, #tpu.memory_space<vmem>>, vector<256x4xbf16>
    tpu.vector_store %arg6[%c0_35, %c20], %24 {strides = array<i32>} : memref<256x128xbf16, #tpu.memory_space<vmem>>, vector<256x4xbf16>,
    %c0_36 = arith.constant 0 : index
    %c0_37 = arith.constant 0 : index
    %c2_38 = arith.constant 2 : index
    %c0_39 = arith.constant 0 : index
    %c0_40 = arith.constant 0 : index
    %26 = vector.load %arg2[%c0_36, %c0_37, %c2_38, %c0_39, %c0_40] : memref<1x1x18x18x4xbf16, #tpu.memory_space<vmem>>, vector<1x1x16x16x4xbf16>
    %27 = vector.shape_cast %26 : vector<1x1x16x16x4xbf16> to vector<16x16x4xbf16>
    %28 = vector.shape_cast %27 : vector<16x16x4xbf16> to vector<256x4xbf16>
    %c0_41 = arith.constant 0 : index
    %c24 = arith.constant 24 : index
    %29 = vector.load %arg6[%c0_41, %c24] : memref<256x128xbf16, #tpu.memory_space<vmem>>, vector<256x4xbf16>
    tpu.vector_store %arg6[%c0_41, %c24], %28 {strides = array<i32>} : memref<256x128xbf16, #tpu.memory_space<vmem>>, vector<256x4xbf16>,
    %c0_42 = arith.constant 0 : index
    %c0_43 = arith.constant 0 : index
    %c2_44 = arith.constant 2 : index
    %c1_45 = arith.constant 1 : index
    %c0_46 = arith.constant 0 : index
    %30 = vector.load %arg2[%c0_42, %c0_43, %c2_44, %c1_45, %c0_46] : memref<1x1x18x18x4xbf16, #tpu.memory_space<vmem>>, vector<1x1x16x16x4xbf16>
    %31 = vector.shape_cast %30 : vector<1x1x16x16x4xbf16> to vector<16x16x4xbf16>
    %32 = vector.shape_cast %31 : vector<16x16x4xbf16> to vector<256x4xbf16>
    %c0_47 = arith.constant 0 : index
    %c28 = arith.constant 28 : index
    %33 = vector.load %arg6[%c0_47, %c28] : memref<256x128xbf16, #tpu.memory_space<vmem>>, vector<256x4xbf16>
    tpu.vector_store %arg6[%c0_47, %c28], %32 {strides = array<i32>} : memref<256x128xbf16, #tpu.memory_space<vmem>>, vector<256x4xbf16>,
    %c0_48 = arith.constant 0 : index
    %c0_49 = arith.constant 0 : index
    %c2_50 = arith.constant 2 : index
    %c2_51 = arith.constant 2 : index
    %c0_52 = arith.constant 0 : index
    %34 = vector.load %arg2[%c0_48, %c0_49, %c2_50, %c2_51, %c0_52] : memref<1x1x18x18x4xbf16, #tpu.memory_space<vmem>>, vector<1x1x16x16x4xbf16>
    %35 = vector.shape_cast %34 : vector<1x1x16x16x4xbf16> to vector<16x16x4xbf16>
    %36 = vector.shape_cast %35 : vector<16x16x4xbf16> to vector<256x4xbf16>
    %c0_53 = arith.constant 0 : index
    %c32 = arith.constant 32 : index
    %37 = vector.load %arg6[%c0_53, %c32] : memref<256x128xbf16, #tpu.memory_space<vmem>>, vector<256x4xbf16>
    tpu.vector_store %arg6[%c0_53, %c32], %36 {strides = array<i32>} : memref<256x128xbf16, #tpu.memory_space<vmem>>, vector<256x4xbf16>,
    %c0_54 = arith.constant 0 : index
    %c0_55 = arith.constant 0 : index
    %38 = vector.load %arg6[%c0_54, %c0_55] : memref<256x128xbf16, #tpu.memory_space<vmem>>, vector<256x128xbf16>
    %c0_56 = arith.constant 0 : index
    %c0_57 = arith.constant 0 : index
    %39 = vector.load %arg3[%c0_56, %c0_57] : memref<128x128xbf16, #tpu.memory_space<vmem>>, vector<128x128xbf16>
    %cst_58 = arith.constant dense<0.000000e+00> : vector<256x128xf32>
    %40 = tpu.matmul %38, %39, %cst_58 {dimension_numbers = #tpu.dot_dimension_numbers<[1], [0], [0], [1], [0, 0, 1, 1], [], []>} : vector<256x128xbf16>, vector<128x128xbf16>, vector<256x128xf32> -> vector<256x128xf32>
    %c0_59 = arith.constant 0 : index
    %c0_60 = arith.constant 0 : index
    %41 = vector.load %arg4[%c0_59, %c0_60] : memref<1x128xf32, #tpu.memory_space<vmem>>, vector<1x128xf32>
    %42 = vector.broadcast %41 : vector<1x128xf32> to vector<256x128xf32>
    %43 = arith.addf %40, %42 : vector<256x128xf32>
    %cst_61 = arith.constant 0.000000e+00 : f32
    %44 = vector.broadcast %cst_61 : f32 to vector<256x128xf32>
    %45 = arith.maximumf %43, %44 : vector<256x128xf32>
    %46 = vector.extract_strided_slice %45 {offsets = [0, 0], sizes = [256, 8], strides = [1, 1]} : vector<256x128xf32> to vector<256x8xf32>
    %47 = vector.shape_cast %46 : vector<256x8xf32> to vector<16x16x8xf32>
    %48 = arith.truncf %47 : vector<16x16x8xf32> to vector<16x16x8xbf16>
    %c0_62 = arith.constant 0 : index
    %c0_63 = arith.constant 0 : index
    %c0_64 = arith.constant 0 : index
    %c0_65 = arith.constant 0 : index
    %49 = vector.load %arg5[%c0_62, %c0_63, %c0_64, %c0_65] : memref<1x16x16x8xbf16, #tpu.memory_space<vmem>>, vector<1x16x16x8xbf16>
    %50 = vector.shape_cast %49 : vector<1x16x16x8xbf16> to vector<16x16x8xbf16>
    %51 = vector.shape_cast %48 : vector<16x16x8xbf16> to vector<1x16x16x8xbf16>
    tpu.vector_store %arg5[%c0_62, %c0_63, %c0_64, %c0_65], %51 {strides = array<i32>} : memref<1x16x16x8xbf16, #tpu.memory_space<vmem>>, vector<1x16x16x8xbf16>,
    return
  }
  func.func @transform_0(%arg0: i32, %arg1: i32) -> (i32, i32, i32, i32, i32) {
    %c0_i32 = arith.constant 0 : i32
    %c0_i32_0 = arith.constant 0 : i32
    %c0_i32_1 = arith.constant 0 : i32
    %c0_i32_2 = arith.constant 0 : i32
    return %arg0, %arg1, %c0_i32, %c0_i32_0, %c0_i32_1 : i32, i32, i32, i32, i32
  }
  func.func @transform_1(%arg0: i32, %arg1: i32) -> (i32, i32) {
    %c0_i32 = arith.constant 0 : i32
    %c0_i32_0 = arith.constant 0 : i32
    %c0_i32_1 = arith.constant 0 : i32
    return %c0_i32, %c0_i32_0 : i32, i32
  }
  func.func @transform_2(%arg0: i32, %arg1: i32) -> (i32, i32) {
    %c0_i32 = arith.constant 0 : i32
    %c0_i32_0 = arith.constant 0 : i32
    %c0_i32_1 = arith.constant 0 : i32
    return %c0_i32, %c0_i32_0 : i32, i32
  }
  func.func @transform_3(%arg0: i32, %arg1: i32) -> (i32, i32, i32, i32) {
    %c0_i32 = arith.constant 0 : i32
    %c0_i32_0 = arith.constant 0 : i32
    %c0_i32_1 = arith.constant 0 : i32
    return %arg0, %arg1, %c0_i32, %c0_i32_0 : i32, i32, i32, i32
  }
}

module attributes {stable_mosaic.version = 11 : i64} {
  func.func @_conv_bn_relu_kernel(%arg0: i32, %arg1: i32, %arg2: memref<1x1x18x18x4xbf16, #tpu.memory_space<vmem>>, %arg3: memref<128x128xbf16, #tpu.memory_space<vmem>>, %arg4: memref<1x128xf32, #tpu.memory_space<vmem>>, %arg5: memref<1x16x16x8xbf16, #tpu.memory_space<vmem>>, %arg6: memref<256x128xbf16, #tpu.memory_space<vmem>>) attributes {dimension_semantics = [#tpu.dimension_semantics<parallel>, #tpu.dimension_semantics<parallel>], iteration_bounds = array<i64: 2, 1>, scalar_prefetch = 0 : i64, scratch_operands = 1 : i64, tpu.core_type = #tpu.core_type<tc>, window_params = [{transform_indices = @transform_0, window_bounds = array<i64: 1, 1, 18, 18, 4>}, {pipeline_mode = #tpu.pipeline_mode<synchronous>, transform_indices = @transform_1, window_bounds = array<i64: 128, 128>}, {pipeline_mode = #tpu.pipeline_mode<synchronous>, transform_indices = @transform_2, window_bounds = array<i64: 1, 128>}, {transform_indices = @transform_3, window_bounds = array<i64: 1, 16, 16, 8>}]} {
    %cst = arith.constant 0.000000e+00 : bf16
    %0 = vector.broadcast %cst : bf16 to vector<256x128xbf16>
    %c0 = arith.constant 0 : index
    %c0_0 = arith.constant 0 : index
    %1 = vector.load %arg6[%c0, %c0_0] : memref<256x128xbf16, #tpu.memory_space<vmem>>, vector<256x128xbf16>
    tpu.vector_store %arg6[%c0, %c0_0], %0 {strides = array<i32>} : memref<256x128xbf16, #tpu.memory_space<vmem>>, vector<256x128xbf16>,
    %c0_1 = arith.constant 0 : index
    %c0_2 = arith.constant 0 : index
    %c0_3 = arith.constant 0 : index
    %c0_4 = arith.constant 0 : index
    %c0_5 = arith.constant 0 : index
    %2 = vector.load %arg2[%c0_1, %c0_2, %c0_3, %c0_4, %c0_5] : memref<1x1x18x18x4xbf16, #tpu.memory_space<vmem>>, vector<1x1x16x16x4xbf16>
    %3 = vector.shape_cast %2 : vector<1x1x16x16x4xbf16> to vector<16x16x4xbf16>
    %4 = vector.shape_cast %3 : vector<16x16x4xbf16> to vector<256x4xbf16>
    %c0_6 = arith.constant 0 : index
    %c0_7 = arith.constant 0 : index
    %5 = vector.load %arg6[%c0_6, %c0_7] : memref<256x128xbf16, #tpu.memory_space<vmem>>, vector<256x4xbf16>
    tpu.vector_store %arg6[%c0_6, %c0_7], %4 {strides = array<i32>} : memref<256x128xbf16, #tpu.memory_space<vmem>>, vector<256x4xbf16>,
    %c0_8 = arith.constant 0 : index
    %c0_9 = arith.constant 0 : index
    %c0_10 = arith.constant 0 : index
    %c1 = arith.constant 1 : index
    %c0_11 = arith.constant 0 : index
    %6 = vector.load %arg2[%c0_8, %c0_9, %c0_10, %c1, %c0_11] : memref<1x1x18x18x4xbf16, #tpu.memory_space<vmem>>, vector<1x1x16x16x4xbf16>
    %7 = vector.shape_cast %6 : vector<1x1x16x16x4xbf16> to vector<16x16x4xbf16>
    %8 = vector.shape_cast %7 : vector<16x16x4xbf16> to vector<256x4xbf16>
    %c0_12 = arith.constant 0 : index
    %c4 = arith.constant 4 : index
    %9 = vector.load %arg6[%c0_12, %c4] : memref<256x128xbf16, #tpu.memory_space<vmem>>, vector<256x4xbf16>
    tpu.vector_store %arg6[%c0_12, %c4], %8 {strides = array<i32>} : memref<256x128xbf16, #tpu.memory_space<vmem>>, vector<256x4xbf16>,
    %c0_13 = arith.constant 0 : index
    %c0_14 = arith.constant 0 : index
    %c0_15 = arith.constant 0 : index
    %c2 = arith.constant 2 : index
    %c0_16 = arith.constant 0 : index
    %10 = vector.load %arg2[%c0_13, %c0_14, %c0_15, %c2, %c0_16] : memref<1x1x18x18x4xbf16, #tpu.memory_space<vmem>>, vector<1x1x16x16x4xbf16>
    %11 = vector.shape_cast %10 : vector<1x1x16x16x4xbf16> to vector<16x16x4xbf16>
    %12 = vector.shape_cast %11 : vector<16x16x4xbf16> to vector<256x4xbf16>
    %c0_17 = arith.constant 0 : index
    %c8 = arith.constant 8 : index
    %13 = vector.load %arg6[%c0_17, %c8] : memref<256x128xbf16, #tpu.memory_space<vmem>>, vector<256x4xbf16>
    tpu.vector_store %arg6[%c0_17, %c8], %12 {strides = array<i32>} : memref<256x128xbf16, #tpu.memory_space<vmem>>, vector<256x4xbf16>,
    %c0_18 = arith.constant 0 : index
    %c0_19 = arith.constant 0 : index
    %c1_20 = arith.constant 1 : index
    %c0_21 = arith.constant 0 : index
    %c0_22 = arith.constant 0 : index
    %14 = vector.load %arg2[%c0_18, %c0_19, %c1_20, %c0_21, %c0_22] : memref<1x1x18x18x4xbf16, #tpu.memory_space<vmem>>, vector<1x1x16x16x4xbf16>
    %15 = vector.shape_cast %14 : vector<1x1x16x16x4xbf16> to vector<16x16x4xbf16>
    %16 = vector.shape_cast %15 : vector<16x16x4xbf16> to vector<256x4xbf16>
    %c0_23 = arith.constant 0 : index
    %c12 = arith.constant 12 : index
    %17 = vector.load %arg6[%c0_23, %c12] : memref<256x128xbf16, #tpu.memory_space<vmem>>, vector<256x4xbf16>
    tpu.vector_store %arg6[%c0_23, %c12], %16 {strides = array<i32>} : memref<256x128xbf16, #tpu.memory_space<vmem>>, vector<256x4xbf16>,
    %c0_24 = arith.constant 0 : index
    %c0_25 = arith.constant 0 : index
    %c1_26 = arith.constant 1 : index
    %c1_27 = arith.constant 1 : index
    %c0_28 = arith.constant 0 : index
    %18 = vector.load %arg2[%c0_24, %c0_25, %c1_26, %c1_27, %c0_28] : memref<1x1x18x18x4xbf16, #tpu.memory_space<vmem>>, vector<1x1x16x16x4xbf16>
    %19 = vector.shape_cast %18 : vector<1x1x16x16x4xbf16> to vector<16x16x4xbf16>
    %20 = vector.shape_cast %19 : vector<16x16x4xbf16> to vector<256x4xbf16>
    %c0_29 = arith.constant 0 : index
    %c16 = arith.constant 16 : index
    %21 = vector.load %arg6[%c0_29, %c16] : memref<256x128xbf16, #tpu.memory_space<vmem>>, vector<256x4xbf16>
    tpu.vector_store %arg6[%c0_29, %c16], %20 {strides = array<i32>} : memref<256x128xbf16, #tpu.memory_space<vmem>>, vector<256x4xbf16>,
    %c0_30 = arith.constant 0 : index
    %c0_31 = arith.constant 0 : index
    %c1_32 = arith.constant 1 : index
    %c2_33 = arith.constant 2 : index
    %c0_34 = arith.constant 0 : index
    %22 = vector.load %arg2[%c0_30, %c0_31, %c1_32, %c2_33, %c0_34] : memref<1x1x18x18x4xbf16, #tpu.memory_space<vmem>>, vector<1x1x16x16x4xbf16>
    %23 = vector.shape_cast %22 : vector<1x1x16x16x4xbf16> to vector<16x16x4xbf16>
    %24 = vector.shape_cast %23 : vector<16x16x4xbf16> to vector<256x4xbf16>
    %c0_35 = arith.constant 0 : index
    %c20 = arith.constant 20 : index
    %25 = vector.load %arg6[%c0_35, %c20] : memref<256x128xbf16, #tpu.memory_space<vmem>>, vector<256x4xbf16>
    tpu.vector_store %arg6[%c0_35, %c20], %24 {strides = array<i32>} : memref<256x128xbf16, #tpu.memory_space<vmem>>, vector<256x4xbf16>,
    %c0_36 = arith.constant 0 : index
    %c0_37 = arith.constant 0 : index
    %c2_38 = arith.constant 2 : index
    %c0_39 = arith.constant 0 : index
    %c0_40 = arith.constant 0 : index
    %26 = vector.load %arg2[%c0_36, %c0_37, %c2_38, %c0_39, %c0_40] : memref<1x1x18x18x4xbf16, #tpu.memory_space<vmem>>, vector<1x1x16x16x4xbf16>
    %27 = vector.shape_cast %26 : vector<1x1x16x16x4xbf16> to vector<16x16x4xbf16>
    %28 = vector.shape_cast %27 : vector<16x16x4xbf16> to vector<256x4xbf16>
    %c0_41 = arith.constant 0 : index
    %c24 = arith.constant 24 : index
    %29 = vector.load %arg6[%c0_41, %c24] : memref<256x128xbf16, #tpu.memory_space<vmem>>, vector<256x4xbf16>
    tpu.vector_store %arg6[%c0_41, %c24], %28 {strides = array<i32>} : memref<256x128xbf16, #tpu.memory_space<vmem>>, vector<256x4xbf16>,
    %c0_42 = arith.constant 0 : index
    %c0_43 = arith.constant 0 : index
    %c2_44 = arith.constant 2 : index
    %c1_45 = arith.constant 1 : index
    %c0_46 = arith.constant 0 : index
    %30 = vector.load %arg2[%c0_42, %c0_43, %c2_44, %c1_45, %c0_46] : memref<1x1x18x18x4xbf16, #tpu.memory_space<vmem>>, vector<1x1x16x16x4xbf16>
    %31 = vector.shape_cast %30 : vector<1x1x16x16x4xbf16> to vector<16x16x4xbf16>
    %32 = vector.shape_cast %31 : vector<16x16x4xbf16> to vector<256x4xbf16>
    %c0_47 = arith.constant 0 : index
    %c28 = arith.constant 28 : index
    %33 = vector.load %arg6[%c0_47, %c28] : memref<256x128xbf16, #tpu.memory_space<vmem>>, vector<256x4xbf16>
    tpu.vector_store %arg6[%c0_47, %c28], %32 {strides = array<i32>} : memref<256x128xbf16, #tpu.memory_space<vmem>>, vector<256x4xbf16>,
    %c0_48 = arith.constant 0 : index
    %c0_49 = arith.constant 0 : index
    %c2_50 = arith.constant 2 : index
    %c2_51 = arith.constant 2 : index
    %c0_52 = arith.constant 0 : index
    %34 = vector.load %arg2[%c0_48, %c0_49, %c2_50, %c2_51, %c0_52] : memref<1x1x18x18x4xbf16, #tpu.memory_space<vmem>>, vector<1x1x16x16x4xbf16>
    %35 = vector.shape_cast %34 : vector<1x1x16x16x4xbf16> to vector<16x16x4xbf16>
    %36 = vector.shape_cast %35 : vector<16x16x4xbf16> to vector<256x4xbf16>
    %c0_53 = arith.constant 0 : index
    %c32 = arith.constant 32 : index
    %37 = vector.load %arg6[%c0_53, %c32] : memref<256x128xbf16, #tpu.memory_space<vmem>>, vector<256x4xbf16>
    tpu.vector_store %arg6[%c0_53, %c32], %36 {strides = array<i32>} : memref<256x128xbf16, #tpu.memory_space<vmem>>, vector<256x4xbf16>,
    %c0_54 = arith.constant 0 : index
    %c0_55 = arith.constant 0 : index
    %38 = vector.load %arg6[%c0_54, %c0_55] : memref<256x128xbf16, #tpu.memory_space<vmem>>, vector<256x128xbf16>
    %c0_56 = arith.constant 0 : index
    %c0_57 = arith.constant 0 : index
    %39 = vector.load %arg3[%c0_56, %c0_57] : memref<128x128xbf16, #tpu.memory_space<vmem>>, vector<128x128xbf16>
    %cst_58 = arith.constant dense<0.000000e+00> : vector<256x128xf32>
    %40 = tpu.matmul %38, %39, %cst_58 {dimension_numbers = #tpu.dot_dimension_numbers<[1], [0], [0], [1], [0, 0, 1, 1], [], []>} : vector<256x128xbf16>, vector<128x128xbf16>, vector<256x128xf32> -> vector<256x128xf32>
    %c0_59 = arith.constant 0 : index
    %c0_60 = arith.constant 0 : index
    %41 = vector.load %arg4[%c0_59, %c0_60] : memref<1x128xf32, #tpu.memory_space<vmem>>, vector<1x128xf32>
    %42 = vector.broadcast %41 : vector<1x128xf32> to vector<256x128xf32>
    %43 = arith.addf %40, %42 : vector<256x128xf32>
    %cst_61 = arith.constant 0.000000e+00 : f32
    %44 = vector.broadcast %cst_61 : f32 to vector<256x128xf32>
    %45 = arith.maximumf %43, %44 : vector<256x128xf32>
    %46 = vector.extract_strided_slice %45 {offsets = [0, 0], sizes = [256, 8], strides = [1, 1]} : vector<256x128xf32> to vector<256x8xf32>
    %47 = vector.shape_cast %46 : vector<256x8xf32> to vector<16x16x8xf32>
    %48 = arith.truncf %47 : vector<16x16x8xf32> to vector<16x16x8xbf16>
    %c0_62 = arith.constant 0 : index
    %c0_63 = arith.constant 0 : index
    %c0_64 = arith.constant 0 : index
    %c0_65 = arith.constant 0 : index
    %49 = vector.load %arg5[%c0_62, %c0_63, %c0_64, %c0_65] : memref<1x16x16x8xbf16, #tpu.memory_space<vmem>>, vector<1x16x16x8xbf16>
    %50 = vector.shape_cast %49 : vector<1x16x16x8xbf16> to vector<16x16x8xbf16>
    %51 = vector.shape_cast %48 : vector<16x16x8xbf16> to vector<1x16x16x8xbf16>
    tpu.vector_store %arg5[%c0_62, %c0_63, %c0_64, %c0_65], %51 {strides = array<i32>} : memref<1x16x16x8xbf16, #tpu.memory_space<vmem>>, vector<1x16x16x8xbf16>,
    return
  }
  func.func @transform_0(%arg0: i32, %arg1: i32) -> (i32, i32, i32, i32, i32) {
    %c0_i32 = arith.constant 0 : i32
    %c0_i32_0 = arith.constant 0 : i32
    %c0_i32_1 = arith.constant 0 : i32
    %c0_i32_2 = arith.constant 0 : i32
    return %arg0, %arg1, %c0_i32, %c0_i32_0, %c0_i32_1 : i32, i32, i32, i32, i32
  }
  func.func @transform_1(%arg0: i32, %arg1: i32) -> (i32, i32) {
    %c0_i32 = arith.constant 0 : i32
    %c0_i32_0 = arith.constant 0 : i32
    %c0_i32_1 = arith.constant 0 : i32
    return %c0_i32, %c0_i32_0 : i32, i32
  }
  func.func @transform_2(%arg0: i32, %arg1: i32) -> (i32, i32) {
    %c0_i32 = arith.constant 0 : i32
    %c0_i32_0 = arith.constant 0 : i32
    %c0_i32_1 = arith.constant 0 : i32
    return %c0_i32, %c0_i32_0 : i32, i32
  }
  func.func @transform_3(%arg0: i32, %arg1: i32) -> (i32, i32, i32, i32) {
    %c0_i32 = arith.constant 0 : i32
    %c0_i32_0 = arith.constant 0 : i32
    %c0_i32_1 = arith.constant 0 : i32
    return %arg0, %arg1, %c0_i32, %c0_i32_0 : i32, i32, i32, i32
  }
}

</mosaic_0001>

<llo_original>
// kernel: tpu_custom_call.1
$region0: #{tpu_custom_call.1}
  #allocation0 [shape = 'u32[]', space=smem, size = 0x4, offset = 0x4, fixed_abs, tag = 'smem constant byte address 0x4 - core index']
  #allocation1 [shape = 'u32[144,128]{1,0:T(1,128)}', space=vmem, size = 0x12000, scoped, tag = 'internal scratch']
  #allocation2 [shape = 'bf16[256,128]{1,0:T(8,128)(2,1)}', space=vmem, size = 0x10000, scoped, tag = 'scratch operand']
  %s0 = inlined_call_operand.vmem [shape: bf16[2,1,18,18,4], index: 0, kind: input, shape index: {}]
  %s1 = inlined_call_operand.vmem [shape: bf16[128,128], index: 1, kind: input, shape index: {}]
  %s2 = inlined_call_operand.vmem [shape: f32[1,128], index: 2, kind: input, shape index: {}]
  %s3 = inlined_call_operand.vmem [shape: bf16[2,16,16,8], index: 3, kind: output, shape index: {}]
  %s4 = sld [smem:[#allocation0]]
  $region45: #{tpu_custom_call.1} parent=0
    _
  %s6 = ssub.s32 1, %s4
  %s7 = scalar_select 0, %s6, %s4
  loop: start=0, step=1, limit=4
  $region2: #{tpu_custom_call.1} parent=0 // loop_pre_header
    _
  $region3: #{tpu_custom_call.1} parent=0 // loop_header
    %s9 = sphi 0, %s13
    %p10 = scmp.ge.s32.totalorder %s9, 4
    %s16 = sphi 0, %s28
    %s17 = sphi 0, %s24
    %s18 = sphi 0, %s16
    %s19 = sphi 0, %s17
    %s20 = sphi 0, %s18
    %s21 = sphi 0, %s19
    %s33 = sphi 0, %s35
    %s36 = sphi 0, %s33
    %s37 = sphi 0, %s36
    %s53 = sphi 0, %s37
    %s57 = sphi 0, %s57
    %s59 = sphi 0, %s57
    %s60 = sphi 0, %s59
    %s74 = sphi 0, %s60
    %s78 = sphi 0, %s78
    %s80 = sphi 0, %s78
    %s81 = sphi 0, %s80
    %s95 = sphi 0, %s81
    %s103 = sphi 0, %s105
    %s106 = sphi 0, %s103
    %s107 = sphi 0, %s106
    %s123 = sphi 0, %s107
  $region4: #{tpu_custom_call.1} parent=0 // loop_header_branch
    %12 = sbr.rel (%p10) target = $region8
  $region5: #{tpu_custom_call.1} parent=0 // loop_body
    %s14 = ssub.s32 %s9, 1
    %s15 = ssub.s32 %s9, 2
    %s22 = sadd.s32 1, %s17
    %p23 = scmp.ge.s32.totalorder %s22, 1
    %s24 = scalar_select %p23, 0, %s22
    %s25 = sadd.s32 1, %s16
    %s26 = scalar_select %p23, %s25, %s16
    %p27 = scmp.ge.s32.totalorder %s26, 2
    %s28 = scalar_select %p27, 0, %s26
    %s29 = ssub.s32 %s16, %s28
    %s30 = ssub.s32 %s17, %s24
    %s31 = sor.u32 %s29, %s30
    %p32 = scmp.eq.s32.totalorder %s31, 0
    %s34 = sadd.s32 %s33, 1
    %s35 = scalar_select %p32, %s33, %s34
    %p38 = pneg %p32
    %p39 = scmp.eq.s32.totalorder %s9, 1
    %p40 = por %p38, %p39
    %p41 = scmp.ne.s32.totalorder %s33, %s36
    %p42 = scmp.eq.s32.totalorder %s9, 0
    %p43 = por %p41, %p42
    %p44 = scmp.ne.s32.totalorder %s33, %s36
    %p45 = scmp.eq.s32.totalorder %s14, 1
    %p46 = por %p44, %p45
    %p47 = scmp.ne.s32.totalorder %s36, %s37
    %p48 = scmp.eq.s32.totalorder %s14, 0
    %p49 = por %p47, %p48
    %p50 = scmp.ne.s32.totalorder %s36, %s37
    %p51 = scmp.eq.s32.totalorder %s15, 1
    %p52 = por %p50, %p51
    %p54 = scmp.ne.s32.totalorder %s37, %s53
    %p55 = scmp.eq.s32.totalorder %s15, 0
    %p56 = por %p54, %p55
    %s58 = sadd.s32 %s57, 1
    %p61 = scmp.eq.s32.totalorder %s9, 1
    %p62 = scmp.ne.s32.totalorder %s57, %s59
    %p63 = scmp.eq.s32.totalorder %s9, 0
    %p64 = por %p62, %p63
    %p65 = scmp.ne.s32.totalorder %s57, %s59
    %p66 = scmp.eq.s32.totalorder %s14, 1
    %p67 = por %p65, %p66
    %p68 = scmp.ne.s32.totalorder %s59, %s60
    %p69 = scmp.eq.s32.totalorder %s14, 0
    %p70 = por %p68, %p69
    %p71 = scmp.ne.s32.totalorder %s59, %s60
    %p72 = scmp.eq.s32.totalorder %s15, 1
    %p73 = por %p71, %p72
    %p75 = scmp.ne.s32.totalorder %s60, %s74
    %p76 = scmp.eq.s32.totalorder %s15, 0
    %p77 = por %p75, %p76
    %s79 = sadd.s32 %s78, 1
    %p82 = scmp.eq.s32.totalorder %s9, 1
    %p83 = scmp.ne.s32.totalorder %s78, %s80
    %p84 = scmp.eq.s32.totalorder %s9, 0
    %p85 = por %p83, %p84
    %p86 = scmp.ne.s32.totalorder %s78, %s80
    %p87 = scmp.eq.s32.totalorder %s14, 1
    %p88 = por %p86, %p87
    %p89 = scmp.ne.s32.totalorder %s80, %s81
    %p90 = scmp.eq.s32.totalorder %s14, 0
    %p91 = por %p89, %p90
    %p92 = scmp.ne.s32.totalorder %s80, %s81
    %p93 = scmp.eq.s32.totalorder %s15, 1
    %p94 = por %p92, %p93
    %p96 = scmp.ne.s32.totalorder %s81, %s95
    %p97 = scmp.eq.s32.totalorder %s15, 0
    %p98 = por %p96, %p97
    %s99 = ssub.s32 %s16, %s28
    %s100 = ssub.s32 %s17, %s24
    %s101 = sor.u32 %s99, %s100
    %p102 = scmp.eq.s32.totalorder %s101, 0
    %s104 = sadd.s32 %s103, 1
    %s105 = scalar_select %p102, %s103, %s104
    %p108 = pneg %p102
    %p109 = scmp.eq.s32.totalorder %s9, 1
    %p110 = por %p108, %p109
    %p111 = scmp.ne.s32.totalorder %s103, %s106
    %p112 = scmp.eq.s32.totalorder %s9, 0
    %p113 = por %p111, %p112
    %p114 = scmp.ne.s32.totalorder %s103, %s106
    %p115 = scmp.eq.s32.totalorder %s14, 1
    %p116 = por %p114, %p115
    %p117 = scmp.ne.s32.totalorder %s106, %s107
    %p118 = scmp.eq.s32.totalorder %s14, 0
    %p119 = por %p117, %p118
    %p120 = scmp.ne.s32.totalorder %s106, %s107
    %p121 = scmp.eq.s32.totalorder %s15, 1
    %p122 = por %p120, %p121
    %p124 = scmp.ne.s32.totalorder %s107, %s123
    %p125 = scmp.eq.s32.totalorder %s15, 0
    %p126 = por %p124, %p125
    %p127 = scmp.le.s32.totalorder 1, %s9
    %p128 = scmp.lt.s32.totalorder %s9, 3
    %p129 = pnand %p127, %p128
    %p130 = pneg %p129
    // Predicated region
    $region9: #{tpu_custom_call.1} parent=5 // pred_check
      _
    $region10: #{tpu_custom_call.1} parent=5 // pred_check_branch
      %132 = sbr.rel (%p129) target = $region12
    $region11: #{tpu_custom_call.1} parent=5 // pred_region
      %s133 = ssub.s32 %s9, 1
      // Predicated region
      $region13: #{tpu_custom_call.1} parent=11 // pred_check
        %p134 = pneg %p70
      $region14: #{tpu_custom_call.1} parent=11 // pred_check_branch
        %136 = sbr.rel (%p134) target = $region16
      $region15: #{tpu_custom_call.1} parent=11 // pred_region
        _
      $region16: #{tpu_custom_call.1} parent=11 // pred_fallthru
        _
      // Predicated region
      $region17: #{tpu_custom_call.1} parent=11 // pred_check
        %p137 = pneg %p91
      $region18: #{tpu_custom_call.1} parent=11 // pred_check_branch
        %139 = sbr.rel (%p137) target = $region20
      $region19: #{tpu_custom_call.1} parent=11 // pred_region
        _
      $region20: #{tpu_custom_call.1} parent=11 // pred_fallthru
        _
    $region12: #{tpu_custom_call.1} parent=5 // pred_fallthru
      _
    %p140 = scmp.lt.s32.totalorder %s9, 2
    // Predicated region
    $region21: #{tpu_custom_call.1} parent=5 // pred_check
      %p141 = pneg %p140
    $region22: #{tpu_custom_call.1} parent=5 // pred_check_branch
      %143 = sbr.rel (%p141) target = $region24
    $region23: #{tpu_custom_call.1} parent=5 // pred_region
      // Predicated region
      $region25: #{tpu_custom_call.1} parent=23 // pred_check
        %p144 = pneg %p43
      $region26: #{tpu_custom_call.1} parent=23 // pred_check_branch
        %146 = sbr.rel (%p144) target = $region28
      $region27: #{tpu_custom_call.1} parent=23 // pred_region
        %p147 = scmp.lt.s32.totalorder %s16, 1
        %s148 = scalar_select %p147, %s16, 1
        %p149 = scmp.lt.s32.totalorder %s17, 0
        %s150 = scalar_select %p149, %s17, 0
        %s151 = smul.addr %s150, 54
        %s152 = smul.addr %s148, 54
        %s153 = sadd.s32 %s151, %s152
        %s154 = smul.addr %s153, 4
        %s155 = scalar_lea.vmem %s0, %s154
      $region28: #{tpu_custom_call.1} parent=23 // pred_fallthru
        _
    $region24: #{tpu_custom_call.1} parent=5 // pred_fallthru
      _
    %p156 = scmp.le.s32.totalorder 1, %s9
    %p157 = scmp.lt.s32.totalorder %s9, 3
    %p158 = pnand %p156, %p157
    %p159 = pneg %p158
    // Predicated region
    $region29: #{tpu_custom_call.1} parent=5 // pred_check
      _
    $region30: #{tpu_custom_call.1} parent=5 // pred_check_branch
      %161 = sbr.rel (%p158) target = $region32
    $region31: #{tpu_custom_call.1} parent=5 // pred_region
      %s162 = ssub.s32 %s9, 1
      %p163 = scmp.lt.s32.totalorder %s18, 1
      %s164 = scalar_select %p163, %s18, 1
      %p165 = scmp.lt.s32.totalorder %s19, 0
      %s166 = scalar_select %p165, %s19, 0
      %s167 = smul.addr %s166, 54
      %s168 = smul.addr %s164, 54
      %s169 = sadd.s32 %s167, %s168
      %s170 = smul.addr %s169, 4
      %s171 = scalar_lea.vmem %s0, %s170
      %p172 = pneg %p49
      %p173 = pneg %p46
      %p174 = pneg %p70
      %p175 = pneg %p67
      %p176 = pneg %p91
      %p177 = pneg %p88
      %p178 = pneg %p119
      %p179 = pneg %p116
      %s180 = smul.u32 16, %s19
      %p181 = scmp.lt.s32.totalorder %s18, 1
      %s182 = scalar_select %p181, %s18, 1
      %p183 = scmp.lt.s32.totalorder %s180, 15
      %s184 = scalar_select %p183, %s180, 15
      %s185 = smul.addr %s184, 2
      %s186 = smul.addr %s182, 32
      %s187 = sadd.s32 %s185, %s186
      %s188 = smul.addr %s187, 4
      %s189 = scalar_lea.vmem %s3, %s188
      %p190 = scmp.lt.s32.totalorder %s18, 1
      %s191 = scalar_select %p190, %s18, 1
      %p192 = scmp.lt.s32.totalorder %s19, 0
      %s193 = scalar_select %p192, %s19, 0
      %s194 = smul.addr %s193, 54
      %s195 = smul.addr %s191, 54
      %s196 = sadd.s32 %s194, %s195
      %s197 = smul.addr %s196, 4
      %s198 = scalar_lea.vmem %s0, %s197
      %s199 = smul.u32 16, %s19
      %p200 = scmp.lt.s32.totalorder %s18, 1
      %s201 = scalar_select %p200, %s18, 1
      %p202 = scmp.lt.s32.totalorder %s199, 15
      %s203 = scalar_select %p202, %s199, 15
      %s204 = smul.addr %s203, 2
      %s205 = smul.addr %s201, 32
      %s206 = sadd.s32 %s204, %s205
      %s207 = smul.addr %s206, 4
      %s208 = scalar_lea.vmem %s3, %s207
      %s209 = smul.u32 16, %s19
      %211 = vst [vmem:[#allocation2] sm:$0xf] 0
      %212 = vst [vmem:[#allocation2 + $0x4] sm:$0xf] 0
      %213 = vst [vmem:[#allocation2 + $0x8] sm:$0xf] 0
      %214 = vst [vmem:[#allocation2 + $0xc] sm:$0xf] 0
      %215 = vst [vmem:[#allocation2 + $0x10] sm:$0xf] 0
      %216 = vst [vmem:[#allocation2 + $0x14] sm:$0xf] 0
      %217 = vst [vmem:[#allocation2 + $0x18] sm:$0xf] 0
      %218 = vst [vmem:[#allocation2 + $0x1c] sm:$0xf] 0
      %219 = vst [vmem:[#allocation2 + $0x20] sm:$0xf] 0
      %220 = vst [vmem:[#allocation2 + $0x24] sm:$0xf] 0
      %221 = vst [vmem:[#allocation2 + $0x28] sm:$0xf] 0
      %222 = vst [vmem:[#allocation2 + $0x2c] sm:$0xf] 0
      %223 = vst [vmem:[#allocation2 + $0x30] sm:$0xf] 0
      %224 = vst [vmem:[#allocation2 + $0x34] sm:$0xf] 0
      %225 = vst [vmem:[#allocation2 + $0x38] sm:$0xf] 0
      %226 = vst [vmem:[#allocation2 + $0x3c] sm:$0xf] 0
      %227 = vst [vmem:[#allocation2 + $0x40] sm:$0xf] 0
      %228 = vst [vmem:[#allocation2 + $0x44] sm:$0xf] 0
      %229 = vst [vmem:[#allocation2 + $0x48] sm:$0xf] 0
      %230 = vst [vmem:[#allocation2 + $0x4c] sm:$0xf] 0
      %231 = vst [vmem:[#allocation2 + $0x50] sm:$0xf] 0
      %232 = vst [vmem:[#allocation2 + $0x54] sm:$0xf] 0
      %233 = vst [vmem:[#allocation2 + $0x58] sm:$0xf] 0
      %234 = vst [vmem:[#allocation2 + $0x5c] sm:$0xf] 0
      %235 = vst [vmem:[#allocation2 + $0x60] sm:$0xf] 0
      %236 = vst [vmem:[#allocation2 + $0x64] sm:$0xf] 0
      %237 = vst [vmem:[#allocation2 + $0x68] sm:$0xf] 0
      %238 = vst [vmem:[#allocation2 + $0x6c] sm:$0xf] 0
      %239 = vst [vmem:[#allocation2 + $0x70] sm:$0xf] 0
      %240 = vst [vmem:[#allocation2 + $0x74] sm:$0xf] 0
      %241 = vst [vmem:[#allocation2 + $0x78] sm:$0xf] 0
      %242 = vst [vmem:[#allocation2 + $0x7c] sm:$0xf] 0
      %v243 = vld [vmem:[%s198] sm:$0xf]
      %v244 = vld [vmem:[%s198 + $0x4] sm:$0xf]
      %v245 = vld [vmem:[%s198 + $0xc] sm:$0xf]
      %v246 = vld [vmem:[%s198 + $0x10] sm:$0xf]
      %v247 = vld [vmem:[%s198 + $0x18] sm:$0xf]
      %v248 = vld [vmem:[%s198 + $0x1c] sm:$0xf]
      %v249 = vld [vmem:[%s198 + $0x24] sm:$0xf]
      %v250 = vld [vmem:[%s198 + $0x28] sm:$0xf]
      %v251 = vld [vmem:[%s198 + $0x30] sm:$0xf]
      %v252 = vld [vmem:[%s198 + $0x34] sm:$0xf]
      %v253 = vld [vmem:[%s198 + $0x3c] sm:$0xf]
      %v254 = vld [vmem:[%s198 + $0x40] sm:$0xf]
      %v255 = vld [vmem:[%s198 + $0x48] sm:$0xf]
      %v256 = vld [vmem:[%s198 + $0x4c] sm:$0xf]
      %v257 = vld [vmem:[%s198 + $0x54] sm:$0xf]
      %v258 = vld [vmem:[%s198 + $0x58] sm:$0xf]
      %v259 = vld [vmem:[%s198 + $0x60] sm:$0xf]
      %v260 = vld [vmem:[%s198 + $0x64] sm:$0xf]
      %v261 = vld [vmem:[%s198 + $0x6c] sm:$0xf]
      %v262 = vld [vmem:[%s198 + $0x70] sm:$0xf]
      %v263 = vld [vmem:[%s198 + $0x78] sm:$0xf]
      %v264 = vld [vmem:[%s198 + $0x7c] sm:$0xf]
      %v265 = vld [vmem:[%s198 + $0x84] sm:$0xf]
      %v266 = vld [vmem:[%s198 + $0x88] sm:$0xf]
      %v267 = vld [vmem:[%s198 + $0x90] sm:$0xf]
      %v268 = vld [vmem:[%s198 + $0x94] sm:$0xf]
      %v269 = vld [vmem:[%s198 + $0x9c] sm:$0xf]
      %v270 = vld [vmem:[%s198 + $0xa0] sm:$0xf]
      %v271 = vld [vmem:[%s198 + $0xa8] sm:$0xf]
      %v272 = vld [vmem:[%s198 + $0xac] sm:$0xf]
      %v273 = vld [vmem:[%s198 + $0xb4] sm:$0xf]
      %v274 = vld [vmem:[%s198 + $0xb8] sm:$0xf]
      %vm275 = vcmask 27648
      %276 = vst.msk [vmem:[#allocation2] sm:$0xf] %vm275, %v243
      %277 = vst.msk [vmem:[#allocation2 + $0x4] sm:$0xf] %vm275, %v244
      %278 = vst.msk [vmem:[#allocation2 + $0x8] sm:$0xf] %vm275, %v245
      %279 = vst.msk [vmem:[#allocation2 + $0xc] sm:$0xf] %vm275, %v246
      %280 = vst.msk [vmem:[#allocation2 + $0x10] sm:$0xf] %vm275, %v247
      %281 = vst.msk [vmem:[#allocation2 + $0x14] sm:$0xf] %vm275, %v248
      %282 = vst.msk [vmem:[#allocation2 + $0x18] sm:$0xf] %vm275, %v249
      %283 = vst.msk [vmem:[#allocation2 + $0x1c] sm:$0xf] %vm275, %v250
      %284 = vst.msk [vmem:[#allocation2 + $0x20] sm:$0xf] %vm275, %v251
      %285 = vst.msk [vmem:[#allocation2 + $0x24] sm:$0xf] %vm275, %v252
      %286 = vst.msk [vmem:[#allocation2 + $0x28] sm:$0xf] %vm275, %v253
      %287 = vst.msk [vmem:[#allocation2 + $0x2c] sm:$0xf] %vm275, %v254
      %288 = vst.msk [vmem:[#allocation2 + $0x30] sm:$0xf] %vm275, %v255
      %289 = vst.msk [vmem:[#allocation2 + $0x34] sm:$0xf] %vm275, %v256
      %290 = vst.msk [vmem:[#allocation2 + $0x38] sm:$0xf] %vm275, %v257
      %291 = vst.msk [vmem:[#allocation2 + $0x3c] sm:$0xf] %vm275, %v258
      %292 = vst.msk [vmem:[#allocation2 + $0x40] sm:$0xf] %vm275, %v259
      %293 = vst.msk [vmem:[#allocation2 + $0x44] sm:$0xf] %vm275, %v260
      %294 = vst.msk [vmem:[#allocation2 + $0x48] sm:$0xf] %vm275, %v261
      %295 = vst.msk [vmem:[#allocation2 + $0x4c] sm:$0xf] %vm275, %v262
      %296 = vst.msk [vmem:[#allocation2 + $0x50] sm:$0xf] %vm275, %v263
      %297 = vst.msk [vmem:[#allocation2 + $0x54] sm:$0xf] %vm275, %v264
      %298 = vst.msk [vmem:[#allocation2 + $0x58] sm:$0xf] %vm275, %v265
      %299 = vst.msk [vmem:[#allocation2 + $0x5c] sm:$0xf] %vm275, %v266
      %300 = vst.msk [vmem:[#allocation2 + $0x60] sm:$0xf] %vm275, %v267
      %301 = vst.msk [vmem:[#allocation2 + $0x64] sm:$0xf] %vm275, %v268
      %302 = vst.msk [vmem:[#allocation2 + $0x68] sm:$0xf] %vm275, %v269
      %303 = vst.msk [vmem:[#allocation2 + $0x6c] sm:$0xf] %vm275, %v270
      %304 = vst.msk [vmem:[#allocation2 + $0x70] sm:$0xf] %vm275, %v271
      %305 = vst.msk [vmem:[#allocation2 + $0x74] sm:$0xf] %vm275, %v272
      %306 = vst.msk [vmem:[#allocation2 + $0x78] sm:$0xf] %vm275, %v273
      %307 = vst.msk [vmem:[#allocation2 + $0x7c] sm:$0xf] %vm275, %v274
      %v308 = vld [vmem:[%s198] sm:$0xf]
      %v309 = vld [vmem:[%s198 + $0x4] sm:$0xf]
      %v310 = vld [vmem:[%s198 + $0x8] sm:$0x1]
      %v311 = vld [vmem:[%s198 + $0xc] sm:$0xf]
      %v312 = vld [vmem:[%s198 + $0x10] sm:$0xf]
      %v313 = vld [vmem:[%s198 + $0x14] sm:$0x1]
      %v314 = vld [vmem:[%s198 + $0x18] sm:$0xf]
      %v315 = vld [vmem:[%s198 + $0x1c] sm:$0xf]
      %v316 = vld [vmem:[%s198 + $0x20] sm:$0x1]
      %v317 = vld [vmem:[%s198 + $0x24] sm:$0xf]
      %v318 = vld [vmem:[%s198 + $0x28] sm:$0xf]
      %v319 = vld [vmem:[%s198 + $0x2c] sm:$0x1]
      %v320 = vld [vmem:[%s198 + $0x30] sm:$0xf]
      %v321 = vld [vmem:[%s198 + $0x34] sm:$0xf]
      %v322 = vld [vmem:[%s198 + $0x38] sm:$0x1]
      %v323 = vld [vmem:[%s198 + $0x3c] sm:$0xf]
      %v324 = vld [vmem:[%s198 + $0x40] sm:$0xf]
      %v325 = vld [vmem:[%s198 + $0x44] sm:$0x1]
      %v326 = vld [vmem:[%s198 + $0x48] sm:$0xf]
      %v327 = vld [vmem:[%s198 + $0x4c] sm:$0xf]
      %v328 = vld [vmem:[%s198 + $0x50] sm:$0x1]
      %v329 = vld [vmem:[%s198 + $0x54] sm:$0xf]
      %v330 = vld [vmem:[%s198 + $0x58] sm:$0xf]
      %v331 = vld [vmem:[%s198 + $0x5c] sm:$0x1]
      %v332 = vld [vmem:[%s198 + $0x60] sm:$0xf]
      %v333 = vld [vmem:[%s198 + $0x64] sm:$0xf]
      %v334 = vld [vmem:[%s198 + $0x68] sm:$0x1]
      %v335 = vld [vmem:[%s198 + $0x6c] sm:$0xf]
      %v336 = vld [vmem:[%s198 + $0x70] sm:$0xf]
      %v337 = vld [vmem:[%s198 + $0x74] sm:$0x1]
      %v338 = vld [vmem:[%s198 + $0x78] sm:$0xf]
      %v339 = vld [vmem:[%s198 + $0x7c] sm:$0xf]
      %v340 = vld [vmem:[%s198 + $0x80] sm:$0x1]
      %v341 = vld [vmem:[%s198 + $0x84] sm:$0xf]
      %v342 = vld [vmem:[%s198 + $0x88] sm:$0xf]
      %v343 = vld [vmem:[%s198 + $0x8c] sm:$0x1]
      %v344 = vld [vmem:[%s198 + $0x90] sm:$0xf]
      %v345 = vld [vmem:[%s198 + $0x94] sm:$0xf]
      %v346 = vld [vmem:[%s198 + $0x98] sm:$0x1]
      %v347 = vld [vmem:[%s198 + $0x9c] sm:$0xf]
      %v348 = vld [vmem:[%s198 + $0xa0] sm:$0xf]
      %v349 = vld [vmem:[%s198 + $0xa4] sm:$0x1]
      %v350 = vld [vmem:[%s198 + $0xa8] sm:$0xf]
      %v351 = vld [vmem:[%s198 + $0xac] sm:$0xf]
      %v352 = vld [vmem:[%s198 + $0xb0] sm:$0x1]
      %v353 = vld [vmem:[%s198 + $0xb4] sm:$0xf]
      %v354 = vld [vmem:[%s198 + $0xb8] sm:$0xf]
      %v355 = vld [vmem:[%s198 + $0xbc] sm:$0x1]
      %vm356 = vsmask.f32 3328
      %vm357 = vsmask.f32 7440
      %vm358 = vmor %vm356, %vm357
      %v360 = vshrl.u32 %v308, 16
      %v362 = vrot.slane %v360, 4
      %v363 = vshll.u32 %v308, 16
      %v365 = vrot.slane %v363, 5
      %v366 = vor.u32 %v362, %v365
      %v367 = vrot.slane %v366, 4
      %v369 = vshll.u32 %v309, 16
      %v371 = vrot.slane %v369, 5
      %v372 = vsel %vm358, %v367, %v371
      %v373 = vshrl.u32 %v309, 16
      %v375 = vrot.slane %v373, 4
      %v376 = vor.u32 %v375, %v371
      %v377 = vrot.slane %v376, 4
      %v379 = vshll.u32 %v310, 16
      %v381 = vrot.slane %v379, 5
      %v382 = vsel %vm358, %v377, %v381
      %v384 = vshrl.u32 %v311, 16
      %v386 = vrot.slane %v384, 4
      %v387 = vshll.u32 %v311, 16
      %v389 = vrot.slane %v387, 5
      %v390 = vor.u32 %v386, %v389
      %v391 = vrot.slane %v390, 4
      %v393 = vshll.u32 %v312, 16
      %v395 = vrot.slane %v393, 5
      %v396 = vsel %vm358, %v391, %v395
      %v397 = vshrl.u32 %v312, 16
      %v399 = vrot.slane %v397, 4
      %v400 = vor.u32 %v399, %v395
      %v401 = vrot.slane %v400, 4
      %v403 = vshll.u32 %v313, 16
      %v405 = vrot.slane %v403, 5
      %v406 = vsel %vm358, %v401, %v405
      %v408 = vshrl.u32 %v314, 16
      %v410 = vrot.slane %v408, 4
      %v411 = vshll.u32 %v314, 16
      %v413 = vrot.slane %v411, 5
      %v414 = vor.u32 %v410, %v413
      %v415 = vrot.slane %v414, 4
      %v417 = vshll.u32 %v315, 16
      %v419 = vrot.slane %v417, 5
      %v420 = vsel %vm358, %v415, %v419
      %v421 = vshrl.u32 %v315, 16
      %v423 = vrot.slane %v421, 4
      %v424 = vor.u32 %v423, %v419
      %v425 = vrot.slane %v424, 4
      %v427 = vshll.u32 %v316, 16
      %v429 = vrot.slane %v427, 5
      %v430 = vsel %vm358, %v425, %v429
      %v432 = vshrl.u32 %v317, 16
      %v434 = vrot.slane %v432, 4
      %v435 = vshll.u32 %v317, 16
      %v437 = vrot.slane %v435, 5
      %v438 = vor.u32 %v434, %v437
      %v439 = vrot.slane %v438, 4
      %v441 = vshll.u32 %v318, 16
      %v443 = vrot.slane %v441, 5
      %v444 = vsel %vm358, %v439, %v443
      %v445 = vshrl.u32 %v318, 16
      %v447 = vrot.slane %v445, 4
      %v448 = vor.u32 %v447, %v443
      %v449 = vrot.slane %v448, 4
      %v451 = vshll.u32 %v319, 16
      %v453 = vrot.slane %v451, 5
      %v454 = vsel %vm358, %v449, %v453
      %v456 = vshrl.u32 %v320, 16
      %v458 = vrot.slane %v456, 4
      %v459 = vshll.u32 %v320, 16
      %v461 = vrot.slane %v459, 5
      %v462 = vor.u32 %v458, %v461
      %v463 = vrot.slane %v462, 4
      %v465 = vshll.u32 %v321, 16
      %v467 = vrot.slane %v465, 5
      %v468 = vsel %vm358, %v463, %v467
      %v469 = vshrl.u32 %v321, 16
      %v471 = vrot.slane %v469, 4
      %v472 = vor.u32 %v471, %v467
      %v473 = vrot.slane %v472, 4
      %v475 = vshll.u32 %v322, 16
      %v477 = vrot.slane %v475, 5
      %v478 = vsel %vm358, %v473, %v477
      %v480 = vshrl.u32 %v323, 16
      %v482 = vrot.slane %v480, 4
      %v483 = vshll.u32 %v323, 16
      %v485 = vrot.slane %v483, 5
      %v486 = vor.u32 %v482, %v485
      %v487 = vrot.slane %v486, 4
      %v489 = vshll.u32 %v324, 16
      %v491 = vrot.slane %v489, 5
      %v492 = vsel %vm358, %v487, %v491
      %v493 = vshrl.u32 %v324, 16
      %v495 = vrot.slane %v493, 4
      %v496 = vor.u32 %v495, %v491
      %v497 = vrot.slane %v496, 4
      %v499 = vshll.u32 %v325, 16
      %v501 = vrot.slane %v499, 5
      %v502 = vsel %vm358, %v497, %v501
      %v504 = vshrl.u32 %v326, 16
      %v506 = vrot.slane %v504, 4
      %v507 = vshll.u32 %v326, 16
      %v509 = vrot.slane %v507, 5
      %v510 = vor.u32 %v506, %v509
      %v511 = vrot.slane %v510, 4
      %v513 = vshll.u32 %v327, 16
      %v515 = vrot.slane %v513, 5
      %v516 = vsel %vm358, %v511, %v515
      %v517 = vshrl.u32 %v327, 16
      %v519 = vrot.slane %v517, 4
      %v520 = vor.u32 %v519, %v515
      %v521 = vrot.slane %v520, 4
      %v523 = vshll.u32 %v328, 16
      %v525 = vrot.slane %v523, 5
      %v526 = vsel %vm358, %v521, %v525
      %v528 = vshrl.u32 %v329, 16
      %v530 = vrot.slane %v528, 4
      %v531 = vshll.u32 %v329, 16
      %v533 = vrot.slane %v531, 5
      %v534 = vor.u32 %v530, %v533
      %v535 = vrot.slane %v534, 4
      %v537 = vshll.u32 %v330, 16
      %v539 = vrot.slane %v537, 5
      %v540 = vsel %vm358, %v535, %v539
      %v541 = vshrl.u32 %v330, 16
      %v543 = vrot.slane %v541, 4
      %v544 = vor.u32 %v543, %v539
      %v545 = vrot.slane %v544, 4
      %v547 = vshll.u32 %v331, 16
      %v549 = vrot.slane %v547, 5
      %v550 = vsel %vm358, %v545, %v549
      %v552 = vshrl.u32 %v332, 16
      %v554 = vrot.slane %v552, 4
      %v555 = vshll.u32 %v332, 16
      %v557 = vrot.slane %v555, 5
      %v558 = vor.u32 %v554, %v557
      %v559 = vrot.slane %v558, 4
      %v561 = vshll.u32 %v333, 16
      %v563 = vrot.slane %v561, 5
      %v564 = vsel %vm358, %v559, %v563
      %v565 = vshrl.u32 %v333, 16
      %v567 = vrot.slane %v565, 4
      %v568 = vor.u32 %v567, %v563
      %v569 = vrot.slane %v568, 4
      %v571 = vshll.u32 %v334, 16
      %v573 = vrot.slane %v571, 5
      %v574 = vsel %vm358, %v569, %v573
      %v576 = vshrl.u32 %v335, 16
      %v578 = vrot.slane %v576, 4
      %v579 = vshll.u32 %v335, 16
      %v581 = vrot.slane %v579, 5
      %v582 = vor.u32 %v578, %v581
      %v583 = vrot.slane %v582, 4
      %v585 = vshll.u32 %v336, 16
      %v587 = vrot.slane %v585, 5
      %v588 = vsel %vm358, %v583, %v587
      %v589 = vshrl.u32 %v336, 16
      %v591 = vrot.slane %v589, 4
      %v592 = vor.u32 %v591, %v587
      %v593 = vrot.slane %v592, 4
      %v595 = vshll.u32 %v337, 16
      %v597 = vrot.slane %v595, 5
      %v598 = vsel %vm358, %v593, %v597
      %v600 = vshrl.u32 %v338, 16
      %v602 = vrot.slane %v600, 4
      %v603 = vshll.u32 %v338, 16
      %v605 = vrot.slane %v603, 5
      %v606 = vor.u32 %v602, %v605
      %v607 = vrot.slane %v606, 4
      %v609 = vshll.u32 %v339, 16
      %v611 = vrot.slane %v609, 5
      %v612 = vsel %vm358, %v607, %v611
      %v613 = vshrl.u32 %v339, 16
      %v615 = vrot.slane %v613, 4
      %v616 = vor.u32 %v615, %v611
      %v617 = vrot.slane %v616, 4
      %v619 = vshll.u32 %v340, 16
      %v621 = vrot.slane %v619, 5
      %v622 = vsel %vm358, %v617, %v621
      %v624 = vshrl.u32 %v341, 16
      %v626 = vrot.slane %v624, 4
      %v627 = vshll.u32 %v341, 16
      %v629 = vrot.slane %v627, 5
      %v630 = vor.u32 %v626, %v629
      %v631 = vrot.slane %v630, 4
      %v633 = vshll.u32 %v342, 16
      %v635 = vrot.slane %v633, 5
      %v636 = vsel %vm358, %v631, %v635
      %v637 = vshrl.u32 %v342, 16
      %v639 = vrot.slane %v637, 4
      %v640 = vor.u32 %v639, %v635
      %v641 = vrot.slane %v640, 4
      %v643 = vshll.u32 %v343, 16
      %v645 = vrot.slane %v643, 5
      %v646 = vsel %vm358, %v641, %v645
      %v648 = vshrl.u32 %v344, 16
      %v650 = vrot.slane %v648, 4
      %v651 = vshll.u32 %v344, 16
      %v653 = vrot.slane %v651, 5
      %v654 = vor.u32 %v650, %v653
      %v655 = vrot.slane %v654, 4
      %v657 = vshll.u32 %v345, 16
      %v659 = vrot.slane %v657, 5
      %v660 = vsel %vm358, %v655, %v659
      %v661 = vshrl.u32 %v345, 16
      %v663 = vrot.slane %v661, 4
      %v664 = vor.u32 %v663, %v659
      %v665 = vrot.slane %v664, 4
      %v667 = vshll.u32 %v346, 16
      %v669 = vrot.slane %v667, 5
      %v670 = vsel %vm358, %v665, %v669
      %v672 = vshrl.u32 %v347, 16
      %v674 = vrot.slane %v672, 4
      %v675 = vshll.u32 %v347, 16
      %v677 = vrot.slane %v675, 5
      %v678 = vor.u32 %v674, %v677
      %v679 = vrot.slane %v678, 4
      %v681 = vshll.u32 %v348, 16
      %v683 = vrot.slane %v681, 5
      %v684 = vsel %vm358, %v679, %v683
      %v685 = vshrl.u32 %v348, 16
      %v687 = vrot.slane %v685, 4
      %v688 = vor.u32 %v687, %v683
      %v689 = vrot.slane %v688, 4
      %v691 = vshll.u32 %v349, 16
      %v693 = vrot.slane %v691, 5
      %v694 = vsel %vm358, %v689, %v693
      %v696 = vshrl.u32 %v350, 16
      %v698 = vrot.slane %v696, 4
      %v699 = vshll.u32 %v350, 16
      %v701 = vrot.slane %v699, 5
      %v702 = vor.u32 %v698, %v701
      %v703 = vrot.slane %v702, 4
      %v705 = vshll.u32 %v351, 16
      %v707 = vrot.slane %v705, 5
      %v708 = vsel %vm358, %v703, %v707
      %v709 = vshrl.u32 %v351, 16
      %v711 = vrot.slane %v709, 4
      %v712 = vor.u32 %v711, %v707
      %v713 = vrot.slane %v712, 4
      %v715 = vshll.u32 %v352, 16
      %v717 = vrot.slane %v715, 5
      %v718 = vsel %vm358, %v713, %v717
      %v720 = vshrl.u32 %v353, 16
      %v722 = vrot.slane %v720, 4
      %v723 = vshll.u32 %v353, 16
      %v725 = vrot.slane %v723, 5
      %v726 = vor.u32 %v722, %v725
      %v727 = vrot.slane %v726, 4
      %v729 = vshll.u32 %v354, 16
      %v731 = vrot.slane %v729, 5
      %v732 = vsel %vm358, %v727, %v731
      %v733 = vshrl.u32 %v354, 16
      %v735 = vrot.slane %v733, 4
      %v736 = vor.u32 %v735, %v731
      %v737 = vrot.slane %v736, 4
      %v739 = vshll.u32 %v355, 16
      %v741 = vrot.slane %v739, 5
      %v742 = vsel %vm358, %v737, %v741
      %743 = vrot.lane.b32.xlu0 %v372, 4
      %v744 = vpop.permute.xlu0 %743
      %745 = vrot.lane.b32.xlu0 %v382, 4
      %v746 = vpop.permute.xlu0 %745
      %747 = vrot.lane.b32.xlu0 %v396, 4
      %v748 = vpop.permute.xlu0 %747
      %749 = vrot.lane.b32.xlu0 %v406, 4
      %v750 = vpop.permute.xlu0 %749
      %751 = vrot.lane.b32.xlu0 %v420, 4
      %v752 = vpop.permute.xlu0 %751
      %753 = vrot.lane.b32.xlu0 %v430, 4
      %v754 = vpop.permute.xlu0 %753
      %755 = vrot.lane.b32.xlu0 %v444, 4
      %v756 = vpop.permute.xlu0 %755
      %757 = vrot.lane.b32.xlu0 %v454, 4
      %v758 = vpop.permute.xlu0 %757
      %759 = vrot.lane.b32.xlu0 %v468, 4
      %v760 = vpop.permute.xlu0 %759
      %761 = vrot.lane.b32.xlu0 %v478, 4
      %v762 = vpop.permute.xlu0 %761
      %763 = vrot.lane.b32.xlu0 %v492, 4
      %v764 = vpop.permute.xlu0 %763
      %765 = vrot.lane.b32.xlu0 %v502, 4
      %v766 = vpop.permute.xlu0 %765
      %767 = vrot.lane.b32.xlu0 %v516, 4
      %v768 = vpop.permute.xlu0 %767
      %769 = vrot.lane.b32.xlu0 %v526, 4
      %v770 = vpop.permute.xlu0 %769
      %771 = vrot.lane.b32.xlu0 %v540, 4
      %v772 = vpop.permute.xlu0 %771
      %773 = vrot.lane.b32.xlu0 %v550, 4
      %v774 = vpop.permute.xlu0 %773
      %775 = vrot.lane.b32.xlu0 %v564, 4
      %v776 = vpop.permute.xlu0 %775
      %777 = vrot.lane.b32.xlu0 %v574, 4
      %v778 = vpop.permute.xlu0 %777
      %779 = vrot.lane.b32.xlu0 %v588, 4
      %v780 = vpop.permute.xlu0 %779
      %781 = vrot.lane.b32.xlu0 %v598, 4
      %v782 = vpop.permute.xlu0 %781
      %783 = vrot.lane.b32.xlu0 %v612, 4
      %v784 = vpop.permute.xlu0 %783
      %785 = vrot.lane.b32.xlu0 %v622, 4
      %v786 = vpop.permute.xlu0 %785
      %787 = vrot.lane.b32.xlu0 %v636, 4
      %v788 = vpop.permute.xlu0 %787
      %789 = vrot.lane.b32.xlu0 %v646, 4
      %v790 = vpop.permute.xlu0 %789
      %791 = vrot.lane.b32.xlu0 %v660, 4
      %v792 = vpop.permute.xlu0 %791
      %793 = vrot.lane.b32.xlu0 %v670, 4
      %v794 = vpop.permute.xlu0 %793
      %795 = vrot.lane.b32.xlu0 %v684, 4
      %v796 = vpop.permute.xlu0 %795
      %797 = vrot.lane.b32.xlu0 %v694, 4
      %v798 = vpop.permute.xlu0 %797
      %799 = vrot.lane.b32.xlu0 %v708, 4
      %v800 = vpop.permute.xlu0 %799
      %801 = vrot.lane.b32.xlu0 %v718, 4
      %v802 = vpop.permute.xlu0 %801
      %803 = vrot.lane.b32.xlu0 %v732, 4
      %v804 = vpop.permute.xlu0 %803
      %805 = vrot.lane.b32.xlu0 %v742, 4
      %v806 = vpop.permute.xlu0 %805
      %vm839 = vcmask 60448
      %840 = vst.msk [vmem:[#allocation2] sm:$0xf] %vm839, %v744
      %841 = vst.msk [vmem:[#allocation2 + $0x4] sm:$0xf] %vm839, %v746
      %842 = vst.msk [vmem:[#allocation2 + $0x8] sm:$0xf] %vm839, %v748
      %843 = vst.msk [vmem:[#allocation2 + $0xc] sm:$0xf] %vm839, %v750
      %844 = vst.msk [vmem:[#allocation2 + $0x10] sm:$0xf] %vm839, %v752
      %845 = vst.msk [vmem:[#allocation2 + $0x14] sm:$0xf] %vm839, %v754
      %846 = vst.msk [vmem:[#allocation2 + $0x18] sm:$0xf] %vm839, %v756
      %847 = vst.msk [vmem:[#allocation2 + $0x1c] sm:$0xf] %vm839, %v758
      %848 = vst.msk [vmem:[#allocation2 + $0x20] sm:$0xf] %vm839, %v760
      %849 = vst.msk [vmem:[#allocation2 + $0x24] sm:$0xf] %vm839, %v762
      %850 = vst.msk [vmem:[#allocation2 + $0x28] sm:$0xf] %vm839, %v764
      %851 = vst.msk [vmem:[#allocation2 + $0x2c] sm:$0xf] %vm839, %v766
      %852 = vst.msk [vmem:[#allocation2 + $0x30] sm:$0xf] %vm839, %v768
      %853 = vst.msk [vmem:[#allocation2 + $0x34] sm:$0xf] %vm839, %v770
      %854 = vst.msk [vmem:[#allocation2 + $0x38] sm:$0xf] %vm839, %v772
      %855 = vst.msk [vmem:[#allocation2 + $0x3c] sm:$0xf] %vm839, %v774
      %856 = vst.msk [vmem:[#allocation2 + $0x40] sm:$0xf] %vm839, %v776
      %857 = vst.msk [vmem:[#allocation2 + $0x44] sm:$0xf] %vm839, %v778
      %858 = vst.msk [vmem:[#allocation2 + $0x48] sm:$0xf] %vm839, %v780
      %859 = vst.msk [vmem:[#allocation2 + $0x4c] sm:$0xf] %vm839, %v782
      %860 = vst.msk [vmem:[#allocation2 + $0x50] sm:$0xf] %vm839, %v784
      %861 = vst.msk [vmem:[#allocation2 + $0x54] sm:$0xf] %vm839, %v786
      %862 = vst.msk [vmem:[#allocation2 + $0x58] sm:$0xf] %vm839, %v788
      %863 = vst.msk [vmem:[#allocation2 + $0x5c] sm:$0xf] %vm839, %v790
      %864 = vst.msk [vmem:[#allocation2 + $0x60] sm:$0xf] %vm839, %v792
      %865 = vst.msk [vmem:[#allocation2 + $0x64] sm:$0xf] %vm839, %v794
      %866 = vst.msk [vmem:[#allocation2 + $0x68] sm:$0xf] %vm839, %v796
      %867 = vst.msk [vmem:[#allocation2 + $0x6c] sm:$0xf] %vm839, %v798
      %868 = vst.msk [vmem:[#allocation2 + $0x70] sm:$0xf] %vm839, %v800
      %869 = vst.msk [vmem:[#allocation2 + $0x74] sm:$0xf] %vm839, %v802
      %870 = vst.msk [vmem:[#allocation2 + $0x78] sm:$0xf] %vm839, %v804
      %871 = vst.msk [vmem:[#allocation2 + $0x7c] sm:$0xf] %vm839, %v806
      %v872 = vld [vmem:[%s198] sm:$0xe]
      %v873 = vld [vmem:[%s198 + $0x4] sm:$0xf]
      %v874 = vld [vmem:[%s198 + $0x8] sm:$0x1]
      %v875 = vld [vmem:[%s198 + $0xc] sm:$0xe]
      %v876 = vld [vmem:[%s198 + $0x10] sm:$0xf]
      %v877 = vld [vmem:[%s198 + $0x14] sm:$0x1]
      %v878 = vld [vmem:[%s198 + $0x18] sm:$0xe]
      %v879 = vld [vmem:[%s198 + $0x1c] sm:$0xf]
      %v880 = vld [vmem:[%s198 + $0x20] sm:$0x1]
      %v881 = vld [vmem:[%s198 + $0x24] sm:$0xe]
      %v882 = vld [vmem:[%s198 + $0x28] sm:$0xf]
      %v883 = vld [vmem:[%s198 + $0x2c] sm:$0x1]
      %v884 = vld [vmem:[%s198 + $0x30] sm:$0xe]
      %v885 = vld [vmem:[%s198 + $0x34] sm:$0xf]
      %v886 = vld [vmem:[%s198 + $0x38] sm:$0x1]
      %v887 = vld [vmem:[%s198 + $0x3c] sm:$0xe]
      %v888 = vld [vmem:[%s198 + $0x40] sm:$0xf]
      %v889 = vld [vmem:[%s198 + $0x44] sm:$0x1]
      %v890 = vld [vmem:[%s198 + $0x48] sm:$0xe]
      %v891 = vld [vmem:[%s198 + $0x4c] sm:$0xf]
      %v892 = vld [vmem:[%s198 + $0x50] sm:$0x1]
      %v893 = vld [vmem:[%s198 + $0x54] sm:$0xe]
      %v894 = vld [vmem:[%s198 + $0x58] sm:$0xf]
      %v895 = vld [vmem:[%s198 + $0x5c] sm:$0x1]
      %v896 = vld [vmem:[%s198 + $0x60] sm:$0xe]
      %v897 = vld [vmem:[%s198 + $0x64] sm:$0xf]
      %v898 = vld [vmem:[%s198 + $0x68] sm:$0x1]
      %v899 = vld [vmem:[%s198 + $0x6c] sm:$0xe]
      %v900 = vld [vmem:[%s198 + $0x70] sm:$0xf]
      %v901 = vld [vmem:[%s198 + $0x74] sm:$0x1]
      %v902 = vld [vmem:[%s198 + $0x78] sm:$0xe]
      %v903 = vld [vmem:[%s198 + $0x7c] sm:$0xf]
      %v904 = vld [vmem:[%s198 + $0x80] sm:$0x1]
      %v905 = vld [vmem:[%s198 + $0x84] sm:$0xe]
      %v906 = vld [vmem:[%s198 + $0x88] sm:$0xf]
      %v907 = vld [vmem:[%s198 + $0x8c] sm:$0x1]
      %v908 = vld [vmem:[%s198 + $0x90] sm:$0xe]
      %v909 = vld [vmem:[%s198 + $0x94] sm:$0xf]
      %v910 = vld [vmem:[%s198 + $0x98] sm:$0x1]
      %v911 = vld [vmem:[%s198 + $0x9c] sm:$0xe]
      %v912 = vld [vmem:[%s198 + $0xa0] sm:$0xf]
      %v913 = vld [vmem:[%s198 + $0xa4] sm:$0x1]
      %v914 = vld [vmem:[%s198 + $0xa8] sm:$0xe]
      %v915 = vld [vmem:[%s198 + $0xac] sm:$0xf]
      %v916 = vld [vmem:[%s198 + $0xb0] sm:$0x1]
      %v917 = vld [vmem:[%s198 + $0xb4] sm:$0xe]
      %v918 = vld [vmem:[%s198 + $0xb8] sm:$0xf]
      %v919 = vld [vmem:[%s198 + $0xbc] sm:$0x1]
      %vm968 = vcmask 1042432
      %vm969 = vcmask 1046532
      %vm970 = vmor %vm968, %vm969
      %v971 = vrot.slane %v872, 5
      %v972 = vrot.slane %v971, 4
      %v973 = vrot.slane %v873, 5
      %v974 = vsel %vm970, %v972, %v973
      %v975 = vrot.slane %v973, 4
      %v976 = vrot.slane %v874, 5
      %v977 = vsel %vm970, %v975, %v976
      %v978 = vrot.slane %v875, 5
      %v979 = vrot.slane %v978, 4
      %v980 = vrot.slane %v876, 5
      %v981 = vsel %vm970, %v979, %v980
      %v982 = vrot.slane %v980, 4
      %v983 = vrot.slane %v877, 5
      %v984 = vsel %vm970, %v982, %v983
      %v985 = vrot.slane %v878, 5
      %v986 = vrot.slane %v985, 4
      %v987 = vrot.slane %v879, 5
      %v988 = vsel %vm970, %v986, %v987
      %v989 = vrot.slane %v987, 4
      %v990 = vrot.slane %v880, 5
      %v991 = vsel %vm970, %v989, %v990
      %v992 = vrot.slane %v881, 5
      %v993 = vrot.slane %v992, 4
      %v994 = vrot.slane %v882, 5
      %v995 = vsel %vm970, %v993, %v994
      %v996 = vrot.slane %v994, 4
      %v997 = vrot.slane %v883, 5
      %v998 = vsel %vm970, %v996, %v997
      %v999 = vrot.slane %v884, 5
      %v1000 = vrot.slane %v999, 4
      %v1001 = vrot.slane %v885, 5
      %v1002 = vsel %vm970, %v1000, %v1001
      %v1003 = vrot.slane %v1001, 4
      %v1004 = vrot.slane %v886, 5
      %v1005 = vsel %vm970, %v1003, %v1004
      %v1006 = vrot.slane %v887, 5
      %v1007 = vrot.slane %v1006, 4
      %v1008 = vrot.slane %v888, 5
      %v1009 = vsel %vm970, %v1007, %v1008
      %v1010 = vrot.slane %v1008, 4
      %v1011 = vrot.slane %v889, 5
      %v1012 = vsel %vm970, %v1010, %v1011
      %v1013 = vrot.slane %v890, 5
      %v1014 = vrot.slane %v1013, 4
      %v1015 = vrot.slane %v891, 5
      %v1016 = vsel %vm970, %v1014, %v1015
      %v1017 = vrot.slane %v1015, 4
      %v1018 = vrot.slane %v892, 5
      %v1019 = vsel %vm970, %v1017, %v1018
      %v1020 = vrot.slane %v893, 5
      %v1021 = vrot.slane %v1020, 4
      %v1022 = vrot.slane %v894, 5
      %v1023 = vsel %vm970, %v1021, %v1022
      %v1024 = vrot.slane %v1022, 4
      %v1025 = vrot.slane %v895, 5
      %v1026 = vsel %vm970, %v1024, %v1025
      %v1027 = vrot.slane %v896, 5
      %v1028 = vrot.slane %v1027, 4
      %v1029 = vrot.slane %v897, 5
      %v1030 = vsel %vm970, %v1028, %v1029
      %v1031 = vrot.slane %v1029, 4
      %v1032 = vrot.slane %v898, 5
      %v1033 = vsel %vm970, %v1031, %v1032
      %v1034 = vrot.slane %v899, 5
      %v1035 = vrot.slane %v1034, 4
      %v1036 = vrot.slane %v900, 5
      %v1037 = vsel %vm970, %v1035, %v1036
      %v1038 = vrot.slane %v1036, 4
      %v1039 = vrot.slane %v901, 5
      %v1040 = vsel %vm970, %v1038, %v1039
      %v1041 = vrot.slane %v902, 5
      %v1042 = vrot.slane %v1041, 4
      %v1043 = vrot.slane %v903, 5
      %v1044 = vsel %vm970, %v1042, %v1043
      %v1045 = vrot.slane %v1043, 4
      %v1046 = vrot.slane %v904, 5
      %v1047 = vsel %vm970, %v1045, %v1046
      %v1048 = vrot.slane %v905, 5
      %v1049 = vrot.slane %v1048, 4
      %v1050 = vrot.slane %v906, 5
      %v1051 = vsel %vm970, %v1049, %v1050
      %v1052 = vrot.slane %v1050, 4
      %v1053 = vrot.slane %v907, 5
      %v1054 = vsel %vm970, %v1052, %v1053
      %v1055 = vrot.slane %v908, 5
      %v1056 = vrot.slane %v1055, 4
      %v1057 = vrot.slane %v909, 5
      %v1058 = vsel %vm970, %v1056, %v1057
      %v1059 = vrot.slane %v1057, 4
      %v1060 = vrot.slane %v910, 5
      %v1061 = vsel %vm970, %v1059, %v1060
      %v1062 = vrot.slane %v911, 5
      %v1063 = vrot.slane %v1062, 4
      %v1064 = vrot.slane %v912, 5
      %v1065 = vsel %vm970, %v1063, %v1064
      %v1066 = vrot.slane %v1064, 4
      %v1067 = vrot.slane %v913, 5
      %v1068 = vsel %vm970, %v1066, %v1067
      %v1069 = vrot.slane %v914, 5
      %v1070 = vrot.slane %v1069, 4
      %v1071 = vrot.slane %v915, 5
      %v1072 = vsel %vm970, %v1070, %v1071
      %v1073 = vrot.slane %v1071, 4
      %v1074 = vrot.slane %v916, 5
      %v1075 = vsel %vm970, %v1073, %v1074
      %v1076 = vrot.slane %v917, 5
      %v1077 = vrot.slane %v1076, 4
      %v1078 = vrot.slane %v918, 5
      %v1079 = vsel %vm970, %v1077, %v1078
      %v1080 = vrot.slane %v1078, 4
      %v1081 = vrot.slane %v919, 5
      %v1082 = vsel %vm970, %v1080, %v1081
      %1083 = vrot.lane.b32.xlu0 %v974, 8
      %v1084 = vpop.permute.xlu0 %1083
      %1085 = vrot.lane.b32.xlu0 %v977, 8
      %v1086 = vpop.permute.xlu0 %1085
      %1087 = vrot.lane.b32.xlu0 %v981, 8
      %v1088 = vpop.permute.xlu0 %1087
      %1089 = vrot.lane.b32.xlu0 %v984, 8
      %v1090 = vpop.permute.xlu0 %1089
      %1091 = vrot.lane.b32.xlu0 %v988, 8
      %v1092 = vpop.permute.xlu0 %1091
      %1093 = vrot.lane.b32.xlu0 %v991, 8
      %v1094 = vpop.permute.xlu0 %1093
      %1095 = vrot.lane.b32.xlu0 %v995, 8
      %v1096 = vpop.permute.xlu0 %1095
      %1097 = vrot.lane.b32.xlu0 %v998, 8
      %v1098 = vpop.permute.xlu0 %1097
      %1099 = vrot.lane.b32.xlu0 %v1002, 8
      %v1100 = vpop.permute.xlu0 %1099
      %1101 = vrot.lane.b32.xlu0 %v1005, 8
      %v1102 = vpop.permute.xlu0 %1101
      %1103 = vrot.lane.b32.xlu0 %v1009, 8
      %v1104 = vpop.permute.xlu0 %1103
      %1105 = vrot.lane.b32.xlu0 %v1012, 8
      %v1106 = vpop.permute.xlu0 %1105
      %1107 = vrot.lane.b32.xlu0 %v1016, 8
      %v1108 = vpop.permute.xlu0 %1107
      %1109 = vrot.lane.b32.xlu0 %v1019, 8
      %v1110 = vpop.permute.xlu0 %1109
      %1111 = vrot.lane.b32.xlu0 %v1023, 8
      %v1112 = vpop.permute.xlu0 %1111
      %1113 = vrot.lane.b32.xlu0 %v1026, 8
      %v1114 = vpop.permute.xlu0 %1113
      %1115 = vrot.lane.b32.xlu0 %v1030, 8
      %v1116 = vpop.permute.xlu0 %1115
      %1117 = vrot.lane.b32.xlu0 %v1033, 8
      %v1118 = vpop.permute.xlu0 %1117
      %1119 = vrot.lane.b32.xlu0 %v1037, 8
      %v1120 = vpop.permute.xlu0 %1119
      %1121 = vrot.lane.b32.xlu0 %v1040, 8
      %v1122 = vpop.permute.xlu0 %1121
      %1123 = vrot.lane.b32.xlu0 %v1044, 8
      %v1124 = vpop.permute.xlu0 %1123
      %1125 = vrot.lane.b32.xlu0 %v1047, 8
      %v1126 = vpop.permute.xlu0 %1125
      %1127 = vrot.lane.b32.xlu0 %v1051, 8
      %v1128 = vpop.permute.xlu0 %1127
      %1129 = vrot.lane.b32.xlu0 %v1054, 8
      %v1130 = vpop.permute.xlu0 %1129
      %1131 = vrot.lane.b32.xlu0 %v1058, 8
      %v1132 = vpop.permute.xlu0 %1131
      %1133 = vrot.lane.b32.xlu0 %v1061, 8
      %v1134 = vpop.permute.xlu0 %1133
      %1135 = vrot.lane.b32.xlu0 %v1065, 8
      %v1136 = vpop.permute.xlu0 %1135
      %1137 = vrot.lane.b32.xlu0 %v1068, 8
      %v1138 = vpop.permute.xlu0 %1137
      %1139 = vrot.lane.b32.xlu0 %v1072, 8
      %v1140 = vpop.permute.xlu0 %1139
      %1141 = vrot.lane.b32.xlu0 %v1075, 8
      %v1142 = vpop.permute.xlu0 %1141
      %1143 = vrot.lane.b32.xlu0 %v1079, 8
      %v1144 = vpop.permute.xlu0 %1143
      %1145 = vrot.lane.b32.xlu0 %v1082, 8
      %v1146 = vpop.permute.xlu0 %1145
      %vm1179 = vcmask 93248
      %1180 = vst.msk [vmem:[#allocation2] sm:$0xf] %vm1179, %v1084
      %1181 = vst.msk [vmem:[#allocation2 + $0x4] sm:$0xf] %vm1179, %v1086
      %1182 = vst.msk [vmem:[#allocation2 + $0x8] sm:$0xf] %vm1179, %v1088
      %1183 = vst.msk [vmem:[#allocation2 + $0xc] sm:$0xf] %vm1179, %v1090
      %1184 = vst.msk [vmem:[#allocation2 + $0x10] sm:$0xf] %vm1179, %v1092
      %1185 = vst.msk [vmem:[#allocation2 + $0x14] sm:$0xf] %vm1179, %v1094
      %1186 = vst.msk [vmem:[#allocation2 + $0x18] sm:$0xf] %vm1179, %v1096
      %1187 = vst.msk [vmem:[#allocation2 + $0x1c] sm:$0xf] %vm1179, %v1098
      %1188 = vst.msk [vmem:[#allocation2 + $0x20] sm:$0xf] %vm1179, %v1100
      %1189 = vst.msk [vmem:[#allocation2 + $0x24] sm:$0xf] %vm1179, %v1102
      %1190 = vst.msk [vmem:[#allocation2 + $0x28] sm:$0xf] %vm1179, %v1104
      %1191 = vst.msk [vmem:[#allocation2 + $0x2c] sm:$0xf] %vm1179, %v1106
      %1192 = vst.msk [vmem:[#allocation2 + $0x30] sm:$0xf] %vm1179, %v1108
      %1193 = vst.msk [vmem:[#allocation2 + $0x34] sm:$0xf] %vm1179, %v1110
      %1194 = vst.msk [vmem:[#allocation2 + $0x38] sm:$0xf] %vm1179, %v1112
      %1195 = vst.msk [vmem:[#allocation2 + $0x3c] sm:$0xf] %vm1179, %v1114
      %1196 = vst.msk [vmem:[#allocation2 + $0x40] sm:$0xf] %vm1179, %v1116
      %1197 = vst.msk [vmem:[#allocation2 + $0x44] sm:$0xf] %vm1179, %v1118
      %1198 = vst.msk [vmem:[#allocation2 + $0x48] sm:$0xf] %vm1179, %v1120
      %1199 = vst.msk [vmem:[#allocation2 + $0x4c] sm:$0xf] %vm1179, %v1122
      %1200 = vst.msk [vmem:[#allocation2 + $0x50] sm:$0xf] %vm1179, %v1124
      %1201 = vst.msk [vmem:[#allocation2 + $0x54] sm:$0xf] %vm1179, %v1126
      %1202 = vst.msk [vmem:[#allocation2 + $0x58] sm:$0xf] %vm1179, %v1128
      %1203 = vst.msk [vmem:[#allocation2 + $0x5c] sm:$0xf] %vm1179, %v1130
      %1204 = vst.msk [vmem:[#allocation2 + $0x60] sm:$0xf] %vm1179, %v1132
      %1205 = vst.msk [vmem:[#allocation2 + $0x64] sm:$0xf] %vm1179, %v1134
      %1206 = vst.msk [vmem:[#allocation2 + $0x68] sm:$0xf] %vm1179, %v1136
      %1207 = vst.msk [vmem:[#allocation2 + $0x6c] sm:$0xf] %vm1179, %v1138
      %1208 = vst.msk [vmem:[#allocation2 + $0x70] sm:$0xf] %vm1179, %v1140
      %1209 = vst.msk [vmem:[#allocation2 + $0x74] sm:$0xf] %vm1179, %v1142
      %1210 = vst.msk [vmem:[#allocation2 + $0x78] sm:$0xf] %vm1179, %v1144
      %1211 = vst.msk [vmem:[#allocation2 + $0x7c] sm:$0xf] %vm1179, %v1146
      %s1212 = scalar_lea.vmem %s198, 12
      %v1213 = vld [vmem:[%s1212] sm:$0xf]
      %v1214 = vld [vmem:[%s1212 + $0x4] sm:$0xf]
      %v1215 = vld [vmem:[%s1212 + $0xc] sm:$0xf]
      %v1216 = vld [vmem:[%s1212 + $0x10] sm:$0xf]
      %v1217 = vld [vmem:[%s1212 + $0x18] sm:$0xf]
      %v1218 = vld [vmem:[%s1212 + $0x1c] sm:$0xf]
      %v1219 = vld [vmem:[%s1212 + $0x24] sm:$0xf]
      %v1220 = vld [vmem:[%s1212 + $0x28] sm:$0xf]
      %v1221 = vld [vmem:[%s1212 + $0x30] sm:$0xf]
      %v1222 = vld [vmem:[%s1212 + $0x34] sm:$0xf]
      %v1223 = vld [vmem:[%s1212 + $0x3c] sm:$0xf]
      %v1224 = vld [vmem:[%s1212 + $0x40] sm:$0xf]
      %v1225 = vld [vmem:[%s1212 + $0x48] sm:$0xf]
      %v1226 = vld [vmem:[%s1212 + $0x4c] sm:$0xf]
      %v1227 = vld [vmem:[%s1212 + $0x54] sm:$0xf]
      %v1228 = vld [vmem:[%s1212 + $0x58] sm:$0xf]
      %v1229 = vld [vmem:[%s1212 + $0x60] sm:$0xf]
      %v1230 = vld [vmem:[%s1212 + $0x64] sm:$0xf]
      %v1231 = vld [vmem:[%s1212 + $0x6c] sm:$0xf]
      %v1232 = vld [vmem:[%s1212 + $0x70] sm:$0xf]
      %v1233 = vld [vmem:[%s1212 + $0x78] sm:$0xf]
      %v1234 = vld [vmem:[%s1212 + $0x7c] sm:$0xf]
      %v1235 = vld [vmem:[%s1212 + $0x84] sm:$0xf]
      %v1236 = vld [vmem:[%s1212 + $0x88] sm:$0xf]
      %v1237 = vld [vmem:[%s1212 + $0x90] sm:$0xf]
      %v1238 = vld [vmem:[%s1212 + $0x94] sm:$0xf]
      %v1239 = vld [vmem:[%s1212 + $0x9c] sm:$0xf]
      %v1240 = vld [vmem:[%s1212 + $0xa0] sm:$0xf]
      %v1241 = vld [vmem:[%s1212 + $0xa8] sm:$0xf]
      %v1242 = vld [vmem:[%s1212 + $0xac] sm:$0xf]
      %v1243 = vld [vmem:[%s1212 + $0xb4] sm:$0xf]
      %v1244 = vld [vmem:[%s1212 + $0xb8] sm:$0xf]
      %1277 = vrot.lane.b32.xlu0 %v1213, 12
      %v1278 = vpop.permute.xlu0 %1277
      %1279 = vrot.lane.b32.xlu0 %v1214, 12
      %v1280 = vpop.permute.xlu0 %1279
      %1281 = vrot.lane.b32.xlu0 %v1215, 12
      %v1282 = vpop.permute.xlu0 %1281
      %1283 = vrot.lane.b32.xlu0 %v1216, 12
      %v1284 = vpop.permute.xlu0 %1283
      %1285 = vrot.lane.b32.xlu0 %v1217, 12
      %v1286 = vpop.permute.xlu0 %1285
      %1287 = vrot.lane.b32.xlu0 %v1218, 12
      %v1288 = vpop.permute.xlu0 %1287
      %1289 = vrot.lane.b32.xlu0 %v1219, 12
      %v1290 = vpop.permute.xlu0 %1289
      %1291 = vrot.lane.b32.xlu0 %v1220, 12
      %v1292 = vpop.permute.xlu0 %1291
      %1293 = vrot.lane.b32.xlu0 %v1221, 12
      %v1294 = vpop.permute.xlu0 %1293
      %1295 = vrot.lane.b32.xlu0 %v1222, 12
      %v1296 = vpop.permute.xlu0 %1295
      %1297 = vrot.lane.b32.xlu0 %v1223, 12
      %v1298 = vpop.permute.xlu0 %1297
      %1299 = vrot.lane.b32.xlu0 %v1224, 12
      %v1300 = vpop.permute.xlu0 %1299
      %1301 = vrot.lane.b32.xlu0 %v1225, 12
      %v1302 = vpop.permute.xlu0 %1301
      %1303 = vrot.lane.b32.xlu0 %v1226, 12
      %v1304 = vpop.permute.xlu0 %1303
      %1305 = vrot.lane.b32.xlu0 %v1227, 12
      %v1306 = vpop.permute.xlu0 %1305
      %1307 = vrot.lane.b32.xlu0 %v1228, 12
      %v1308 = vpop.permute.xlu0 %1307
      %1309 = vrot.lane.b32.xlu0 %v1229, 12
      %v1310 = vpop.permute.xlu0 %1309
      %1311 = vrot.lane.b32.xlu0 %v1230, 12
      %v1312 = vpop.permute.xlu0 %1311
      %1313 = vrot.lane.b32.xlu0 %v1231, 12
      %v1314 = vpop.permute.xlu0 %1313
      %1315 = vrot.lane.b32.xlu0 %v1232, 12
      %v1316 = vpop.permute.xlu0 %1315
      %1317 = vrot.lane.b32.xlu0 %v1233, 12
      %v1318 = vpop.permute.xlu0 %1317
      %1319 = vrot.lane.b32.xlu0 %v1234, 12
      %v1320 = vpop.permute.xlu0 %1319
      %1321 = vrot.lane.b32.xlu0 %v1235, 12
      %v1322 = vpop.permute.xlu0 %1321
      %1323 = vrot.lane.b32.xlu0 %v1236, 12
      %v1324 = vpop.permute.xlu0 %1323
      %1325 = vrot.lane.b32.xlu0 %v1237, 12
      %v1326 = vpop.permute.xlu0 %1325
      %1327 = vrot.lane.b32.xlu0 %v1238, 12
      %v1328 = vpop.permute.xlu0 %1327
      %1329 = vrot.lane.b32.xlu0 %v1239, 12
      %v1330 = vpop.permute.xlu0 %1329
      %1331 = vrot.lane.b32.xlu0 %v1240, 12
      %v1332 = vpop.permute.xlu0 %1331
      %1333 = vrot.lane.b32.xlu0 %v1241, 12
      %v1334 = vpop.permute.xlu0 %1333
      %1335 = vrot.lane.b32.xlu0 %v1242, 12
      %v1336 = vpop.permute.xlu0 %1335
      %1337 = vrot.lane.b32.xlu0 %v1243, 12
      %v1338 = vpop.permute.xlu0 %1337
      %1339 = vrot.lane.b32.xlu0 %v1244, 12
      %v1340 = vpop.permute.xlu0 %1339
      %vm1373 = vcmask 126048
      %1374 = vst.msk [vmem:[#allocation2] sm:$0xf] %vm1373, %v1278
      %1375 = vst.msk [vmem:[#allocation2 + $0x4] sm:$0xf] %vm1373, %v1280
      %1376 = vst.msk [vmem:[#allocation2 + $0x8] sm:$0xf] %vm1373, %v1282
      %1377 = vst.msk [vmem:[#allocation2 + $0xc] sm:$0xf] %vm1373, %v1284
      %1378 = vst.msk [vmem:[#allocation2 + $0x10] sm:$0xf] %vm1373, %v1286
      %1379 = vst.msk [vmem:[#allocation2 + $0x14] sm:$0xf] %vm1373, %v1288
      %1380 = vst.msk [vmem:[#allocation2 + $0x18] sm:$0xf] %vm1373, %v1290
      %1381 = vst.msk [vmem:[#allocation2 + $0x1c] sm:$0xf] %vm1373, %v1292
      %1382 = vst.msk [vmem:[#allocation2 + $0x20] sm:$0xf] %vm1373, %v1294
      %1383 = vst.msk [vmem:[#allocation2 + $0x24] sm:$0xf] %vm1373, %v1296
      %1384 = vst.msk [vmem:[#allocation2 + $0x28] sm:$0xf] %vm1373, %v1298
      %1385 = vst.msk [vmem:[#allocation2 + $0x2c] sm:$0xf] %vm1373, %v1300
      %1386 = vst.msk [vmem:[#allocation2 + $0x30] sm:$0xf] %vm1373, %v1302
      %1387 = vst.msk [vmem:[#allocation2 + $0x34] sm:$0xf] %vm1373, %v1304
      %1388 = vst.msk [vmem:[#allocation2 + $0x38] sm:$0xf] %vm1373, %v1306
      %1389 = vst.msk [vmem:[#allocation2 + $0x3c] sm:$0xf] %vm1373, %v1308
      %1390 = vst.msk [vmem:[#allocation2 + $0x40] sm:$0xf] %vm1373, %v1310
      %1391 = vst.msk [vmem:[#allocation2 + $0x44] sm:$0xf] %vm1373, %v1312
      %1392 = vst.msk [vmem:[#allocation2 + $0x48] sm:$0xf] %vm1373, %v1314
      %1393 = vst.msk [vmem:[#allocation2 + $0x4c] sm:$0xf] %vm1373, %v1316
      %1394 = vst.msk [vmem:[#allocation2 + $0x50] sm:$0xf] %vm1373, %v1318
      %1395 = vst.msk [vmem:[#allocation2 + $0x54] sm:$0xf] %vm1373, %v1320
      %1396 = vst.msk [vmem:[#allocation2 + $0x58] sm:$0xf] %vm1373, %v1322
      %1397 = vst.msk [vmem:[#allocation2 + $0x5c] sm:$0xf] %vm1373, %v1324
      %1398 = vst.msk [vmem:[#allocation2 + $0x60] sm:$0xf] %vm1373, %v1326
      %1399 = vst.msk [vmem:[#allocation2 + $0x64] sm:$0xf] %vm1373, %v1328
      %1400 = vst.msk [vmem:[#allocation2 + $0x68] sm:$0xf] %vm1373, %v1330
      %1401 = vst.msk [vmem:[#allocation2 + $0x6c] sm:$0xf] %vm1373, %v1332
      %1402 = vst.msk [vmem:[#allocation2 + $0x70] sm:$0xf] %vm1373, %v1334
      %1403 = vst.msk [vmem:[#allocation2 + $0x74] sm:$0xf] %vm1373, %v1336
      %1404 = vst.msk [vmem:[#allocation2 + $0x78] sm:$0xf] %vm1373, %v1338
      %1405 = vst.msk [vmem:[#allocation2 + $0x7c] sm:$0xf] %vm1373, %v1340
      %v1406 = vld [vmem:[%s1212] sm:$0xf]
      %v1407 = vld [vmem:[%s1212 + $0x4] sm:$0xf]
      %v1408 = vld [vmem:[%s1212 + $0x8] sm:$0x1]
      %v1409 = vld [vmem:[%s1212 + $0xc] sm:$0xf]
      %v1410 = vld [vmem:[%s1212 + $0x10] sm:$0xf]
      %v1411 = vld [vmem:[%s1212 + $0x14] sm:$0x1]
      %v1412 = vld [vmem:[%s1212 + $0x18] sm:$0xf]
      %v1413 = vld [vmem:[%s1212 + $0x1c] sm:$0xf]
      %v1414 = vld [vmem:[%s1212 + $0x20] sm:$0x1]
      %v1415 = vld [vmem:[%s1212 + $0x24] sm:$0xf]
      %v1416 = vld [vmem:[%s1212 + $0x28] sm:$0xf]
      %v1417 = vld [vmem:[%s1212 + $0x2c] sm:$0x1]
      %v1418 = vld [vmem:[%s1212 + $0x30] sm:$0xf]
      %v1419 = vld [vmem:[%s1212 + $0x34] sm:$0xf]
      %v1420 = vld [vmem:[%s1212 + $0x38] sm:$0x1]
      %v1421 = vld [vmem:[%s1212 + $0x3c] sm:$0xf]
      %v1422 = vld [vmem:[%s1212 + $0x40] sm:$0xf]
      %v1423 = vld [vmem:[%s1212 + $0x44] sm:$0x1]
      %v1424 = vld [vmem:[%s1212 + $0x48] sm:$0xf]
      %v1425 = vld [vmem:[%s1212 + $0x4c] sm:$0xf]
      %v1426 = vld [vmem:[%s1212 + $0x50] sm:$0x1]
      %v1427 = vld [vmem:[%s1212 + $0x54] sm:$0xf]
      %v1428 = vld [vmem:[%s1212 + $0x58] sm:$0xf]
      %v1429 = vld [vmem:[%s1212 + $0x5c] sm:$0x1]
      %v1430 = vld [vmem:[%s1212 + $0x60] sm:$0xf]
      %v1431 = vld [vmem:[%s1212 + $0x64] sm:$0xf]
      %v1432 = vld [vmem:[%s1212 + $0x68] sm:$0x1]
      %v1433 = vld [vmem:[%s1212 + $0x6c] sm:$0xf]
      %v1434 = vld [vmem:[%s1212 + $0x70] sm:$0xf]
      %v1435 = vld [vmem:[%s1212 + $0x74] sm:$0x1]
      %v1436 = vld [vmem:[%s1212 + $0x78] sm:$0xf]
      %v1437 = vld [vmem:[%s1212 + $0x7c] sm:$0xf]
      %v1438 = vld [vmem:[%s1212 + $0x80] sm:$0x1]
      %v1439 = vld [vmem:[%s1212 + $0x84] sm:$0xf]
      %v1440 = vld [vmem:[%s1212 + $0x88] sm:$0xf]
      %v1441 = vld [vmem:[%s1212 + $0x8c] sm:$0x1]
      %v1442 = vld [vmem:[%s1212 + $0x90] sm:$0xf]
      %v1443 = vld [vmem:[%s1212 + $0x94] sm:$0xf]
      %v1444 = vld [vmem:[%s1212 + $0x98] sm:$0x1]
      %v1445 = vld [vmem:[%s1212 + $0x9c] sm:$0xf]
      %v1446 = vld [vmem:[%s1212 + $0xa0] sm:$0xf]
      %v1447 = vld [vmem:[%s1212 + $0xa4] sm:$0x1]
      %v1448 = vld [vmem:[%s1212 + $0xa8] sm:$0xf]
      %v1449 = vld [vmem:[%s1212 + $0xac] sm:$0xf]
      %v1450 = vld [vmem:[%s1212 + $0xb0] sm:$0x1]
      %v1451 = vld [vmem:[%s1212 + $0xb4] sm:$0xf]
      %v1452 = vld [vmem:[%s1212 + $0xb8] sm:$0xf]
      %v1453 = vld [vmem:[%s1212 + $0xbc] sm:$0x1]
      %v1455 = vshrl.u32 %v1406, 16
      %v1457 = vrot.slane %v1455, 4
      %v1458 = vshll.u32 %v1406, 16
      %v1460 = vrot.slane %v1458, 5
      %v1461 = vor.u32 %v1457, %v1460
      %v1462 = vrot.slane %v1461, 4
      %v1464 = vshll.u32 %v1407, 16
      %v1466 = vrot.slane %v1464, 5
      %v1467 = vsel %vm358, %v1462, %v1466
      %v1468 = vshrl.u32 %v1407, 16
      %v1470 = vrot.slane %v1468, 4
      %v1471 = vor.u32 %v1470, %v1466
      %v1472 = vrot.slane %v1471, 4
      %v1474 = vshll.u32 %v1408, 16
      %v1476 = vrot.slane %v1474, 5
      %v1477 = vsel %vm358, %v1472, %v1476
      %v1479 = vshrl.u32 %v1409, 16
      %v1481 = vrot.slane %v1479, 4
      %v1482 = vshll.u32 %v1409, 16
      %v1484 = vrot.slane %v1482, 5
      %v1485 = vor.u32 %v1481, %v1484
      %v1486 = vrot.slane %v1485, 4
      %v1488 = vshll.u32 %v1410, 16
      %v1490 = vrot.slane %v1488, 5
      %v1491 = vsel %vm358, %v1486, %v1490
      %v1492 = vshrl.u32 %v1410, 16
      %v1494 = vrot.slane %v1492, 4
      %v1495 = vor.u32 %v1494, %v1490
      %v1496 = vrot.slane %v1495, 4
      %v1498 = vshll.u32 %v1411, 16
      %v1500 = vrot.slane %v1498, 5
      %v1501 = vsel %vm358, %v1496, %v1500
      %v1503 = vshrl.u32 %v1412, 16
      %v1505 = vrot.slane %v1503, 4
      %v1506 = vshll.u32 %v1412, 16
      %v1508 = vrot.slane %v1506, 5
      %v1509 = vor.u32 %v1505, %v1508
      %v1510 = vrot.slane %v1509, 4
      %v1512 = vshll.u32 %v1413, 16
      %v1514 = vrot.slane %v1512, 5
      %v1515 = vsel %vm358, %v1510, %v1514
      %v1516 = vshrl.u32 %v1413, 16
      %v1518 = vrot.slane %v1516, 4
      %v1519 = vor.u32 %v1518, %v1514
      %v1520 = vrot.slane %v1519, 4
      %v1522 = vshll.u32 %v1414, 16
      %v1524 = vrot.slane %v1522, 5
      %v1525 = vsel %vm358, %v1520, %v1524
      %v1527 = vshrl.u32 %v1415, 16
      %v1529 = vrot.slane %v1527, 4
      %v1530 = vshll.u32 %v1415, 16
      %v1532 = vrot.slane %v1530, 5
      %v1533 = vor.u32 %v1529, %v1532
      %v1534 = vrot.slane %v1533, 4
      %v1536 = vshll.u32 %v1416, 16
      %v1538 = vrot.slane %v1536, 5
      %v1539 = vsel %vm358, %v1534, %v1538
      %v1540 = vshrl.u32 %v1416, 16
      %v1542 = vrot.slane %v1540, 4
      %v1543 = vor.u32 %v1542, %v1538
      %v1544 = vrot.slane %v1543, 4
      %v1546 = vshll.u32 %v1417, 16
      %v1548 = vrot.slane %v1546, 5
      %v1549 = vsel %vm358, %v1544, %v1548
      %v1551 = vshrl.u32 %v1418, 16
      %v1553 = vrot.slane %v1551, 4
      %v1554 = vshll.u32 %v1418, 16
      %v1556 = vrot.slane %v1554, 5
      %v1557 = vor.u32 %v1553, %v1556
      %v1558 = vrot.slane %v1557, 4
      %v1560 = vshll.u32 %v1419, 16
      %v1562 = vrot.slane %v1560, 5
      %v1563 = vsel %vm358, %v1558, %v1562
      %v1564 = vshrl.u32 %v1419, 16
      %v1566 = vrot.slane %v1564, 4
      %v1567 = vor.u32 %v1566, %v1562
      %v1568 = vrot.slane %v1567, 4
      %v1570 = vshll.u32 %v1420, 16
      %v1572 = vrot.slane %v1570, 5
      %v1573 = vsel %vm358, %v1568, %v1572
      %v1575 = vshrl.u32 %v1421, 16
      %v1577 = vrot.slane %v1575, 4
      %v1578 = vshll.u32 %v1421, 16
      %v1580 = vrot.slane %v1578, 5
      %v1581 = vor.u32 %v1577, %v1580
      %v1582 = vrot.slane %v1581, 4
      %v1584 = vshll.u32 %v1422, 16
      %v1586 = vrot.slane %v1584, 5
      %v1587 = vsel %vm358, %v1582, %v1586
      %v1588 = vshrl.u32 %v1422, 16
      %v1590 = vrot.slane %v1588, 4
      %v1591 = vor.u32 %v1590, %v1586
      %v1592 = vrot.slane %v1591, 4
      %v1594 = vshll.u32 %v1423, 16
      %v1596 = vrot.slane %v1594, 5
      %v1597 = vsel %vm358, %v1592, %v1596
      %v1599 = vshrl.u32 %v1424, 16
      %v1601 = vrot.slane %v1599, 4
      %v1602 = vshll.u32 %v1424, 16
      %v1604 = vrot.slane %v1602, 5
      %v1605 = vor.u32 %v1601, %v1604
      %v1606 = vrot.slane %v1605, 4
      %v1608 = vshll.u32 %v1425, 16
      %v1610 = vrot.slane %v1608, 5
      %v1611 = vsel %vm358, %v1606, %v1610
      %v1612 = vshrl.u32 %v1425, 16
      %v1614 = vrot.slane %v1612, 4
      %v1615 = vor.u32 %v1614, %v1610
      %v1616 = vrot.slane %v1615, 4
      %v1618 = vshll.u32 %v1426, 16
      %v1620 = vrot.slane %v1618, 5
      %v1621 = vsel %vm358, %v1616, %v1620
      %v1623 = vshrl.u32 %v1427, 16
      %v1625 = vrot.slane %v1623, 4
      %v1626 = vshll.u32 %v1427, 16
      %v1628 = vrot.slane %v1626, 5
      %v1629 = vor.u32 %v1625, %v1628
      %v1630 = vrot.slane %v1629, 4
      %v1632 = vshll.u32 %v1428, 16
      %v1634 = vrot.slane %v1632, 5
      %v1635 = vsel %vm358, %v1630, %v1634
      %v1636 = vshrl.u32 %v1428, 16
      %v1638 = vrot.slane %v1636, 4
      %v1639 = vor.u32 %v1638, %v1634
      %v1640 = vrot.slane %v1639, 4
      %v1642 = vshll.u32 %v1429, 16
      %v1644 = vrot.slane %v1642, 5
      %v1645 = vsel %vm358, %v1640, %v1644
      %v1647 = vshrl.u32 %v1430, 16
      %v1649 = vrot.slane %v1647, 4
      %v1650 = vshll.u32 %v1430, 16
      %v1652 = vrot.slane %v1650, 5
      %v1653 = vor.u32 %v1649, %v1652
      %v1654 = vrot.slane %v1653, 4
      %v1656 = vshll.u32 %v1431, 16
      %v1658 = vrot.slane %v1656, 5
      %v1659 = vsel %vm358, %v1654, %v1658
      %v1660 = vshrl.u32 %v1431, 16
      %v1662 = vrot.slane %v1660, 4
      %v1663 = vor.u32 %v1662, %v1658
      %v1664 = vrot.slane %v1663, 4
      %v1666 = vshll.u32 %v1432, 16
      %v1668 = vrot.slane %v1666, 5
      %v1669 = vsel %vm358, %v1664, %v1668
      %v1671 = vshrl.u32 %v1433, 16
      %v1673 = vrot.slane %v1671, 4
      %v1674 = vshll.u32 %v1433, 16
      %v1676 = vrot.slane %v1674, 5
      %v1677 = vor.u32 %v1673, %v1676
      %v1678 = vrot.slane %v1677, 4
      %v1680 = vshll.u32 %v1434, 16
      %v1682 = vrot.slane %v1680, 5
      %v1683 = vsel %vm358, %v1678, %v1682
      %v1684 = vshrl.u32 %v1434, 16
      %v1686 = vrot.slane %v1684, 4
      %v1687 = vor.u32 %v1686, %v1682
      %v1688 = vrot.slane %v1687, 4
      %v1690 = vshll.u32 %v1435, 16
      %v1692 = vrot.slane %v1690, 5
      %v1693 = vsel %vm358, %v1688, %v1692
      %v1695 = vshrl.u32 %v1436, 16
      %v1697 = vrot.slane %v1695, 4
      %v1698 = vshll.u32 %v1436, 16
      %v1700 = vrot.slane %v1698, 5
      %v1701 = vor.u32 %v1697, %v1700
      %v1702 = vrot.slane %v1701, 4
      %v1704 = vshll.u32 %v1437, 16
      %v1706 = vrot.slane %v1704, 5
      %v1707 = vsel %vm358, %v1702, %v1706
      %v1708 = vshrl.u32 %v1437, 16
      %v1710 = vrot.slane %v1708, 4
      %v1711 = vor.u32 %v1710, %v1706
      %v1712 = vrot.slane %v1711, 4
      %v1714 = vshll.u32 %v1438, 16
      %v1716 = vrot.slane %v1714, 5
      %v1717 = vsel %vm358, %v1712, %v1716
      %v1719 = vshrl.u32 %v1439, 16
      %v1721 = vrot.slane %v1719, 4
      %v1722 = vshll.u32 %v1439, 16
      %v1724 = vrot.slane %v1722, 5
      %v1725 = vor.u32 %v1721, %v1724
      %v1726 = vrot.slane %v1725, 4
      %v1728 = vshll.u32 %v1440, 16
      %v1730 = vrot.slane %v1728, 5
      %v1731 = vsel %vm358, %v1726, %v1730
      %v1732 = vshrl.u32 %v1440, 16
      %v1734 = vrot.slane %v1732, 4
      %v1735 = vor.u32 %v1734, %v1730
      %v1736 = vrot.slane %v1735, 4
      %v1738 = vshll.u32 %v1441, 16
      %v1740 = vrot.slane %v1738, 5
      %v1741 = vsel %vm358, %v1736, %v1740
      %v1743 = vshrl.u32 %v1442, 16
      %v1745 = vrot.slane %v1743, 4
      %v1746 = vshll.u32 %v1442, 16
      %v1748 = vrot.slane %v1746, 5
      %v1749 = vor.u32 %v1745, %v1748
      %v1750 = vrot.slane %v1749, 4
      %v1752 = vshll.u32 %v1443, 16
      %v1754 = vrot.slane %v1752, 5
      %v1755 = vsel %vm358, %v1750, %v1754
      %v1756 = vshrl.u32 %v1443, 16
      %v1758 = vrot.slane %v1756, 4
      %v1759 = vor.u32 %v1758, %v1754
      %v1760 = vrot.slane %v1759, 4
      %v1762 = vshll.u32 %v1444, 16
      %v1764 = vrot.slane %v1762, 5
      %v1765 = vsel %vm358, %v1760, %v1764
      %v1767 = vshrl.u32 %v1445, 16
      %v1769 = vrot.slane %v1767, 4
      %v1770 = vshll.u32 %v1445, 16
      %v1772 = vrot.slane %v1770, 5
      %v1773 = vor.u32 %v1769, %v1772
      %v1774 = vrot.slane %v1773, 4
      %v1776 = vshll.u32 %v1446, 16
      %v1778 = vrot.slane %v1776, 5
      %v1779 = vsel %vm358, %v1774, %v1778
      %v1780 = vshrl.u32 %v1446, 16
      %v1782 = vrot.slane %v1780, 4
      %v1783 = vor.u32 %v1782, %v1778
      %v1784 = vrot.slane %v1783, 4
      %v1786 = vshll.u32 %v1447, 16
      %v1788 = vrot.slane %v1786, 5
      %v1789 = vsel %vm358, %v1784, %v1788
      %v1791 = vshrl.u32 %v1448, 16
      %v1793 = vrot.slane %v1791, 4
      %v1794 = vshll.u32 %v1448, 16
      %v1796 = vrot.slane %v1794, 5
      %v1797 = vor.u32 %v1793, %v1796
      %v1798 = vrot.slane %v1797, 4
      %v1800 = vshll.u32 %v1449, 16
      %v1802 = vrot.slane %v1800, 5
      %v1803 = vsel %vm358, %v1798, %v1802
      %v1804 = vshrl.u32 %v1449, 16
      %v1806 = vrot.slane %v1804, 4
      %v1807 = vor.u32 %v1806, %v1802
      %v1808 = vrot.slane %v1807, 4
      %v1810 = vshll.u32 %v1450, 16
      %v1812 = vrot.slane %v1810, 5
      %v1813 = vsel %vm358, %v1808, %v1812
      %v1815 = vshrl.u32 %v1451, 16
      %v1817 = vrot.slane %v1815, 4
      %v1818 = vshll.u32 %v1451, 16
      %v1820 = vrot.slane %v1818, 5
      %v1821 = vor.u32 %v1817, %v1820
      %v1822 = vrot.slane %v1821, 4
      %v1824 = vshll.u32 %v1452, 16
      %v1826 = vrot.slane %v1824, 5
      %v1827 = vsel %vm358, %v1822, %v1826
      %v1828 = vshrl.u32 %v1452, 16
      %v1830 = vrot.slane %v1828, 4
      %v1831 = vor.u32 %v1830, %v1826
      %v1832 = vrot.slane %v1831, 4
      %v1834 = vshll.u32 %v1453, 16
      %v1836 = vrot.slane %v1834, 5
      %v1837 = vsel %vm358, %v1832, %v1836
      %1838 = vrot.lane.b32.xlu0 %v1467, 16
      %v1839 = vpop.permute.xlu0 %1838
      %1840 = vrot.lane.b32.xlu0 %v1477, 16
      %v1841 = vpop.permute.xlu0 %1840
      %1842 = vrot.lane.b32.xlu0 %v1491, 16
      %v1843 = vpop.permute.xlu0 %1842
      %1844 = vrot.lane.b32.xlu0 %v1501, 16
      %v1845 = vpop.permute.xlu0 %1844
      %1846 = vrot.lane.b32.xlu0 %v1515, 16
      %v1847 = vpop.permute.xlu0 %1846
      %1848 = vrot.lane.b32.xlu0 %v1525, 16
      %v1849 = vpop.permute.xlu0 %1848
      %1850 = vrot.lane.b32.xlu0 %v1539, 16
      %v1851 = vpop.permute.xlu0 %1850
      %1852 = vrot.lane.b32.xlu0 %v1549, 16
      %v1853 = vpop.permute.xlu0 %1852
      %1854 = vrot.lane.b32.xlu0 %v1563, 16
      %v1855 = vpop.permute.xlu0 %1854
      %1856 = vrot.lane.b32.xlu0 %v1573, 16
      %v1857 = vpop.permute.xlu0 %1856
      %1858 = vrot.lane.b32.xlu0 %v1587, 16
      %v1859 = vpop.permute.xlu0 %1858
      %1860 = vrot.lane.b32.xlu0 %v1597, 16
      %v1861 = vpop.permute.xlu0 %1860
      %1862 = vrot.lane.b32.xlu0 %v1611, 16
      %v1863 = vpop.permute.xlu0 %1862
      %1864 = vrot.lane.b32.xlu0 %v1621, 16
      %v1865 = vpop.permute.xlu0 %1864
      %1866 = vrot.lane.b32.xlu0 %v1635, 16
      %v1867 = vpop.permute.xlu0 %1866
      %1868 = vrot.lane.b32.xlu0 %v1645, 16
      %v1869 = vpop.permute.xlu0 %1868
      %1870 = vrot.lane.b32.xlu0 %v1659, 16
      %v1871 = vpop.permute.xlu0 %1870
      %1872 = vrot.lane.b32.xlu0 %v1669, 16
      %v1873 = vpop.permute.xlu0 %1872
      %1874 = vrot.lane.b32.xlu0 %v1683, 16
      %v1875 = vpop.permute.xlu0 %1874
      %1876 = vrot.lane.b32.xlu0 %v1693, 16
      %v1877 = vpop.permute.xlu0 %1876
      %1878 = vrot.lane.b32.xlu0 %v1707, 16
      %v1879 = vpop.permute.xlu0 %1878
      %1880 = vrot.lane.b32.xlu0 %v1717, 16
      %v1881 = vpop.permute.xlu0 %1880
      %1882 = vrot.lane.b32.xlu0 %v1731, 16
      %v1883 = vpop.permute.xlu0 %1882
      %1884 = vrot.lane.b32.xlu0 %v1741, 16
      %v1885 = vpop.permute.xlu0 %1884
      %1886 = vrot.lane.b32.xlu0 %v1755, 16
      %v1887 = vpop.permute.xlu0 %1886
      %1888 = vrot.lane.b32.xlu0 %v1765, 16
      %v1889 = vpop.permute.xlu0 %1888
      %1890 = vrot.lane.b32.xlu0 %v1779, 16
      %v1891 = vpop.permute.xlu0 %1890
      %1892 = vrot.lane.b32.xlu0 %v1789, 16
      %v1893 = vpop.permute.xlu0 %1892
      %1894 = vrot.lane.b32.xlu0 %v1803, 16
      %v1895 = vpop.permute.xlu0 %1894
      %1896 = vrot.lane.b32.xlu0 %v1813, 16
      %v1897 = vpop.permute.xlu0 %1896
      %1898 = vrot.lane.b32.xlu0 %v1827, 16
      %v1899 = vpop.permute.xlu0 %1898
      %1900 = vrot.lane.b32.xlu0 %v1837, 16
      %v1901 = vpop.permute.xlu0 %1900
      %vm1934 = vcmask 158848
      %1935 = vst.msk [vmem:[#allocation2] sm:$0xf] %vm1934, %v1839
      %1936 = vst.msk [vmem:[#allocation2 + $0x4] sm:$0xf] %vm1934, %v1841
      %1937 = vst.msk [vmem:[#allocation2 + $0x8] sm:$0xf] %vm1934, %v1843
      %1938 = vst.msk [vmem:[#allocation2 + $0xc] sm:$0xf] %vm1934, %v1845
      %1939 = vst.msk [vmem:[#allocation2 + $0x10] sm:$0xf] %vm1934, %v1847
      %1940 = vst.msk [vmem:[#allocation2 + $0x14] sm:$0xf] %vm1934, %v1849
      %1941 = vst.msk [vmem:[#allocation2 + $0x18] sm:$0xf] %vm1934, %v1851
      %1942 = vst.msk [vmem:[#allocation2 + $0x1c] sm:$0xf] %vm1934, %v1853
      %1943 = vst.msk [vmem:[#allocation2 + $0x20] sm:$0xf] %vm1934, %v1855
      %1944 = vst.msk [vmem:[#allocation2 + $0x24] sm:$0xf] %vm1934, %v1857
      %1945 = vst.msk [vmem:[#allocation2 + $0x28] sm:$0xf] %vm1934, %v1859
      %1946 = vst.msk [vmem:[#allocation2 + $0x2c] sm:$0xf] %vm1934, %v1861
      %1947 = vst.msk [vmem:[#allocation2 + $0x30] sm:$0xf] %vm1934, %v1863
      %1948 = vst.msk [vmem:[#allocation2 + $0x34] sm:$0xf] %vm1934, %v1865
      %1949 = vst.msk [vmem:[#allocation2 + $0x38] sm:$0xf] %vm1934, %v1867
      %1950 = vst.msk [vmem:[#allocation2 + $0x3c] sm:$0xf] %vm1934, %v1869
      %1951 = vst.msk [vmem:[#allocation2 + $0x40] sm:$0xf] %vm1934, %v1871
      %1952 = vst.msk [vmem:[#allocation2 + $0x44] sm:$0xf] %vm1934, %v1873
      %1953 = vst.msk [vmem:[#allocation2 + $0x48] sm:$0xf] %vm1934, %v1875
      %1954 = vst.msk [vmem:[#allocation2 + $0x4c] sm:$0xf] %vm1934, %v1877
      %1955 = vst.msk [vmem:[#allocation2 + $0x50] sm:$0xf] %vm1934, %v1879
      %1956 = vst.msk [vmem:[#allocation2 + $0x54] sm:$0xf] %vm1934, %v1881
      %1957 = vst.msk [vmem:[#allocation2 + $0x58] sm:$0xf] %vm1934, %v1883
      %1958 = vst.msk [vmem:[#allocation2 + $0x5c] sm:$0xf] %vm1934, %v1885
      %1959 = vst.msk [vmem:[#allocation2 + $0x60] sm:$0xf] %vm1934, %v1887
      %1960 = vst.msk [vmem:[#allocation2 + $0x64] sm:$0xf] %vm1934, %v1889
      %1961 = vst.msk [vmem:[#allocation2 + $0x68] sm:$0xf] %vm1934, %v1891
      %1962 = vst.msk [vmem:[#allocation2 + $0x6c] sm:$0xf] %vm1934, %v1893
      %1963 = vst.msk [vmem:[#allocation2 + $0x70] sm:$0xf] %vm1934, %v1895
      %1964 = vst.msk [vmem:[#allocation2 + $0x74] sm:$0xf] %vm1934, %v1897
      %1965 = vst.msk [vmem:[#allocation2 + $0x78] sm:$0xf] %vm1934, %v1899
      %1966 = vst.msk [vmem:[#allocation2 + $0x7c] sm:$0xf] %vm1934, %v1901
      %v1967 = vld [vmem:[%s1212] sm:$0xe]
      %v1968 = vld [vmem:[%s1212 + $0x4] sm:$0xf]
      %v1969 = vld [vmem:[%s1212 + $0x8] sm:$0x1]
      %v1970 = vld [vmem:[%s1212 + $0xc] sm:$0xe]
      %v1971 = vld [vmem:[%s1212 + $0x10] sm:$0xf]
      %v1972 = vld [vmem:[%s1212 + $0x14] sm:$0x1]
      %v1973 = vld [vmem:[%s1212 + $0x18] sm:$0xe]
      %v1974 = vld [vmem:[%s1212 + $0x1c] sm:$0xf]
      %v1975 = vld [vmem:[%s1212 + $0x20] sm:$0x1]
      %v1976 = vld [vmem:[%s1212 + $0x24] sm:$0xe]
      %v1977 = vld [vmem:[%s1212 + $0x28] sm:$0xf]
      %v1978 = vld [vmem:[%s1212 + $0x2c] sm:$0x1]
      %v1979 = vld [vmem:[%s1212 + $0x30] sm:$0xe]
      %v1980 = vld [vmem:[%s1212 + $0x34] sm:$0xf]
      %v1981 = vld [vmem:[%s1212 + $0x38] sm:$0x1]
      %v1982 = vld [vmem:[%s1212 + $0x3c] sm:$0xe]
      %v1983 = vld [vmem:[%s1212 + $0x40] sm:$0xf]
      %v1984 = vld [vmem:[%s1212 + $0x44] sm:$0x1]
      %v1985 = vld [vmem:[%s1212 + $0x48] sm:$0xe]
      %v1986 = vld [vmem:[%s1212 + $0x4c] sm:$0xf]
      %v1987 = vld [vmem:[%s1212 + $0x50] sm:$0x1]
      %v1988 = vld [vmem:[%s1212 + $0x54] sm:$0xe]
      %v1989 = vld [vmem:[%s1212 + $0x58] sm:$0xf]
      %v1990 = vld [vmem:[%s1212 + $0x5c] sm:$0x1]
      %v1991 = vld [vmem:[%s1212 + $0x60] sm:$0xe]
      %v1992 = vld [vmem:[%s1212 + $0x64] sm:$0xf]
      %v1993 = vld [vmem:[%s1212 + $0x68] sm:$0x1]
      %v1994 = vld [vmem:[%s1212 + $0x6c] sm:$0xe]
      %v1995 = vld [vmem:[%s1212 + $0x70] sm:$0xf]
      %v1996 = vld [vmem:[%s1212 + $0x74] sm:$0x1]
      %v1997 = vld [vmem:[%s1212 + $0x78] sm:$0xe]
      %v1998 = vld [vmem:[%s1212 + $0x7c] sm:$0xf]
      %v1999 = vld [vmem:[%s1212 + $0x80] sm:$0x1]
      %v2000 = vld [vmem:[%s1212 + $0x84] sm:$0xe]
      %v2001 = vld [vmem:[%s1212 + $0x88] sm:$0xf]
      %v2002 = vld [vmem:[%s1212 + $0x8c] sm:$0x1]
      %v2003 = vld [vmem:[%s1212 + $0x90] sm:$0xe]
      %v2004 = vld [vmem:[%s1212 + $0x94] sm:$0xf]
      %v2005 = vld [vmem:[%s1212 + $0x98] sm:$0x1]
      %v2006 = vld [vmem:[%s1212 + $0x9c] sm:$0xe]
      %v2007 = vld [vmem:[%s1212 + $0xa0] sm:$0xf]
      %v2008 = vld [vmem:[%s1212 + $0xa4] sm:$0x1]
      %v2009 = vld [vmem:[%s1212 + $0xa8] sm:$0xe]
      %v2010 = vld [vmem:[%s1212 + $0xac] sm:$0xf]
      %v2011 = vld [vmem:[%s1212 + $0xb0] sm:$0x1]
      %v2012 = vld [vmem:[%s1212 + $0xb4] sm:$0xe]
      %v2013 = vld [vmem:[%s1212 + $0xb8] sm:$0xf]
      %v2014 = vld [vmem:[%s1212 + $0xbc] sm:$0x1]
      %v2063 = vrot.slane %v1967, 5
      %v2064 = vrot.slane %v2063, 4
      %v2065 = vrot.slane %v1968, 5
      %v2066 = vsel %vm970, %v2064, %v2065
      %v2067 = vrot.slane %v2065, 4
      %v2068 = vrot.slane %v1969, 5
      %v2069 = vsel %vm970, %v2067, %v2068
      %v2070 = vrot.slane %v1970, 5
      %v2071 = vrot.slane %v2070, 4
      %v2072 = vrot.slane %v1971, 5
      %v2073 = vsel %vm970, %v2071, %v2072
      %v2074 = vrot.slane %v2072, 4
      %v2075 = vrot.slane %v1972, 5
      %v2076 = vsel %vm970, %v2074, %v2075
      %v2077 = vrot.slane %v1973, 5
      %v2078 = vrot.slane %v2077, 4
      %v2079 = vrot.slane %v1974, 5
      %v2080 = vsel %vm970, %v2078, %v2079
      %v2081 = vrot.slane %v2079, 4
      %v2082 = vrot.slane %v1975, 5
      %v2083 = vsel %vm970, %v2081, %v2082
      %v2084 = vrot.slane %v1976, 5
      %v2085 = vrot.slane %v2084, 4
      %v2086 = vrot.slane %v1977, 5
      %v2087 = vsel %vm970, %v2085, %v2086
      %v2088 = vrot.slane %v2086, 4
      %v2089 = vrot.slane %v1978, 5
      %v2090 = vsel %vm970, %v2088, %v2089
      %v2091 = vrot.slane %v1979, 5
      %v2092 = vrot.slane %v2091, 4
      %v2093 = vrot.slane %v1980, 5
      %v2094 = vsel %vm970, %v2092, %v2093
      %v2095 = vrot.slane %v2093, 4
      %v2096 = vrot.slane %v1981, 5
      %v2097 = vsel %vm970, %v2095, %v2096
      %v2098 = vrot.slane %v1982, 5
      %v2099 = vrot.slane %v2098, 4
      %v2100 = vrot.slane %v1983, 5
      %v2101 = vsel %vm970, %v2099, %v2100
      %v2102 = vrot.slane %v2100, 4
      %v2103 = vrot.slane %v1984, 5
      %v2104 = vsel %vm970, %v2102, %v2103
      %v2105 = vrot.slane %v1985, 5
      %v2106 = vrot.slane %v2105, 4
      %v2107 = vrot.slane %v1986, 5
      %v2108 = vsel %vm970, %v2106, %v2107
      %v2109 = vrot.slane %v2107, 4
      %v2110 = vrot.slane %v1987, 5
      %v2111 = vsel %vm970, %v2109, %v2110
      %v2112 = vrot.slane %v1988, 5
      %v2113 = vrot.slane %v2112, 4
      %v2114 = vrot.slane %v1989, 5
      %v2115 = vsel %vm970, %v2113, %v2114
      %v2116 = vrot.slane %v2114, 4
      %v2117 = vrot.slane %v1990, 5
      %v2118 = vsel %vm970, %v2116, %v2117
      %v2119 = vrot.slane %v1991, 5
      %v2120 = vrot.slane %v2119, 4
      %v2121 = vrot.slane %v1992, 5
      %v2122 = vsel %vm970, %v2120, %v2121
      %v2123 = vrot.slane %v2121, 4
      %v2124 = vrot.slane %v1993, 5
      %v2125 = vsel %vm970, %v2123, %v2124
      %v2126 = vrot.slane %v1994, 5
      %v2127 = vrot.slane %v2126, 4
      %v2128 = vrot.slane %v1995, 5
      %v2129 = vsel %vm970, %v2127, %v2128
      %v2130 = vrot.slane %v2128, 4
      %v2131 = vrot.slane %v1996, 5
      %v2132 = vsel %vm970, %v2130, %v2131
      %v2133 = vrot.slane %v1997, 5
      %v2134 = vrot.slane %v2133, 4
      %v2135 = vrot.slane %v1998, 5
      %v2136 = vsel %vm970, %v2134, %v2135
      %v2137 = vrot.slane %v2135, 4
      %v2138 = vrot.slane %v1999, 5
      %v2139 = vsel %vm970, %v2137, %v2138
      %v2140 = vrot.slane %v2000, 5
      %v2141 = vrot.slane %v2140, 4
      %v2142 = vrot.slane %v2001, 5
      %v2143 = vsel %vm970, %v2141, %v2142
      %v2144 = vrot.slane %v2142, 4
      %v2145 = vrot.slane %v2002, 5
      %v2146 = vsel %vm970, %v2144, %v2145
      %v2147 = vrot.slane %v2003, 5
      %v2148 = vrot.slane %v2147, 4
      %v2149 = vrot.slane %v2004, 5
      %v2150 = vsel %vm970, %v2148, %v2149
      %v2151 = vrot.slane %v2149, 4
      %v2152 = vrot.slane %v2005, 5
      %v2153 = vsel %vm970, %v2151, %v2152
      %v2154 = vrot.slane %v2006, 5
      %v2155 = vrot.slane %v2154, 4
      %v2156 = vrot.slane %v2007, 5
      %v2157 = vsel %vm970, %v2155, %v2156
      %v2158 = vrot.slane %v2156, 4
      %v2159 = vrot.slane %v2008, 5
      %v2160 = vsel %vm970, %v2158, %v2159
      %v2161 = vrot.slane %v2009, 5
      %v2162 = vrot.slane %v2161, 4
      %v2163 = vrot.slane %v2010, 5
      %v2164 = vsel %vm970, %v2162, %v2163
      %v2165 = vrot.slane %v2163, 4
      %v2166 = vrot.slane %v2011, 5
      %v2167 = vsel %vm970, %v2165, %v2166
      %v2168 = vrot.slane %v2012, 5
      %v2169 = vrot.slane %v2168, 4
      %v2170 = vrot.slane %v2013, 5
      %v2171 = vsel %vm970, %v2169, %v2170
      %v2172 = vrot.slane %v2170, 4
      %v2173 = vrot.slane %v2014, 5
      %v2174 = vsel %vm970, %v2172, %v2173
      %2175 = vrot.lane.b32.xlu0 %v2066, 20
      %v2176 = vpop.permute.xlu0 %2175
      %2177 = vrot.lane.b32.xlu0 %v2069, 20
      %v2178 = vpop.permute.xlu0 %2177
      %2179 = vrot.lane.b32.xlu0 %v2073, 20
      %v2180 = vpop.permute.xlu0 %2179
      %2181 = vrot.lane.b32.xlu0 %v2076, 20
      %v2182 = vpop.permute.xlu0 %2181
      %2183 = vrot.lane.b32.xlu0 %v2080, 20
      %v2184 = vpop.permute.xlu0 %2183
      %2185 = vrot.lane.b32.xlu0 %v2083, 20
      %v2186 = vpop.permute.xlu0 %2185
      %2187 = vrot.lane.b32.xlu0 %v2087, 20
      %v2188 = vpop.permute.xlu0 %2187
      %2189 = vrot.lane.b32.xlu0 %v2090, 20
      %v2190 = vpop.permute.xlu0 %2189
      %2191 = vrot.lane.b32.xlu0 %v2094, 20
      %v2192 = vpop.permute.xlu0 %2191
      %2193 = vrot.lane.b32.xlu0 %v2097, 20
      %v2194 = vpop.permute.xlu0 %2193
      %2195 = vrot.lane.b32.xlu0 %v2101, 20
      %v2196 = vpop.permute.xlu0 %2195
      %2197 = vrot.lane.b32.xlu0 %v2104, 20
      %v2198 = vpop.permute.xlu0 %2197
      %2199 = vrot.lane.b32.xlu0 %v2108, 20
      %v2200 = vpop.permute.xlu0 %2199
      %2201 = vrot.lane.b32.xlu0 %v2111, 20
      %v2202 = vpop.permute.xlu0 %2201
      %2203 = vrot.lane.b32.xlu0 %v2115, 20
      %v2204 = vpop.permute.xlu0 %2203
      %2205 = vrot.lane.b32.xlu0 %v2118, 20
      %v2206 = vpop.permute.xlu0 %2205
      %2207 = vrot.lane.b32.xlu0 %v2122, 20
      %v2208 = vpop.permute.xlu0 %2207
      %2209 = vrot.lane.b32.xlu0 %v2125, 20
      %v2210 = vpop.permute.xlu0 %2209
      %2211 = vrot.lane.b32.xlu0 %v2129, 20
      %v2212 = vpop.permute.xlu0 %2211
      %2213 = vrot.lane.b32.xlu0 %v2132, 20
      %v2214 = vpop.permute.xlu0 %2213
      %2215 = vrot.lane.b32.xlu0 %v2136, 20
      %v2216 = vpop.permute.xlu0 %2215
      %2217 = vrot.lane.b32.xlu0 %v2139, 20
      %v2218 = vpop.permute.xlu0 %2217
      %2219 = vrot.lane.b32.xlu0 %v2143, 20
      %v2220 = vpop.permute.xlu0 %2219
      %2221 = vrot.lane.b32.xlu0 %v2146, 20
      %v2222 = vpop.permute.xlu0 %2221
      %2223 = vrot.lane.b32.xlu0 %v2150, 20
      %v2224 = vpop.permute.xlu0 %2223
      %2225 = vrot.lane.b32.xlu0 %v2153, 20
      %v2226 = vpop.permute.xlu0 %2225
      %2227 = vrot.lane.b32.xlu0 %v2157, 20
      %v2228 = vpop.permute.xlu0 %2227
      %2229 = vrot.lane.b32.xlu0 %v2160, 20
      %v2230 = vpop.permute.xlu0 %2229
      %2231 = vrot.lane.b32.xlu0 %v2164, 20
      %v2232 = vpop.permute.xlu0 %2231
      %2233 = vrot.lane.b32.xlu0 %v2167, 20
      %v2234 = vpop.permute.xlu0 %2233
      %2235 = vrot.lane.b32.xlu0 %v2171, 20
      %v2236 = vpop.permute.xlu0 %2235
      %2237 = vrot.lane.b32.xlu0 %v2174, 20
      %v2238 = vpop.permute.xlu0 %2237
      %vm2271 = vcmask 191648
      %2272 = vst.msk [vmem:[#allocation2] sm:$0xf] %vm2271, %v2176
      %2273 = vst.msk [vmem:[#allocation2 + $0x4] sm:$0xf] %vm2271, %v2178
      %2274 = vst.msk [vmem:[#allocation2 + $0x8] sm:$0xf] %vm2271, %v2180
      %2275 = vst.msk [vmem:[#allocation2 + $0xc] sm:$0xf] %vm2271, %v2182
      %2276 = vst.msk [vmem:[#allocation2 + $0x10] sm:$0xf] %vm2271, %v2184
      %2277 = vst.msk [vmem:[#allocation2 + $0x14] sm:$0xf] %vm2271, %v2186
      %2278 = vst.msk [vmem:[#allocation2 + $0x18] sm:$0xf] %vm2271, %v2188
      %2279 = vst.msk [vmem:[#allocation2 + $0x1c] sm:$0xf] %vm2271, %v2190
      %2280 = vst.msk [vmem:[#allocation2 + $0x20] sm:$0xf] %vm2271, %v2192
      %2281 = vst.msk [vmem:[#allocation2 + $0x24] sm:$0xf] %vm2271, %v2194
      %2282 = vst.msk [vmem:[#allocation2 + $0x28] sm:$0xf] %vm2271, %v2196
      %2283 = vst.msk [vmem:[#allocation2 + $0x2c] sm:$0xf] %vm2271, %v2198
      %2284 = vst.msk [vmem:[#allocation2 + $0x30] sm:$0xf] %vm2271, %v2200
      %2285 = vst.msk [vmem:[#allocation2 + $0x34] sm:$0xf] %vm2271, %v2202
      %2286 = vst.msk [vmem:[#allocation2 + $0x38] sm:$0xf] %vm2271, %v2204
      %2287 = vst.msk [vmem:[#allocation2 + $0x3c] sm:$0xf] %vm2271, %v2206
      %2288 = vst.msk [vmem:[#allocation2 + $0x40] sm:$0xf] %vm2271, %v2208
      %2289 = vst.msk [vmem:[#allocation2 + $0x44] sm:$0xf] %vm2271, %v2210
      %2290 = vst.msk [vmem:[#allocation2 + $0x48] sm:$0xf] %vm2271, %v2212
      %2291 = vst.msk [vmem:[#allocation2 + $0x4c] sm:$0xf] %vm2271, %v2214
      %2292 = vst.msk [vmem:[#allocation2 + $0x50] sm:$0xf] %vm2271, %v2216
      %2293 = vst.msk [vmem:[#allocation2 + $0x54] sm:$0xf] %vm2271, %v2218
      %2294 = vst.msk [vmem:[#allocation2 + $0x58] sm:$0xf] %vm2271, %v2220
      %2295 = vst.msk [vmem:[#allocation2 + $0x5c] sm:$0xf] %vm2271, %v2222
      %2296 = vst.msk [vmem:[#allocation2 + $0x60] sm:$0xf] %vm2271, %v2224
      %2297 = vst.msk [vmem:[#allocation2 + $0x64] sm:$0xf] %vm2271, %v2226
      %2298 = vst.msk [vmem:[#allocation2 + $0x68] sm:$0xf] %vm2271, %v2228
      %2299 = vst.msk [vmem:[#allocation2 + $0x6c] sm:$0xf] %vm2271, %v2230
      %2300 = vst.msk [vmem:[#allocation2 + $0x70] sm:$0xf] %vm2271, %v2232
      %2301 = vst.msk [vmem:[#allocation2 + $0x74] sm:$0xf] %vm2271, %v2234
      %2302 = vst.msk [vmem:[#allocation2 + $0x78] sm:$0xf] %vm2271, %v2236
      %2303 = vst.msk [vmem:[#allocation2 + $0x7c] sm:$0xf] %vm2271, %v2238
      %s2304 = scalar_lea.vmem %s198, 24
      %v2305 = vld [vmem:[%s2304] sm:$0xf]
      %v2306 = vld [vmem:[%s2304 + $0x4] sm:$0xf]
      %v2307 = vld [vmem:[%s2304 + $0xc] sm:$0xf]
      %v2308 = vld [vmem:[%s2304 + $0x10] sm:$0xf]
      %v2309 = vld [vmem:[%s2304 + $0x18] sm:$0xf]
      %v2310 = vld [vmem:[%s2304 + $0x1c] sm:$0xf]
      %v2311 = vld [vmem:[%s2304 + $0x24] sm:$0xf]
      %v2312 = vld [vmem:[%s2304 + $0x28] sm:$0xf]
      %v2313 = vld [vmem:[%s2304 + $0x30] sm:$0xf]
      %v2314 = vld [vmem:[%s2304 + $0x34] sm:$0xf]
      %v2315 = vld [vmem:[%s2304 + $0x3c] sm:$0xf]
      %v2316 = vld [vmem:[%s2304 + $0x40] sm:$0xf]
      %v2317 = vld [vmem:[%s2304 + $0x48] sm:$0xf]
      %v2318 = vld [vmem:[%s2304 + $0x4c] sm:$0xf]
      %v2319 = vld [vmem:[%s2304 + $0x54] sm:$0xf]
      %v2320 = vld [vmem:[%s2304 + $0x58] sm:$0xf]
      %v2321 = vld [vmem:[%s2304 + $0x60] sm:$0xf]
      %v2322 = vld [vmem:[%s2304 + $0x64] sm:$0xf]
      %v2323 = vld [vmem:[%s2304 + $0x6c] sm:$0xf]
      %v2324 = vld [vmem:[%s2304 + $0x70] sm:$0xf]
      %v2325 = vld [vmem:[%s2304 + $0x78] sm:$0xf]
      %v2326 = vld [vmem:[%s2304 + $0x7c] sm:$0xf]
      %v2327 = vld [vmem:[%s2304 + $0x84] sm:$0xf]
      %v2328 = vld [vmem:[%s2304 + $0x88] sm:$0xf]
      %v2329 = vld [vmem:[%s2304 + $0x90] sm:$0xf]
      %v2330 = vld [vmem:[%s2304 + $0x94] sm:$0xf]
      %v2331 = vld [vmem:[%s2304 + $0x9c] sm:$0xf]
      %v2332 = vld [vmem:[%s2304 + $0xa0] sm:$0xf]
      %v2333 = vld [vmem:[%s2304 + $0xa8] sm:$0xf]
      %v2334 = vld [vmem:[%s2304 + $0xac] sm:$0xf]
      %v2335 = vld [vmem:[%s2304 + $0xb4] sm:$0xf]
      %v2336 = vld [vmem:[%s2304 + $0xb8] sm:$0xf]
      %2369 = vrot.lane.b32.xlu0 %v2305, 24
      %v2370 = vpop.permute.xlu0 %2369
      %2371 = vrot.lane.b32.xlu0 %v2306, 24
      %v2372 = vpop.permute.xlu0 %2371
      %2373 = vrot.lane.b32.xlu0 %v2307, 24
      %v2374 = vpop.permute.xlu0 %2373
      %2375 = vrot.lane.b32.xlu0 %v2308, 24
      %v2376 = vpop.permute.xlu0 %2375
      %2377 = vrot.lane.b32.xlu0 %v2309, 24
      %v2378 = vpop.permute.xlu0 %2377
      %2379 = vrot.lane.b32.xlu0 %v2310, 24
      %v2380 = vpop.permute.xlu0 %2379
      %2381 = vrot.lane.b32.xlu0 %v2311, 24
      %v2382 = vpop.permute.xlu0 %2381
      %2383 = vrot.lane.b32.xlu0 %v2312, 24
      %v2384 = vpop.permute.xlu0 %2383
      %2385 = vrot.lane.b32.xlu0 %v2313, 24
      %v2386 = vpop.permute.xlu0 %2385
      %2387 = vrot.lane.b32.xlu0 %v2314, 24
      %v2388 = vpop.permute.xlu0 %2387
      %2389 = vrot.lane.b32.xlu0 %v2315, 24
      %v2390 = vpop.permute.xlu0 %2389
      %2391 = vrot.lane.b32.xlu0 %v2316, 24
      %v2392 = vpop.permute.xlu0 %2391
      %2393 = vrot.lane.b32.xlu0 %v2317, 24
      %v2394 = vpop.permute.xlu0 %2393
      %2395 = vrot.lane.b32.xlu0 %v2318, 24
      %v2396 = vpop.permute.xlu0 %2395
      %2397 = vrot.lane.b32.xlu0 %v2319, 24
      %v2398 = vpop.permute.xlu0 %2397
      %2399 = vrot.lane.b32.xlu0 %v2320, 24
      %v2400 = vpop.permute.xlu0 %2399
      %2401 = vrot.lane.b32.xlu0 %v2321, 24
      %v2402 = vpop.permute.xlu0 %2401
      %2403 = vrot.lane.b32.xlu0 %v2322, 24
      %v2404 = vpop.permute.xlu0 %2403
      %2405 = vrot.lane.b32.xlu0 %v2323, 24
      %v2406 = vpop.permute.xlu0 %2405
      %2407 = vrot.lane.b32.xlu0 %v2324, 24
      %v2408 = vpop.permute.xlu0 %2407
      %2409 = vrot.lane.b32.xlu0 %v2325, 24
      %v2410 = vpop.permute.xlu0 %2409
      %2411 = vrot.lane.b32.xlu0 %v2326, 24
      %v2412 = vpop.permute.xlu0 %2411
      %2413 = vrot.lane.b32.xlu0 %v2327, 24
      %v2414 = vpop.permute.xlu0 %2413
      %2415 = vrot.lane.b32.xlu0 %v2328, 24
      %v2416 = vpop.permute.xlu0 %2415
      %2417 = vrot.lane.b32.xlu0 %v2329, 24
      %v2418 = vpop.permute.xlu0 %2417
      %2419 = vrot.lane.b32.xlu0 %v2330, 24
      %v2420 = vpop.permute.xlu0 %2419
      %2421 = vrot.lane.b32.xlu0 %v2331, 24
      %v2422 = vpop.permute.xlu0 %2421
      %2423 = vrot.lane.b32.xlu0 %v2332, 24
      %v2424 = vpop.permute.xlu0 %2423
      %2425 = vrot.lane.b32.xlu0 %v2333, 24
      %v2426 = vpop.permute.xlu0 %2425
      %2427 = vrot.lane.b32.xlu0 %v2334, 24
      %v2428 = vpop.permute.xlu0 %2427
      %2429 = vrot.lane.b32.xlu0 %v2335, 24
      %v2430 = vpop.permute.xlu0 %2429
      %2431 = vrot.lane.b32.xlu0 %v2336, 24
      %v2432 = vpop.permute.xlu0 %2431
      %vm2465 = vcmask 224448
      %2466 = vst.msk [vmem:[#allocation2] sm:$0xf] %vm2465, %v2370
      %2467 = vst.msk [vmem:[#allocation2 + $0x4] sm:$0xf] %vm2465, %v2372
      %2468 = vst.msk [vmem:[#allocation2 + $0x8] sm:$0xf] %vm2465, %v2374
      %2469 = vst.msk [vmem:[#allocation2 + $0xc] sm:$0xf] %vm2465, %v2376
      %2470 = vst.msk [vmem:[#allocation2 + $0x10] sm:$0xf] %vm2465, %v2378
      %2471 = vst.msk [vmem:[#allocation2 + $0x14] sm:$0xf] %vm2465, %v2380
      %2472 = vst.msk [vmem:[#allocation2 + $0x18] sm:$0xf] %vm2465, %v2382
      %2473 = vst.msk [vmem:[#allocation2 + $0x1c] sm:$0xf] %vm2465, %v2384
      %2474 = vst.msk [vmem:[#allocation2 + $0x20] sm:$0xf] %vm2465, %v2386
      %2475 = vst.msk [vmem:[#allocation2 + $0x24] sm:$0xf] %vm2465, %v2388
      %2476 = vst.msk [vmem:[#allocation2 + $0x28] sm:$0xf] %vm2465, %v2390
      %2477 = vst.msk [vmem:[#allocation2 + $0x2c] sm:$0xf] %vm2465, %v2392
      %2478 = vst.msk [vmem:[#allocation2 + $0x30] sm:$0xf] %vm2465, %v2394
      %2479 = vst.msk [vmem:[#allocation2 + $0x34] sm:$0xf] %vm2465, %v2396
      %2480 = vst.msk [vmem:[#allocation2 + $0x38] sm:$0xf] %vm2465, %v2398
      %2481 = vst.msk [vmem:[#allocation2 + $0x3c] sm:$0xf] %vm2465, %v2400
      %2482 = vst.msk [vmem:[#allocation2 + $0x40] sm:$0xf] %vm2465, %v2402
      %2483 = vst.msk [vmem:[#allocation2 + $0x44] sm:$0xf] %vm2465, %v2404
      %2484 = vst.msk [vmem:[#allocation2 + $0x48] sm:$0xf] %vm2465, %v2406
      %2485 = vst.msk [vmem:[#allocation2 + $0x4c] sm:$0xf] %vm2465, %v2408
      %2486 = vst.msk [vmem:[#allocation2 + $0x50] sm:$0xf] %vm2465, %v2410
      %2487 = vst.msk [vmem:[#allocation2 + $0x54] sm:$0xf] %vm2465, %v2412
      %2488 = vst.msk [vmem:[#allocation2 + $0x58] sm:$0xf] %vm2465, %v2414
      %2489 = vst.msk [vmem:[#allocation2 + $0x5c] sm:$0xf] %vm2465, %v2416
      %2490 = vst.msk [vmem:[#allocation2 + $0x60] sm:$0xf] %vm2465, %v2418
      %2491 = vst.msk [vmem:[#allocation2 + $0x64] sm:$0xf] %vm2465, %v2420
      %2492 = vst.msk [vmem:[#allocation2 + $0x68] sm:$0xf] %vm2465, %v2422
      %2493 = vst.msk [vmem:[#allocation2 + $0x6c] sm:$0xf] %vm2465, %v2424
      %2494 = vst.msk [vmem:[#allocation2 + $0x70] sm:$0xf] %vm2465, %v2426
      %2495 = vst.msk [vmem:[#allocation2 + $0x74] sm:$0xf] %vm2465, %v2428
      %2496 = vst.msk [vmem:[#allocation2 + $0x78] sm:$0xf] %vm2465, %v2430
      %2497 = vst.msk [vmem:[#allocation2 + $0x7c] sm:$0xf] %vm2465, %v2432
      %v2498 = vld [vmem:[%s2304] sm:$0xf]
      %v2499 = vld [vmem:[%s2304 + $0x4] sm:$0xf]
      %v2500 = vld [vmem:[%s2304 + $0x8] sm:$0x1]
      %v2501 = vld [vmem:[%s2304 + $0xc] sm:$0xf]
      %v2502 = vld [vmem:[%s2304 + $0x10] sm:$0xf]
      %v2503 = vld [vmem:[%s2304 + $0x14] sm:$0x1]
      %v2504 = vld [vmem:[%s2304 + $0x18] sm:$0xf]
      %v2505 = vld [vmem:[%s2304 + $0x1c] sm:$0xf]
      %v2506 = vld [vmem:[%s2304 + $0x20] sm:$0x1]
      %v2507 = vld [vmem:[%s2304 + $0x24] sm:$0xf]
      %v2508 = vld [vmem:[%s2304 + $0x28] sm:$0xf]
      %v2509 = vld [vmem:[%s2304 + $0x2c] sm:$0x1]
      %v2510 = vld [vmem:[%s2304 + $0x30] sm:$0xf]
      %v2511 = vld [vmem:[%s2304 + $0x34] sm:$0xf]
      %v2512 = vld [vmem:[%s2304 + $0x38] sm:$0x1]
      %v2513 = vld [vmem:[%s2304 + $0x3c] sm:$0xf]
      %v2514 = vld [vmem:[%s2304 + $0x40] sm:$0xf]
      %v2515 = vld [vmem:[%s2304 + $0x44] sm:$0x1]
      %v2516 = vld [vmem:[%s2304 + $0x48] sm:$0xf]
      %v2517 = vld [vmem:[%s2304 + $0x4c] sm:$0xf]
      %v2518 = vld [vmem:[%s2304 + $0x50] sm:$0x1]
      %v2519 = vld [vmem:[%s2304 + $0x54] sm:$0xf]
      %v2520 = vld [vmem:[%s2304 + $0x58] sm:$0xf]
      %v2521 = vld [vmem:[%s2304 + $0x5c] sm:$0x1]
      %v2522 = vld [vmem:[%s2304 + $0x60] sm:$0xf]
      %v2523 = vld [vmem:[%s2304 + $0x64] sm:$0xf]
      %v2524 = vld [vmem:[%s2304 + $0x68] sm:$0x1]
      %v2525 = vld [vmem:[%s2304 + $0x6c] sm:$0xf]
      %v2526 = vld [vmem:[%s2304 + $0x70] sm:$0xf]
      %v2527 = vld [vmem:[%s2304 + $0x74] sm:$0x1]
      %v2528 = vld [vmem:[%s2304 + $0x78] sm:$0xf]
      %v2529 = vld [vmem:[%s2304 + $0x7c] sm:$0xf]
      %v2530 = vld [vmem:[%s2304 + $0x80] sm:$0x1]
      %v2531 = vld [vmem:[%s2304 + $0x84] sm:$0xf]
      %v2532 = vld [vmem:[%s2304 + $0x88] sm:$0xf]
      %v2533 = vld [vmem:[%s2304 + $0x8c] sm:$0x1]
      %v2534 = vld [vmem:[%s2304 + $0x90] sm:$0xf]
      %v2535 = vld [vmem:[%s2304 + $0x94] sm:$0xf]
      %v2536 = vld [vmem:[%s2304 + $0x98] sm:$0x1]
      %v2537 = vld [vmem:[%s2304 + $0x9c] sm:$0xf]
      %v2538 = vld [vmem:[%s2304 + $0xa0] sm:$0xf]
      %v2539 = vld [vmem:[%s2304 + $0xa4] sm:$0x1]
      %v2540 = vld [vmem:[%s2304 + $0xa8] sm:$0xf]
      %v2541 = vld [vmem:[%s2304 + $0xac] sm:$0xf]
      %v2542 = vld [vmem:[%s2304 + $0xb0] sm:$0x1]
      %v2543 = vld [vmem:[%s2304 + $0xb4] sm:$0xf]
      %v2544 = vld [vmem:[%s2304 + $0xb8] sm:$0xf]
      %v2545 = vld [vmem:[%s2304 + $0xbc] sm:$0x1]
      %v2547 = vshrl.u32 %v2498, 16
      %v2549 = vrot.slane %v2547, 4
      %v2550 = vshll.u32 %v2498, 16
      %v2552 = vrot.slane %v2550, 5
      %v2553 = vor.u32 %v2549, %v2552
      %v2554 = vrot.slane %v2553, 4
      %v2556 = vshll.u32 %v2499, 16
      %v2558 = vrot.slane %v2556, 5
      %v2559 = vsel %vm358, %v2554, %v2558
      %v2560 = vshrl.u32 %v2499, 16
      %v2562 = vrot.slane %v2560, 4
      %v2563 = vor.u32 %v2562, %v2558
      %v2564 = vrot.slane %v2563, 4
      %v2566 = vshll.u32 %v2500, 16
      %v2568 = vrot.slane %v2566, 5
      %v2569 = vsel %vm358, %v2564, %v2568
      %v2571 = vshrl.u32 %v2501, 16
      %v2573 = vrot.slane %v2571, 4
      %v2574 = vshll.u32 %v2501, 16
      %v2576 = vrot.slane %v2574, 5
      %v2577 = vor.u32 %v2573, %v2576
      %v2578 = vrot.slane %v2577, 4
      %v2580 = vshll.u32 %v2502, 16
      %v2582 = vrot.slane %v2580, 5
      %v2583 = vsel %vm358, %v2578, %v2582
      %v2584 = vshrl.u32 %v2502, 16
      %v2586 = vrot.slane %v2584, 4
      %v2587 = vor.u32 %v2586, %v2582
      %v2588 = vrot.slane %v2587, 4
      %v2590 = vshll.u32 %v2503, 16
      %v2592 = vrot.slane %v2590, 5
      %v2593 = vsel %vm358, %v2588, %v2592
      %v2595 = vshrl.u32 %v2504, 16
      %v2597 = vrot.slane %v2595, 4
      %v2598 = vshll.u32 %v2504, 16
      %v2600 = vrot.slane %v2598, 5
      %v2601 = vor.u32 %v2597, %v2600
      %v2602 = vrot.slane %v2601, 4
      %v2604 = vshll.u32 %v2505, 16
      %v2606 = vrot.slane %v2604, 5
      %v2607 = vsel %vm358, %v2602, %v2606
      %v2608 = vshrl.u32 %v2505, 16
      %v2610 = vrot.slane %v2608, 4
      %v2611 = vor.u32 %v2610, %v2606
      %v2612 = vrot.slane %v2611, 4
      %v2614 = vshll.u32 %v2506, 16
      %v2616 = vrot.slane %v2614, 5
      %v2617 = vsel %vm358, %v2612, %v2616
      %v2619 = vshrl.u32 %v2507, 16
      %v2621 = vrot.slane %v2619, 4
      %v2622 = vshll.u32 %v2507, 16
      %v2624 = vrot.slane %v2622, 5
      %v2625 = vor.u32 %v2621, %v2624
      %v2626 = vrot.slane %v2625, 4
      %v2628 = vshll.u32 %v2508, 16
      %v2630 = vrot.slane %v2628, 5
      %v2631 = vsel %vm358, %v2626, %v2630
      %v2632 = vshrl.u32 %v2508, 16
      %v2634 = vrot.slane %v2632, 4
      %v2635 = vor.u32 %v2634, %v2630
      %v2636 = vrot.slane %v2635, 4
      %v2638 = vshll.u32 %v2509, 16
      %v2640 = vrot.slane %v2638, 5
      %v2641 = vsel %vm358, %v2636, %v2640
      %v2643 = vshrl.u32 %v2510, 16
      %v2645 = vrot.slane %v2643, 4
      %v2646 = vshll.u32 %v2510, 16
      %v2648 = vrot.slane %v2646, 5
      %v2649 = vor.u32 %v2645, %v2648
      %v2650 = vrot.slane %v2649, 4
      %v2652 = vshll.u32 %v2511, 16
      %v2654 = vrot.slane %v2652, 5
      %v2655 = vsel %vm358, %v2650, %v2654
      %v2656 = vshrl.u32 %v2511, 16
      %v2658 = vrot.slane %v2656, 4
      %v2659 = vor.u32 %v2658, %v2654
      %v2660 = vrot.slane %v2659, 4
      %v2662 = vshll.u32 %v2512, 16
      %v2664 = vrot.slane %v2662, 5
      %v2665 = vsel %vm358, %v2660, %v2664
      %v2667 = vshrl.u32 %v2513, 16
      %v2669 = vrot.slane %v2667, 4
      %v2670 = vshll.u32 %v2513, 16
      %v2672 = vrot.slane %v2670, 5
      %v2673 = vor.u32 %v2669, %v2672
      %v2674 = vrot.slane %v2673, 4
      %v2676 = vshll.u32 %v2514, 16
      %v2678 = vrot.slane %v2676, 5
      %v2679 = vsel %vm358, %v2674, %v2678
      %v2680 = vshrl.u32 %v2514, 16
      %v2682 = vrot.slane %v2680, 4
      %v2683 = vor.u32 %v2682, %v2678
      %v2684 = vrot.slane %v2683, 4
      %v2686 = vshll.u32 %v2515, 16
      %v2688 = vrot.slane %v2686, 5
      %v2689 = vsel %vm358, %v2684, %v2688
      %v2691 = vshrl.u32 %v2516, 16
      %v2693 = vrot.slane %v2691, 4
      %v2694 = vshll.u32 %v2516, 16
      %v2696 = vrot.slane %v2694, 5
      %v2697 = vor.u32 %v2693, %v2696
      %v2698 = vrot.slane %v2697, 4
      %v2700 = vshll.u32 %v2517, 16
      %v2702 = vrot.slane %v2700, 5
      %v2703 = vsel %vm358, %v2698, %v2702
      %v2704 = vshrl.u32 %v2517, 16
      %v2706 = vrot.slane %v2704, 4
      %v2707 = vor.u32 %v2706, %v2702
      %v2708 = vrot.slane %v2707, 4
      %v2710 = vshll.u32 %v2518, 16
      %v2712 = vrot.slane %v2710, 5
      %v2713 = vsel %vm358, %v2708, %v2712
      %v2715 = vshrl.u32 %v2519, 16
      %v2717 = vrot.slane %v2715, 4
      %v2718 = vshll.u32 %v2519, 16
      %v2720 = vrot.slane %v2718, 5
      %v2721 = vor.u32 %v2717, %v2720
      %v2722 = vrot.slane %v2721, 4
      %v2724 = vshll.u32 %v2520, 16
      %v2726 = vrot.slane %v2724, 5
      %v2727 = vsel %vm358, %v2722, %v2726
      %v2728 = vshrl.u32 %v2520, 16
      %v2730 = vrot.slane %v2728, 4
      %v2731 = vor.u32 %v2730, %v2726
      %v2732 = vrot.slane %v2731, 4
      %v2734 = vshll.u32 %v2521, 16
      %v2736 = vrot.slane %v2734, 5
      %v2737 = vsel %vm358, %v2732, %v2736
      %v2739 = vshrl.u32 %v2522, 16
      %v2741 = vrot.slane %v2739, 4
      %v2742 = vshll.u32 %v2522, 16
      %v2744 = vrot.slane %v2742, 5
      %v2745 = vor.u32 %v2741, %v2744
      %v2746 = vrot.slane %v2745, 4
      %v2748 = vshll.u32 %v2523, 16
      %v2750 = vrot.slane %v2748, 5
      %v2751 = vsel %vm358, %v2746, %v2750
      %v2752 = vshrl.u32 %v2523, 16
      %v2754 = vrot.slane %v2752, 4
      %v2755 = vor.u32 %v2754, %v2750
      %v2756 = vrot.slane %v2755, 4
      %v2758 = vshll.u32 %v2524, 16
      %v2760 = vrot.slane %v2758, 5
      %v2761 = vsel %vm358, %v2756, %v2760
      %v2763 = vshrl.u32 %v2525, 16
      %v2765 = vrot.slane %v2763, 4
      %v2766 = vshll.u32 %v2525, 16
      %v2768 = vrot.slane %v2766, 5
      %v2769 = vor.u32 %v2765, %v2768
      %v2770 = vrot.slane %v2769, 4
      %v2772 = vshll.u32 %v2526, 16
      %v2774 = vrot.slane %v2772, 5
      %v2775 = vsel %vm358, %v2770, %v2774
      %v2776 = vshrl.u32 %v2526, 16
      %v2778 = vrot.slane %v2776, 4
      %v2779 = vor.u32 %v2778, %v2774
      %v2780 = vrot.slane %v2779, 4
      %v2782 = vshll.u32 %v2527, 16
      %v2784 = vrot.slane %v2782, 5
      %v2785 = vsel %vm358, %v2780, %v2784
      %v2787 = vshrl.u32 %v2528, 16
      %v2789 = vrot.slane %v2787, 4
      %v2790 = vshll.u32 %v2528, 16
      %v2792 = vrot.slane %v2790, 5
      %v2793 = vor.u32 %v2789, %v2792
      %v2794 = vrot.slane %v2793, 4
      %v2796 = vshll.u32 %v2529, 16
      %v2798 = vrot.slane %v2796, 5
      %v2799 = vsel %vm358, %v2794, %v2798
      %v2800 = vshrl.u32 %v2529, 16
      %v2802 = vrot.slane %v2800, 4
      %v2803 = vor.u32 %v2802, %v2798
      %v2804 = vrot.slane %v2803, 4
      %v2806 = vshll.u32 %v2530, 16
      %v2808 = vrot.slane %v2806, 5
      %v2809 = vsel %vm358, %v2804, %v2808
      %v2811 = vshrl.u32 %v2531, 16
      %v2813 = vrot.slane %v2811, 4
      %v2814 = vshll.u32 %v2531, 16
      %v2816 = vrot.slane %v2814, 5
      %v2817 = vor.u32 %v2813, %v2816
      %v2818 = vrot.slane %v2817, 4
      %v2820 = vshll.u32 %v2532, 16
      %v2822 = vrot.slane %v2820, 5
      %v2823 = vsel %vm358, %v2818, %v2822
      %v2824 = vshrl.u32 %v2532, 16
      %v2826 = vrot.slane %v2824, 4
      %v2827 = vor.u32 %v2826, %v2822
      %v2828 = vrot.slane %v2827, 4
      %v2830 = vshll.u32 %v2533, 16
      %v2832 = vrot.slane %v2830, 5
      %v2833 = vsel %vm358, %v2828, %v2832
      %v2835 = vshrl.u32 %v2534, 16
      %v2837 = vrot.slane %v2835, 4
      %v2838 = vshll.u32 %v2534, 16
      %v2840 = vrot.slane %v2838, 5
      %v2841 = vor.u32 %v2837, %v2840
      %v2842 = vrot.slane %v2841, 4
      %v2844 = vshll.u32 %v2535, 16
      %v2846 = vrot.slane %v2844, 5
      %v2847 = vsel %vm358, %v2842, %v2846
      %v2848 = vshrl.u32 %v2535, 16
      %v2850 = vrot.slane %v2848, 4
      %v2851 = vor.u32 %v2850, %v2846
      %v2852 = vrot.slane %v2851, 4
      %v2854 = vshll.u32 %v2536, 16
      %v2856 = vrot.slane %v2854, 5
      %v2857 = vsel %vm358, %v2852, %v2856
      %v2859 = vshrl.u32 %v2537, 16
      %v2861 = vrot.slane %v2859, 4
      %v2862 = vshll.u32 %v2537, 16
      %v2864 = vrot.slane %v2862, 5
      %v2865 = vor.u32 %v2861, %v2864
      %v2866 = vrot.slane %v2865, 4
      %v2868 = vshll.u32 %v2538, 16
      %v2870 = vrot.slane %v2868, 5
      %v2871 = vsel %vm358, %v2866, %v2870
      %v2872 = vshrl.u32 %v2538, 16
      %v2874 = vrot.slane %v2872, 4
      %v2875 = vor.u32 %v2874, %v2870
      %v2876 = vrot.slane %v2875, 4
      %v2878 = vshll.u32 %v2539, 16
      %v2880 = vrot.slane %v2878, 5
      %v2881 = vsel %vm358, %v2876, %v2880
      %v2883 = vshrl.u32 %v2540, 16
      %v2885 = vrot.slane %v2883, 4
      %v2886 = vshll.u32 %v2540, 16
      %v2888 = vrot.slane %v2886, 5
      %v2889 = vor.u32 %v2885, %v2888
      %v2890 = vrot.slane %v2889, 4
      %v2892 = vshll.u32 %v2541, 16
      %v2894 = vrot.slane %v2892, 5
      %v2895 = vsel %vm358, %v2890, %v2894
      %v2896 = vshrl.u32 %v2541, 16
      %v2898 = vrot.slane %v2896, 4
      %v2899 = vor.u32 %v2898, %v2894
      %v2900 = vrot.slane %v2899, 4
      %v2902 = vshll.u32 %v2542, 16
      %v2904 = vrot.slane %v2902, 5
      %v2905 = vsel %vm358, %v2900, %v2904
      %v2907 = vshrl.u32 %v2543, 16
      %v2909 = vrot.slane %v2907, 4
      %v2910 = vshll.u32 %v2543, 16
      %v2912 = vrot.slane %v2910, 5
      %v2913 = vor.u32 %v2909, %v2912
      %v2914 = vrot.slane %v2913, 4
      %v2916 = vshll.u32 %v2544, 16
      %v2918 = vrot.slane %v2916, 5
      %v2919 = vsel %vm358, %v2914, %v2918
      %v2920 = vshrl.u32 %v2544, 16
      %v2922 = vrot.slane %v2920, 4
      %v2923 = vor.u32 %v2922, %v2918
      %v2924 = vrot.slane %v2923, 4
      %v2926 = vshll.u32 %v2545, 16
      %v2928 = vrot.slane %v2926, 5
      %v2929 = vsel %vm358, %v2924, %v2928
      %2930 = vrot.lane.b32.xlu0 %v2559, 28
      %v2931 = vpop.permute.xlu0 %2930
      %2932 = vrot.lane.b32.xlu0 %v2569, 28
      %v2933 = vpop.permute.xlu0 %2932
      %2934 = vrot.lane.b32.xlu0 %v2583, 28
      %v2935 = vpop.permute.xlu0 %2934
      %2936 = vrot.lane.b32.xlu0 %v2593, 28
      %v2937 = vpop.permute.xlu0 %2936
      %2938 = vrot.lane.b32.xlu0 %v2607, 28
      %v2939 = vpop.permute.xlu0 %2938
      %2940 = vrot.lane.b32.xlu0 %v2617, 28
      %v2941 = vpop.permute.xlu0 %2940
      %2942 = vrot.lane.b32.xlu0 %v2631, 28
      %v2943 = vpop.permute.xlu0 %2942
      %2944 = vrot.lane.b32.xlu0 %v2641, 28
      %v2945 = vpop.permute.xlu0 %2944
      %2946 = vrot.lane.b32.xlu0 %v2655, 28
      %v2947 = vpop.permute.xlu0 %2946
      %2948 = vrot.lane.b32.xlu0 %v2665, 28
      %v2949 = vpop.permute.xlu0 %2948
      %2950 = vrot.lane.b32.xlu0 %v2679, 28
      %v2951 = vpop.permute.xlu0 %2950
      %2952 = vrot.lane.b32.xlu0 %v2689, 28
      %v2953 = vpop.permute.xlu0 %2952
      %2954 = vrot.lane.b32.xlu0 %v2703, 28
      %v2955 = vpop.permute.xlu0 %2954
      %2956 = vrot.lane.b32.xlu0 %v2713, 28
      %v2957 = vpop.permute.xlu0 %2956
      %2958 = vrot.lane.b32.xlu0 %v2727, 28
      %v2959 = vpop.permute.xlu0 %2958
      %2960 = vrot.lane.b32.xlu0 %v2737, 28
      %v2961 = vpop.permute.xlu0 %2960
      %2962 = vrot.lane.b32.xlu0 %v2751, 28
      %v2963 = vpop.permute.xlu0 %2962
      %2964 = vrot.lane.b32.xlu0 %v2761, 28
      %v2965 = vpop.permute.xlu0 %2964
      %2966 = vrot.lane.b32.xlu0 %v2775, 28
      %v2967 = vpop.permute.xlu0 %2966
      %2968 = vrot.lane.b32.xlu0 %v2785, 28
      %v2969 = vpop.permute.xlu0 %2968
      %2970 = vrot.lane.b32.xlu0 %v2799, 28
      %v2971 = vpop.permute.xlu0 %2970
      %2972 = vrot.lane.b32.xlu0 %v2809, 28
      %v2973 = vpop.permute.xlu0 %2972
      %2974 = vrot.lane.b32.xlu0 %v2823, 28
      %v2975 = vpop.permute.xlu0 %2974
      %2976 = vrot.lane.b32.xlu0 %v2833, 28
      %v2977 = vpop.permute.xlu0 %2976
      %2978 = vrot.lane.b32.xlu0 %v2847, 28
      %v2979 = vpop.permute.xlu0 %2978
      %2980 = vrot.lane.b32.xlu0 %v2857, 28
      %v2981 = vpop.permute.xlu0 %2980
      %2982 = vrot.lane.b32.xlu0 %v2871, 28
      %v2983 = vpop.permute.xlu0 %2982
      %2984 = vrot.lane.b32.xlu0 %v2881, 28
      %v2985 = vpop.permute.xlu0 %2984
      %2986 = vrot.lane.b32.xlu0 %v2895, 28
      %v2987 = vpop.permute.xlu0 %2986
      %2988 = vrot.lane.b32.xlu0 %v2905, 28
      %v2989 = vpop.permute.xlu0 %2988
      %2990 = vrot.lane.b32.xlu0 %v2919, 28
      %v2991 = vpop.permute.xlu0 %2990
      %2992 = vrot.lane.b32.xlu0 %v2929, 28
      %v2993 = vpop.permute.xlu0 %2992
      %vm3026 = vcmask 257248
      %3027 = vst.msk [vmem:[#allocation2] sm:$0xf] %vm3026, %v2931
      %3028 = vst.msk [vmem:[#allocation2 + $0x4] sm:$0xf] %vm3026, %v2933
      %3029 = vst.msk [vmem:[#allocation2 + $0x8] sm:$0xf] %vm3026, %v2935
      %3030 = vst.msk [vmem:[#allocation2 + $0xc] sm:$0xf] %vm3026, %v2937
      %3031 = vst.msk [vmem:[#allocation2 + $0x10] sm:$0xf] %vm3026, %v2939
      %3032 = vst.msk [vmem:[#allocation2 + $0x14] sm:$0xf] %vm3026, %v2941
      %3033 = vst.msk [vmem:[#allocation2 + $0x18] sm:$0xf] %vm3026, %v2943
      %3034 = vst.msk [vmem:[#allocation2 + $0x1c] sm:$0xf] %vm3026, %v2945
      %3035 = vst.msk [vmem:[#allocation2 + $0x20] sm:$0xf] %vm3026, %v2947
      %3036 = vst.msk [vmem:[#allocation2 + $0x24] sm:$0xf] %vm3026, %v2949
      %3037 = vst.msk [vmem:[#allocation2 + $0x28] sm:$0xf] %vm3026, %v2951
      %3038 = vst.msk [vmem:[#allocation2 + $0x2c] sm:$0xf] %vm3026, %v2953
      %3039 = vst.msk [vmem:[#allocation2 + $0x30] sm:$0xf] %vm3026, %v2955
      %3040 = vst.msk [vmem:[#allocation2 + $0x34] sm:$0xf] %vm3026, %v2957
      %3041 = vst.msk [vmem:[#allocation2 + $0x38] sm:$0xf] %vm3026, %v2959
      %3042 = vst.msk [vmem:[#allocation2 + $0x3c] sm:$0xf] %vm3026, %v2961
      %3043 = vst.msk [vmem:[#allocation2 + $0x40] sm:$0xf] %vm3026, %v2963
      %3044 = vst.msk [vmem:[#allocation2 + $0x44] sm:$0xf] %vm3026, %v2965
      %3045 = vst.msk [vmem:[#allocation2 + $0x48] sm:$0xf] %vm3026, %v2967
      %3046 = vst.msk [vmem:[#allocation2 + $0x4c] sm:$0xf] %vm3026, %v2969
      %3047 = vst.msk [vmem:[#allocation2 + $0x50] sm:$0xf] %vm3026, %v2971
      %3048 = vst.msk [vmem:[#allocation2 + $0x54] sm:$0xf] %vm3026, %v2973
      %3049 = vst.msk [vmem:[#allocation2 + $0x58] sm:$0xf] %vm3026, %v2975
      %3050 = vst.msk [vmem:[#allocation2 + $0x5c] sm:$0xf] %vm3026, %v2977
      %3051 = vst.msk [vmem:[#allocation2 + $0x60] sm:$0xf] %vm3026, %v2979
      %3052 = vst.msk [vmem:[#allocation2 + $0x64] sm:$0xf] %vm3026, %v2981
      %3053 = vst.msk [vmem:[#allocation2 + $0x68] sm:$0xf] %vm3026, %v2983
      %3054 = vst.msk [vmem:[#allocation2 + $0x6c] sm:$0xf] %vm3026, %v2985
      %3055 = vst.msk [vmem:[#allocation2 + $0x70] sm:$0xf] %vm3026, %v2987
      %3056 = vst.msk [vmem:[#allocation2 + $0x74] sm:$0xf] %vm3026, %v2989
      %3057 = vst.msk [vmem:[#allocation2 + $0x78] sm:$0xf] %vm3026, %v2991
      %3058 = vst.msk [vmem:[#allocation2 + $0x7c] sm:$0xf] %vm3026, %v2993
      %v3059 = vld [vmem:[%s2304] sm:$0xe]
      %v3060 = vld [vmem:[%s2304 + $0x4] sm:$0xf]
      %v3061 = vld [vmem:[%s2304 + $0x8] sm:$0x1]
      %v3062 = vld [vmem:[%s2304 + $0xc] sm:$0xe]
      %v3063 = vld [vmem:[%s2304 + $0x10] sm:$0xf]
      %v3064 = vld [vmem:[%s2304 + $0x14] sm:$0x1]
      %v3065 = vld [vmem:[%s2304 + $0x18] sm:$0xe]
      %v3066 = vld [vmem:[%s2304 + $0x1c] sm:$0xf]
      %v3067 = vld [vmem:[%s2304 + $0x20] sm:$0x1]
      %v3068 = vld [vmem:[%s2304 + $0x24] sm:$0xe]
      %v3069 = vld [vmem:[%s2304 + $0x28] sm:$0xf]
      %v3070 = vld [vmem:[%s2304 + $0x2c] sm:$0x1]
      %v3071 = vld [vmem:[%s2304 + $0x30] sm:$0xe]
      %v3072 = vld [vmem:[%s2304 + $0x34] sm:$0xf]
      %v3073 = vld [vmem:[%s2304 + $0x38] sm:$0x1]
      %v3074 = vld [vmem:[%s2304 + $0x3c] sm:$0xe]
      %v3075 = vld [vmem:[%s2304 + $0x40] sm:$0xf]
      %v3076 = vld [vmem:[%s2304 + $0x44] sm:$0x1]
      %v3077 = vld [vmem:[%s2304 + $0x48] sm:$0xe]
      %v3078 = vld [vmem:[%s2304 + $0x4c] sm:$0xf]
      %v3079 = vld [vmem:[%s2304 + $0x50] sm:$0x1]
      %v3080 = vld [vmem:[%s2304 + $0x54] sm:$0xe]
      %v3081 = vld [vmem:[%s2304 + $0x58] sm:$0xf]
      %v3082 = vld [vmem:[%s2304 + $0x5c] sm:$0x1]
      %v3083 = vld [vmem:[%s2304 + $0x60] sm:$0xe]
      %v3084 = vld [vmem:[%s2304 + $0x64] sm:$0xf]
      %v3085 = vld [vmem:[%s2304 + $0x68] sm:$0x1]
      %v3086 = vld [vmem:[%s2304 + $0x6c] sm:$0xe]
      %v3087 = vld [vmem:[%s2304 + $0x70] sm:$0xf]
      %v3088 = vld [vmem:[%s2304 + $0x74] sm:$0x1]
      %v3089 = vld [vmem:[%s2304 + $0x78] sm:$0xe]
      %v3090 = vld [vmem:[%s2304 + $0x7c] sm:$0xf]
      %v3091 = vld [vmem:[%s2304 + $0x80] sm:$0x1]
      %v3092 = vld [vmem:[%s2304 + $0x84] sm:$0xe]
      %v3093 = vld [vmem:[%s2304 + $0x88] sm:$0xf]
      %v3094 = vld [vmem:[%s2304 + $0x8c] sm:$0x1]
      %v3095 = vld [vmem:[%s2304 + $0x90] sm:$0xe]
      %v3096 = vld [vmem:[%s2304 + $0x94] sm:$0xf]
      %v3097 = vld [vmem:[%s2304 + $0x98] sm:$0x1]
      %v3098 = vld [vmem:[%s2304 + $0x9c] sm:$0xe]
      %v3099 = vld [vmem:[%s2304 + $0xa0] sm:$0xf]
      %v3100 = vld [vmem:[%s2304 + $0xa4] sm:$0x1]
      %v3101 = vld [vmem:[%s2304 + $0xa8] sm:$0xe]
      %v3102 = vld [vmem:[%s2304 + $0xac] sm:$0xf]
      %v3103 = vld [vmem:[%s2304 + $0xb0] sm:$0x1]
      %v3104 = vld [vmem:[%s2304 + $0xb4] sm:$0xe]
      %v3105 = vld [vmem:[%s2304 + $0xb8] sm:$0xf]
      %v3106 = vld [vmem:[%s2304 + $0xbc] sm:$0x1]
      %v3155 = vrot.slane %v3059, 5
      %v3156 = vrot.slane %v3155, 4
      %v3157 = vrot.slane %v3060, 5
      %v3158 = vsel %vm970, %v3156, %v3157
      %v3159 = vrot.slane %v3157, 4
      %v3160 = vrot.slane %v3061, 5
      %v3161 = vsel %vm970, %v3159, %v3160
      %v3162 = vrot.slane %v3062, 5
      %v3163 = vrot.slane %v3162, 4
      %v3164 = vrot.slane %v3063, 5
      %v3165 = vsel %vm970, %v3163, %v3164
      %v3166 = vrot.slane %v3164, 4
      %v3167 = vrot.slane %v3064, 5
      %v3168 = vsel %vm970, %v3166, %v3167
      %v3169 = vrot.slane %v3065, 5
      %v3170 = vrot.slane %v3169, 4
      %v3171 = vrot.slane %v3066, 5
      %v3172 = vsel %vm970, %v3170, %v3171
      %v3173 = vrot.slane %v3171, 4
      %v3174 = vrot.slane %v3067, 5
      %v3175 = vsel %vm970, %v3173, %v3174
      %v3176 = vrot.slane %v3068, 5
      %v3177 = vrot.slane %v3176, 4
      %v3178 = vrot.slane %v3069, 5
      %v3179 = vsel %vm970, %v3177, %v3178
      %v3180 = vrot.slane %v3178, 4
      %v3181 = vrot.slane %v3070, 5
      %v3182 = vsel %vm970, %v3180, %v3181
      %v3183 = vrot.slane %v3071, 5
      %v3184 = vrot.slane %v3183, 4
      %v3185 = vrot.slane %v3072, 5
      %v3186 = vsel %vm970, %v3184, %v3185
      %v3187 = vrot.slane %v3185, 4
      %v3188 = vrot.slane %v3073, 5
      %v3189 = vsel %vm970, %v3187, %v3188
      %v3190 = vrot.slane %v3074, 5
      %v3191 = vrot.slane %v3190, 4
      %v3192 = vrot.slane %v3075, 5
      %v3193 = vsel %vm970, %v3191, %v3192
      %v3194 = vrot.slane %v3192, 4
      %v3195 = vrot.slane %v3076, 5
      %v3196 = vsel %vm970, %v3194, %v3195
      %v3197 = vrot.slane %v3077, 5
      %v3198 = vrot.slane %v3197, 4
      %v3199 = vrot.slane %v3078, 5
      %v3200 = vsel %vm970, %v3198, %v3199
      %v3201 = vrot.slane %v3199, 4
      %v3202 = vrot.slane %v3079, 5
      %v3203 = vsel %vm970, %v3201, %v3202
      %v3204 = vrot.slane %v3080, 5
      %v3205 = vrot.slane %v3204, 4
      %v3206 = vrot.slane %v3081, 5
      %v3207 = vsel %vm970, %v3205, %v3206
      %v3208 = vrot.slane %v3206, 4
      %v3209 = vrot.slane %v3082, 5
      %v3210 = vsel %vm970, %v3208, %v3209
      %v3211 = vrot.slane %v3083, 5
      %v3212 = vrot.slane %v3211, 4
      %v3213 = vrot.slane %v3084, 5
      %v3214 = vsel %vm970, %v3212, %v3213
      %v3215 = vrot.slane %v3213, 4
      %v3216 = vrot.slane %v3085, 5
      %v3217 = vsel %vm970, %v3215, %v3216
      %v3218 = vrot.slane %v3086, 5
      %v3219 = vrot.slane %v3218, 4
      %v3220 = vrot.slane %v3087, 5
      %v3221 = vsel %vm970, %v3219, %v3220
      %v3222 = vrot.slane %v3220, 4
      %v3223 = vrot.slane %v3088, 5
      %v3224 = vsel %vm970, %v3222, %v3223
      %v3225 = vrot.slane %v3089, 5
      %v3226 = vrot.slane %v3225, 4
      %v3227 = vrot.slane %v3090, 5
      %v3228 = vsel %vm970, %v3226, %v3227
      %v3229 = vrot.slane %v3227, 4
      %v3230 = vrot.slane %v3091, 5
      %v3231 = vsel %vm970, %v3229, %v3230
      %v3232 = vrot.slane %v3092, 5
      %v3233 = vrot.slane %v3232, 4
      %v3234 = vrot.slane %v3093, 5
      %v3235 = vsel %vm970, %v3233, %v3234
      %v3236 = vrot.slane %v3234, 4
      %v3237 = vrot.slane %v3094, 5
      %v3238 = vsel %vm970, %v3236, %v3237
      %v3239 = vrot.slane %v3095, 5
      %v3240 = vrot.slane %v3239, 4
      %v3241 = vrot.slane %v3096, 5
      %v3242 = vsel %vm970, %v3240, %v3241
      %v3243 = vrot.slane %v3241, 4
      %v3244 = vrot.slane %v3097, 5
      %v3245 = vsel %vm970, %v3243, %v3244
      %v3246 = vrot.slane %v3098, 5
      %v3247 = vrot.slane %v3246, 4
      %v3248 = vrot.slane %v3099, 5
      %v3249 = vsel %vm970, %v3247, %v3248
      %v3250 = vrot.slane %v3248, 4
      %v3251 = vrot.slane %v3100, 5
      %v3252 = vsel %vm970, %v3250, %v3251
      %v3253 = vrot.slane %v3101, 5
      %v3254 = vrot.slane %v3253, 4
      %v3255 = vrot.slane %v3102, 5
      %v3256 = vsel %vm970, %v3254, %v3255
      %v3257 = vrot.slane %v3255, 4
      %v3258 = vrot.slane %v3103, 5
      %v3259 = vsel %vm970, %v3257, %v3258
      %v3260 = vrot.slane %v3104, 5
      %v3261 = vrot.slane %v3260, 4
      %v3262 = vrot.slane %v3105, 5
      %v3263 = vsel %vm970, %v3261, %v3262
      %v3264 = vrot.slane %v3262, 4
      %v3265 = vrot.slane %v3106, 5
      %v3266 = vsel %vm970, %v3264, %v3265
      %3267 = vrot.lane.b32.xlu0 %v3158, 32
      %v3268 = vpop.permute.xlu0 %3267
      %3269 = vrot.lane.b32.xlu0 %v3161, 32
      %v3270 = vpop.permute.xlu0 %3269
      %3271 = vrot.lane.b32.xlu0 %v3165, 32
      %v3272 = vpop.permute.xlu0 %3271
      %3273 = vrot.lane.b32.xlu0 %v3168, 32
      %v3274 = vpop.permute.xlu0 %3273
      %3275 = vrot.lane.b32.xlu0 %v3172, 32
      %v3276 = vpop.permute.xlu0 %3275
      %3277 = vrot.lane.b32.xlu0 %v3175, 32
      %v3278 = vpop.permute.xlu0 %3277
      %3279 = vrot.lane.b32.xlu0 %v3179, 32
      %v3280 = vpop.permute.xlu0 %3279
      %3281 = vrot.lane.b32.xlu0 %v3182, 32
      %v3282 = vpop.permute.xlu0 %3281
      %3283 = vrot.lane.b32.xlu0 %v3186, 32
      %v3284 = vpop.permute.xlu0 %3283
      %3285 = vrot.lane.b32.xlu0 %v3189, 32
      %v3286 = vpop.permute.xlu0 %3285
      %3287 = vrot.lane.b32.xlu0 %v3193, 32
      %v3288 = vpop.permute.xlu0 %3287
      %3289 = vrot.lane.b32.xlu0 %v3196, 32
      %v3290 = vpop.permute.xlu0 %3289
      %3291 = vrot.lane.b32.xlu0 %v3200, 32
      %v3292 = vpop.permute.xlu0 %3291
      %3293 = vrot.lane.b32.xlu0 %v3203, 32
      %v3294 = vpop.permute.xlu0 %3293
      %3295 = vrot.lane.b32.xlu0 %v3207, 32
      %v3296 = vpop.permute.xlu0 %3295
      %3297 = vrot.lane.b32.xlu0 %v3210, 32
      %v3298 = vpop.permute.xlu0 %3297
      %3299 = vrot.lane.b32.xlu0 %v3214, 32
      %v3300 = vpop.permute.xlu0 %3299
      %3301 = vrot.lane.b32.xlu0 %v3217, 32
      %v3302 = vpop.permute.xlu0 %3301
      %3303 = vrot.lane.b32.xlu0 %v3221, 32
      %v3304 = vpop.permute.xlu0 %3303
      %3305 = vrot.lane.b32.xlu0 %v3224, 32
      %v3306 = vpop.permute.xlu0 %3305
      %3307 = vrot.lane.b32.xlu0 %v3228, 32
      %v3308 = vpop.permute.xlu0 %3307
      %3309 = vrot.lane.b32.xlu0 %v3231, 32
      %v3310 = vpop.permute.xlu0 %3309
      %3311 = vrot.lane.b32.xlu0 %v3235, 32
      %v3312 = vpop.permute.xlu0 %3311
      %3313 = vrot.lane.b32.xlu0 %v3238, 32
      %v3314 = vpop.permute.xlu0 %3313
      %3315 = vrot.lane.b32.xlu0 %v3242, 32
      %v3316 = vpop.permute.xlu0 %3315
      %3317 = vrot.lane.b32.xlu0 %v3245, 32
      %v3318 = vpop.permute.xlu0 %3317
      %3319 = vrot.lane.b32.xlu0 %v3249, 32
      %v3320 = vpop.permute.xlu0 %3319
      %3321 = vrot.lane.b32.xlu0 %v3252, 32
      %v3322 = vpop.permute.xlu0 %3321
      %3323 = vrot.lane.b32.xlu0 %v3256, 32
      %v3324 = vpop.permute.xlu0 %3323
      %3325 = vrot.lane.b32.xlu0 %v3259, 32
      %v3326 = vpop.permute.xlu0 %3325
      %3327 = vrot.lane.b32.xlu0 %v3263, 32
      %v3328 = vpop.permute.xlu0 %3327
      %3329 = vrot.lane.b32.xlu0 %v3266, 32
      %v3330 = vpop.permute.xlu0 %3329
      %vm3363 = vcmask 290048
      %3364 = vst.msk [vmem:[#allocation2] sm:$0xf] %vm3363, %v3268
      %3365 = vst.msk [vmem:[#allocation2 + $0x4] sm:$0xf] %vm3363, %v3270
      %3366 = vst.msk [vmem:[#allocation2 + $0x8] sm:$0xf] %vm3363, %v3272
      %3367 = vst.msk [vmem:[#allocation2 + $0xc] sm:$0xf] %vm3363, %v3274
      %3368 = vst.msk [vmem:[#allocation2 + $0x10] sm:$0xf] %vm3363, %v3276
      %3369 = vst.msk [vmem:[#allocation2 + $0x14] sm:$0xf] %vm3363, %v3278
      %3370 = vst.msk [vmem:[#allocation2 + $0x18] sm:$0xf] %vm3363, %v3280
      %3371 = vst.msk [vmem:[#allocation2 + $0x1c] sm:$0xf] %vm3363, %v3282
      %3372 = vst.msk [vmem:[#allocation2 + $0x20] sm:$0xf] %vm3363, %v3284
      %3373 = vst.msk [vmem:[#allocation2 + $0x24] sm:$0xf] %vm3363, %v3286
      %3374 = vst.msk [vmem:[#allocation2 + $0x28] sm:$0xf] %vm3363, %v3288
      %3375 = vst.msk [vmem:[#allocation2 + $0x2c] sm:$0xf] %vm3363, %v3290
      %3376 = vst.msk [vmem:[#allocation2 + $0x30] sm:$0xf] %vm3363, %v3292
      %3377 = vst.msk [vmem:[#allocation2 + $0x34] sm:$0xf] %vm3363, %v3294
      %3378 = vst.msk [vmem:[#allocation2 + $0x38] sm:$0xf] %vm3363, %v3296
      %3379 = vst.msk [vmem:[#allocation2 + $0x3c] sm:$0xf] %vm3363, %v3298
      %3380 = vst.msk [vmem:[#allocation2 + $0x40] sm:$0xf] %vm3363, %v3300
      %3381 = vst.msk [vmem:[#allocation2 + $0x44] sm:$0xf] %vm3363, %v3302
      %3382 = vst.msk [vmem:[#allocation2 + $0x48] sm:$0xf] %vm3363, %v3304
      %3383 = vst.msk [vmem:[#allocation2 + $0x4c] sm:$0xf] %vm3363, %v3306
      %3384 = vst.msk [vmem:[#allocation2 + $0x50] sm:$0xf] %vm3363, %v3308
      %3385 = vst.msk [vmem:[#allocation2 + $0x54] sm:$0xf] %vm3363, %v3310
      %3386 = vst.msk [vmem:[#allocation2 + $0x58] sm:$0xf] %vm3363, %v3312
      %3387 = vst.msk [vmem:[#allocation2 + $0x5c] sm:$0xf] %vm3363, %v3314
      %3388 = vst.msk [vmem:[#allocation2 + $0x60] sm:$0xf] %vm3363, %v3316
      %3389 = vst.msk [vmem:[#allocation2 + $0x64] sm:$0xf] %vm3363, %v3318
      %3390 = vst.msk [vmem:[#allocation2 + $0x68] sm:$0xf] %vm3363, %v3320
      %3391 = vst.msk [vmem:[#allocation2 + $0x6c] sm:$0xf] %vm3363, %v3322
      %3392 = vst.msk [vmem:[#allocation2 + $0x70] sm:$0xf] %vm3363, %v3324
      %3393 = vst.msk [vmem:[#allocation2 + $0x74] sm:$0xf] %vm3363, %v3326
      %3394 = vst.msk [vmem:[#allocation2 + $0x78] sm:$0xf] %vm3363, %v3328
      %3395 = vst.msk [vmem:[#allocation2 + $0x7c] sm:$0xf] %vm3363, %v3330
      %v3396 = vld [vmem:[#allocation2] sm:$0xf]
      %v3397 = vld [vmem:[#allocation2 + $0x4] sm:$0xf]
      %v3398 = vld [vmem:[#allocation2 + $0x8] sm:$0xf]
      %v3399 = vld [vmem:[#allocation2 + $0xc] sm:$0xf]
      %v3400 = vld [vmem:[#allocation2 + $0x10] sm:$0xf]
      %v3401 = vld [vmem:[#allocation2 + $0x14] sm:$0xf]
      %v3402 = vld [vmem:[#allocation2 + $0x18] sm:$0xf]
      %v3403 = vld [vmem:[#allocation2 + $0x1c] sm:$0xf]
      %v3404 = vld [vmem:[#allocation2 + $0x20] sm:$0xf]
      %v3405 = vld [vmem:[#allocation2 + $0x24] sm:$0xf]
      %v3406 = vld [vmem:[#allocation2 + $0x28] sm:$0xf]
      %v3407 = vld [vmem:[#allocation2 + $0x2c] sm:$0xf]
      %v3408 = vld [vmem:[#allocation2 + $0x30] sm:$0xf]
      %v3409 = vld [vmem:[#allocation2 + $0x34] sm:$0xf]
      %v3410 = vld [vmem:[#allocation2 + $0x38] sm:$0xf]
      %v3411 = vld [vmem:[#allocation2 + $0x3c] sm:$0xf]
      %v3412 = vld [vmem:[#allocation2 + $0x40] sm:$0xf]
      %v3413 = vld [vmem:[#allocation2 + $0x44] sm:$0xf]
      %v3414 = vld [vmem:[#allocation2 + $0x48] sm:$0xf]
      %v3415 = vld [vmem:[#allocation2 + $0x4c] sm:$0xf]
      %v3416 = vld [vmem:[#allocation2 + $0x50] sm:$0xf]
      %v3417 = vld [vmem:[#allocation2 + $0x54] sm:$0xf]
      %v3418 = vld [vmem:[#allocation2 + $0x58] sm:$0xf]
      %v3419 = vld [vmem:[#allocation2 + $0x5c] sm:$0xf]
      %v3420 = vld [vmem:[#allocation2 + $0x60] sm:$0xf]
      %v3421 = vld [vmem:[#allocation2 + $0x64] sm:$0xf]
      %v3422 = vld [vmem:[#allocation2 + $0x68] sm:$0xf]
      %v3423 = vld [vmem:[#allocation2 + $0x6c] sm:$0xf]
      %v3424 = vld [vmem:[#allocation2 + $0x70] sm:$0xf]
      %v3425 = vld [vmem:[#allocation2 + $0x74] sm:$0xf]
      %v3426 = vld [vmem:[#allocation2 + $0x78] sm:$0xf]
      %v3427 = vld [vmem:[#allocation2 + $0x7c] sm:$0xf]
      %v3428 = vld [vmem:[%s1] sm:$0xf]
      %v3429 = vld [vmem:[%s1 + $0x4] sm:$0xf]
      %v3430 = vld [vmem:[%s1 + $0x8] sm:$0xf]
      %v3431 = vld [vmem:[%s1 + $0xc] sm:$0xf]
      %v3432 = vld [vmem:[%s1 + $0x10] sm:$0xf]
      %v3433 = vld [vmem:[%s1 + $0x14] sm:$0xf]
      %v3434 = vld [vmem:[%s1 + $0x18] sm:$0xf]
      %v3435 = vld [vmem:[%s1 + $0x1c] sm:$0xf]
      %v3436 = vld [vmem:[%s1 + $0x20] sm:$0xf]
      %v3437 = vld [vmem:[%s1 + $0x24] sm:$0xf]
      %v3438 = vld [vmem:[%s1 + $0x28] sm:$0xf]
      %v3439 = vld [vmem:[%s1 + $0x2c] sm:$0xf]
      %v3440 = vld [vmem:[%s1 + $0x30] sm:$0xf]
      %v3441 = vld [vmem:[%s1 + $0x34] sm:$0xf]
      %v3442 = vld [vmem:[%s1 + $0x38] sm:$0xf]
      %v3443 = vld [vmem:[%s1 + $0x3c] sm:$0xf]
      %v3444 = vld [vmem:[%s2] sm:$0x1]
      %v3446 = vlaneseq
      %v3447 = vshrl.u32 %v3446, 7
      %v3448 = vsub.s32 0, %v3447
      %v3449 = vrot.slane %v3444, %v3448
      %v3483 = vunpack.c.l.b16 %v3396
      %v3484 = vunpack.c.l.b16 %v3397
      %v3485 = vunpack.c.l.b16 %v3398
      %v3486 = vunpack.c.l.b16 %v3399
      %v3487 = vunpack.c.l.b16 %v3400
      %v3488 = vunpack.c.l.b16 %v3401
      %v3489 = vunpack.c.l.b16 %v3402
      %v3490 = vunpack.c.l.b16 %v3403
      %v3491 = vunpack.c.l.b16 %v3404
      %v3492 = vunpack.c.l.b16 %v3405
      %v3493 = vunpack.c.l.b16 %v3406
      %v3494 = vunpack.c.l.b16 %v3407
      %v3495 = vunpack.c.l.b16 %v3408
      %v3496 = vunpack.c.l.b16 %v3409
      %v3497 = vunpack.c.l.b16 %v3410
      %v3498 = vunpack.c.l.b16 %v3411
      %v3499 = vunpack.c.l.b16 %v3412
      %v3500 = vunpack.c.l.b16 %v3413
      %v3501 = vunpack.c.l.b16 %v3414
      %v3502 = vunpack.c.l.b16 %v3415
      %v3503 = vunpack.c.l.b16 %v3416
      %v3504 = vunpack.c.l.b16 %v3417
      %v3505 = vunpack.c.l.b16 %v3418
      %v3506 = vunpack.c.l.b16 %v3419
      %v3507 = vunpack.c.l.b16 %v3420
      %v3508 = vunpack.c.l.b16 %v3421
      %v3509 = vunpack.c.l.b16 %v3422
      %v3510 = vunpack.c.l.b16 %v3423
      %v3511 = vunpack.c.l.b16 %v3424
      %v3512 = vunpack.c.l.b16 %v3425
      %v3513 = vunpack.c.l.b16 %v3426
      %v3514 = vunpack.c.l.b16 %v3427
      %v3515 = vpack.c.b16 %v3484, %v3483
      %v3516 = vpack.c.b16 %v3486, %v3485
      %v3517 = vpack.c.b16 %v3488, %v3487
      %v3518 = vpack.c.b16 %v3490, %v3489
      %v3519 = vpack.c.b16 %v3492, %v3491
      %v3520 = vpack.c.b16 %v3494, %v3493
      %v3521 = vpack.c.b16 %v3496, %v3495
      %v3522 = vpack.c.b16 %v3498, %v3497
      %v3523 = vpack.c.b16 %v3500, %v3499
      %v3524 = vpack.c.b16 %v3502, %v3501
      %v3525 = vpack.c.b16 %v3504, %v3503
      %v3526 = vpack.c.b16 %v3506, %v3505
      %v3527 = vpack.c.b16 %v3508, %v3507
      %v3528 = vpack.c.b16 %v3510, %v3509
      %v3529 = vpack.c.b16 %v3512, %v3511
      %v3530 = vpack.c.b16 %v3514, %v3513
      %v3563 = vunpack.c.l.b16 %v3428
      %v3564 = vunpack.c.l.b16 %v3429
      %v3565 = vunpack.c.l.b16 %v3430
      %v3566 = vunpack.c.l.b16 %v3431
      %v3567 = vunpack.c.l.b16 %v3432
      %v3568 = vunpack.c.l.b16 %v3433
      %v3569 = vunpack.c.l.b16 %v3434
      %v3570 = vunpack.c.l.b16 %v3435
      %v3571 = vunpack.c.l.b16 %v3436
      %v3572 = vunpack.c.l.b16 %v3437
      %v3573 = vunpack.c.l.b16 %v3438
      %v3574 = vunpack.c.l.b16 %v3439
      %v3575 = vunpack.c.l.b16 %v3440
      %v3576 = vunpack.c.l.b16 %v3441
      %v3577 = vunpack.c.l.b16 %v3442
      %v3578 = vunpack.c.l.b16 %v3443
      %v3579 = vpack.c.b16 %v3564, %v3563
      %v3580 = vpack.c.b16 %v3566, %v3565
      %v3581 = vpack.c.b16 %v3568, %v3567
      %v3582 = vpack.c.b16 %v3570, %v3569
      %v3583 = vpack.c.b16 %v3572, %v3571
      %v3584 = vpack.c.b16 %v3574, %v3573
      %v3585 = vpack.c.b16 %v3576, %v3575
      %v3586 = vpack.c.b16 %v3578, %v3577
      %3595 = vmatprep.subr.bf16.mxu0 0
      %3596 = vmatpush1.bf16.msra.mxu0 %v3586
      %3597 = vmatprep.subr.bf16.mxu0 0
      %3598 = vmatpush1.bf16.msra.mxu0 %v3585
      %3599 = vmatprep.subr.bf16.mxu0 0
      %3600 = vmatpush1.bf16.msra.mxu0 %v3584
      %3601 = vmatprep.subr.bf16.mxu0 0
      %3602 = vmatpush1.bf16.msra.mxu0 %v3583
      %3603 = vmatprep.subr.bf16.mxu0 0
      %3604 = vmatpush1.bf16.msra.mxu0 %v3582
      %3605 = vmatprep.subr.bf16.mxu0 0
      %3606 = vmatpush1.bf16.msra.mxu0 %v3581
      %3607 = vmatprep.subr.bf16.mxu0 0
      %3608 = vmatpush1.bf16.msra.mxu0 %v3580
      %3609 = vmatprep.subr.bf16.mxu0 0
      %3610 = vmatpush1.bf16.msra.mxu0 %v3579
      %3611 = vmatprep.subr.bf16.mxu0 0
      %3612 = vmatpush2.bf16.msra.mxu0 0
      %3613 = vmatprep.subr.bf16.mxu0 0
      %3614 = vmatpush2.bf16.msra.mxu0 0
      %3615 = vmatprep.subr.bf16.mxu0 0
      %3616 = vmatpush2.bf16.msra.mxu0 0
      %3617 = vmatprep.subr.bf16.mxu0 0
      %3618 = vmatpush2.bf16.msra.mxu0 0
      %3619 = vmatprep.subr.bf16.mxu0 0
      %3620 = vmatpush2.bf16.msra.mxu0 0
      %3621 = vmatprep.subr.bf16.mxu0 0
      %3622 = vmatpush2.bf16.msra.mxu0 0
      %3623 = vmatprep.subr.bf16.mxu0 0
      %3624 = vmatpush2.bf16.msra.mxu0 0
      %3625 = vmatprep.subr.bf16.mxu0 0
      %3626 = vmatpush2.bf16.msra.mxu0 0
      %3627 = vmatprep.mubr.bf16.mxu0 0
      %3628 = vmatmul.mubr.bf16.gmra.mxu0 %v3515
      %v3629 = vpop.f32.mrf.mxu0
      %v3630 = vadd.f32 %v3449, %v3629
      %v3631 = vpop.f32.mrf.mxu0
      %v3632 = vpop.f32.mrf.mxu0
      %v3633 = vadd.f32 %v3449, %v3632
      %v3634 = vpop.f32.mrf.mxu0
      %3635 = vmatprep.mubr.bf16.mxu0 0
      %3636 = vmatmul.mubr.bf16.gmra.mxu0 %v3516
      %v3637 = vpop.f32.mrf.mxu0
      %v3638 = vadd.f32 %v3449, %v3637
      %v3639 = vpop.f32.mrf.mxu0
      %v3640 = vpop.f32.mrf.mxu0
      %v3641 = vadd.f32 %v3449, %v3640
      %v3642 = vpop.f32.mrf.mxu0
      %3643 = vmatprep.mubr.bf16.mxu0 0
      %3644 = vmatmul.mubr.bf16.gmra.mxu0 %v3517
      %v3645 = vpop.f32.mrf.mxu0
      %v3646 = vadd.f32 %v3449, %v3645
      %v3647 = vpop.f32.mrf.mxu0
      %v3648 = vpop.f32.mrf.mxu0
      %v3649 = vadd.f32 %v3449, %v3648
      %v3650 = vpop.f32.mrf.mxu0
      %3651 = vmatprep.mubr.bf16.mxu0 0
      %3652 = vmatmul.mubr.bf16.gmra.mxu0 %v3518
      %v3653 = vpop.f32.mrf.mxu0
      %v3654 = vadd.f32 %v3449, %v3653
      %v3655 = vpop.f32.mrf.mxu0
      %v3656 = vpop.f32.mrf.mxu0
      %v3657 = vadd.f32 %v3449, %v3656
      %v3658 = vpop.f32.mrf.mxu0
      %3659 = vmatprep.mubr.bf16.mxu0 0
      %3660 = vmatmul.mubr.bf16.gmra.mxu0 %v3519
      %v3661 = vpop.f32.mrf.mxu0
      %v3662 = vadd.f32 %v3449, %v3661
      %v3663 = vpop.f32.mrf.mxu0
      %v3664 = vpop.f32.mrf.mxu0
      %v3665 = vadd.f32 %v3449, %v3664
      %v3666 = vpop.f32.mrf.mxu0
      %3667 = vmatprep.mubr.bf16.mxu0 0
      %3668 = vmatmul.mubr.bf16.gmra.mxu0 %v3520
      %v3669 = vpop.f32.mrf.mxu0
      %v3670 = vadd.f32 %v3449, %v3669
      %v3671 = vpop.f32.mrf.mxu0
      %v3672 = vpop.f32.mrf.mxu0
      %v3673 = vadd.f32 %v3449, %v3672
      %v3674 = vpop.f32.mrf.mxu0
      %3675 = vmatprep.mubr.bf16.mxu0 0
      %3676 = vmatmul.mubr.bf16.gmra.mxu0 %v3521
      %v3677 = vpop.f32.mrf.mxu0
      %v3678 = vadd.f32 %v3449, %v3677
      %v3679 = vpop.f32.mrf.mxu0
      %v3680 = vpop.f32.mrf.mxu0
      %v3681 = vadd.f32 %v3449, %v3680
      %v3682 = vpop.f32.mrf.mxu0
      %3683 = vmatprep.mubr.bf16.mxu0 0
      %3684 = vmatmul.mubr.bf16.gmra.mxu0 %v3522
      %v3685 = vpop.f32.mrf.mxu0
      %v3686 = vadd.f32 %v3449, %v3685
      %v3687 = vpop.f32.mrf.mxu0
      %v3688 = vpop.f32.mrf.mxu0
      %v3689 = vadd.f32 %v3449, %v3688
      %v3690 = vpop.f32.mrf.mxu0
      %3691 = vmatprep.mubr.bf16.mxu0 0
      %3692 = vmatmul.mubr.bf16.gmra.mxu0 %v3523
      %v3693 = vpop.f32.mrf.mxu0
      %v3694 = vadd.f32 %v3449, %v3693
      %v3695 = vpop.f32.mrf.mxu0
      %v3696 = vpop.f32.mrf.mxu0
      %v3697 = vadd.f32 %v3449, %v3696
      %v3698 = vpop.f32.mrf.mxu0
      %3699 = vmatprep.mubr.bf16.mxu0 0
      %3700 = vmatmul.mubr.bf16.gmra.mxu0 %v3524
      %v3701 = vpop.f32.mrf.mxu0
      %v3702 = vadd.f32 %v3449, %v3701
      %v3703 = vpop.f32.mrf.mxu0
      %v3704 = vpop.f32.mrf.mxu0
      %v3705 = vadd.f32 %v3449, %v3704
      %v3706 = vpop.f32.mrf.mxu0
      %3707 = vmatprep.mubr.bf16.mxu0 0
      %3708 = vmatmul.mubr.bf16.gmra.mxu0 %v3525
      %v3709 = vpop.f32.mrf.mxu0
      %v3710 = vadd.f32 %v3449, %v3709
      %v3711 = vpop.f32.mrf.mxu0
      %v3712 = vpop.f32.mrf.mxu0
      %v3713 = vadd.f32 %v3449, %v3712
      %v3714 = vpop.f32.mrf.mxu0
      %3715 = vmatprep.mubr.bf16.mxu0 0
      %3716 = vmatmul.mubr.bf16.gmra.mxu0 %v3526
      %v3717 = vpop.f32.mrf.mxu0
      %v3718 = vadd.f32 %v3449, %v3717
      %v3719 = vpop.f32.mrf.mxu0
      %v3720 = vpop.f32.mrf.mxu0
      %v3721 = vadd.f32 %v3449, %v3720
      %v3722 = vpop.f32.mrf.mxu0
      %3723 = vmatprep.mubr.bf16.mxu0 0
      %3724 = vmatmul.mubr.bf16.gmra.mxu0 %v3527
      %v3725 = vpop.f32.mrf.mxu0
      %v3726 = vadd.f32 %v3449, %v3725
      %v3727 = vpop.f32.mrf.mxu0
      %v3728 = vpop.f32.mrf.mxu0
      %v3729 = vadd.f32 %v3449, %v3728
      %v3730 = vpop.f32.mrf.mxu0
      %3731 = vmatprep.mubr.bf16.mxu0 0
      %3732 = vmatmul.mubr.bf16.gmra.mxu0 %v3528
      %v3733 = vpop.f32.mrf.mxu0
      %v3734 = vadd.f32 %v3449, %v3733
      %v3735 = vpop.f32.mrf.mxu0
      %v3736 = vpop.f32.mrf.mxu0
      %v3737 = vadd.f32 %v3449, %v3736
      %v3738 = vpop.f32.mrf.mxu0
      %3739 = vmatprep.mubr.bf16.mxu0 0
      %3740 = vmatmul.mubr.bf16.gmra.mxu0 %v3529
      %v3741 = vpop.f32.mrf.mxu0
      %v3742 = vadd.f32 %v3449, %v3741
      %v3743 = vpop.f32.mrf.mxu0
      %v3744 = vpop.f32.mrf.mxu0
      %v3745 = vadd.f32 %v3449, %v3744
      %v3746 = vpop.f32.mrf.mxu0
      %3747 = vmatprep.mubr.bf16.mxu0 0
      %3748 = vmatmul.mubr.bf16.gmra.mxu0 %v3530
      %v3749 = vpop.f32.mrf.mxu0
      %v3750 = vadd.f32 %v3449, %v3749
      %v3751 = vpop.f32.mrf.mxu0
      %v3752 = vpop.f32.mrf.mxu0
      %v3753 = vadd.f32 %v3449, %v3752
      %v3754 = vpop.f32.mrf.mxu0
      %3755 = vdwg.mxu0
      %v3756 = vmax.f32 %v3630, 0.0
      %v3757 = vmax.f32 %v3633, 0.0
      %v3758 = vmax.f32 %v3638, 0.0
      %v3759 = vmax.f32 %v3641, 0.0
      %v3760 = vmax.f32 %v3646, 0.0
      %v3761 = vmax.f32 %v3649, 0.0
      %v3762 = vmax.f32 %v3654, 0.0
      %v3763 = vmax.f32 %v3657, 0.0
      %v3764 = vmax.f32 %v3662, 0.0
      %v3765 = vmax.f32 %v3665, 0.0
      %v3766 = vmax.f32 %v3670, 0.0
      %v3767 = vmax.f32 %v3673, 0.0
      %v3768 = vmax.f32 %v3678, 0.0
      %v3769 = vmax.f32 %v3681, 0.0
      %v3770 = vmax.f32 %v3686, 0.0
      %v3771 = vmax.f32 %v3689, 0.0
      %v3772 = vmax.f32 %v3694, 0.0
      %v3773 = vmax.f32 %v3697, 0.0
      %v3774 = vmax.f32 %v3702, 0.0
      %v3775 = vmax.f32 %v3705, 0.0
      %v3776 = vmax.f32 %v3710, 0.0
      %v3777 = vmax.f32 %v3713, 0.0
      %v3778 = vmax.f32 %v3718, 0.0
      %v3779 = vmax.f32 %v3721, 0.0
      %v3780 = vmax.f32 %v3726, 0.0
      %v3781 = vmax.f32 %v3729, 0.0
      %v3782 = vmax.f32 %v3734, 0.0
      %v3783 = vmax.f32 %v3737, 0.0
      %v3784 = vmax.f32 %v3742, 0.0
      %v3785 = vmax.f32 %v3745, 0.0
      %v3786 = vmax.f32 %v3750, 0.0
      %v3787 = vmax.f32 %v3753, 0.0
      %v3788 = vpack.c.bf16 %v3757, %v3756
      %v3789 = vpack.c.bf16 %v3759, %v3758
      %v3790 = vpack.c.bf16 %v3761, %v3760
      %v3791 = vpack.c.bf16 %v3763, %v3762
      %v3792 = vpack.c.bf16 %v3765, %v3764
      %v3793 = vpack.c.bf16 %v3767, %v3766
      %v3794 = vpack.c.bf16 %v3769, %v3768
      %v3795 = vpack.c.bf16 %v3771, %v3770
      %v3796 = vpack.c.bf16 %v3773, %v3772
      %v3797 = vpack.c.bf16 %v3775, %v3774
      %v3798 = vpack.c.bf16 %v3777, %v3776
      %v3799 = vpack.c.bf16 %v3779, %v3778
      %v3800 = vpack.c.bf16 %v3781, %v3780
      %v3801 = vpack.c.bf16 %v3783, %v3782
      %v3802 = vpack.c.bf16 %v3785, %v3784
      %v3803 = vpack.c.bf16 %v3787, %v3786
      %v3820 = vunpack.c.l.b16 %v3788
      %v3821 = vunpack.c.h.b16 %v3788
      %v3822 = vunpack.c.l.b16 %v3789
      %v3823 = vunpack.c.h.b16 %v3789
      %v3824 = vunpack.c.l.b16 %v3790
      %v3825 = vunpack.c.h.b16 %v3790
      %v3826 = vunpack.c.l.b16 %v3791
      %v3827 = vunpack.c.h.b16 %v3791
      %v3828 = vunpack.c.l.b16 %v3792
      %v3829 = vunpack.c.h.b16 %v3792
      %v3830 = vunpack.c.l.b16 %v3793
      %v3831 = vunpack.c.h.b16 %v3793
      %v3832 = vunpack.c.l.b16 %v3794
      %v3833 = vunpack.c.h.b16 %v3794
      %v3834 = vunpack.c.l.b16 %v3795
      %v3835 = vunpack.c.h.b16 %v3795
      %v3836 = vunpack.c.l.b16 %v3796
      %v3837 = vunpack.c.h.b16 %v3796
      %v3838 = vunpack.c.l.b16 %v3797
      %v3839 = vunpack.c.h.b16 %v3797
      %v3840 = vunpack.c.l.b16 %v3798
      %v3841 = vunpack.c.h.b16 %v3798
      %v3842 = vunpack.c.l.b16 %v3799
      %v3843 = vunpack.c.h.b16 %v3799
      %v3844 = vunpack.c.l.b16 %v3800
      %v3845 = vunpack.c.h.b16 %v3800
      %v3846 = vunpack.c.l.b16 %v3801
      %v3847 = vunpack.c.h.b16 %v3801
      %v3848 = vunpack.c.l.b16 %v3802
      %v3849 = vunpack.c.h.b16 %v3802
      %v3850 = vunpack.c.l.b16 %v3803
      %v3851 = vunpack.c.h.b16 %v3803
      %v3852 = vpack.c.b16 %v3820, %v3820
      %v3853 = vpack.c.b16 %v3821, %v3821
      %v3854 = vpack.c.b16 %v3822, %v3822
      %v3855 = vpack.c.b16 %v3823, %v3823
      %v3856 = vpack.c.b16 %v3824, %v3824
      %v3857 = vpack.c.b16 %v3825, %v3825
      %v3858 = vpack.c.b16 %v3826, %v3826
      %v3859 = vpack.c.b16 %v3827, %v3827
      %v3860 = vpack.c.b16 %v3828, %v3828
      %v3861 = vpack.c.b16 %v3829, %v3829
      %v3862 = vpack.c.b16 %v3830, %v3830
      %v3863 = vpack.c.b16 %v3831, %v3831
      %v3864 = vpack.c.b16 %v3832, %v3832
      %v3865 = vpack.c.b16 %v3833, %v3833
      %v3866 = vpack.c.b16 %v3834, %v3834
      %v3867 = vpack.c.b16 %v3835, %v3835
      %v3868 = vpack.c.b16 %v3836, %v3836
      %v3869 = vpack.c.b16 %v3837, %v3837
      %v3870 = vpack.c.b16 %v3838, %v3838
      %v3871 = vpack.c.b16 %v3839, %v3839
      %v3872 = vpack.c.b16 %v3840, %v3840
      %v3873 = vpack.c.b16 %v3841, %v3841
      %v3874 = vpack.c.b16 %v3842, %v3842
      %v3875 = vpack.c.b16 %v3843, %v3843
      %v3876 = vpack.c.b16 %v3844, %v3844
      %v3877 = vpack.c.b16 %v3845, %v3845
      %v3878 = vpack.c.b16 %v3846, %v3846
      %v3879 = vpack.c.b16 %v3847, %v3847
      %v3880 = vpack.c.b16 %v3848, %v3848
      %v3881 = vpack.c.b16 %v3849, %v3849
      %v3882 = vpack.c.b16 %v3850, %v3850
      %v3883 = vpack.c.b16 %v3851, %v3851
      %vm3916 = vcmask 60416
      %3917 = vst.msk [vmem:[%s208] sm:$0xf] %vm3916, %v3852
      %3918 = vst.msk [vmem:[%s208 + $0x4] sm:$0xf] %vm3916, %v3853
      %3919 = vst.msk [vmem:[%s208 + $0x8] sm:$0xf] %vm3916, %v3854
      %3920 = vst.msk [vmem:[%s208 + $0xc] sm:$0xf] %vm3916, %v3855
      %3921 = vst.msk [vmem:[%s208 + $0x10] sm:$0xf] %vm3916, %v3856
      %3922 = vst.msk [vmem:[%s208 + $0x14] sm:$0xf] %vm3916, %v3857
      %3923 = vst.msk [vmem:[%s208 + $0x18] sm:$0xf] %vm3916, %v3858
      %3924 = vst.msk [vmem:[%s208 + $0x1c] sm:$0xf] %vm3916, %v3859
      %3925 = vst.msk [vmem:[%s208 + $0x20] sm:$0xf] %vm3916, %v3860
      %3926 = vst.msk [vmem:[%s208 + $0x24] sm:$0xf] %vm3916, %v3861
      %3927 = vst.msk [vmem:[%s208 + $0x28] sm:$0xf] %vm3916, %v3862
      %3928 = vst.msk [vmem:[%s208 + $0x2c] sm:$0xf] %vm3916, %v3863
      %3929 = vst.msk [vmem:[%s208 + $0x30] sm:$0xf] %vm3916, %v3864
      %3930 = vst.msk [vmem:[%s208 + $0x34] sm:$0xf] %vm3916, %v3865
      %3931 = vst.msk [vmem:[%s208 + $0x38] sm:$0xf] %vm3916, %v3866
      %3932 = vst.msk [vmem:[%s208 + $0x3c] sm:$0xf] %vm3916, %v3867
      %3933 = vst.msk [vmem:[%s208 + $0x40] sm:$0xf] %vm3916, %v3868
      %3934 = vst.msk [vmem:[%s208 + $0x44] sm:$0xf] %vm3916, %v3869
      %3935 = vst.msk [vmem:[%s208 + $0x48] sm:$0xf] %vm3916, %v3870
      %3936 = vst.msk [vmem:[%s208 + $0x4c] sm:$0xf] %vm3916, %v3871
      %3937 = vst.msk [vmem:[%s208 + $0x50] sm:$0xf] %vm3916, %v3872
      %3938 = vst.msk [vmem:[%s208 + $0x54] sm:$0xf] %vm3916, %v3873
      %3939 = vst.msk [vmem:[%s208 + $0x58] sm:$0xf] %vm3916, %v3874
      %3940 = vst.msk [vmem:[%s208 + $0x5c] sm:$0xf] %vm3916, %v3875
      %3941 = vst.msk [vmem:[%s208 + $0x60] sm:$0xf] %vm3916, %v3876
      %3942 = vst.msk [vmem:[%s208 + $0x64] sm:$0xf] %vm3916, %v3877
      %3943 = vst.msk [vmem:[%s208 + $0x68] sm:$0xf] %vm3916, %v3878
      %3944 = vst.msk [vmem:[%s208 + $0x6c] sm:$0xf] %vm3916, %v3879
      %3945 = vst.msk [vmem:[%s208 + $0x70] sm:$0xf] %vm3916, %v3880
      %3946 = vst.msk [vmem:[%s208 + $0x74] sm:$0xf] %vm3916, %v3881
      %3947 = vst.msk [vmem:[%s208 + $0x78] sm:$0xf] %vm3916, %v3882
      %3948 = vst.msk [vmem:[%s208 + $0x7c] sm:$0xf] %vm3916, %v3883
      %s3949 = smul.u32 16, %s19
      %p3950 = scmp.lt.s32.totalorder %s18, 1
      %s3951 = scalar_select %p3950, %s18, 1
      %p3952 = scmp.lt.s32.totalorder %s3949, 15
      %s3953 = scalar_select %p3952, %s3949, 15
      %s3954 = smul.addr %s3953, 2
      %s3955 = smul.addr %s3951, 32
      %s3956 = sadd.s32 %s3954, %s3955
      %s3957 = smul.addr %s3956, 4
      %s3958 = scalar_lea.vmem %s3, %s3957
      // Predicated region
      $region33: #{tpu_custom_call.1} parent=31 // pred_check
        %p3959 = pneg %p116
      $region34: #{tpu_custom_call.1} parent=31 // pred_check_branch
        %3961 = sbr.rel (%p3959) target = $region36
      $region35: #{tpu_custom_call.1} parent=31 // pred_region
        %s3962 = smul.u32 16, %s19
      $region36: #{tpu_custom_call.1} parent=31 // pred_fallthru
        _
    $region32: #{tpu_custom_call.1} parent=5 // pred_fallthru
      _
    %p3963 = scmp.le.s32.totalorder 2, %s9
    // Predicated region
    $region37: #{tpu_custom_call.1} parent=5 // pred_check
      %p3964 = pneg %p3963
    $region38: #{tpu_custom_call.1} parent=5 // pred_check_branch
      %3966 = sbr.rel (%p3964) target = $region40
    $region39: #{tpu_custom_call.1} parent=5 // pred_region
      %s3967 = ssub.s32 %s9, 2
      // Predicated region
      $region41: #{tpu_custom_call.1} parent=39 // pred_check
        %p3968 = pneg %p122
      $region42: #{tpu_custom_call.1} parent=39 // pred_check_branch
        %3970 = sbr.rel (%p3968) target = $region44
      $region43: #{tpu_custom_call.1} parent=39 // pred_region
        %s3971 = smul.u32 16, %s21
        %p3972 = scmp.lt.s32.totalorder %s20, 1
        %s3973 = scalar_select %p3972, %s20, 1
        %p3974 = scmp.lt.s32.totalorder %s3971, 15
        %s3975 = scalar_select %p3974, %s3971, 15
        %s3976 = smul.addr %s3975, 2
        %s3977 = smul.addr %s3973, 32
        %s3978 = sadd.s32 %s3976, %s3977
        %s3979 = smul.addr %s3978, 4
        %s3980 = scalar_lea.vmem %s3, %s3979
      $region44: #{tpu_custom_call.1} parent=39 // pred_fallthru
        _
    $region40: #{tpu_custom_call.1} parent=5 // pred_fallthru
      _
  $region6: #{tpu_custom_call.1} parent=0 // loop_footer
    %s13 = sadd.s32 1, %s9
  $region7: #{tpu_custom_call.1} parent=0 // loop_footer_branch
    %8 = sbr.rel target = $region3
  $region8: #{tpu_custom_call.1} parent=0 // loop_exit
    _

// kernel: tpu_custom_call.1
$region0: #{tpu_custom_call.1}
  #allocation0 [shape = 'u32[]', space=smem, size = 0x4, offset = 0x4, fixed_abs, tag = 'smem constant byte address 0x4 - core index']
  #allocation1 [shape = 'u32[144,128]{1,0:T(1,128)}', space=vmem, size = 0x12000, scoped, tag = 'internal scratch']
  #allocation2 [shape = 'bf16[256,128]{1,0:T(8,128)(2,1)}', space=vmem, size = 0x10000, scoped, tag = 'scratch operand']
  %s0 = inlined_call_operand.vmem [shape: bf16[2,1,18,18,4], index: 0, kind: input, shape index: {}]
  %s1 = inlined_call_operand.vmem [shape: bf16[128,128], index: 1, kind: input, shape index: {}]
  %s2 = inlined_call_operand.vmem [shape: f32[1,128], index: 2, kind: input, shape index: {}]
  %s3 = inlined_call_operand.vmem [shape: bf16[2,16,16,8], index: 3, kind: output, shape index: {}]
  %s4 = sld [smem:[#allocation0]]
  $region45: #{tpu_custom_call.1} parent=0
    _
  %s6 = ssub.s32 1, %s4
  %s7 = scalar_select 0, %s6, %s4
  loop: start=0, step=1, limit=4
  $region2: #{tpu_custom_call.1} parent=0 // loop_pre_header
    _
  $region3: #{tpu_custom_call.1} parent=0 // loop_header
    %s9 = sphi 0, %s13
    %p10 = scmp.ge.s32.totalorder %s9, 4
    %s16 = sphi 0, %s28
    %s17 = sphi 0, %s24
    %s18 = sphi 0, %s16
    %s19 = sphi 0, %s17
    %s20 = sphi 0, %s18
    %s21 = sphi 0, %s19
    %s33 = sphi 0, %s35
    %s36 = sphi 0, %s33
    %s37 = sphi 0, %s36
    %s53 = sphi 0, %s37
    %s57 = sphi 0, %s57
    %s59 = sphi 0, %s57
    %s60 = sphi 0, %s59
    %s74 = sphi 0, %s60
    %s78 = sphi 0, %s78
    %s80 = sphi 0, %s78
    %s81 = sphi 0, %s80
    %s95 = sphi 0, %s81
    %s103 = sphi 0, %s105
    %s106 = sphi 0, %s103
    %s107 = sphi 0, %s106
    %s123 = sphi 0, %s107
  $region4: #{tpu_custom_call.1} parent=0 // loop_header_branch
    %12 = sbr.rel (%p10) target = $region8
  $region5: #{tpu_custom_call.1} parent=0 // loop_body
    %s14 = ssub.s32 %s9, 1
    %s15 = ssub.s32 %s9, 2
    %s22 = sadd.s32 1, %s17
    %p23 = scmp.ge.s32.totalorder %s22, 1
    %s24 = scalar_select %p23, 0, %s22
    %s25 = sadd.s32 1, %s16
    %s26 = scalar_select %p23, %s25, %s16
    %p27 = scmp.ge.s32.totalorder %s26, 2
    %s28 = scalar_select %p27, 0, %s26
    %s29 = ssub.s32 %s16, %s28
    %s30 = ssub.s32 %s17, %s24
    %s31 = sor.u32 %s29, %s30
    %p32 = scmp.eq.s32.totalorder %s31, 0
    %s34 = sadd.s32 %s33, 1
    %s35 = scalar_select %p32, %s33, %s34
    %p38 = pneg %p32
    %p39 = scmp.eq.s32.totalorder %s9, 1
    %p40 = por %p38, %p39
    %p41 = scmp.ne.s32.totalorder %s33, %s36
    %p42 = scmp.eq.s32.totalorder %s9, 0
    %p43 = por %p41, %p42
    %p44 = scmp.ne.s32.totalorder %s33, %s36
    %p45 = scmp.eq.s32.totalorder %s14, 1
    %p46 = por %p44, %p45
    %p47 = scmp.ne.s32.totalorder %s36, %s37
    %p48 = scmp.eq.s32.totalorder %s14, 0
    %p49 = por %p47, %p48
    %p50 = scmp.ne.s32.totalorder %s36, %s37
    %p51 = scmp.eq.s32.totalorder %s15, 1
    %p52 = por %p50, %p51
    %p54 = scmp.ne.s32.totalorder %s37, %s53
    %p55 = scmp.eq.s32.totalorder %s15, 0
    %p56 = por %p54, %p55
    %s58 = sadd.s32 %s57, 1
    %p61 = scmp.eq.s32.totalorder %s9, 1
    %p62 = scmp.ne.s32.totalorder %s57, %s59
    %p63 = scmp.eq.s32.totalorder %s9, 0
    %p64 = por %p62, %p63
    %p65 = scmp.ne.s32.totalorder %s57, %s59
    %p66 = scmp.eq.s32.totalorder %s14, 1
    %p67 = por %p65, %p66
    %p68 = scmp.ne.s32.totalorder %s59, %s60
    %p69 = scmp.eq.s32.totalorder %s14, 0
    %p70 = por %p68, %p69
    %p71 = scmp.ne.s32.totalorder %s59, %s60
    %p72 = scmp.eq.s32.totalorder %s15, 1
    %p73 = por %p71, %p72
    %p75 = scmp.ne.s32.totalorder %s60, %s74
    %p76 = scmp.eq.s32.totalorder %s15, 0
    %p77 = por %p75, %p76
    %s79 = sadd.s32 %s78, 1
    %p82 = scmp.eq.s32.totalorder %s9, 1
    %p83 = scmp.ne.s32.totalorder %s78, %s80
    %p84 = scmp.eq.s32.totalorder %s9, 0
    %p85 = por %p83, %p84
    %p86 = scmp.ne.s32.totalorder %s78, %s80
    %p87 = scmp.eq.s32.totalorder %s14, 1
    %p88 = por %p86, %p87
    %p89 = scmp.ne.s32.totalorder %s80, %s81
    %p90 = scmp.eq.s32.totalorder %s14, 0
    %p91 = por %p89, %p90
    %p92 = scmp.ne.s32.totalorder %s80, %s81
    %p93 = scmp.eq.s32.totalorder %s15, 1
    %p94 = por %p92, %p93
    %p96 = scmp.ne.s32.totalorder %s81, %s95
    %p97 = scmp.eq.s32.totalorder %s15, 0
    %p98 = por %p96, %p97
    %s99 = ssub.s32 %s16, %s28
    %s100 = ssub.s32 %s17, %s24
    %s101 = sor.u32 %s99, %s100
    %p102 = scmp.eq.s32.totalorder %s101, 0
    %s104 = sadd.s32 %s103, 1
    %s105 = scalar_select %p102, %s103, %s104
    %p108 = pneg %p102
    %p109 = scmp.eq.s32.totalorder %s9, 1
    %p110 = por %p108, %p109
    %p111 = scmp.ne.s32.totalorder %s103, %s106
    %p112 = scmp.eq.s32.totalorder %s9, 0
    %p113 = por %p111, %p112
    %p114 = scmp.ne.s32.totalorder %s103, %s106
    %p115 = scmp.eq.s32.totalorder %s14, 1
    %p116 = por %p114, %p115
    %p117 = scmp.ne.s32.totalorder %s106, %s107
    %p118 = scmp.eq.s32.totalorder %s14, 0
    %p119 = por %p117, %p118
    %p120 = scmp.ne.s32.totalorder %s106, %s107
    %p121 = scmp.eq.s32.totalorder %s15, 1
    %p122 = por %p120, %p121
    %p124 = scmp.ne.s32.totalorder %s107, %s123
    %p125 = scmp.eq.s32.totalorder %s15, 0
    %p126 = por %p124, %p125
    %p127 = scmp.le.s32.totalorder 1, %s9
    %p128 = scmp.lt.s32.totalorder %s9, 3
    %p129 = pnand %p127, %p128
    %p130 = pneg %p129
    // Predicated region
    $region9: #{tpu_custom_call.1} parent=5 // pred_check
      _
    $region10: #{tpu_custom_call.1} parent=5 // pred_check_branch
      %132 = sbr.rel (%p129) target = $region12
    $region11: #{tpu_custom_call.1} parent=5 // pred_region
      %s133 = ssub.s32 %s9, 1
      // Predicated region
      $region13: #{tpu_custom_call.1} parent=11 // pred_check
        %p134 = pneg %p70
      $region14: #{tpu_custom_call.1} parent=11 // pred_check_branch
        %136 = sbr.rel (%p134) target = $region16
      $region15: #{tpu_custom_call.1} parent=11 // pred_region
        _
      $region16: #{tpu_custom_call.1} parent=11 // pred_fallthru
        _
      // Predicated region
      $region17: #{tpu_custom_call.1} parent=11 // pred_check
        %p137 = pneg %p91
      $region18: #{tpu_custom_call.1} parent=11 // pred_check_branch
        %139 = sbr.rel (%p137) target = $region20
      $region19: #{tpu_custom_call.1} parent=11 // pred_region
        _
      $region20: #{tpu_custom_call.1} parent=11 // pred_fallthru
        _
    $region12: #{tpu_custom_call.1} parent=5 // pred_fallthru
      _
    %p140 = scmp.lt.s32.totalorder %s9, 2
    // Predicated region
    $region21: #{tpu_custom_call.1} parent=5 // pred_check
      %p141 = pneg %p140
    $region22: #{tpu_custom_call.1} parent=5 // pred_check_branch
      %143 = sbr.rel (%p141) target = $region24
    $region23: #{tpu_custom_call.1} parent=5 // pred_region
      // Predicated region
      $region25: #{tpu_custom_call.1} parent=23 // pred_check
        %p144 = pneg %p43
      $region26: #{tpu_custom_call.1} parent=23 // pred_check_branch
        %146 = sbr.rel (%p144) target = $region28
      $region27: #{tpu_custom_call.1} parent=23 // pred_region
        %p147 = scmp.lt.s32.totalorder %s16, 1
        %s148 = scalar_select %p147, %s16, 1
        %p149 = scmp.lt.s32.totalorder %s17, 0
        %s150 = scalar_select %p149, %s17, 0
        %s151 = smul.addr %s150, 54
        %s152 = smul.addr %s148, 54
        %s153 = sadd.s32 %s151, %s152
        %s154 = smul.addr %s153, 4
        %s155 = scalar_lea.vmem %s0, %s154
      $region28: #{tpu_custom_call.1} parent=23 // pred_fallthru
        _
    $region24: #{tpu_custom_call.1} parent=5 // pred_fallthru
      _
    %p156 = scmp.le.s32.totalorder 1, %s9
    %p157 = scmp.lt.s32.totalorder %s9, 3
    %p158 = pnand %p156, %p157
    %p159 = pneg %p158
    // Predicated region
    $region29: #{tpu_custom_call.1} parent=5 // pred_check
      _
    $region30: #{tpu_custom_call.1} parent=5 // pred_check_branch
      %161 = sbr.rel (%p158) target = $region32
    $region31: #{tpu_custom_call.1} parent=5 // pred_region
      %s162 = ssub.s32 %s9, 1
      %p163 = scmp.lt.s32.totalorder %s18, 1
      %s164 = scalar_select %p163, %s18, 1
      %p165 = scmp.lt.s32.totalorder %s19, 0
      %s166 = scalar_select %p165, %s19, 0
      %s167 = smul.addr %s166, 54
      %s168 = smul.addr %s164, 54
      %s169 = sadd.s32 %s167, %s168
      %s170 = smul.addr %s169, 4
      %s171 = scalar_lea.vmem %s0, %s170
      %p172 = pneg %p49
      %p173 = pneg %p46
      %p174 = pneg %p70
      %p175 = pneg %p67
      %p176 = pneg %p91
      %p177 = pneg %p88
      %p178 = pneg %p119
      %p179 = pneg %p116
      %s180 = smul.u32 16, %s19
      %p181 = scmp.lt.s32.totalorder %s18, 1
      %s182 = scalar_select %p181, %s18, 1
      %p183 = scmp.lt.s32.totalorder %s180, 15
      %s184 = scalar_select %p183, %s180, 15
      %s185 = smul.addr %s184, 2
      %s186 = smul.addr %s182, 32
      %s187 = sadd.s32 %s185, %s186
      %s188 = smul.addr %s187, 4
      %s189 = scalar_lea.vmem %s3, %s188
      %p190 = scmp.lt.s32.totalorder %s18, 1
      %s191 = scalar_select %p190, %s18, 1
      %p192 = scmp.lt.s32.totalorder %s19, 0
      %s193 = scalar_select %p192, %s19, 0
      %s194 = smul.addr %s193, 54
      %s195 = smul.addr %s191, 54
      %s196 = sadd.s32 %s194, %s195
      %s197 = smul.addr %s196, 4
      %s198 = scalar_lea.vmem %s0, %s197
      %s199 = smul.u32 16, %s19
      %p200 = scmp.lt.s32.totalorder %s18, 1
      %s201 = scalar_select %p200, %s18, 1
      %p202 = scmp.lt.s32.totalorder %s199, 15
      %s203 = scalar_select %p202, %s199, 15
      %s204 = smul.addr %s203, 2
      %s205 = smul.addr %s201, 32
      %s206 = sadd.s32 %s204, %s205
      %s207 = smul.addr %s206, 4
      %s208 = scalar_lea.vmem %s3, %s207
      %s209 = smul.u32 16, %s19
      %211 = vst [vmem:[#allocation2] sm:$0xf] 0
      %212 = vst [vmem:[#allocation2 + $0x4] sm:$0xf] 0
      %213 = vst [vmem:[#allocation2 + $0x8] sm:$0xf] 0
      %214 = vst [vmem:[#allocation2 + $0xc] sm:$0xf] 0
      %215 = vst [vmem:[#allocation2 + $0x10] sm:$0xf] 0
      %216 = vst [vmem:[#allocation2 + $0x14] sm:$0xf] 0
      %217 = vst [vmem:[#allocation2 + $0x18] sm:$0xf] 0
      %218 = vst [vmem:[#allocation2 + $0x1c] sm:$0xf] 0
      %219 = vst [vmem:[#allocation2 + $0x20] sm:$0xf] 0
      %220 = vst [vmem:[#allocation2 + $0x24] sm:$0xf] 0
      %221 = vst [vmem:[#allocation2 + $0x28] sm:$0xf] 0
      %222 = vst [vmem:[#allocation2 + $0x2c] sm:$0xf] 0
      %223 = vst [vmem:[#allocation2 + $0x30] sm:$0xf] 0
      %224 = vst [vmem:[#allocation2 + $0x34] sm:$0xf] 0
      %225 = vst [vmem:[#allocation2 + $0x38] sm:$0xf] 0
      %226 = vst [vmem:[#allocation2 + $0x3c] sm:$0xf] 0
      %227 = vst [vmem:[#allocation2 + $0x40] sm:$0xf] 0
      %228 = vst [vmem:[#allocation2 + $0x44] sm:$0xf] 0
      %229 = vst [vmem:[#allocation2 + $0x48] sm:$0xf] 0
      %230 = vst [vmem:[#allocation2 + $0x4c] sm:$0xf] 0
      %231 = vst [vmem:[#allocation2 + $0x50] sm:$0xf] 0
      %232 = vst [vmem:[#allocation2 + $0x54] sm:$0xf] 0
      %233 = vst [vmem:[#allocation2 + $0x58] sm:$0xf] 0
      %234 = vst [vmem:[#allocation2 + $0x5c] sm:$0xf] 0
      %235 = vst [vmem:[#allocation2 + $0x60] sm:$0xf] 0
      %236 = vst [vmem:[#allocation2 + $0x64] sm:$0xf] 0
      %237 = vst [vmem:[#allocation2 + $0x68] sm:$0xf] 0
      %238 = vst [vmem:[#allocation2 + $0x6c] sm:$0xf] 0
      %239 = vst [vmem:[#allocation2 + $0x70] sm:$0xf] 0
      %240 = vst [vmem:[#allocation2 + $0x74] sm:$0xf] 0
      %241 = vst [vmem:[#allocation2 + $0x78] sm:$0xf] 0
      %242 = vst [vmem:[#allocation2 + $0x7c] sm:$0xf] 0
      %v243 = vld [vmem:[%s198] sm:$0xf]
      %v244 = vld [vmem:[%s198 + $0x4] sm:$0xf]
      %v245 = vld [vmem:[%s198 + $0xc] sm:$0xf]
      %v246 = vld [vmem:[%s198 + $0x10] sm:$0xf]
      %v247 = vld [vmem:[%s198 + $0x18] sm:$0xf]
      %v248 = vld [vmem:[%s198 + $0x1c] sm:$0xf]
      %v249 = vld [vmem:[%s198 + $0x24] sm:$0xf]
      %v250 = vld [vmem:[%s198 + $0x28] sm:$0xf]
      %v251 = vld [vmem:[%s198 + $0x30] sm:$0xf]
      %v252 = vld [vmem:[%s198 + $0x34] sm:$0xf]
      %v253 = vld [vmem:[%s198 + $0x3c] sm:$0xf]
      %v254 = vld [vmem:[%s198 + $0x40] sm:$0xf]
      %v255 = vld [vmem:[%s198 + $0x48] sm:$0xf]
      %v256 = vld [vmem:[%s198 + $0x4c] sm:$0xf]
      %v257 = vld [vmem:[%s198 + $0x54] sm:$0xf]
      %v258 = vld [vmem:[%s198 + $0x58] sm:$0xf]
      %v259 = vld [vmem:[%s198 + $0x60] sm:$0xf]
      %v260 = vld [vmem:[%s198 + $0x64] sm:$0xf]
      %v261 = vld [vmem:[%s198 + $0x6c] sm:$0xf]
      %v262 = vld [vmem:[%s198 + $0x70] sm:$0xf]
      %v263 = vld [vmem:[%s198 + $0x78] sm:$0xf]
      %v264 = vld [vmem:[%s198 + $0x7c] sm:$0xf]
      %v265 = vld [vmem:[%s198 + $0x84] sm:$0xf]
      %v266 = vld [vmem:[%s198 + $0x88] sm:$0xf]
      %v267 = vld [vmem:[%s198 + $0x90] sm:$0xf]
      %v268 = vld [vmem:[%s198 + $0x94] sm:$0xf]
      %v269 = vld [vmem:[%s198 + $0x9c] sm:$0xf]
      %v270 = vld [vmem:[%s198 + $0xa0] sm:$0xf]
      %v271 = vld [vmem:[%s198 + $0xa8] sm:$0xf]
      %v272 = vld [vmem:[%s198 + $0xac] sm:$0xf]
      %v273 = vld [vmem:[%s198 + $0xb4] sm:$0xf]
      %v274 = vld [vmem:[%s198 + $0xb8] sm:$0xf]
      %vm275 = vcmask 27648
      %276 = vst.msk [vmem:[#allocation2] sm:$0xf] %vm275, %v243
      %277 = vst.msk [vmem:[#allocation2 + $0x4] sm:$0xf] %vm275, %v244
      %278 = vst.msk [vmem:[#allocation2 + $0x8] sm:$0xf] %vm275, %v245
      %279 = vst.msk [vmem:[#allocation2 + $0xc] sm:$0xf] %vm275, %v246
      %280 = vst.msk [vmem:[#allocation2 + $0x10] sm:$0xf] %vm275, %v247
      %281 = vst.msk [vmem:[#allocation2 + $0x14] sm:$0xf] %vm275, %v248
      %282 = vst.msk [vmem:[#allocation2 + $0x18] sm:$0xf] %vm275, %v249
      %283 = vst.msk [vmem:[#allocation2 + $0x1c] sm:$0xf] %vm275, %v250
      %284 = vst.msk [vmem:[#allocation2 + $0x20] sm:$0xf] %vm275, %v251
      %285 = vst.msk [vmem:[#allocation2 + $0x24] sm:$0xf] %vm275, %v252
      %286 = vst.msk [vmem:[#allocation2 + $0x28] sm:$0xf] %vm275, %v253
      %287 = vst.msk [vmem:[#allocation2 + $0x2c] sm:$0xf] %vm275, %v254
      %288 = vst.msk [vmem:[#allocation2 + $0x30] sm:$0xf] %vm275, %v255
      %289 = vst.msk [vmem:[#allocation2 + $0x34] sm:$0xf] %vm275, %v256
      %290 = vst.msk [vmem:[#allocation2 + $0x38] sm:$0xf] %vm275, %v257
      %291 = vst.msk [vmem:[#allocation2 + $0x3c] sm:$0xf] %vm275, %v258
      %292 = vst.msk [vmem:[#allocation2 + $0x40] sm:$0xf] %vm275, %v259
      %293 = vst.msk [vmem:[#allocation2 + $0x44] sm:$0xf] %vm275, %v260
      %294 = vst.msk [vmem:[#allocation2 + $0x48] sm:$0xf] %vm275, %v261
      %295 = vst.msk [vmem:[#allocation2 + $0x4c] sm:$0xf] %vm275, %v262
      %296 = vst.msk [vmem:[#allocation2 + $0x50] sm:$0xf] %vm275, %v263
      %297 = vst.msk [vmem:[#allocation2 + $0x54] sm:$0xf] %vm275, %v264
      %298 = vst.msk [vmem:[#allocation2 + $0x58] sm:$0xf] %vm275, %v265
      %299 = vst.msk [vmem:[#allocation2 + $0x5c] sm:$0xf] %vm275, %v266
      %300 = vst.msk [vmem:[#allocation2 + $0x60] sm:$0xf] %vm275, %v267
      %301 = vst.msk [vmem:[#allocation2 + $0x64] sm:$0xf] %vm275, %v268
      %302 = vst.msk [vmem:[#allocation2 + $0x68] sm:$0xf] %vm275, %v269
      %303 = vst.msk [vmem:[#allocation2 + $0x6c] sm:$0xf] %vm275, %v270
      %304 = vst.msk [vmem:[#allocation2 + $0x70] sm:$0xf] %vm275, %v271
      %305 = vst.msk [vmem:[#allocation2 + $0x74] sm:$0xf] %vm275, %v272
      %306 = vst.msk [vmem:[#allocation2 + $0x78] sm:$0xf] %vm275, %v273
      %307 = vst.msk [vmem:[#allocation2 + $0x7c] sm:$0xf] %vm275, %v274
      %v308 = vld [vmem:[%s198] sm:$0xf]
      %v309 = vld [vmem:[%s198 + $0x4] sm:$0xf]
      %v310 = vld [vmem:[%s198 + $0x8] sm:$0x1]
      %v311 = vld [vmem:[%s198 + $0xc] sm:$0xf]
      %v312 = vld [vmem:[%s198 + $0x10] sm:$0xf]
      %v313 = vld [vmem:[%s198 + $0x14] sm:$0x1]
      %v314 = vld [vmem:[%s198 + $0x18] sm:$0xf]
      %v315 = vld [vmem:[%s198 + $0x1c] sm:$0xf]
      %v316 = vld [vmem:[%s198 + $0x20] sm:$0x1]
      %v317 = vld [vmem:[%s198 + $0x24] sm:$0xf]
      %v318 = vld [vmem:[%s198 + $0x28] sm:$0xf]
      %v319 = vld [vmem:[%s198 + $0x2c] sm:$0x1]
      %v320 = vld [vmem:[%s198 + $0x30] sm:$0xf]
      %v321 = vld [vmem:[%s198 + $0x34] sm:$0xf]
      %v322 = vld [vmem:[%s198 + $0x38] sm:$0x1]
      %v323 = vld [vmem:[%s198 + $0x3c] sm:$0xf]
      %v324 = vld [vmem:[%s198 + $0x40] sm:$0xf]
      %v325 = vld [vmem:[%s198 + $0x44] sm:$0x1]
      %v326 = vld [vmem:[%s198 + $0x48] sm:$0xf]
      %v327 = vld [vmem:[%s198 + $0x4c] sm:$0xf]
      %v328 = vld [vmem:[%s198 + $0x50] sm:$0x1]
      %v329 = vld [vmem:[%s198 + $0x54] sm:$0xf]
      %v330 = vld [vmem:[%s198 + $0x58] sm:$0xf]
      %v331 = vld [vmem:[%s198 + $0x5c] sm:$0x1]
      %v332 = vld [vmem:[%s198 + $0x60] sm:$0xf]
      %v333 = vld [vmem:[%s198 + $0x64] sm:$0xf]
      %v334 = vld [vmem:[%s198 + $0x68] sm:$0x1]
      %v335 = vld [vmem:[%s198 + $0x6c] sm:$0xf]
      %v336 = vld [vmem:[%s198 + $0x70] sm:$0xf]
      %v337 = vld [vmem:[%s198 + $0x74] sm:$0x1]
      %v338 = vld [vmem:[%s198 + $0x78] sm:$0xf]
      %v339 = vld [vmem:[%s198 + $0x7c] sm:$0xf]
      %v340 = vld [vmem:[%s198 + $0x80] sm:$0x1]
      %v341 = vld [vmem:[%s198 + $0x84] sm:$0xf]
      %v342 = vld [vmem:[%s198 + $0x88] sm:$0xf]
      %v343 = vld [vmem:[%s198 + $0x8c] sm:$0x1]
      %v344 = vld [vmem:[%s198 + $0x90] sm:$0xf]
      %v345 = vld [vmem:[%s198 + $0x94] sm:$0xf]
      %v346 = vld [vmem:[%s198 + $0x98] sm:$0x1]
      %v347 = vld [vmem:[%s198 + $0x9c] sm:$0xf]
      %v348 = vld [vmem:[%s198 + $0xa0] sm:$0xf]
      %v349 = vld [vmem:[%s198 + $0xa4] sm:$0x1]
      %v350 = vld [vmem:[%s198 + $0xa8] sm:$0xf]
      %v351 = vld [vmem:[%s198 + $0xac] sm:$0xf]
      %v352 = vld [vmem:[%s198 + $0xb0] sm:$0x1]
      %v353 = vld [vmem:[%s198 + $0xb4] sm:$0xf]
      %v354 = vld [vmem:[%s198 + $0xb8] sm:$0xf]
      %v355 = vld [vmem:[%s198 + $0xbc] sm:$0x1]
      %vm356 = vsmask.f32 3328
      %vm357 = vsmask.f32 7440
      %vm358 = vmor %vm356, %vm357
      %v360 = vshrl.u32 %v308, 16
      %v362 = vrot.slane %v360, 4
      %v363 = vshll.u32 %v308, 16
      %v365 = vrot.slane %v363, 5
      %v366 = vor.u32 %v362, %v365
      %v367 = vrot.slane %v366, 4
      %v369 = vshll.u32 %v309, 16
      %v371 = vrot.slane %v369, 5
      %v372 = vsel %vm358, %v367, %v371
      %v373 = vshrl.u32 %v309, 16
      %v375 = vrot.slane %v373, 4
      %v376 = vor.u32 %v375, %v371
      %v377 = vrot.slane %v376, 4
      %v379 = vshll.u32 %v310, 16
      %v381 = vrot.slane %v379, 5
      %v382 = vsel %vm358, %v377, %v381
      %v384 = vshrl.u32 %v311, 16
      %v386 = vrot.slane %v384, 4
      %v387 = vshll.u32 %v311, 16
      %v389 = vrot.slane %v387, 5
      %v390 = vor.u32 %v386, %v389
      %v391 = vrot.slane %v390, 4
      %v393 = vshll.u32 %v312, 16
      %v395 = vrot.slane %v393, 5
      %v396 = vsel %vm358, %v391, %v395
      %v397 = vshrl.u32 %v312, 16
      %v399 = vrot.slane %v397, 4
      %v400 = vor.u32 %v399, %v395
      %v401 = vrot.slane %v400, 4
      %v403 = vshll.u32 %v313, 16
      %v405 = vrot.slane %v403, 5
      %v406 = vsel %vm358, %v401, %v405
      %v408 = vshrl.u32 %v314, 16
      %v410 = vrot.slane %v408, 4
      %v411 = vshll.u32 %v314, 16
      %v413 = vrot.slane %v411, 5
      %v414 = vor.u32 %v410, %v413
      %v415 = vrot.slane %v414, 4
      %v417 = vshll.u32 %v315, 16
      %v419 = vrot.slane %v417, 5
      %v420 = vsel %vm358, %v415, %v419
      %v421 = vshrl.u32 %v315, 16
      %v423 = vrot.slane %v421, 4
      %v424 = vor.u32 %v423, %v419
      %v425 = vrot.slane %v424, 4
      %v427 = vshll.u32 %v316, 16
      %v429 = vrot.slane %v427, 5
      %v430 = vsel %vm358, %v425, %v429
      %v432 = vshrl.u32 %v317, 16
      %v434 = vrot.slane %v432, 4
      %v435 = vshll.u32 %v317, 16
      %v437 = vrot.slane %v435, 5
      %v438 = vor.u32 %v434, %v437
      %v439 = vrot.slane %v438, 4
      %v441 = vshll.u32 %v318, 16
      %v443 = vrot.slane %v441, 5
      %v444 = vsel %vm358, %v439, %v443
      %v445 = vshrl.u32 %v318, 16
      %v447 = vrot.slane %v445, 4
      %v448 = vor.u32 %v447, %v443
      %v449 = vrot.slane %v448, 4
      %v451 = vshll.u32 %v319, 16
      %v453 = vrot.slane %v451, 5
      %v454 = vsel %vm358, %v449, %v453
      %v456 = vshrl.u32 %v320, 16
      %v458 = vrot.slane %v456, 4
      %v459 = vshll.u32 %v320, 16
      %v461 = vrot.slane %v459, 5
      %v462 = vor.u32 %v458, %v461
      %v463 = vrot.slane %v462, 4
      %v465 = vshll.u32 %v321, 16
      %v467 = vrot.slane %v465, 5
      %v468 = vsel %vm358, %v463, %v467
      %v469 = vshrl.u32 %v321, 16
      %v471 = vrot.slane %v469, 4
      %v472 = vor.u32 %v471, %v467
      %v473 = vrot.slane %v472, 4
      %v475 = vshll.u32 %v322, 16
      %v477 = vrot.slane %v475, 5
      %v478 = vsel %vm358, %v473, %v477
      %v480 = vshrl.u32 %v323, 16
      %v482 = vrot.slane %v480, 4
      %v483 = vshll.u32 %v323, 16
      %v485 = vrot.slane %v483, 5
      %v486 = vor.u32 %v482, %v485
      %v487 = vrot.slane %v486, 4
      %v489 = vshll.u32 %v324, 16
      %v491 = vrot.slane %v489, 5
      %v492 = vsel %vm358, %v487, %v491
      %v493 = vshrl.u32 %v324, 16
      %v495 = vrot.slane %v493, 4
      %v496 = vor.u32 %v495, %v491
      %v497 = vrot.slane %v496, 4
      %v499 = vshll.u32 %v325, 16
      %v501 = vrot.slane %v499, 5
      %v502 = vsel %vm358, %v497, %v501
      %v504 = vshrl.u32 %v326, 16
      %v506 = vrot.slane %v504, 4
      %v507 = vshll.u32 %v326, 16
      %v509 = vrot.slane %v507, 5
      %v510 = vor.u32 %v506, %v509
      %v511 = vrot.slane %v510, 4
      %v513 = vshll.u32 %v327, 16
      %v515 = vrot.slane %v513, 5
      %v516 = vsel %vm358, %v511, %v515
      %v517 = vshrl.u32 %v327, 16
      %v519 = vrot.slane %v517, 4
      %v520 = vor.u32 %v519, %v515
      %v521 = vrot.slane %v520, 4
      %v523 = vshll.u32 %v328, 16
      %v525 = vrot.slane %v523, 5
      %v526 = vsel %vm358, %v521, %v525
      %v528 = vshrl.u32 %v329, 16
      %v530 = vrot.slane %v528, 4
      %v531 = vshll.u32 %v329, 16
      %v533 = vrot.slane %v531, 5
      %v534 = vor.u32 %v530, %v533
      %v535 = vrot.slane %v534, 4
      %v537 = vshll.u32 %v330, 16
      %v539 = vrot.slane %v537, 5
      %v540 = vsel %vm358, %v535, %v539
      %v541 = vshrl.u32 %v330, 16
      %v543 = vrot.slane %v541, 4
      %v544 = vor.u32 %v543, %v539
      %v545 = vrot.slane %v544, 4
      %v547 = vshll.u32 %v331, 16
      %v549 = vrot.slane %v547, 5
      %v550 = vsel %vm358, %v545, %v549
      %v552 = vshrl.u32 %v332, 16
      %v554 = vrot.slane %v552, 4
      %v555 = vshll.u32 %v332, 16
      %v557 = vrot.slane %v555, 5
      %v558 = vor.u32 %v554, %v557
      %v559 = vrot.slane %v558, 4
      %v561 = vshll.u32 %v333, 16
      %v563 = vrot.slane %v561, 5
      %v564 = vsel %vm358, %v559, %v563
      %v565 = vshrl.u32 %v333, 16
      %v567 = vrot.slane %v565, 4
      %v568 = vor.u32 %v567, %v563
      %v569 = vrot.slane %v568, 4
      %v571 = vshll.u32 %v334, 16
      %v573 = vrot.slane %v571, 5
      %v574 = vsel %vm358, %v569, %v573
      %v576 = vshrl.u32 %v335, 16
      %v578 = vrot.slane %v576, 4
      %v579 = vshll.u32 %v335, 16
      %v581 = vrot.slane %v579, 5
      %v582 = vor.u32 %v578, %v581
      %v583 = vrot.slane %v582, 4
      %v585 = vshll.u32 %v336, 16
      %v587 = vrot.slane %v585, 5
      %v588 = vsel %vm358, %v583, %v587
      %v589 = vshrl.u32 %v336, 16
      %v591 = vrot.slane %v589, 4
      %v592 = vor.u32 %v591, %v587
      %v593 = vrot.slane %v592, 4
      %v595 = vshll.u32 %v337, 16
      %v597 = vrot.slane %v595, 5
      %v598 = vsel %vm358, %v593, %v597
      %v600 = vshrl.u32 %v338, 16
      %v602 = vrot.slane %v600, 4
      %v603 = vshll.u32 %v338, 16
      %v605 = vrot.slane %v603, 5
      %v606 = vor.u32 %v602, %v605
      %v607 = vrot.slane %v606, 4
      %v609 = vshll.u32 %v339, 16
      %v611 = vrot.slane %v609, 5
      %v612 = vsel %vm358, %v607, %v611
      %v613 = vshrl.u32 %v339, 16
      %v615 = vrot.slane %v613, 4
      %v616 = vor.u32 %v615, %v611
      %v617 = vrot.slane %v616, 4
      %v619 = vshll.u32 %v340, 16
      %v621 = vrot.slane %v619, 5
      %v622 = vsel %vm358, %v617, %v621
      %v624 = vshrl.u32 %v341, 16
      %v626 = vrot.slane %v624, 4
      %v627 = vshll.u32 %v341, 16
      %v629 = vrot.slane %v627, 5
      %v630 = vor.u32 %v626, %v629
      %v631 = vrot.slane %v630, 4
      %v633 = vshll.u32 %v342, 16
      %v635 = vrot.slane %v633, 5
      %v636 = vsel %vm358, %v631, %v635
      %v637 = vshrl.u32 %v342, 16
      %v639 = vrot.slane %v637, 4
      %v640 = vor.u32 %v639, %v635
      %v641 = vrot.slane %v640, 4
      %v643 = vshll.u32 %v343, 16
      %v645 = vrot.slane %v643, 5
      %v646 = vsel %vm358, %v641, %v645
      %v648 = vshrl.u32 %v344, 16
      %v650 = vrot.slane %v648, 4
      %v651 = vshll.u32 %v344, 16
      %v653 = vrot.slane %v651, 5
      %v654 = vor.u32 %v650, %v653
      %v655 = vrot.slane %v654, 4
      %v657 = vshll.u32 %v345, 16
      %v659 = vrot.slane %v657, 5
      %v660 = vsel %vm358, %v655, %v659
      %v661 = vshrl.u32 %v345, 16
      %v663 = vrot.slane %v661, 4
      %v664 = vor.u32 %v663, %v659
      %v665 = vrot.slane %v664, 4
      %v667 = vshll.u32 %v346, 16
      %v669 = vrot.slane %v667, 5
      %v670 = vsel %vm358, %v665, %v669
      %v672 = vshrl.u32 %v347, 16
      %v674 = vrot.slane %v672, 4
      %v675 = vshll.u32 %v347, 16
      %v677 = vrot.slane %v675, 5
      %v678 = vor.u32 %v674, %v677
      %v679 = vrot.slane %v678, 4
      %v681 = vshll.u32 %v348, 16
      %v683 = vrot.slane %v681, 5
      %v684 = vsel %vm358, %v679, %v683
      %v685 = vshrl.u32 %v348, 16
      %v687 = vrot.slane %v685, 4
      %v688 = vor.u32 %v687, %v683
      %v689 = vrot.slane %v688, 4
      %v691 = vshll.u32 %v349, 16
      %v693 = vrot.slane %v691, 5
      %v694 = vsel %vm358, %v689, %v693
      %v696 = vshrl.u32 %v350, 16
      %v698 = vrot.slane %v696, 4
      %v699 = vshll.u32 %v350, 16
      %v701 = vrot.slane %v699, 5
      %v702 = vor.u32 %v698, %v701
      %v703 = vrot.slane %v702, 4
      %v705 = vshll.u32 %v351, 16
      %v707 = vrot.slane %v705, 5
      %v708 = vsel %vm358, %v703, %v707
      %v709 = vshrl.u32 %v351, 16
      %v711 = vrot.slane %v709, 4
      %v712 = vor.u32 %v711, %v707
      %v713 = vrot.slane %v712, 4
      %v715 = vshll.u32 %v352, 16
      %v717 = vrot.slane %v715, 5
      %v718 = vsel %vm358, %v713, %v717
      %v720 = vshrl.u32 %v353, 16
      %v722 = vrot.slane %v720, 4
      %v723 = vshll.u32 %v353, 16
      %v725 = vrot.slane %v723, 5
      %v726 = vor.u32 %v722, %v725
      %v727 = vrot.slane %v726, 4
      %v729 = vshll.u32 %v354, 16
      %v731 = vrot.slane %v729, 5
      %v732 = vsel %vm358, %v727, %v731
      %v733 = vshrl.u32 %v354, 16
      %v735 = vrot.slane %v733, 4
      %v736 = vor.u32 %v735, %v731
      %v737 = vrot.slane %v736, 4
      %v739 = vshll.u32 %v355, 16
      %v741 = vrot.slane %v739, 5
      %v742 = vsel %vm358, %v737, %v741
      %743 = vrot.lane.b32.xlu0 %v372, 4
      %v744 = vpop.permute.xlu0 %743
      %745 = vrot.lane.b32.xlu0 %v382, 4
      %v746 = vpop.permute.xlu0 %745
      %747 = vrot.lane.b32.xlu0 %v396, 4
      %v748 = vpop.permute.xlu0 %747
      %749 = vrot.lane.b32.xlu0 %v406, 4
      %v750 = vpop.permute.xlu0 %749
      %751 = vrot.lane.b32.xlu0 %v420, 4
      %v752 = vpop.permute.xlu0 %751
      %753 = vrot.lane.b32.xlu0 %v430, 4
      %v754 = vpop.permute.xlu0 %753
      %755 = vrot.lane.b32.xlu0 %v444, 4
      %v756 = vpop.permute.xlu0 %755
      %757 = vrot.lane.b32.xlu0 %v454, 4
      %v758 = vpop.permute.xlu0 %757
      %759 = vrot.lane.b32.xlu0 %v468, 4
      %v760 = vpop.permute.xlu0 %759
      %761 = vrot.lane.b32.xlu0 %v478, 4
      %v762 = vpop.permute.xlu0 %761
      %763 = vrot.lane.b32.xlu0 %v492, 4
      %v764 = vpop.permute.xlu0 %763
      %765 = vrot.lane.b32.xlu0 %v502, 4
      %v766 = vpop.permute.xlu0 %765
      %767 = vrot.lane.b32.xlu0 %v516, 4
      %v768 = vpop.permute.xlu0 %767
      %769 = vrot.lane.b32.xlu0 %v526, 4
      %v770 = vpop.permute.xlu0 %769
      %771 = vrot.lane.b32.xlu0 %v540, 4
      %v772 = vpop.permute.xlu0 %771
      %773 = vrot.lane.b32.xlu0 %v550, 4
      %v774 = vpop.permute.xlu0 %773
      %775 = vrot.lane.b32.xlu0 %v564, 4
      %v776 = vpop.permute.xlu0 %775
      %777 = vrot.lane.b32.xlu0 %v574, 4
      %v778 = vpop.permute.xlu0 %777
      %779 = vrot.lane.b32.xlu0 %v588, 4
      %v780 = vpop.permute.xlu0 %779
      %781 = vrot.lane.b32.xlu0 %v598, 4
      %v782 = vpop.permute.xlu0 %781
      %783 = vrot.lane.b32.xlu0 %v612, 4
      %v784 = vpop.permute.xlu0 %783
      %785 = vrot.lane.b32.xlu0 %v622, 4
      %v786 = vpop.permute.xlu0 %785
      %787 = vrot.lane.b32.xlu0 %v636, 4
      %v788 = vpop.permute.xlu0 %787
      %789 = vrot.lane.b32.xlu0 %v646, 4
      %v790 = vpop.permute.xlu0 %789
      %791 = vrot.lane.b32.xlu0 %v660, 4
      %v792 = vpop.permute.xlu0 %791
      %793 = vrot.lane.b32.xlu0 %v670, 4
      %v794 = vpop.permute.xlu0 %793
      %795 = vrot.lane.b32.xlu0 %v684, 4
      %v796 = vpop.permute.xlu0 %795
      %797 = vrot.lane.b32.xlu0 %v694, 4
      %v798 = vpop.permute.xlu0 %797
      %799 = vrot.lane.b32.xlu0 %v708, 4
      %v800 = vpop.permute.xlu0 %799
      %801 = vrot.lane.b32.xlu0 %v718, 4
      %v802 = vpop.permute.xlu0 %801
      %803 = vrot.lane.b32.xlu0 %v732, 4
      %v804 = vpop.permute.xlu0 %803
      %805 = vrot.lane.b32.xlu0 %v742, 4
      %v806 = vpop.permute.xlu0 %805
      %vm839 = vcmask 60448
      %840 = vst.msk [vmem:[#allocation2] sm:$0xf] %vm839, %v744
      %841 = vst.msk [vmem:[#allocation2 + $0x4] sm:$0xf] %vm839, %v746
      %842 = vst.msk [vmem:[#allocation2 + $0x8] sm:$0xf] %vm839, %v748
      %843 = vst.msk [vmem:[#allocation2 + $0xc] sm:$0xf] %vm839, %v750
      %844 = vst.msk [vmem:[#allocation2 + $0x10] sm:$0xf] %vm839, %v752
      %845 = vst.msk [vmem:[#allocation2 + $0x14] sm:$0xf] %vm839, %v754
      %846 = vst.msk [vmem:[#allocation2 + $0x18] sm:$0xf] %vm839, %v756
      %847 = vst.msk [vmem:[#allocation2 + $0x1c] sm:$0xf] %vm839, %v758
      %848 = vst.msk [vmem:[#allocation2 + $0x20] sm:$0xf] %vm839, %v760
      %849 = vst.msk [vmem:[#allocation2 + $0x24] sm:$0xf] %vm839, %v762
      %850 = vst.msk [vmem:[#allocation2 + $0x28] sm:$0xf] %vm839, %v764
      %851 = vst.msk [vmem:[#allocation2 + $0x2c] sm:$0xf] %vm839, %v766
      %852 = vst.msk [vmem:[#allocation2 + $0x30] sm:$0xf] %vm839, %v768
      %853 = vst.msk [vmem:[#allocation2 + $0x34] sm:$0xf] %vm839, %v770
      %854 = vst.msk [vmem:[#allocation2 + $0x38] sm:$0xf] %vm839, %v772
      %855 = vst.msk [vmem:[#allocation2 + $0x3c] sm:$0xf] %vm839, %v774
      %856 = vst.msk [vmem:[#allocation2 + $0x40] sm:$0xf] %vm839, %v776
      %857 = vst.msk [vmem:[#allocation2 + $0x44] sm:$0xf] %vm839, %v778
      %858 = vst.msk [vmem:[#allocation2 + $0x48] sm:$0xf] %vm839, %v780
      %859 = vst.msk [vmem:[#allocation2 + $0x4c] sm:$0xf] %vm839, %v782
      %860 = vst.msk [vmem:[#allocation2 + $0x50] sm:$0xf] %vm839, %v784
      %861 = vst.msk [vmem:[#allocation2 + $0x54] sm:$0xf] %vm839, %v786
      %862 = vst.msk [vmem:[#allocation2 + $0x58] sm:$0xf] %vm839, %v788
      %863 = vst.msk [vmem:[#allocation2 + $0x5c] sm:$0xf] %vm839, %v790
      %864 = vst.msk [vmem:[#allocation2 + $0x60] sm:$0xf] %vm839, %v792
      %865 = vst.msk [vmem:[#allocation2 + $0x64] sm:$0xf] %vm839, %v794
      %866 = vst.msk [vmem:[#allocation2 + $0x68] sm:$0xf] %vm839, %v796
      %867 = vst.msk [vmem:[#allocation2 + $0x6c] sm:$0xf] %vm839, %v798
      %868 = vst.msk [vmem:[#allocation2 + $0x70] sm:$0xf] %vm839, %v800
      %869 = vst.msk [vmem:[#allocation2 + $0x74] sm:$0xf] %vm839, %v802
      %870 = vst.msk [vmem:[#allocation2 + $0x78] sm:$0xf] %vm839, %v804
      %871 = vst.msk [vmem:[#allocation2 + $0x7c] sm:$0xf] %vm839, %v806
      %v872 = vld [vmem:[%s198] sm:$0xe]
      %v873 = vld [vmem:[%s198 + $0x4] sm:$0xf]
      %v874 = vld [vmem:[%s198 + $0x8] sm:$0x1]
      %v875 = vld [vmem:[%s198 + $0xc] sm:$0xe]
      %v876 = vld [vmem:[%s198 + $0x10] sm:$0xf]
      %v877 = vld [vmem:[%s198 + $0x14] sm:$0x1]
      %v878 = vld [vmem:[%s198 + $0x18] sm:$0xe]
      %v879 = vld [vmem:[%s198 + $0x1c] sm:$0xf]
      %v880 = vld [vmem:[%s198 + $0x20] sm:$0x1]
      %v881 = vld [vmem:[%s198 + $0x24] sm:$0xe]
      %v882 = vld [vmem:[%s198 + $0x28] sm:$0xf]
      %v883 = vld [vmem:[%s198 + $0x2c] sm:$0x1]
      %v884 = vld [vmem:[%s198 + $0x30] sm:$0xe]
      %v885 = vld [vmem:[%s198 + $0x34] sm:$0xf]
      %v886 = vld [vmem:[%s198 + $0x38] sm:$0x1]
      %v887 = vld [vmem:[%s198 + $0x3c] sm:$0xe]
      %v888 = vld [vmem:[%s198 + $0x40] sm:$0xf]
      %v889 = vld [vmem:[%s198 + $0x44] sm:$0x1]
      %v890 = vld [vmem:[%s198 + $0x48] sm:$0xe]
      %v891 = vld [vmem:[%s198 + $0x4c] sm:$0xf]
      %v892 = vld [vmem:[%s198 + $0x50] sm:$0x1]
      %v893 = vld [vmem:[%s198 + $0x54] sm:$0xe]
      %v894 = vld [vmem:[%s198 + $0x58] sm:$0xf]
      %v895 = vld [vmem:[%s198 + $0x5c] sm:$0x1]
      %v896 = vld [vmem:[%s198 + $0x60] sm:$0xe]
      %v897 = vld [vmem:[%s198 + $0x64] sm:$0xf]
      %v898 = vld [vmem:[%s198 + $0x68] sm:$0x1]
      %v899 = vld [vmem:[%s198 + $0x6c] sm:$0xe]
      %v900 = vld [vmem:[%s198 + $0x70] sm:$0xf]
      %v901 = vld [vmem:[%s198 + $0x74] sm:$0x1]
      %v902 = vld [vmem:[%s198 + $0x78] sm:$0xe]
      %v903 = vld [vmem:[%s198 + $0x7c] sm:$0xf]
      %v904 = vld [vmem:[%s198 + $0x80] sm:$0x1]
      %v905 = vld [vmem:[%s198 + $0x84] sm:$0xe]
      %v906 = vld [vmem:[%s198 + $0x88] sm:$0xf]
      %v907 = vld [vmem:[%s198 + $0x8c] sm:$0x1]
      %v908 = vld [vmem:[%s198 + $0x90] sm:$0xe]
      %v909 = vld [vmem:[%s198 + $0x94] sm:$0xf]
      %v910 = vld [vmem:[%s198 + $0x98] sm:$0x1]
      %v911 = vld [vmem:[%s198 + $0x9c] sm:$0xe]
      %v912 = vld [vmem:[%s198 + $0xa0] sm:$0xf]
      %v913 = vld [vmem:[%s198 + $0xa4] sm:$0x1]
      %v914 = vld [vmem:[%s198 + $0xa8] sm:$0xe]
      %v915 = vld [vmem:[%s198 + $0xac] sm:$0xf]
      %v916 = vld [vmem:[%s198 + $0xb0] sm:$0x1]
      %v917 = vld [vmem:[%s198 + $0xb4] sm:$0xe]
      %v918 = vld [vmem:[%s198 + $0xb8] sm:$0xf]
      %v919 = vld [vmem:[%s198 + $0xbc] sm:$0x1]
      %vm968 = vcmask 1042432
      %vm969 = vcmask 1046532
      %vm970 = vmor %vm968, %vm969
      %v971 = vrot.slane %v872, 5
      %v972 = vrot.slane %v971, 4
      %v973 = vrot.slane %v873, 5
      %v974 = vsel %vm970, %v972, %v973
      %v975 = vrot.slane %v973, 4
      %v976 = vrot.slane %v874, 5
      %v977 = vsel %vm970, %v975, %v976
      %v978 = vrot.slane %v875, 5
      %v979 = vrot.slane %v978, 4
      %v980 = vrot.slane %v876, 5
      %v981 = vsel %vm970, %v979, %v980
      %v982 = vrot.slane %v980, 4
      %v983 = vrot.slane %v877, 5
      %v984 = vsel %vm970, %v982, %v983
      %v985 = vrot.slane %v878, 5
      %v986 = vrot.slane %v985, 4
      %v987 = vrot.slane %v879, 5
      %v988 = vsel %vm970, %v986, %v987
      %v989 = vrot.slane %v987, 4
      %v990 = vrot.slane %v880, 5
      %v991 = vsel %vm970, %v989, %v990
      %v992 = vrot.slane %v881, 5
      %v993 = vrot.slane %v992, 4
      %v994 = vrot.slane %v882, 5
      %v995 = vsel %vm970, %v993, %v994
      %v996 = vrot.slane %v994, 4
      %v997 = vrot.slane %v883, 5
      %v998 = vsel %vm970, %v996, %v997
      %v999 = vrot.slane %v884, 5
      %v1000 = vrot.slane %v999, 4
      %v1001 = vrot.slane %v885, 5
      %v1002 = vsel %vm970, %v1000, %v1001
      %v1003 = vrot.slane %v1001, 4
      %v1004 = vrot.slane %v886, 5
      %v1005 = vsel %vm970, %v1003, %v1004
      %v1006 = vrot.slane %v887, 5
      %v1007 = vrot.slane %v1006, 4
      %v1008 = vrot.slane %v888, 5
      %v1009 = vsel %vm970, %v1007, %v1008
      %v1010 = vrot.slane %v1008, 4
      %v1011 = vrot.slane %v889, 5
      %v1012 = vsel %vm970, %v1010, %v1011
      %v1013 = vrot.slane %v890, 5
      %v1014 = vrot.slane %v1013, 4
      %v1015 = vrot.slane %v891, 5
      %v1016 = vsel %vm970, %v1014, %v1015
      %v1017 = vrot.slane %v1015, 4
      %v1018 = vrot.slane %v892, 5
      %v1019 = vsel %vm970, %v1017, %v1018
      %v1020 = vrot.slane %v893, 5
      %v1021 = vrot.slane %v1020, 4
      %v1022 = vrot.slane %v894, 5
      %v1023 = vsel %vm970, %v1021, %v1022
      %v1024 = vrot.slane %v1022, 4
      %v1025 = vrot.slane %v895, 5
      %v1026 = vsel %vm970, %v1024, %v1025
      %v1027 = vrot.slane %v896, 5
      %v1028 = vrot.slane %v1027, 4
      %v1029 = vrot.slane %v897, 5
      %v1030 = vsel %vm970, %v1028, %v1029
      %v1031 = vrot.slane %v1029, 4
      %v1032 = vrot.slane %v898, 5
      %v1033 = vsel %vm970, %v1031, %v1032
      %v1034 = vrot.slane %v899, 5
      %v1035 = vrot.slane %v1034, 4
      %v1036 = vrot.slane %v900, 5
      %v1037 = vsel %vm970, %v1035, %v1036
      %v1038 = vrot.slane %v1036, 4
      %v1039 = vrot.slane %v901, 5
      %v1040 = vsel %vm970, %v1038, %v1039
      %v1041 = vrot.slane %v902, 5
      %v1042 = vrot.slane %v1041, 4
      %v1043 = vrot.slane %v903, 5
      %v1044 = vsel %vm970, %v1042, %v1043
      %v1045 = vrot.slane %v1043, 4
      %v1046 = vrot.slane %v904, 5
      %v1047 = vsel %vm970, %v1045, %v1046
      %v1048 = vrot.slane %v905, 5
      %v1049 = vrot.slane %v1048, 4
      %v1050 = vrot.slane %v906, 5
      %v1051 = vsel %vm970, %v1049, %v1050
      %v1052 = vrot.slane %v1050, 4
      %v1053 = vrot.slane %v907, 5
      %v1054 = vsel %vm970, %v1052, %v1053
      %v1055 = vrot.slane %v908, 5
      %v1056 = vrot.slane %v1055, 4
      %v1057 = vrot.slane %v909, 5
      %v1058 = vsel %vm970, %v1056, %v1057
      %v1059 = vrot.slane %v1057, 4
      %v1060 = vrot.slane %v910, 5
      %v1061 = vsel %vm970, %v1059, %v1060
      %v1062 = vrot.slane %v911, 5
      %v1063 = vrot.slane %v1062, 4
      %v1064 = vrot.slane %v912, 5
      %v1065 = vsel %vm970, %v1063, %v1064
      %v1066 = vrot.slane %v1064, 4
      %v1067 = vrot.slane %v913, 5
      %v1068 = vsel %vm970, %v1066, %v1067
      %v1069 = vrot.slane %v914, 5
      %v1070 = vrot.slane %v1069, 4
      %v1071 = vrot.slane %v915, 5
      %v1072 = vsel %vm970, %v1070, %v1071
      %v1073 = vrot.slane %v1071, 4
      %v1074 = vrot.slane %v916, 5
      %v1075 = vsel %vm970, %v1073, %v1074
      %v1076 = vrot.slane %v917, 5
      %v1077 = vrot.slane %v1076, 4
      %v1078 = vrot.slane %v918, 5
      %v1079 = vsel %vm970, %v1077, %v1078
      %v1080 = vrot.slane %v1078, 4
      %v1081 = vrot.slane %v919, 5
      %v1082 = vsel %vm970, %v1080, %v1081
      %1083 = vrot.lane.b32.xlu0 %v974, 8
      %v1084 = vpop.permute.xlu0 %1083
      %1085 = vrot.lane.b32.xlu0 %v977, 8
      %v1086 = vpop.permute.xlu0 %1085
      %1087 = vrot.lane.b32.xlu0 %v981, 8
      %v1088 = vpop.permute.xlu0 %1087
      %1089 = vrot.lane.b32.xlu0 %v984, 8
      %v1090 = vpop.permute.xlu0 %1089
      %1091 = vrot.lane.b32.xlu0 %v988, 8
      %v1092 = vpop.permute.xlu0 %1091
      %1093 = vrot.lane.b32.xlu0 %v991, 8
      %v1094 = vpop.permute.xlu0 %1093
      %1095 = vrot.lane.b32.xlu0 %v995, 8
      %v1096 = vpop.permute.xlu0 %1095
      %1097 = vrot.lane.b32.xlu0 %v998, 8
      %v1098 = vpop.permute.xlu0 %1097
      %1099 = vrot.lane.b32.xlu0 %v1002, 8
      %v1100 = vpop.permute.xlu0 %1099
      %1101 = vrot.lane.b32.xlu0 %v1005, 8
      %v1102 = vpop.permute.xlu0 %1101
      %1103 = vrot.lane.b32.xlu0 %v1009, 8
      %v1104 = vpop.permute.xlu0 %1103
      %1105 = vrot.lane.b32.xlu0 %v1012, 8
      %v1106 = vpop.permute.xlu0 %1105
      %1107 = vrot.lane.b32.xlu0 %v1016, 8
      %v1108 = vpop.permute.xlu0 %1107
      %1109 = vrot.lane.b32.xlu0 %v1019, 8
      %v1110 = vpop.permute.xlu0 %1109
      %1111 = vrot.lane.b32.xlu0 %v1023, 8
      %v1112 = vpop.permute.xlu0 %1111
      %1113 = vrot.lane.b32.xlu0 %v1026, 8
      %v1114 = vpop.permute.xlu0 %1113
      %1115 = vrot.lane.b32.xlu0 %v1030, 8
      %v1116 = vpop.permute.xlu0 %1115
      %1117 = vrot.lane.b32.xlu0 %v1033, 8
      %v1118 = vpop.permute.xlu0 %1117
      %1119 = vrot.lane.b32.xlu0 %v1037, 8
      %v1120 = vpop.permute.xlu0 %1119
      %1121 = vrot.lane.b32.xlu0 %v1040, 8
      %v1122 = vpop.permute.xlu0 %1121
      %1123 = vrot.lane.b32.xlu0 %v1044, 8
      %v1124 = vpop.permute.xlu0 %1123
      %1125 = vrot.lane.b32.xlu0 %v1047, 8
      %v1126 = vpop.permute.xlu0 %1125
      %1127 = vrot.lane.b32.xlu0 %v1051, 8
      %v1128 = vpop.permute.xlu0 %1127
      %1129 = vrot.lane.b32.xlu0 %v1054, 8
      %v1130 = vpop.permute.xlu0 %1129
      %1131 = vrot.lane.b32.xlu0 %v1058, 8
      %v1132 = vpop.permute.xlu0 %1131
      %1133 = vrot.lane.b32.xlu0 %v1061, 8
      %v1134 = vpop.permute.xlu0 %1133
      %1135 = vrot.lane.b32.xlu0 %v1065, 8
      %v1136 = vpop.permute.xlu0 %1135
      %1137 = vrot.lane.b32.xlu0 %v1068, 8
      %v1138 = vpop.permute.xlu0 %1137
      %1139 = vrot.lane.b32.xlu0 %v1072, 8
      %v1140 = vpop.permute.xlu0 %1139
      %1141 = vrot.lane.b32.xlu0 %v1075, 8
      %v1142 = vpop.permute.xlu0 %1141
      %1143 = vrot.lane.b32.xlu0 %v1079, 8
      %v1144 = vpop.permute.xlu0 %1143
      %1145 = vrot.lane.b32.xlu0 %v1082, 8
      %v1146 = vpop.permute.xlu0 %1145
      %vm1179 = vcmask 93248
      %1180 = vst.msk [vmem:[#allocation2] sm:$0xf] %vm1179, %v1084
      %1181 = vst.msk [vmem:[#allocation2 + $0x4] sm:$0xf] %vm1179, %v1086
      %1182 = vst.msk [vmem:[#allocation2 + $0x8] sm:$0xf] %vm1179, %v1088
      %1183 = vst.msk [vmem:[#allocation2 + $0xc] sm:$0xf] %vm1179, %v1090
      %1184 = vst.msk [vmem:[#allocation2 + $0x10] sm:$0xf] %vm1179, %v1092
      %1185 = vst.msk [vmem:[#allocation2 + $0x14] sm:$0xf] %vm1179, %v1094
      %1186 = vst.msk [vmem:[#allocation2 + $0x18] sm:$0xf] %vm1179, %v1096
      %1187 = vst.msk [vmem:[#allocation2 + $0x1c] sm:$0xf] %vm1179, %v1098
      %1188 = vst.msk [vmem:[#allocation2 + $0x20] sm:$0xf] %vm1179, %v1100
      %1189 = vst.msk [vmem:[#allocation2 + $0x24] sm:$0xf] %vm1179, %v1102
      %1190 = vst.msk [vmem:[#allocation2 + $0x28] sm:$0xf] %vm1179, %v1104
      %1191 = vst.msk [vmem:[#allocation2 + $0x2c] sm:$0xf] %vm1179, %v1106
      %1192 = vst.msk [vmem:[#allocation2 + $0x30] sm:$0xf] %vm1179, %v1108
      %1193 = vst.msk [vmem:[#allocation2 + $0x34] sm:$0xf] %vm1179, %v1110
      %1194 = vst.msk [vmem:[#allocation2 + $0x38] sm:$0xf] %vm1179, %v1112
      %1195 = vst.msk [vmem:[#allocation2 + $0x3c] sm:$0xf] %vm1179, %v1114
      %1196 = vst.msk [vmem:[#allocation2 + $0x40] sm:$0xf] %vm1179, %v1116
      %1197 = vst.msk [vmem:[#allocation2 + $0x44] sm:$0xf] %vm1179, %v1118
      %1198 = vst.msk [vmem:[#allocation2 + $0x48] sm:$0xf] %vm1179, %v1120
      %1199 = vst.msk [vmem:[#allocation2 + $0x4c] sm:$0xf] %vm1179, %v1122
      %1200 = vst.msk [vmem:[#allocation2 + $0x50] sm:$0xf] %vm1179, %v1124
      %1201 = vst.msk [vmem:[#allocation2 + $0x54] sm:$0xf] %vm1179, %v1126
      %1202 = vst.msk [vmem:[#allocation2 + $0x58] sm:$0xf] %vm1179, %v1128
      %1203 = vst.msk [vmem:[#allocation2 + $0x5c] sm:$0xf] %vm1179, %v1130
      %1204 = vst.msk [vmem:[#allocation2 + $0x60] sm:$0xf] %vm1179, %v1132
      %1205 = vst.msk [vmem:[#allocation2 + $0x64] sm:$0xf] %vm1179, %v1134
      %1206 = vst.msk [vmem:[#allocation2 + $0x68] sm:$0xf] %vm1179, %v1136
      %1207 = vst.msk [vmem:[#allocation2 + $0x6c] sm:$0xf] %vm1179, %v1138
      %1208 = vst.msk [vmem:[#allocation2 + $0x70] sm:$0xf] %vm1179, %v1140
      %1209 = vst.msk [vmem:[#allocation2 + $0x74] sm:$0xf] %vm1179, %v1142
      %1210 = vst.msk [vmem:[#allocation2 + $0x78] sm:$0xf] %vm1179, %v1144
      %1211 = vst.msk [vmem:[#allocation2 + $0x7c] sm:$0xf] %vm1179, %v1146
      %s1212 = scalar_lea.vmem %s198, 12
      %v1213 = vld [vmem:[%s1212] sm:$0xf]
      %v1214 = vld [vmem:[%s1212 + $0x4] sm:$0xf]
      %v1215 = vld [vmem:[%s1212 + $0xc] sm:$0xf]
      %v1216 = vld [vmem:[%s1212 + $0x10] sm:$0xf]
      %v1217 = vld [vmem:[%s1212 + $0x18] sm:$0xf]
      %v1218 = vld [vmem:[%s1212 + $0x1c] sm:$0xf]
      %v1219 = vld [vmem:[%s1212 + $0x24] sm:$0xf]
      %v1220 = vld [vmem:[%s1212 + $0x28] sm:$0xf]
      %v1221 = vld [vmem:[%s1212 + $0x30] sm:$0xf]
      %v1222 = vld [vmem:[%s1212 + $0x34] sm:$0xf]
      %v1223 = vld [vmem:[%s1212 + $0x3c] sm:$0xf]
      %v1224 = vld [vmem:[%s1212 + $0x40] sm:$0xf]
      %v1225 = vld [vmem:[%s1212 + $0x48] sm:$0xf]
      %v1226 = vld [vmem:[%s1212 + $0x4c] sm:$0xf]
      %v1227 = vld [vmem:[%s1212 + $0x54] sm:$0xf]
      %v1228 = vld [vmem:[%s1212 + $0x58] sm:$0xf]
      %v1229 = vld [vmem:[%s1212 + $0x60] sm:$0xf]
      %v1230 = vld [vmem:[%s1212 + $0x64] sm:$0xf]
      %v1231 = vld [vmem:[%s1212 + $0x6c] sm:$0xf]
      %v1232 = vld [vmem:[%s1212 + $0x70] sm:$0xf]
      %v1233 = vld [vmem:[%s1212 + $0x78] sm:$0xf]
      %v1234 = vld [vmem:[%s1212 + $0x7c] sm:$0xf]
      %v1235 = vld [vmem:[%s1212 + $0x84] sm:$0xf]
      %v1236 = vld [vmem:[%s1212 + $0x88] sm:$0xf]
      %v1237 = vld [vmem:[%s1212 + $0x90] sm:$0xf]
      %v1238 = vld [vmem:[%s1212 + $0x94] sm:$0xf]
      %v1239 = vld [vmem:[%s1212 + $0x9c] sm:$0xf]
      %v1240 = vld [vmem:[%s1212 + $0xa0] sm:$0xf]
      %v1241 = vld [vmem:[%s1212 + $0xa8] sm:$0xf]
      %v1242 = vld [vmem:[%s1212 + $0xac] sm:$0xf]
      %v1243 = vld [vmem:[%s1212 + $0xb4] sm:$0xf]
      %v1244 = vld [vmem:[%s1212 + $0xb8] sm:$0xf]
      %1277 = vrot.lane.b32.xlu0 %v1213, 12
      %v1278 = vpop.permute.xlu0 %1277
      %1279 = vrot.lane.b32.xlu0 %v1214, 12
      %v1280 = vpop.permute.xlu0 %1279
      %1281 = vrot.lane.b32.xlu0 %v1215, 12
      %v1282 = vpop.permute.xlu0 %1281
      %1283 = vrot.lane.b32.xlu0 %v1216, 12
      %v1284 = vpop.permute.xlu0 %1283
      %1285 = vrot.lane.b32.xlu0 %v1217, 12
      %v1286 = vpop.permute.xlu0 %1285
      %1287 = vrot.lane.b32.xlu0 %v1218, 12
      %v1288 = vpop.permute.xlu0 %1287
      %1289 = vrot.lane.b32.xlu0 %v1219, 12
      %v1290 = vpop.permute.xlu0 %1289
      %1291 = vrot.lane.b32.xlu0 %v1220, 12
      %v1292 = vpop.permute.xlu0 %1291
      %1293 = vrot.lane.b32.xlu0 %v1221, 12
      %v1294 = vpop.permute.xlu0 %1293
      %1295 = vrot.lane.b32.xlu0 %v1222, 12
      %v1296 = vpop.permute.xlu0 %1295
      %1297 = vrot.lane.b32.xlu0 %v1223, 12
      %v1298 = vpop.permute.xlu0 %1297
      %1299 = vrot.lane.b32.xlu0 %v1224, 12
      %v1300 = vpop.permute.xlu0 %1299
      %1301 = vrot.lane.b32.xlu0 %v1225, 12
      %v1302 = vpop.permute.xlu0 %1301
      %1303 = vrot.lane.b32.xlu0 %v1226, 12
      %v1304 = vpop.permute.xlu0 %1303
      %1305 = vrot.lane.b32.xlu0 %v1227, 12
      %v1306 = vpop.permute.xlu0 %1305
      %1307 = vrot.lane.b32.xlu0 %v1228, 12
      %v1308 = vpop.permute.xlu0 %1307
      %1309 = vrot.lane.b32.xlu0 %v1229, 12
      %v1310 = vpop.permute.xlu0 %1309
      %1311 = vrot.lane.b32.xlu0 %v1230, 12
      %v1312 = vpop.permute.xlu0 %1311
      %1313 = vrot.lane.b32.xlu0 %v1231, 12
      %v1314 = vpop.permute.xlu0 %1313
      %1315 = vrot.lane.b32.xlu0 %v1232, 12
      %v1316 = vpop.permute.xlu0 %1315
      %1317 = vrot.lane.b32.xlu0 %v1233, 12
      %v1318 = vpop.permute.xlu0 %1317
      %1319 = vrot.lane.b32.xlu0 %v1234, 12
      %v1320 = vpop.permute.xlu0 %1319
      %1321 = vrot.lane.b32.xlu0 %v1235, 12
      %v1322 = vpop.permute.xlu0 %1321
      %1323 = vrot.lane.b32.xlu0 %v1236, 12
      %v1324 = vpop.permute.xlu0 %1323
      %1325 = vrot.lane.b32.xlu0 %v1237, 12
      %v1326 = vpop.permute.xlu0 %1325
      %1327 = vrot.lane.b32.xlu0 %v1238, 12
      %v1328 = vpop.permute.xlu0 %1327
      %1329 = vrot.lane.b32.xlu0 %v1239, 12
      %v1330 = vpop.permute.xlu0 %1329
      %1331 = vrot.lane.b32.xlu0 %v1240, 12
      %v1332 = vpop.permute.xlu0 %1331
      %1333 = vrot.lane.b32.xlu0 %v1241, 12
      %v1334 = vpop.permute.xlu0 %1333
      %1335 = vrot.lane.b32.xlu0 %v1242, 12
      %v1336 = vpop.permute.xlu0 %1335
      %1337 = vrot.lane.b32.xlu0 %v1243, 12
      %v1338 = vpop.permute.xlu0 %1337
      %1339 = vrot.lane.b32.xlu0 %v1244, 12
      %v1340 = vpop.permute.xlu0 %1339
      %vm1373 = vcmask 126048
      %1374 = vst.msk [vmem:[#allocation2] sm:$0xf] %vm1373, %v1278
      %1375 = vst.msk [vmem:[#allocation2 + $0x4] sm:$0xf] %vm1373, %v1280
      %1376 = vst.msk [vmem:[#allocation2 + $0x8] sm:$0xf] %vm1373, %v1282
      %1377 = vst.msk [vmem:[#allocation2 + $0xc] sm:$0xf] %vm1373, %v1284
      %1378 = vst.msk [vmem:[#allocation2 + $0x10] sm:$0xf] %vm1373, %v1286
      %1379 = vst.msk [vmem:[#allocation2 + $0x14] sm:$0xf] %vm1373, %v1288
      %1380 = vst.msk [vmem:[#allocation2 + $0x18] sm:$0xf] %vm1373, %v1290
      %1381 = vst.msk [vmem:[#allocation2 + $0x1c] sm:$0xf] %vm1373, %v1292
      %1382 = vst.msk [vmem:[#allocation2 + $0x20] sm:$0xf] %vm1373, %v1294
      %1383 = vst.msk [vmem:[#allocation2 + $0x24] sm:$0xf] %vm1373, %v1296
      %1384 = vst.msk [vmem:[#allocation2 + $0x28] sm:$0xf] %vm1373, %v1298
      %1385 = vst.msk [vmem:[#allocation2 + $0x2c] sm:$0xf] %vm1373, %v1300
      %1386 = vst.msk [vmem:[#allocation2 + $0x30] sm:$0xf] %vm1373, %v1302
      %1387 = vst.msk [vmem:[#allocation2 + $0x34] sm:$0xf] %vm1373, %v1304
      %1388 = vst.msk [vmem:[#allocation2 + $0x38] sm:$0xf] %vm1373, %v1306
      %1389 = vst.msk [vmem:[#allocation2 + $0x3c] sm:$0xf] %vm1373, %v1308
      %1390 = vst.msk [vmem:[#allocation2 + $0x40] sm:$0xf] %vm1373, %v1310
      %1391 = vst.msk [vmem:[#allocation2 + $0x44] sm:$0xf] %vm1373, %v1312
      %1392 = vst.msk [vmem:[#allocation2 + $0x48] sm:$0xf] %vm1373, %v1314
      %1393 = vst.msk [vmem:[#allocation2 + $0x4c] sm:$0xf] %vm1373, %v1316
      %1394 = vst.msk [vmem:[#allocation2 + $0x50] sm:$0xf] %vm1373, %v1318
      %1395 = vst.msk [vmem:[#allocation2 + $0x54] sm:$0xf] %vm1373, %v1320
      %1396 = vst.msk [vmem:[#allocation2 + $0x58] sm:$0xf] %vm1373, %v1322
      %1397 = vst.msk [vmem:[#allocation2 + $0x5c] sm:$0xf] %vm1373, %v1324
      %1398 = vst.msk [vmem:[#allocation2 + $0x60] sm:$0xf] %vm1373, %v1326
      %1399 = vst.msk [vmem:[#allocation2 + $0x64] sm:$0xf] %vm1373, %v1328
      %1400 = vst.msk [vmem:[#allocation2 + $0x68] sm:$0xf] %vm1373, %v1330
      %1401 = vst.msk [vmem:[#allocation2 + $0x6c] sm:$0xf] %vm1373, %v1332
      %1402 = vst.msk [vmem:[#allocation2 + $0x70] sm:$0xf] %vm1373, %v1334
      %1403 = vst.msk [vmem:[#allocation2 + $0x74] sm:$0xf] %vm1373, %v1336
      %1404 = vst.msk [vmem:[#allocation2 + $0x78] sm:$0xf] %vm1373, %v1338
      %1405 = vst.msk [vmem:[#allocation2 + $0x7c] sm:$0xf] %vm1373, %v1340
      %v1406 = vld [vmem:[%s1212] sm:$0xf]
      %v1407 = vld [vmem:[%s1212 + $0x4] sm:$0xf]
      %v1408 = vld [vmem:[%s1212 + $0x8] sm:$0x1]
      %v1409 = vld [vmem:[%s1212 + $0xc] sm:$0xf]
      %v1410 = vld [vmem:[%s1212 + $0x10] sm:$0xf]
      %v1411 = vld [vmem:[%s1212 + $0x14] sm:$0x1]
      %v1412 = vld [vmem:[%s1212 + $0x18] sm:$0xf]
      %v1413 = vld [vmem:[%s1212 + $0x1c] sm:$0xf]
      %v1414 = vld [vmem:[%s1212 + $0x20] sm:$0x1]
      %v1415 = vld [vmem:[%s1212 + $0x24] sm:$0xf]
      %v1416 = vld [vmem:[%s1212 + $0x28] sm:$0xf]
      %v1417 = vld [vmem:[%s1212 + $0x2c] sm:$0x1]
      %v1418 = vld [vmem:[%s1212 + $0x30] sm:$0xf]
      %v1419 = vld [vmem:[%s1212 + $0x34] sm:$0xf]
      %v1420 = vld [vmem:[%s1212 + $0x38] sm:$0x1]
      %v1421 = vld [vmem:[%s1212 + $0x3c] sm:$0xf]
      %v1422 = vld [vmem:[%s1212 + $0x40] sm:$0xf]
      %v1423 = vld [vmem:[%s1212 + $0x44] sm:$0x1]
      %v1424 = vld [vmem:[%s1212 + $0x48] sm:$0xf]
      %v1425 = vld [vmem:[%s1212 + $0x4c] sm:$0xf]
      %v1426 = vld [vmem:[%s1212 + $0x50] sm:$0x1]
      %v1427 = vld [vmem:[%s1212 + $0x54] sm:$0xf]
      %v1428 = vld [vmem:[%s1212 + $0x58] sm:$0xf]
      %v1429 = vld [vmem:[%s1212 + $0x5c] sm:$0x1]
      %v1430 = vld [vmem:[%s1212 + $0x60] sm:$0xf]
      %v1431 = vld [vmem:[%s1212 + $0x64] sm:$0xf]
      %v1432 = vld [vmem:[%s1212 + $0x68] sm:$0x1]
      %v1433 = vld [vmem:[%s1212 + $0x6c] sm:$0xf]
      %v1434 = vld [vmem:[%s1212 + $0x70] sm:$0xf]
      %v1435 = vld [vmem:[%s1212 + $0x74] sm:$0x1]
      %v1436 = vld [vmem:[%s1212 + $0x78] sm:$0xf]
      %v1437 = vld [vmem:[%s1212 + $0x7c] sm:$0xf]
      %v1438 = vld [vmem:[%s1212 + $0x80] sm:$0x1]
      %v1439 = vld [vmem:[%s1212 + $0x84] sm:$0xf]
      %v1440 = vld [vmem:[%s1212 + $0x88] sm:$0xf]
      %v1441 = vld [vmem:[%s1212 + $0x8c] sm:$0x1]
      %v1442 = vld [vmem:[%s1212 + $0x90] sm:$0xf]
      %v1443 = vld [vmem:[%s1212 + $0x94] sm:$0xf]
      %v1444 = vld [vmem:[%s1212 + $0x98] sm:$0x1]
      %v1445 = vld [vmem:[%s1212 + $0x9c] sm:$0xf]
      %v1446 = vld [vmem:[%s1212 + $0xa0] sm:$0xf]
      %v1447 = vld [vmem:[%s1212 + $0xa4] sm:$0x1]
      %v1448 = vld [vmem:[%s1212 + $0xa8] sm:$0xf]
      %v1449 = vld [vmem:[%s1212 + $0xac] sm:$0xf]
      %v1450 = vld [vmem:[%s1212 + $0xb0] sm:$0x1]
      %v1451 = vld [vmem:[%s1212 + $0xb4] sm:$0xf]
      %v1452 = vld [vmem:[%s1212 + $0xb8] sm:$0xf]
      %v1453 = vld [vmem:[%s1212 + $0xbc] sm:$0x1]
      %v1455 = vshrl.u32 %v1406, 16
      %v1457 = vrot.slane %v1455, 4
      %v1458 = vshll.u32 %v1406, 16
      %v1460 = vrot.slane %v1458, 5
      %v1461 = vor.u32 %v1457, %v1460
      %v1462 = vrot.slane %v1461, 4
      %v1464 = vshll.u32 %v1407, 16
      %v1466 = vrot.slane %v1464, 5
      %v1467 = vsel %vm358, %v1462, %v1466
      %v1468 = vshrl.u32 %v1407, 16
      %v1470 = vrot.slane %v1468, 4
      %v1471 = vor.u32 %v1470, %v1466
      %v1472 = vrot.slane %v1471, 4
      %v1474 = vshll.u32 %v1408, 16
      %v1476 = vrot.slane %v1474, 5
      %v1477 = vsel %vm358, %v1472, %v1476
      %v1479 = vshrl.u32 %v1409, 16
      %v1481 = vrot.slane %v1479, 4
      %v1482 = vshll.u32 %v1409, 16
      %v1484 = vrot.slane %v1482, 5
      %v1485 = vor.u32 %v1481, %v1484
      %v1486 = vrot.slane %v1485, 4
      %v1488 = vshll.u32 %v1410, 16
      %v1490 = vrot.slane %v1488, 5
      %v1491 = vsel %vm358, %v1486, %v1490
      %v1492 = vshrl.u32 %v1410, 16
      %v1494 = vrot.slane %v1492, 4
      %v1495 = vor.u32 %v1494, %v1490
      %v1496 = vrot.slane %v1495, 4
      %v1498 = vshll.u32 %v1411, 16
      %v1500 = vrot.slane %v1498, 5
      %v1501 = vsel %vm358, %v1496, %v1500
      %v1503 = vshrl.u32 %v1412, 16
      %v1505 = vrot.slane %v1503, 4
      %v1506 = vshll.u32 %v1412, 16
      %v1508 = vrot.slane %v1506, 5
      %v1509 = vor.u32 %v1505, %v1508
      %v1510 = vrot.slane %v1509, 4
      %v1512 = vshll.u32 %v1413, 16
      %v1514 = vrot.slane %v1512, 5
      %v1515 = vsel %vm358, %v1510, %v1514
      %v1516 = vshrl.u32 %v1413, 16
      %v1518 = vrot.slane %v1516, 4
      %v1519 = vor.u32 %v1518, %v1514
      %v1520 = vrot.slane %v1519, 4
      %v1522 = vshll.u32 %v1414, 16
      %v1524 = vrot.slane %v1522, 5
      %v1525 = vsel %vm358, %v1520, %v1524
      %v1527 = vshrl.u32 %v1415, 16
      %v1529 = vrot.slane %v1527, 4
      %v1530 = vshll.u32 %v1415, 16
      %v1532 = vrot.slane %v1530, 5
      %v1533 = vor.u32 %v1529, %v1532
      %v1534 = vrot.slane %v1533, 4
      %v1536 = vshll.u32 %v1416, 16
      %v1538 = vrot.slane %v1536, 5
      %v1539 = vsel %vm358, %v1534, %v1538
      %v1540 = vshrl.u32 %v1416, 16
      %v1542 = vrot.slane %v1540, 4
      %v1543 = vor.u32 %v1542, %v1538
      %v1544 = vrot.slane %v1543, 4
      %v1546 = vshll.u32 %v1417, 16
      %v1548 = vrot.slane %v1546, 5
      %v1549 = vsel %vm358, %v1544, %v1548
      %v1551 = vshrl.u32 %v1418, 16
      %v1553 = vrot.slane %v1551, 4
      %v1554 = vshll.u32 %v1418, 16
      %v1556 = vrot.slane %v1554, 5
      %v1557 = vor.u32 %v1553, %v1556
      %v1558 = vrot.slane %v1557, 4
      %v1560 = vshll.u32 %v1419, 16
      %v1562 = vrot.slane %v1560, 5
      %v1563 = vsel %vm358, %v1558, %v1562
      %v1564 = vshrl.u32 %v1419, 16
      %v1566 = vrot.slane %v1564, 4
      %v1567 = vor.u32 %v1566, %v1562
      %v1568 = vrot.slane %v1567, 4
      %v1570 = vshll.u32 %v1420, 16
      %v1572 = vrot.slane %v1570, 5
      %v1573 = vsel %vm358, %v1568, %v1572
      %v1575 = vshrl.u32 %v1421, 16
      %v1577 = vrot.slane %v1575, 4
      %v1578 = vshll.u32 %v1421, 16
      %v1580 = vrot.slane %v1578, 5
      %v1581 = vor.u32 %v1577, %v1580
      %v1582 = vrot.slane %v1581, 4
      %v1584 = vshll.u32 %v1422, 16
      %v1586 = vrot.slane %v1584, 5
      %v1587 = vsel %vm358, %v1582, %v1586
      %v1588 = vshrl.u32 %v1422, 16
      %v1590 = vrot.slane %v1588, 4
      %v1591 = vor.u32 %v1590, %v1586
      %v1592 = vrot.slane %v1591, 4
      %v1594 = vshll.u32 %v1423, 16
      %v1596 = vrot.slane %v1594, 5
      %v1597 = vsel %vm358, %v1592, %v1596
      %v1599 = vshrl.u32 %v1424, 16
      %v1601 = vrot.slane %v1599, 4
      %v1602 = vshll.u32 %v1424, 16
      %v1604 = vrot.slane %v1602, 5
      %v1605 = vor.u32 %v1601, %v1604
      %v1606 = vrot.slane %v1605, 4
      %v1608 = vshll.u32 %v1425, 16
      %v1610 = vrot.slane %v1608, 5
      %v1611 = vsel %vm358, %v1606, %v1610
      %v1612 = vshrl.u32 %v1425, 16
      %v1614 = vrot.slane %v1612, 4
      %v1615 = vor.u32 %v1614, %v1610
      %v1616 = vrot.slane %v1615, 4
      %v1618 = vshll.u32 %v1426, 16
      %v1620 = vrot.slane %v1618, 5
      %v1621 = vsel %vm358, %v1616, %v1620
      %v1623 = vshrl.u32 %v1427, 16
      %v1625 = vrot.slane %v1623, 4
      %v1626 = vshll.u32 %v1427, 16
      %v1628 = vrot.slane %v1626, 5
      %v1629 = vor.u32 %v1625, %v1628
      %v1630 = vrot.slane %v1629, 4
      %v1632 = vshll.u32 %v1428, 16
      %v1634 = vrot.slane %v1632, 5
      %v1635 = vsel %vm358, %v1630, %v1634
      %v1636 = vshrl.u32 %v1428, 16
      %v1638 = vrot.slane %v1636, 4
      %v1639 = vor.u32 %v1638, %v1634
      %v1640 = vrot.slane %v1639, 4
      %v1642 = vshll.u32 %v1429, 16
      %v1644 = vrot.slane %v1642, 5
      %v1645 = vsel %vm358, %v1640, %v1644
      %v1647 = vshrl.u32 %v1430, 16
      %v1649 = vrot.slane %v1647, 4
      %v1650 = vshll.u32 %v1430, 16
      %v1652 = vrot.slane %v1650, 5
      %v1653 = vor.u32 %v1649, %v1652
      %v1654 = vrot.slane %v1653, 4
      %v1656 = vshll.u32 %v1431, 16
      %v1658 = vrot.slane %v1656, 5
      %v1659 = vsel %vm358, %v1654, %v1658
      %v1660 = vshrl.u32 %v1431, 16
      %v1662 = vrot.slane %v1660, 4
      %v1663 = vor.u32 %v1662, %v1658
      %v1664 = vrot.slane %v1663, 4
      %v1666 = vshll.u32 %v1432, 16
      %v1668 = vrot.slane %v1666, 5
      %v1669 = vsel %vm358, %v1664, %v1668
      %v1671 = vshrl.u32 %v1433, 16
      %v1673 = vrot.slane %v1671, 4
      %v1674 = vshll.u32 %v1433, 16
      %v1676 = vrot.slane %v1674, 5
      %v1677 = vor.u32 %v1673, %v1676
      %v1678 = vrot.slane %v1677, 4
      %v1680 = vshll.u32 %v1434, 16
      %v1682 = vrot.slane %v1680, 5
      %v1683 = vsel %vm358, %v1678, %v1682
      %v1684 = vshrl.u32 %v1434, 16
      %v1686 = vrot.slane %v1684, 4
      %v1687 = vor.u32 %v1686, %v1682
      %v1688 = vrot.slane %v1687, 4
      %v1690 = vshll.u32 %v1435, 16
      %v1692 = vrot.slane %v1690, 5
      %v1693 = vsel %vm358, %v1688, %v1692
      %v1695 = vshrl.u32 %v1436, 16
      %v1697 = vrot.slane %v1695, 4
      %v1698 = vshll.u32 %v1436, 16
      %v1700 = vrot.slane %v1698, 5
      %v1701 = vor.u32 %v1697, %v1700
      %v1702 = vrot.slane %v1701, 4
      %v1704 = vshll.u32 %v1437, 16
      %v1706 = vrot.slane %v1704, 5
      %v1707 = vsel %vm358, %v1702, %v1706
      %v1708 = vshrl.u32 %v1437, 16
      %v1710 = vrot.slane %v1708, 4
      %v1711 = vor.u32 %v1710, %v1706
      %v1712 = vrot.slane %v1711, 4
      %v1714 = vshll.u32 %v1438, 16
      %v1716 = vrot.slane %v1714, 5
      %v1717 = vsel %vm358, %v1712, %v1716
      %v1719 = vshrl.u32 %v1439, 16
      %v1721 = vrot.slane %v1719, 4
      %v1722 = vshll.u32 %v1439, 16
      %v1724 = vrot.slane %v1722, 5
      %v1725 = vor.u32 %v1721, %v1724
      %v1726 = vrot.slane %v1725, 4
      %v1728 = vshll.u32 %v1440, 16
      %v1730 = vrot.slane %v1728, 5
      %v1731 = vsel %vm358, %v1726, %v1730
      %v1732 = vshrl.u32 %v1440, 16
      %v1734 = vrot.slane %v1732, 4
      %v1735 = vor.u32 %v1734, %v1730
      %v1736 = vrot.slane %v1735, 4
      %v1738 = vshll.u32 %v1441, 16
      %v1740 = vrot.slane %v1738, 5
      %v1741 = vsel %vm358, %v1736, %v1740
      %v1743 = vshrl.u32 %v1442, 16
      %v1745 = vrot.slane %v1743, 4
      %v1746 = vshll.u32 %v1442, 16
      %v1748 = vrot.slane %v1746, 5
      %v1749 = vor.u32 %v1745, %v1748
      %v1750 = vrot.slane %v1749, 4
      %v1752 = vshll.u32 %v1443, 16
      %v1754 = vrot.slane %v1752, 5
      %v1755 = vsel %vm358, %v1750, %v1754
      %v1756 = vshrl.u32 %v1443, 16
      %v1758 = vrot.slane %v1756, 4
      %v1759 = vor.u32 %v1758, %v1754
      %v1760 = vrot.slane %v1759, 4
      %v1762 = vshll.u32 %v1444, 16
      %v1764 = vrot.slane %v1762, 5
      %v1765 = vsel %vm358, %v1760, %v1764
      %v1767 = vshrl.u32 %v1445, 16
      %v1769 = vrot.slane %v1767, 4
      %v1770 = vshll.u32 %v1445, 16
      %v1772 = vrot.slane %v1770, 5
      %v1773 = vor.u32 %v1769, %v1772
      %v1774 = vrot.slane %v1773, 4
      %v1776 = vshll.u32 %v1446, 16
      %v1778 = vrot.slane %v1776, 5
      %v1779 = vsel %vm358, %v1774, %v1778
      %v1780 = vshrl.u32 %v1446, 16
      %v1782 = vrot.slane %v1780, 4
      %v1783 = vor.u32 %v1782, %v1778
      %v1784 = vrot.slane %v1783, 4
      %v1786 = vshll.u32 %v1447, 16
      %v1788 = vrot.slane %v1786, 5
      %v1789 = vsel %vm358, %v1784, %v1788
      %v1791 = vshrl.u32 %v1448, 16
      %v1793 = vrot.slane %v1791, 4
      %v1794 = vshll.u32 %v1448, 16
      %v1796 = vrot.slane %v1794, 5
      %v1797 = vor.u32 %v1793, %v1796
      %v1798 = vrot.slane %v1797, 4
      %v1800 = vshll.u32 %v1449, 16
      %v1802 = vrot.slane %v1800, 5
      %v1803 = vsel %vm358, %v1798, %v1802
      %v1804 = vshrl.u32 %v1449, 16
      %v1806 = vrot.slane %v1804, 4
      %v1807 = vor.u32 %v1806, %v1802
      %v1808 = vrot.slane %v1807, 4
      %v1810 = vshll.u32 %v1450, 16
      %v1812 = vrot.slane %v1810, 5
      %v1813 = vsel %vm358, %v1808, %v1812
      %v1815 = vshrl.u32 %v1451, 16
      %v1817 = vrot.slane %v1815, 4
      %v1818 = vshll.u32 %v1451, 16
      %v1820 = vrot.slane %v1818, 5
      %v1821 = vor.u32 %v1817, %v1820
      %v1822 = vrot.slane %v1821, 4
      %v1824 = vshll.u32 %v1452, 16
      %v1826 = vrot.slane %v1824, 5
      %v1827 = vsel %vm358, %v1822, %v1826
      %v1828 = vshrl.u32 %v1452, 16
      %v1830 = vrot.slane %v1828, 4
      %v1831 = vor.u32 %v1830, %v1826
      %v1832 = vrot.slane %v1831, 4
      %v1834 = vshll.u32 %v1453, 16
      %v1836 = vrot.slane %v1834, 5
      %v1837 = vsel %vm358, %v1832, %v1836
      %1838 = vrot.lane.b32.xlu0 %v1467, 16
      %v1839 = vpop.permute.xlu0 %1838
      %1840 = vrot.lane.b32.xlu0 %v1477, 16
      %v1841 = vpop.permute.xlu0 %1840
      %1842 = vrot.lane.b32.xlu0 %v1491, 16
      %v1843 = vpop.permute.xlu0 %1842
      %1844 = vrot.lane.b32.xlu0 %v1501, 16
      %v1845 = vpop.permute.xlu0 %1844
      %1846 = vrot.lane.b32.xlu0 %v1515, 16
      %v1847 = vpop.permute.xlu0 %1846
      %1848 = vrot.lane.b32.xlu0 %v1525, 16
      %v1849 = vpop.permute.xlu0 %1848
      %1850 = vrot.lane.b32.xlu0 %v1539, 16
      %v1851 = vpop.permute.xlu0 %1850
      %1852 = vrot.lane.b32.xlu0 %v1549, 16
      %v1853 = vpop.permute.xlu0 %1852
      %1854 = vrot.lane.b32.xlu0 %v1563, 16
      %v1855 = vpop.permute.xlu0 %1854
      %1856 = vrot.lane.b32.xlu0 %v1573, 16
      %v1857 = vpop.permute.xlu0 %1856
      %1858 = vrot.lane.b32.xlu0 %v1587, 16
      %v1859 = vpop.permute.xlu0 %1858
      %1860 = vrot.lane.b32.xlu0 %v1597, 16
      %v1861 = vpop.permute.xlu0 %1860
      %1862 = vrot.lane.b32.xlu0 %v1611, 16
      %v1863 = vpop.permute.xlu0 %1862
      %1864 = vrot.lane.b32.xlu0 %v1621, 16
      %v1865 = vpop.permute.xlu0 %1864
      %1866 = vrot.lane.b32.xlu0 %v1635, 16
      %v1867 = vpop.permute.xlu0 %1866
      %1868 = vrot.lane.b32.xlu0 %v1645, 16
      %v1869 = vpop.permute.xlu0 %1868
      %1870 = vrot.lane.b32.xlu0 %v1659, 16
      %v1871 = vpop.permute.xlu0 %1870
      %1872 = vrot.lane.b32.xlu0 %v1669, 16
      %v1873 = vpop.permute.xlu0 %1872
      %1874 = vrot.lane.b32.xlu0 %v1683, 16
      %v1875 = vpop.permute.xlu0 %1874
      %1876 = vrot.lane.b32.xlu0 %v1693, 16
      %v1877 = vpop.permute.xlu0 %1876
      %1878 = vrot.lane.b32.xlu0 %v1707, 16
      %v1879 = vpop.permute.xlu0 %1878
      %1880 = vrot.lane.b32.xlu0 %v1717, 16
      %v1881 = vpop.permute.xlu0 %1880
      %1882 = vrot.lane.b32.xlu0 %v1731, 16
      %v1883 = vpop.permute.xlu0 %1882
      %1884 = vrot.lane.b32.xlu0 %v1741, 16
      %v1885 = vpop.permute.xlu0 %1884
      %1886 = vrot.lane.b32.xlu0 %v1755, 16
      %v1887 = vpop.permute.xlu0 %1886
      %1888 = vrot.lane.b32.xlu0 %v1765, 16
      %v1889 = vpop.permute.xlu0 %1888
      %1890 = vrot.lane.b32.xlu0 %v1779, 16
      %v1891 = vpop.permute.xlu0 %1890
      %1892 = vrot.lane.b32.xlu0 %v1789, 16
      %v1893 = vpop.permute.xlu0 %1892
      %1894 = vrot.lane.b32.xlu0 %v1803, 16
      %v1895 = vpop.permute.xlu0 %1894
      %1896 = vrot.lane.b32.xlu0 %v1813, 16
      %v1897 = vpop.permute.xlu0 %1896
      %1898 = vrot.lane.b32.xlu0 %v1827, 16
      %v1899 = vpop.permute.xlu0 %1898
      %1900 = vrot.lane.b32.xlu0 %v1837, 16
      %v1901 = vpop.permute.xlu0 %1900
      %vm1934 = vcmask 158848
      %1935 = vst.msk [vmem:[#allocation2] sm:$0xf] %vm1934, %v1839
      %1936 = vst.msk [vmem:[#allocation2 + $0x4] sm:$0xf] %vm1934, %v1841
      %1937 = vst.msk [vmem:[#allocation2 + $0x8] sm:$0xf] %vm1934, %v1843
      %1938 = vst.msk [vmem:[#allocation2 + $0xc] sm:$0xf] %vm1934, %v1845
      %1939 = vst.msk [vmem:[#allocation2 + $0x10] sm:$0xf] %vm1934, %v1847
      %1940 = vst.msk [vmem:[#allocation2 + $0x14] sm:$0xf] %vm1934, %v1849
      %1941 = vst.msk [vmem:[#allocation2 + $0x18] sm:$0xf] %vm1934, %v1851
      %1942 = vst.msk [vmem:[#allocation2 + $0x1c] sm:$0xf] %vm1934, %v1853
      %1943 = vst.msk [vmem:[#allocation2 + $0x20] sm:$0xf] %vm1934, %v1855
      %1944 = vst.msk [vmem:[#allocation2 + $0x24] sm:$0xf] %vm1934, %v1857
      %1945 = vst.msk [vmem:[#allocation2 + $0x28] sm:$0xf] %vm1934, %v1859
      %1946 = vst.msk [vmem:[#allocation2 + $0x2c] sm:$0xf] %vm1934, %v1861
      %1947 = vst.msk [vmem:[#allocation2 + $0x30] sm:$0xf] %vm1934, %v1863
      %1948 = vst.msk [vmem:[#allocation2 + $0x34] sm:$0xf] %vm1934, %v1865
      %1949 = vst.msk [vmem:[#allocation2 + $0x38] sm:$0xf] %vm1934, %v1867
      %1950 = vst.msk [vmem:[#allocation2 + $0x3c] sm:$0xf] %vm1934, %v1869
      %1951 = vst.msk [vmem:[#allocation2 + $0x40] sm:$0xf] %vm1934, %v1871
      %1952 = vst.msk [vmem:[#allocation2 + $0x44] sm:$0xf] %vm1934, %v1873
      %1953 = vst.msk [vmem:[#allocation2 + $0x48] sm:$0xf] %vm1934, %v1875
      %1954 = vst.msk [vmem:[#allocation2 + $0x4c] sm:$0xf] %vm1934, %v1877
      %1955 = vst.msk [vmem:[#allocation2 + $0x50] sm:$0xf] %vm1934, %v1879
      %1956 = vst.msk [vmem:[#allocation2 + $0x54] sm:$0xf] %vm1934, %v1881
      %1957 = vst.msk [vmem:[#allocation2 + $0x58] sm:$0xf] %vm1934, %v1883
      %1958 = vst.msk [vmem:[#allocation2 + $0x5c] sm:$0xf] %vm1934, %v1885
      %1959 = vst.msk [vmem:[#allocation2 + $0x60] sm:$0xf] %vm1934, %v1887
      %1960 = vst.msk [vmem:[#allocation2 + $0x64] sm:$0xf] %vm1934, %v1889
      %1961 = vst.msk [vmem:[#allocation2 + $0x68] sm:$0xf] %vm1934, %v1891
      %1962 = vst.msk [vmem:[#allocation2 + $0x6c] sm:$0xf] %vm1934, %v1893
      %1963 = vst.msk [vmem:[#allocation2 + $0x70] sm:$0xf] %vm1934, %v1895
      %1964 = vst.msk [vmem:[#allocation2 + $0x74] sm:$0xf] %vm1934, %v1897
      %1965 = vst.msk [vmem:[#allocation2 + $0x78] sm:$0xf] %vm1934, %v1899
      %1966 = vst.msk [vmem:[#allocation2 + $0x7c] sm:$0xf] %vm1934, %v1901
      %v1967 = vld [vmem:[%s1212] sm:$0xe]
      %v1968 = vld [vmem:[%s1212 + $0x4] sm:$0xf]
      %v1969 = vld [vmem:[%s1212 + $0x8] sm:$0x1]
      %v1970 = vld [vmem:[%s1212 + $0xc] sm:$0xe]
      %v1971 = vld [vmem:[%s1212 + $0x10] sm:$0xf]
      %v1972 = vld [vmem:[%s1212 + $0x14] sm:$0x1]
      %v1973 = vld [vmem:[%s1212 + $0x18] sm:$0xe]
      %v1974 = vld [vmem:[%s1212 + $0x1c] sm:$0xf]
      %v1975 = vld [vmem:[%s1212 + $0x20] sm:$0x1]
      %v1976 = vld [vmem:[%s1212 + $0x24] sm:$0xe]
      %v1977 = vld [vmem:[%s1212 + $0x28] sm:$0xf]
      %v1978 = vld [vmem:[%s1212 + $0x2c] sm:$0x1]
      %v1979 = vld [vmem:[%s1212 + $0x30] sm:$0xe]
      %v1980 = vld [vmem:[%s1212 + $0x34] sm:$0xf]
      %v1981 = vld [vmem:[%s1212 + $0x38] sm:$0x1]
      %v1982 = vld [vmem:[%s1212 + $0x3c] sm:$0xe]
      %v1983 = vld [vmem:[%s1212 + $0x40] sm:$0xf]
      %v1984 = vld [vmem:[%s1212 + $0x44] sm:$0x1]
      %v1985 = vld [vmem:[%s1212 + $0x48] sm:$0xe]
      %v1986 = vld [vmem:[%s1212 + $0x4c] sm:$0xf]
      %v1987 = vld [vmem:[%s1212 + $0x50] sm:$0x1]
      %v1988 = vld [vmem:[%s1212 + $0x54] sm:$0xe]
      %v1989 = vld [vmem:[%s1212 + $0x58] sm:$0xf]
      %v1990 = vld [vmem:[%s1212 + $0x5c] sm:$0x1]
      %v1991 = vld [vmem:[%s1212 + $0x60] sm:$0xe]
      %v1992 = vld [vmem:[%s1212 + $0x64] sm:$0xf]
      %v1993 = vld [vmem:[%s1212 + $0x68] sm:$0x1]
      %v1994 = vld [vmem:[%s1212 + $0x6c] sm:$0xe]
      %v1995 = vld [vmem:[%s1212 + $0x70] sm:$0xf]
      %v1996 = vld [vmem:[%s1212 + $0x74] sm:$0x1]
      %v1997 = vld [vmem:[%s1212 + $0x78] sm:$0xe]
      %v1998 = vld [vmem:[%s1212 + $0x7c] sm:$0xf]
      %v1999 = vld [vmem:[%s1212 + $0x80] sm:$0x1]
      %v2000 = vld [vmem:[%s1212 + $0x84] sm:$0xe]
      %v2001 = vld [vmem:[%s1212 + $0x88] sm:$0xf]
      %v2002 = vld [vmem:[%s1212 + $0x8c] sm:$0x1]
      %v2003 = vld [vmem:[%s1212 + $0x90] sm:$0xe]
      %v2004 = vld [vmem:[%s1212 + $0x94] sm:$0xf]
      %v2005 = vld [vmem:[%s1212 + $0x98] sm:$0x1]
      %v2006 = vld [vmem:[%s1212 + $0x9c] sm:$0xe]
      %v2007 = vld [vmem:[%s1212 + $0xa0] sm:$0xf]
      %v2008 = vld [vmem:[%s1212 + $0xa4] sm:$0x1]
      %v2009 = vld [vmem:[%s1212 + $0xa8] sm:$0xe]
      %v2010 = vld [vmem:[%s1212 + $0xac] sm:$0xf]
      %v2011 = vld [vmem:[%s1212 + $0xb0] sm:$0x1]
      %v2012 = vld [vmem:[%s1212 + $0xb4] sm:$0xe]
      %v2013 = vld [vmem:[%s1212 + $0xb8] sm:$0xf]
      %v2014 = vld [vmem:[%s1212 + $0xbc] sm:$0x1]
      %v2063 = vrot.slane %v1967, 5
      %v2064 = vrot.slane %v2063, 4
      %v2065 = vrot.slane %v1968, 5
      %v2066 = vsel %vm970, %v2064, %v2065
      %v2067 = vrot.slane %v2065, 4
      %v2068 = vrot.slane %v1969, 5
      %v2069 = vsel %vm970, %v2067, %v2068
      %v2070 = vrot.slane %v1970, 5
      %v2071 = vrot.slane %v2070, 4
      %v2072 = vrot.slane %v1971, 5
      %v2073 = vsel %vm970, %v2071, %v2072
      %v2074 = vrot.slane %v2072, 4
      %v2075 = vrot.slane %v1972, 5
      %v2076 = vsel %vm970, %v2074, %v2075
      %v2077 = vrot.slane %v1973, 5
      %v2078 = vrot.slane %v2077, 4
      %v2079 = vrot.slane %v1974, 5
      %v2080 = vsel %vm970, %v2078, %v2079
      %v2081 = vrot.slane %v2079, 4
      %v2082 = vrot.slane %v1975, 5
      %v2083 = vsel %vm970, %v2081, %v2082
      %v2084 = vrot.slane %v1976, 5
      %v2085 = vrot.slane %v2084, 4
      %v2086 = vrot.slane %v1977, 5
      %v2087 = vsel %vm970, %v2085, %v2086
      %v2088 = vrot.slane %v2086, 4
      %v2089 = vrot.slane %v1978, 5
      %v2090 = vsel %vm970, %v2088, %v2089
      %v2091 = vrot.slane %v1979, 5
      %v2092 = vrot.slane %v2091, 4
      %v2093 = vrot.slane %v1980, 5
      %v2094 = vsel %vm970, %v2092, %v2093
      %v2095 = vrot.slane %v2093, 4
      %v2096 = vrot.slane %v1981, 5
      %v2097 = vsel %vm970, %v2095, %v2096
      %v2098 = vrot.slane %v1982, 5
      %v2099 = vrot.slane %v2098, 4
      %v2100 = vrot.slane %v1983, 5
      %v2101 = vsel %vm970, %v2099, %v2100
      %v2102 = vrot.slane %v2100, 4
      %v2103 = vrot.slane %v1984, 5
      %v2104 = vsel %vm970, %v2102, %v2103
      %v2105 = vrot.slane %v1985, 5
      %v2106 = vrot.slane %v2105, 4
      %v2107 = vrot.slane %v1986, 5
      %v2108 = vsel %vm970, %v2106, %v2107
      %v2109 = vrot.slane %v2107, 4
      %v2110 = vrot.slane %v1987, 5
      %v2111 = vsel %vm970, %v2109, %v2110
      %v2112 = vrot.slane %v1988, 5
      %v2113 = vrot.slane %v2112, 4
      %v2114 = vrot.slane %v1989, 5
      %v2115 = vsel %vm970, %v2113, %v2114
      %v2116 = vrot.slane %v2114, 4
      %v2117 = vrot.slane %v1990, 5
      %v2118 = vsel %vm970, %v2116, %v2117
      %v2119 = vrot.slane %v1991, 5
      %v2120 = vrot.slane %v2119, 4
      %v2121 = vrot.slane %v1992, 5
      %v2122 = vsel %vm970, %v2120, %v2121
      %v2123 = vrot.slane %v2121, 4
      %v2124 = vrot.slane %v1993, 5
      %v2125 = vsel %vm970, %v2123, %v2124
      %v2126 = vrot.slane %v1994, 5
      %v2127 = vrot.slane %v2126, 4
      %v2128 = vrot.slane %v1995, 5
      %v2129 = vsel %vm970, %v2127, %v2128
      %v2130 = vrot.slane %v2128, 4
      %v2131 = vrot.slane %v1996, 5
      %v2132 = vsel %vm970, %v2130, %v2131
      %v2133 = vrot.slane %v1997, 5
      %v2134 = vrot.slane %v2133, 4
      %v2135 = vrot.slane %v1998, 5
      %v2136 = vsel %vm970, %v2134, %v2135
      %v2137 = vrot.slane %v2135, 4
      %v2138 = vrot.slane %v1999, 5
      %v2139 = vsel %vm970, %v2137, %v2138
      %v2140 = vrot.slane %v2000, 5
      %v2141 = vrot.slane %v2140, 4
      %v2142 = vrot.slane %v2001, 5
      %v2143 = vsel %vm970, %v2141, %v2142
      %v2144 = vrot.slane %v2142, 4
      %v2145 = vrot.slane %v2002, 5
      %v2146 = vsel %vm970, %v2144, %v2145
      %v2147 = vrot.slane %v2003, 5
      %v2148 = vrot.slane %v2147, 4
      %v2149 = vrot.slane %v2004, 5
      %v2150 = vsel %vm970, %v2148, %v2149
      %v2151 = vrot.slane %v2149, 4
      %v2152 = vrot.slane %v2005, 5
      %v2153 = vsel %vm970, %v2151, %v2152
      %v2154 = vrot.slane %v2006, 5
      %v2155 = vrot.slane %v2154, 4
      %v2156 = vrot.slane %v2007, 5
      %v2157 = vsel %vm970, %v2155, %v2156
      %v2158 = vrot.slane %v2156, 4
      %v2159 = vrot.slane %v2008, 5
      %v2160 = vsel %vm970, %v2158, %v2159
      %v2161 = vrot.slane %v2009, 5
      %v2162 = vrot.slane %v2161, 4
      %v2163 = vrot.slane %v2010, 5
      %v2164 = vsel %vm970, %v2162, %v2163
      %v2165 = vrot.slane %v2163, 4
      %v2166 = vrot.slane %v2011, 5
      %v2167 = vsel %vm970, %v2165, %v2166
      %v2168 = vrot.slane %v2012, 5
      %v2169 = vrot.slane %v2168, 4
      %v2170 = vrot.slane %v2013, 5
      %v2171 = vsel %vm970, %v2169, %v2170
      %v2172 = vrot.slane %v2170, 4
      %v2173 = vrot.slane %v2014, 5
      %v2174 = vsel %vm970, %v2172, %v2173
      %2175 = vrot.lane.b32.xlu0 %v2066, 20
      %v2176 = vpop.permute.xlu0 %2175
      %2177 = vrot.lane.b32.xlu0 %v2069, 20
      %v2178 = vpop.permute.xlu0 %2177
      %2179 = vrot.lane.b32.xlu0 %v2073, 20
      %v2180 = vpop.permute.xlu0 %2179
      %2181 = vrot.lane.b32.xlu0 %v2076, 20
      %v2182 = vpop.permute.xlu0 %2181
      %2183 = vrot.lane.b32.xlu0 %v2080, 20
      %v2184 = vpop.permute.xlu0 %2183
      %2185 = vrot.lane.b32.xlu0 %v2083, 20
      %v2186 = vpop.permute.xlu0 %2185
      %2187 = vrot.lane.b32.xlu0 %v2087, 20
      %v2188 = vpop.permute.xlu0 %2187
      %2189 = vrot.lane.b32.xlu0 %v2090, 20
      %v2190 = vpop.permute.xlu0 %2189
      %2191 = vrot.lane.b32.xlu0 %v2094, 20
      %v2192 = vpop.permute.xlu0 %2191
      %2193 = vrot.lane.b32.xlu0 %v2097, 20
      %v2194 = vpop.permute.xlu0 %2193
      %2195 = vrot.lane.b32.xlu0 %v2101, 20
      %v2196 = vpop.permute.xlu0 %2195
      %2197 = vrot.lane.b32.xlu0 %v2104, 20
      %v2198 = vpop.permute.xlu0 %2197
      %2199 = vrot.lane.b32.xlu0 %v2108, 20
      %v2200 = vpop.permute.xlu0 %2199
      %2201 = vrot.lane.b32.xlu0 %v2111, 20
      %v2202 = vpop.permute.xlu0 %2201
      %2203 = vrot.lane.b32.xlu0 %v2115, 20
      %v2204 = vpop.permute.xlu0 %2203
      %2205 = vrot.lane.b32.xlu0 %v2118, 20
      %v2206 = vpop.permute.xlu0 %2205
      %2207 = vrot.lane.b32.xlu0 %v2122, 20
      %v2208 = vpop.permute.xlu0 %2207
      %2209 = vrot.lane.b32.xlu0 %v2125, 20
      %v2210 = vpop.permute.xlu0 %2209
      %2211 = vrot.lane.b32.xlu0 %v2129, 20
      %v2212 = vpop.permute.xlu0 %2211
      %2213 = vrot.lane.b32.xlu0 %v2132, 20
      %v2214 = vpop.permute.xlu0 %2213
      %2215 = vrot.lane.b32.xlu0 %v2136, 20
      %v2216 = vpop.permute.xlu0 %2215
      %2217 = vrot.lane.b32.xlu0 %v2139, 20
      %v2218 = vpop.permute.xlu0 %2217
      %2219 = vrot.lane.b32.xlu0 %v2143, 20
      %v2220 = vpop.permute.xlu0 %2219
      %2221 = vrot.lane.b32.xlu0 %v2146, 20
      %v2222 = vpop.permute.xlu0 %2221
      %2223 = vrot.lane.b32.xlu0 %v2150, 20
      %v2224 = vpop.permute.xlu0 %2223
      %2225 = vrot.lane.b32.xlu0 %v2153, 20
      %v2226 = vpop.permute.xlu0 %2225
      %2227 = vrot.lane.b32.xlu0 %v2157, 20
      %v2228 = vpop.permute.xlu0 %2227
      %2229 = vrot.lane.b32.xlu0 %v2160, 20
      %v2230 = vpop.permute.xlu0 %2229
      %2231 = vrot.lane.b32.xlu0 %v2164, 20
      %v2232 = vpop.permute.xlu0 %2231
      %2233 = vrot.lane.b32.xlu0 %v2167, 20
      %v2234 = vpop.permute.xlu0 %2233
      %2235 = vrot.lane.b32.xlu0 %v2171, 20
      %v2236 = vpop.permute.xlu0 %2235
      %2237 = vrot.lane.b32.xlu0 %v2174, 20
      %v2238 = vpop.permute.xlu0 %2237
      %vm2271 = vcmask 191648
      %2272 = vst.msk [vmem:[#allocation2] sm:$0xf] %vm2271, %v2176
      %2273 = vst.msk [vmem:[#allocation2 + $0x4] sm:$0xf] %vm2271, %v2178
      %2274 = vst.msk [vmem:[#allocation2 + $0x8] sm:$0xf] %vm2271, %v2180
      %2275 = vst.msk [vmem:[#allocation2 + $0xc] sm:$0xf] %vm2271, %v2182
      %2276 = vst.msk [vmem:[#allocation2 + $0x10] sm:$0xf] %vm2271, %v2184
      %2277 = vst.msk [vmem:[#allocation2 + $0x14] sm:$0xf] %vm2271, %v2186
      %2278 = vst.msk [vmem:[#allocation2 + $0x18] sm:$0xf] %vm2271, %v2188
      %2279 = vst.msk [vmem:[#allocation2 + $0x1c] sm:$0xf] %vm2271, %v2190
      %2280 = vst.msk [vmem:[#allocation2 + $0x20] sm:$0xf] %vm2271, %v2192
      %2281 = vst.msk [vmem:[#allocation2 + $0x24] sm:$0xf] %vm2271, %v2194
      %2282 = vst.msk [vmem:[#allocation2 + $0x28] sm:$0xf] %vm2271, %v2196
      %2283 = vst.msk [vmem:[#allocation2 + $0x2c] sm:$0xf] %vm2271, %v2198
      %2284 = vst.msk [vmem:[#allocation2 + $0x30] sm:$0xf] %vm2271, %v2200
      %2285 = vst.msk [vmem:[#allocation2 + $0x34] sm:$0xf] %vm2271, %v2202
      %2286 = vst.msk [vmem:[#allocation2 + $0x38] sm:$0xf] %vm2271, %v2204
      %2287 = vst.msk [vmem:[#allocation2 + $0x3c] sm:$0xf] %vm2271, %v2206
      %2288 = vst.msk [vmem:[#allocation2 + $0x40] sm:$0xf] %vm2271, %v2208
      %2289 = vst.msk [vmem:[#allocation2 + $0x44] sm:$0xf] %vm2271, %v2210
      %2290 = vst.msk [vmem:[#allocation2 + $0x48] sm:$0xf] %vm2271, %v2212
      %2291 = vst.msk [vmem:[#allocation2 + $0x4c] sm:$0xf] %vm2271, %v2214
      %2292 = vst.msk [vmem:[#allocation2 + $0x50] sm:$0xf] %vm2271, %v2216
      %2293 = vst.msk [vmem:[#allocation2 + $0x54] sm:$0xf] %vm2271, %v2218
      %2294 = vst.msk [vmem:[#allocation2 + $0x58] sm:$0xf] %vm2271, %v2220
      %2295 = vst.msk [vmem:[#allocation2 + $0x5c] sm:$0xf] %vm2271, %v2222
      %2296 = vst.msk [vmem:[#allocation2 + $0x60] sm:$0xf] %vm2271, %v2224
      %2297 = vst.msk [vmem:[#allocation2 + $0x64] sm:$0xf] %vm2271, %v2226
      %2298 = vst.msk [vmem:[#allocation2 + $0x68] sm:$0xf] %vm2271, %v2228
      %2299 = vst.msk [vmem:[#allocation2 + $0x6c] sm:$0xf] %vm2271, %v2230
      %2300 = vst.msk [vmem:[#allocation2 + $0x70] sm:$0xf] %vm2271, %v2232
      %2301 = vst.msk [vmem:[#allocation2 + $0x74] sm:$0xf] %vm2271, %v2234
      %2302 = vst.msk [vmem:[#allocation2 + $0x78] sm:$0xf] %vm2271, %v2236
      %2303 = vst.msk [vmem:[#allocation2 + $0x7c] sm:$0xf] %vm2271, %v2238
      %s2304 = scalar_lea.vmem %s198, 24
      %v2305 = vld [vmem:[%s2304] sm:$0xf]
      %v2306 = vld [vmem:[%s2304 + $0x4] sm:$0xf]
      %v2307 = vld [vmem:[%s2304 + $0xc] sm:$0xf]
      %v2308 = vld [vmem:[%s2304 + $0x10] sm:$0xf]
      %v2309 = vld [vmem:[%s2304 + $0x18] sm:$0xf]
      %v2310 = vld [vmem:[%s2304 + $0x1c] sm:$0xf]
      %v2311 = vld [vmem:[%s2304 + $0x24] sm:$0xf]
      %v2312 = vld [vmem:[%s2304 + $0x28] sm:$0xf]
      %v2313 = vld [vmem:[%s2304 + $0x30] sm:$0xf]
      %v2314 = vld [vmem:[%s2304 + $0x34] sm:$0xf]
      %v2315 = vld [vmem:[%s2304 + $0x3c] sm:$0xf]
      %v2316 = vld [vmem:[%s2304 + $0x40] sm:$0xf]
      %v2317 = vld [vmem:[%s2304 + $0x48] sm:$0xf]
      %v2318 = vld [vmem:[%s2304 + $0x4c] sm:$0xf]
      %v2319 = vld [vmem:[%s2304 + $0x54] sm:$0xf]
      %v2320 = vld [vmem:[%s2304 + $0x58] sm:$0xf]
      %v2321 = vld [vmem:[%s2304 + $0x60] sm:$0xf]
      %v2322 = vld [vmem:[%s2304 + $0x64] sm:$0xf]
      %v2323 = vld [vmem:[%s2304 + $0x6c] sm:$0xf]
      %v2324 = vld [vmem:[%s2304 + $0x70] sm:$0xf]
      %v2325 = vld [vmem:[%s2304 + $0x78] sm:$0xf]
      %v2326 = vld [vmem:[%s2304 + $0x7c] sm:$0xf]
      %v2327 = vld [vmem:[%s2304 + $0x84] sm:$0xf]
      %v2328 = vld [vmem:[%s2304 + $0x88] sm:$0xf]
      %v2329 = vld [vmem:[%s2304 + $0x90] sm:$0xf]
      %v2330 = vld [vmem:[%s2304 + $0x94] sm:$0xf]
      %v2331 = vld [vmem:[%s2304 + $0x9c] sm:$0xf]
      %v2332 = vld [vmem:[%s2304 + $0xa0] sm:$0xf]
      %v2333 = vld [vmem:[%s2304 + $0xa8] sm:$0xf]
      %v2334 = vld [vmem:[%s2304 + $0xac] sm:$0xf]
      %v2335 = vld [vmem:[%s2304 + $0xb4] sm:$0xf]
      %v2336 = vld [vmem:[%s2304 + $0xb8] sm:$0xf]
      %2369 = vrot.lane.b32.xlu0 %v2305, 24
      %v2370 = vpop.permute.xlu0 %2369
      %2371 = vrot.lane.b32.xlu0 %v2306, 24
      %v2372 = vpop.permute.xlu0 %2371
      %2373 = vrot.lane.b32.xlu0 %v2307, 24
      %v2374 = vpop.permute.xlu0 %2373
      %2375 = vrot.lane.b32.xlu0 %v2308, 24
      %v2376 = vpop.permute.xlu0 %2375
      %2377 = vrot.lane.b32.xlu0 %v2309, 24
      %v2378 = vpop.permute.xlu0 %2377
      %2379 = vrot.lane.b32.xlu0 %v2310, 24
      %v2380 = vpop.permute.xlu0 %2379
      %2381 = vrot.lane.b32.xlu0 %v2311, 24
      %v2382 = vpop.permute.xlu0 %2381
      %2383 = vrot.lane.b32.xlu0 %v2312, 24
      %v2384 = vpop.permute.xlu0 %2383
      %2385 = vrot.lane.b32.xlu0 %v2313, 24
      %v2386 = vpop.permute.xlu0 %2385
      %2387 = vrot.lane.b32.xlu0 %v2314, 24
      %v2388 = vpop.permute.xlu0 %2387
      %2389 = vrot.lane.b32.xlu0 %v2315, 24
      %v2390 = vpop.permute.xlu0 %2389
      %2391 = vrot.lane.b32.xlu0 %v2316, 24
      %v2392 = vpop.permute.xlu0 %2391
      %2393 = vrot.lane.b32.xlu0 %v2317, 24
      %v2394 = vpop.permute.xlu0 %2393
      %2395 = vrot.lane.b32.xlu0 %v2318, 24
      %v2396 = vpop.permute.xlu0 %2395
      %2397 = vrot.lane.b32.xlu0 %v2319, 24
      %v2398 = vpop.permute.xlu0 %2397
      %2399 = vrot.lane.b32.xlu0 %v2320, 24
      %v2400 = vpop.permute.xlu0 %2399
      %2401 = vrot.lane.b32.xlu0 %v2321, 24
      %v2402 = vpop.permute.xlu0 %2401
      %2403 = vrot.lane.b32.xlu0 %v2322, 24
      %v2404 = vpop.permute.xlu0 %2403
      %2405 = vrot.lane.b32.xlu0 %v2323, 24
      %v2406 = vpop.permute.xlu0 %2405
      %2407 = vrot.lane.b32.xlu0 %v2324, 24
      %v2408 = vpop.permute.xlu0 %2407
      %2409 = vrot.lane.b32.xlu0 %v2325, 24
      %v2410 = vpop.permute.xlu0 %2409
      %2411 = vrot.lane.b32.xlu0 %v2326, 24
      %v2412 = vpop.permute.xlu0 %2411
      %2413 = vrot.lane.b32.xlu0 %v2327, 24
      %v2414 = vpop.permute.xlu0 %2413
      %2415 = vrot.lane.b32.xlu0 %v2328, 24
      %v2416 = vpop.permute.xlu0 %2415
      %2417 = vrot.lane.b32.xlu0 %v2329, 24
      %v2418 = vpop.permute.xlu0 %2417
      %2419 = vrot.lane.b32.xlu0 %v2330, 24
      %v2420 = vpop.permute.xlu0 %2419
      %2421 = vrot.lane.b32.xlu0 %v2331, 24
      %v2422 = vpop.permute.xlu0 %2421
      %2423 = vrot.lane.b32.xlu0 %v2332, 24
      %v2424 = vpop.permute.xlu0 %2423
      %2425 = vrot.lane.b32.xlu0 %v2333, 24
      %v2426 = vpop.permute.xlu0 %2425
      %2427 = vrot.lane.b32.xlu0 %v2334, 24
      %v2428 = vpop.permute.xlu0 %2427
      %2429 = vrot.lane.b32.xlu0 %v2335, 24
      %v2430 = vpop.permute.xlu0 %2429
      %2431 = vrot.lane.b32.xlu0 %v2336, 24
      %v2432 = vpop.permute.xlu0 %2431
      %vm2465 = vcmask 224448
      %2466 = vst.msk [vmem:[#allocation2] sm:$0xf] %vm2465, %v2370
      %2467 = vst.msk [vmem:[#allocation2 + $0x4] sm:$0xf] %vm2465, %v2372
      %2468 = vst.msk [vmem:[#allocation2 + $0x8] sm:$0xf] %vm2465, %v2374
      %2469 = vst.msk [vmem:[#allocation2 + $0xc] sm:$0xf] %vm2465, %v2376
      %2470 = vst.msk [vmem:[#allocation2 + $0x10] sm:$0xf] %vm2465, %v2378
      %2471 = vst.msk [vmem:[#allocation2 + $0x14] sm:$0xf] %vm2465, %v2380
      %2472 = vst.msk [vmem:[#allocation2 + $0x18] sm:$0xf] %vm2465, %v2382
      %2473 = vst.msk [vmem:[#allocation2 + $0x1c] sm:$0xf] %vm2465, %v2384
      %2474 = vst.msk [vmem:[#allocation2 + $0x20] sm:$0xf] %vm2465, %v2386
      %2475 = vst.msk [vmem:[#allocation2 + $0x24] sm:$0xf] %vm2465, %v2388
      %2476 = vst.msk [vmem:[#allocation2 + $0x28] sm:$0xf] %vm2465, %v2390
      %2477 = vst.msk [vmem:[#allocation2 + $0x2c] sm:$0xf] %vm2465, %v2392
      %2478 = vst.msk [vmem:[#allocation2 + $0x30] sm:$0xf] %vm2465, %v2394
      %2479 = vst.msk [vmem:[#allocation2 + $0x34] sm:$0xf] %vm2465, %v2396
      %2480 = vst.msk [vmem:[#allocation2 + $0x38] sm:$0xf] %vm2465, %v2398
      %2481 = vst.msk [vmem:[#allocation2 + $0x3c] sm:$0xf] %vm2465, %v2400
      %2482 = vst.msk [vmem:[#allocation2 + $0x40] sm:$0xf] %vm2465, %v2402
      %2483 = vst.msk [vmem:[#allocation2 + $0x44] sm:$0xf] %vm2465, %v2404
      %2484 = vst.msk [vmem:[#allocation2 + $0x48] sm:$0xf] %vm2465, %v2406
      %2485 = vst.msk [vmem:[#allocation2 + $0x4c] sm:$0xf] %vm2465, %v2408
      %2486 = vst.msk [vmem:[#allocation2 + $0x50] sm:$0xf] %vm2465, %v2410
      %2487 = vst.msk [vmem:[#allocation2 + $0x54] sm:$0xf] %vm2465, %v2412
      %2488 = vst.msk [vmem:[#allocation2 + $0x58] sm:$0xf] %vm2465, %v2414
      %2489 = vst.msk [vmem:[#allocation2 + $0x5c] sm:$0xf] %vm2465, %v2416
      %2490 = vst.msk [vmem:[#allocation2 + $0x60] sm:$0xf] %vm2465, %v2418
      %2491 = vst.msk [vmem:[#allocation2 + $0x64] sm:$0xf] %vm2465, %v2420
      %2492 = vst.msk [vmem:[#allocation2 + $0x68] sm:$0xf] %vm2465, %v2422
      %2493 = vst.msk [vmem:[#allocation2 + $0x6c] sm:$0xf] %vm2465, %v2424
      %2494 = vst.msk [vmem:[#allocation2 + $0x70] sm:$0xf] %vm2465, %v2426
      %2495 = vst.msk [vmem:[#allocation2 + $0x74] sm:$0xf] %vm2465, %v2428
      %2496 = vst.msk [vmem:[#allocation2 + $0x78] sm:$0xf] %vm2465, %v2430
      %2497 = vst.msk [vmem:[#allocation2 + $0x7c] sm:$0xf] %vm2465, %v2432
      %v2498 = vld [vmem:[%s2304] sm:$0xf]
      %v2499 = vld [vmem:[%s2304 + $0x4] sm:$0xf]
      %v2500 = vld [vmem:[%s2304 + $0x8] sm:$0x1]
      %v2501 = vld [vmem:[%s2304 + $0xc] sm:$0xf]
      %v2502 = vld [vmem:[%s2304 + $0x10] sm:$0xf]
      %v2503 = vld [vmem:[%s2304 + $0x14] sm:$0x1]
      %v2504 = vld [vmem:[%s2304 + $0x18] sm:$0xf]
      %v2505 = vld [vmem:[%s2304 + $0x1c] sm:$0xf]
      %v2506 = vld [vmem:[%s2304 + $0x20] sm:$0x1]
      %v2507 = vld [vmem:[%s2304 + $0x24] sm:$0xf]
      %v2508 = vld [vmem:[%s2304 + $0x28] sm:$0xf]
      %v2509 = vld [vmem:[%s2304 + $0x2c] sm:$0x1]
      %v2510 = vld [vmem:[%s2304 + $0x30] sm:$0xf]
      %v2511 = vld [vmem:[%s2304 + $0x34] sm:$0xf]
      %v2512 = vld [vmem:[%s2304 + $0x38] sm:$0x1]
      %v2513 = vld [vmem:[%s2304 + $0x3c] sm:$0xf]
      %v2514 = vld [vmem:[%s2304 + $0x40] sm:$0xf]
      %v2515 = vld [vmem:[%s2304 + $0x44] sm:$0x1]
      %v2516 = vld [vmem:[%s2304 + $0x48] sm:$0xf]
      %v2517 = vld [vmem:[%s2304 + $0x4c] sm:$0xf]
      %v2518 = vld [vmem:[%s2304 + $0x50] sm:$0x1]
      %v2519 = vld [vmem:[%s2304 + $0x54] sm:$0xf]
      %v2520 = vld [vmem:[%s2304 + $0x58] sm:$0xf]
      %v2521 = vld [vmem:[%s2304 + $0x5c] sm:$0x1]
      %v2522 = vld [vmem:[%s2304 + $0x60] sm:$0xf]
      %v2523 = vld [vmem:[%s2304 + $0x64] sm:$0xf]
      %v2524 = vld [vmem:[%s2304 + $0x68] sm:$0x1]
      %v2525 = vld [vmem:[%s2304 + $0x6c] sm:$0xf]
      %v2526 = vld [vmem:[%s2304 + $0x70] sm:$0xf]
      %v2527 = vld [vmem:[%s2304 + $0x74] sm:$0x1]
      %v2528 = vld [vmem:[%s2304 + $0x78] sm:$0xf]
      %v2529 = vld [vmem:[%s2304 + $0x7c] sm:$0xf]
      %v2530 = vld [vmem:[%s2304 + $0x80] sm:$0x1]
      %v2531 = vld [vmem:[%s2304 + $0x84] sm:$0xf]
      %v2532 = vld [vmem:[%s2304 + $0x88] sm:$0xf]
      %v2533 = vld [vmem:[%s2304 + $0x8c] sm:$0x1]
      %v2534 = vld [vmem:[%s2304 + $0x90] sm:$0xf]
      %v2535 = vld [vmem:[%s2304 + $0x94] sm:$0xf]
      %v2536 = vld [vmem:[%s2304 + $0x98] sm:$0x1]
      %v2537 = vld [vmem:[%s2304 + $0x9c] sm:$0xf]
      %v2538 = vld [vmem:[%s2304 + $0xa0] sm:$0xf]
      %v2539 = vld [vmem:[%s2304 + $0xa4] sm:$0x1]
      %v2540 = vld [vmem:[%s2304 + $0xa8] sm:$0xf]
      %v2541 = vld [vmem:[%s2304 + $0xac] sm:$0xf]
      %v2542 = vld [vmem:[%s2304 + $0xb0] sm:$0x1]
      %v2543 = vld [vmem:[%s2304 + $0xb4] sm:$0xf]
      %v2544 = vld [vmem:[%s2304 + $0xb8] sm:$0xf]
      %v2545 = vld [vmem:[%s2304 + $0xbc] sm:$0x1]
      %v2547 = vshrl.u32 %v2498, 16
      %v2549 = vrot.slane %v2547, 4
      %v2550 = vshll.u32 %v2498, 16
      %v2552 = vrot.slane %v2550, 5
      %v2553 = vor.u32 %v2549, %v2552
      %v2554 = vrot.slane %v2553, 4
      %v2556 = vshll.u32 %v2499, 16
      %v2558 = vrot.slane %v2556, 5
      %v2559 = vsel %vm358, %v2554, %v2558
      %v2560 = vshrl.u32 %v2499, 16
      %v2562 = vrot.slane %v2560, 4
      %v2563 = vor.u32 %v2562, %v2558
      %v2564 = vrot.slane %v2563, 4
      %v2566 = vshll.u32 %v2500, 16
      %v2568 = vrot.slane %v2566, 5
      %v2569 = vsel %vm358, %v2564, %v2568
      %v2571 = vshrl.u32 %v2501, 16
      %v2573 = vrot.slane %v2571, 4
      %v2574 = vshll.u32 %v2501, 16
      %v2576 = vrot.slane %v2574, 5
      %v2577 = vor.u32 %v2573, %v2576
      %v2578 = vrot.slane %v2577, 4
      %v2580 = vshll.u32 %v2502, 16
      %v2582 = vrot.slane %v2580, 5
      %v2583 = vsel %vm358, %v2578, %v2582
      %v2584 = vshrl.u32 %v2502, 16
      %v2586 = vrot.slane %v2584, 4
      %v2587 = vor.u32 %v2586, %v2582
      %v2588 = vrot.slane %v2587, 4
      %v2590 = vshll.u32 %v2503, 16
      %v2592 = vrot.slane %v2590, 5
      %v2593 = vsel %vm358, %v2588, %v2592
      %v2595 = vshrl.u32 %v2504, 16
      %v2597 = vrot.slane %v2595, 4
      %v2598 = vshll.u32 %v2504, 16
      %v2600 = vrot.slane %v2598, 5
      %v2601 = vor.u32 %v2597, %v2600
      %v2602 = vrot.slane %v2601, 4
      %v2604 = vshll.u32 %v2505, 16
      %v2606 = vrot.slane %v2604, 5
      %v2607 = vsel %vm358, %v2602, %v2606
      %v2608 = vshrl.u32 %v2505, 16
      %v2610 = vrot.slane %v2608, 4
      %v2611 = vor.u32 %v2610, %v2606
      %v2612 = vrot.slane %v2611, 4
      %v2614 = vshll.u32 %v2506, 16
      %v2616 = vrot.slane %v2614, 5
      %v2617 = vsel %vm358, %v2612, %v2616
      %v2619 = vshrl.u32 %v2507, 16
      %v2621 = vrot.slane %v2619, 4
      %v2622 = vshll.u32 %v2507, 16
      %v2624 = vrot.slane %v2622, 5
      %v2625 = vor.u32 %v2621, %v2624
      %v2626 = vrot.slane %v2625, 4
      %v2628 = vshll.u32 %v2508, 16
      %v2630 = vrot.slane %v2628, 5
      %v2631 = vsel %vm358, %v2626, %v2630
      %v2632 = vshrl.u32 %v2508, 16
      %v2634 = vrot.slane %v2632, 4
      %v2635 = vor.u32 %v2634, %v2630
      %v2636 = vrot.slane %v2635, 4
      %v2638 = vshll.u32 %v2509, 16
      %v2640 = vrot.slane %v2638, 5
      %v2641 = vsel %vm358, %v2636, %v2640
      %v2643 = vshrl.u32 %v2510, 16
      %v2645 = vrot.slane %v2643, 4
      %v2646 = vshll.u32 %v2510, 16
      %v2648 = vrot.slane %v2646, 5
      %v2649 = vor.u32 %v2645, %v2648
      %v2650 = vrot.slane %v2649, 4
      %v2652 = vshll.u32 %v2511, 16
      %v2654 = vrot.slane %v2652, 5
      %v2655 = vsel %vm358, %v2650, %v2654
      %v2656 = vshrl.u32 %v2511, 16
      %v2658 = vrot.slane %v2656, 4
      %v2659 = vor.u32 %v2658, %v2654
      %v2660 = vrot.slane %v2659, 4
      %v2662 = vshll.u32 %v2512, 16
      %v2664 = vrot.slane %v2662, 5
      %v2665 = vsel %vm358, %v2660, %v2664
      %v2667 = vshrl.u32 %v2513, 16
      %v2669 = vrot.slane %v2667, 4
      %v2670 = vshll.u32 %v2513, 16
      %v2672 = vrot.slane %v2670, 5
      %v2673 = vor.u32 %v2669, %v2672
      %v2674 = vrot.slane %v2673, 4
      %v2676 = vshll.u32 %v2514, 16
      %v2678 = vrot.slane %v2676, 5
      %v2679 = vsel %vm358, %v2674, %v2678
      %v2680 = vshrl.u32 %v2514, 16
      %v2682 = vrot.slane %v2680, 4
      %v2683 = vor.u32 %v2682, %v2678
      %v2684 = vrot.slane %v2683, 4
      %v2686 = vshll.u32 %v2515, 16
      %v2688 = vrot.slane %v2686, 5
      %v2689 = vsel %vm358, %v2684, %v2688
      %v2691 = vshrl.u32 %v2516, 16
      %v2693 = vrot.slane %v2691, 4
      %v2694 = vshll.u32 %v2516, 16
      %v2696 = vrot.slane %v2694, 5
      %v2697 = vor.u32 %v2693, %v2696
      %v2698 = vrot.slane %v2697, 4
      %v2700 = vshll.u32 %v2517, 16
      %v2702 = vrot.slane %v2700, 5
      %v2703 = vsel %vm358, %v2698, %v2702
      %v2704 = vshrl.u32 %v2517, 16
      %v2706 = vrot.slane %v2704, 4
      %v2707 = vor.u32 %v2706, %v2702
      %v2708 = vrot.slane %v2707, 4
      %v2710 = vshll.u32 %v2518, 16
      %v2712 = vrot.slane %v2710, 5
      %v2713 = vsel %vm358, %v2708, %v2712
      %v2715 = vshrl.u32 %v2519, 16
      %v2717 = vrot.slane %v2715, 4
      %v2718 = vshll.u32 %v2519, 16
      %v2720 = vrot.slane %v2718, 5
      %v2721 = vor.u32 %v2717, %v2720
      %v2722 = vrot.slane %v2721, 4
      %v2724 = vshll.u32 %v2520, 16
      %v2726 = vrot.slane %v2724, 5
      %v2727 = vsel %vm358, %v2722, %v2726
      %v2728 = vshrl.u32 %v2520, 16
      %v2730 = vrot.slane %v2728, 4
      %v2731 = vor.u32 %v2730, %v2726
      %v2732 = vrot.slane %v2731, 4
      %v2734 = vshll.u32 %v2521, 16
      %v2736 = vrot.slane %v2734, 5
      %v2737 = vsel %vm358, %v2732, %v2736
      %v2739 = vshrl.u32 %v2522, 16
      %v2741 = vrot.slane %v2739, 4
      %v2742 = vshll.u32 %v2522, 16
      %v2744 = vrot.slane %v2742, 5
      %v2745 = vor.u32 %v2741, %v2744
      %v2746 = vrot.slane %v2745, 4
      %v2748 = vshll.u32 %v2523, 16
      %v2750 = vrot.slane %v2748, 5
      %v2751 = vsel %vm358, %v2746, %v2750
      %v2752 = vshrl.u32 %v2523, 16
      %v2754 = vrot.slane %v2752, 4
      %v2755 = vor.u32 %v2754, %v2750
      %v2756 = vrot.slane %v2755, 4
      %v2758 = vshll.u32 %v2524, 16
      %v2760 = vrot.slane %v2758, 5
      %v2761 = vsel %vm358, %v2756, %v2760
      %v2763 = vshrl.u32 %v2525, 16
      %v2765 = vrot.slane %v2763, 4
      %v2766 = vshll.u32 %v2525, 16
      %v2768 = vrot.slane %v2766, 5
      %v2769 = vor.u32 %v2765, %v2768
      %v2770 = vrot.slane %v2769, 4
      %v2772 = vshll.u32 %v2526, 16
      %v2774 = vrot.slane %v2772, 5
      %v2775 = vsel %vm358, %v2770, %v2774
      %v2776 = vshrl.u32 %v2526, 16
      %v2778 = vrot.slane %v2776, 4
      %v2779 = vor.u32 %v2778, %v2774
      %v2780 = vrot.slane %v2779, 4
      %v2782 = vshll.u32 %v2527, 16
      %v2784 = vrot.slane %v2782, 5
      %v2785 = vsel %vm358, %v2780, %v2784
      %v2787 = vshrl.u32 %v2528, 16
      %v2789 = vrot.slane %v2787, 4
      %v2790 = vshll.u32 %v2528, 16
      %v2792 = vrot.slane %v2790, 5
      %v2793 = vor.u32 %v2789, %v2792
      %v2794 = vrot.slane %v2793, 4
      %v2796 = vshll.u32 %v2529, 16
      %v2798 = vrot.slane %v2796, 5
      %v2799 = vsel %vm358, %v2794, %v2798
      %v2800 = vshrl.u32 %v2529, 16
      %v2802 = vrot.slane %v2800, 4
      %v2803 = vor.u32 %v2802, %v2798
      %v2804 = vrot.slane %v2803, 4
      %v2806 = vshll.u32 %v2530, 16
      %v2808 = vrot.slane %v2806, 5
      %v2809 = vsel %vm358, %v2804, %v2808
      %v2811 = vshrl.u32 %v2531, 16
      %v2813 = vrot.slane %v2811, 4
      %v2814 = vshll.u32 %v2531, 16
      %v2816 = vrot.slane %v2814, 5
      %v2817 = vor.u32 %v2813, %v2816
      %v2818 = vrot.slane %v2817, 4
      %v2820 = vshll.u32 %v2532, 16
      %v2822 = vrot.slane %v2820, 5
      %v2823 = vsel %vm358, %v2818, %v2822
      %v2824 = vshrl.u32 %v2532, 16
      %v2826 = vrot.slane %v2824, 4
      %v2827 = vor.u32 %v2826, %v2822
      %v2828 = vrot.slane %v2827, 4
      %v2830 = vshll.u32 %v2533, 16
      %v2832 = vrot.slane %v2830, 5
      %v2833 = vsel %vm358, %v2828, %v2832
      %v2835 = vshrl.u32 %v2534, 16
      %v2837 = vrot.slane %v2835, 4
      %v2838 = vshll.u32 %v2534, 16
      %v2840 = vrot.slane %v2838, 5
      %v2841 = vor.u32 %v2837, %v2840
      %v2842 = vrot.slane %v2841, 4
      %v2844 = vshll.u32 %v2535, 16
      %v2846 = vrot.slane %v2844, 5
      %v2847 = vsel %vm358, %v2842, %v2846
      %v2848 = vshrl.u32 %v2535, 16
      %v2850 = vrot.slane %v2848, 4
      %v2851 = vor.u32 %v2850, %v2846
      %v2852 = vrot.slane %v2851, 4
      %v2854 = vshll.u32 %v2536, 16
      %v2856 = vrot.slane %v2854, 5
      %v2857 = vsel %vm358, %v2852, %v2856
      %v2859 = vshrl.u32 %v2537, 16
      %v2861 = vrot.slane %v2859, 4
      %v2862 = vshll.u32 %v2537, 16
      %v2864 = vrot.slane %v2862, 5
      %v2865 = vor.u32 %v2861, %v2864
      %v2866 = vrot.slane %v2865, 4
      %v2868 = vshll.u32 %v2538, 16
      %v2870 = vrot.slane %v2868, 5
      %v2871 = vsel %vm358, %v2866, %v2870
      %v2872 = vshrl.u32 %v2538, 16
      %v2874 = vrot.slane %v2872, 4
      %v2875 = vor.u32 %v2874, %v2870
      %v2876 = vrot.slane %v2875, 4
      %v2878 = vshll.u32 %v2539, 16
      %v2880 = vrot.slane %v2878, 5
      %v2881 = vsel %vm358, %v2876, %v2880
      %v2883 = vshrl.u32 %v2540, 16
      %v2885 = vrot.slane %v2883, 4
      %v2886 = vshll.u32 %v2540, 16
      %v2888 = vrot.slane %v2886, 5
      %v2889 = vor.u32 %v2885, %v2888
      %v2890 = vrot.slane %v2889, 4
      %v2892 = vshll.u32 %v2541, 16
      %v2894 = vrot.slane %v2892, 5
      %v2895 = vsel %vm358, %v2890, %v2894
      %v2896 = vshrl.u32 %v2541, 16
      %v2898 = vrot.slane %v2896, 4
      %v2899 = vor.u32 %v2898, %v2894
      %v2900 = vrot.slane %v2899, 4
      %v2902 = vshll.u32 %v2542, 16
      %v2904 = vrot.slane %v2902, 5
      %v2905 = vsel %vm358, %v2900, %v2904
      %v2907 = vshrl.u32 %v2543, 16
      %v2909 = vrot.slane %v2907, 4
      %v2910 = vshll.u32 %v2543, 16
      %v2912 = vrot.slane %v2910, 5
      %v2913 = vor.u32 %v2909, %v2912
      %v2914 = vrot.slane %v2913, 4
      %v2916 = vshll.u32 %v2544, 16
      %v2918 = vrot.slane %v2916, 5
      %v2919 = vsel %vm358, %v2914, %v2918
      %v2920 = vshrl.u32 %v2544, 16
      %v2922 = vrot.slane %v2920, 4
      %v2923 = vor.u32 %v2922, %v2918
      %v2924 = vrot.slane %v2923, 4
      %v2926 = vshll.u32 %v2545, 16
      %v2928 = vrot.slane %v2926, 5
      %v2929 = vsel %vm358, %v2924, %v2928
      %2930 = vrot.lane.b32.xlu0 %v2559, 28
      %v2931 = vpop.permute.xlu0 %2930
      %2932 = vrot.lane.b32.xlu0 %v2569, 28
      %v2933 = vpop.permute.xlu0 %2932
      %2934 = vrot.lane.b32.xlu0 %v2583, 28
      %v2935 = vpop.permute.xlu0 %2934
      %2936 = vrot.lane.b32.xlu0 %v2593, 28
      %v2937 = vpop.permute.xlu0 %2936
      %2938 = vrot.lane.b32.xlu0 %v2607, 28
      %v2939 = vpop.permute.xlu0 %2938
      %2940 = vrot.lane.b32.xlu0 %v2617, 28
      %v2941 = vpop.permute.xlu0 %2940
      %2942 = vrot.lane.b32.xlu0 %v2631, 28
      %v2943 = vpop.permute.xlu0 %2942
      %2944 = vrot.lane.b32.xlu0 %v2641, 28
      %v2945 = vpop.permute.xlu0 %2944
      %2946 = vrot.lane.b32.xlu0 %v2655, 28
      %v2947 = vpop.permute.xlu0 %2946
      %2948 = vrot.lane.b32.xlu0 %v2665, 28
      %v2949 = vpop.permute.xlu0 %2948
      %2950 = vrot.lane.b32.xlu0 %v2679, 28
      %v2951 = vpop.permute.xlu0 %2950
      %2952 = vrot.lane.b32.xlu0 %v2689, 28
      %v2953 = vpop.permute.xlu0 %2952
      %2954 = vrot.lane.b32.xlu0 %v2703, 28
      %v2955 = vpop.permute.xlu0 %2954
      %2956 = vrot.lane.b32.xlu0 %v2713, 28
      %v2957 = vpop.permute.xlu0 %2956
      %2958 = vrot.lane.b32.xlu0 %v2727, 28
      %v2959 = vpop.permute.xlu0 %2958
      %2960 = vrot.lane.b32.xlu0 %v2737, 28
      %v2961 = vpop.permute.xlu0 %2960
      %2962 = vrot.lane.b32.xlu0 %v2751, 28
      %v2963 = vpop.permute.xlu0 %2962
      %2964 = vrot.lane.b32.xlu0 %v2761, 28
      %v2965 = vpop.permute.xlu0 %2964
      %2966 = vrot.lane.b32.xlu0 %v2775, 28
      %v2967 = vpop.permute.xlu0 %2966
      %2968 = vrot.lane.b32.xlu0 %v2785, 28
      %v2969 = vpop.permute.xlu0 %2968
      %2970 = vrot.lane.b32.xlu0 %v2799, 28
      %v2971 = vpop.permute.xlu0 %2970
      %2972 = vrot.lane.b32.xlu0 %v2809, 28
      %v2973 = vpop.permute.xlu0 %2972
      %2974 = vrot.lane.b32.xlu0 %v2823, 28
      %v2975 = vpop.permute.xlu0 %2974
      %2976 = vrot.lane.b32.xlu0 %v2833, 28
      %v2977 = vpop.permute.xlu0 %2976
      %2978 = vrot.lane.b32.xlu0 %v2847, 28
      %v2979 = vpop.permute.xlu0 %2978
      %2980 = vrot.lane.b32.xlu0 %v2857, 28
      %v2981 = vpop.permute.xlu0 %2980
      %2982 = vrot.lane.b32.xlu0 %v2871, 28
      %v2983 = vpop.permute.xlu0 %2982
      %2984 = vrot.lane.b32.xlu0 %v2881, 28
      %v2985 = vpop.permute.xlu0 %2984
      %2986 = vrot.lane.b32.xlu0 %v2895, 28
      %v2987 = vpop.permute.xlu0 %2986
      %2988 = vrot.lane.b32.xlu0 %v2905, 28
      %v2989 = vpop.permute.xlu0 %2988
      %2990 = vrot.lane.b32.xlu0 %v2919, 28
      %v2991 = vpop.permute.xlu0 %2990
      %2992 = vrot.lane.b32.xlu0 %v2929, 28
      %v2993 = vpop.permute.xlu0 %2992
      %vm3026 = vcmask 257248
      %3027 = vst.msk [vmem:[#allocation2] sm:$0xf] %vm3026, %v2931
      %3028 = vst.msk [vmem:[#allocation2 + $0x4] sm:$0xf] %vm3026, %v2933
      %3029 = vst.msk [vmem:[#allocation2 + $0x8] sm:$0xf] %vm3026, %v2935
      %3030 = vst.msk [vmem:[#allocation2 + $0xc] sm:$0xf] %vm3026, %v2937
      %3031 = vst.msk [vmem:[#allocation2 + $0x10] sm:$0xf] %vm3026, %v2939
      %3032 = vst.msk [vmem:[#allocation2 + $0x14] sm:$0xf] %vm3026, %v2941
      %3033 = vst.msk [vmem:[#allocation2 + $0x18] sm:$0xf] %vm3026, %v2943
      %3034 = vst.msk [vmem:[#allocation2 + $0x1c] sm:$0xf] %vm3026, %v2945
      %3035 = vst.msk [vmem:[#allocation2 + $0x20] sm:$0xf] %vm3026, %v2947
      %3036 = vst.msk [vmem:[#allocation2 + $0x24] sm:$0xf] %vm3026, %v2949
      %3037 = vst.msk [vmem:[#allocation2 + $0x28] sm:$0xf] %vm3026, %v2951
      %3038 = vst.msk [vmem:[#allocation2 + $0x2c] sm:$0xf] %vm3026, %v2953
      %3039 = vst.msk [vmem:[#allocation2 + $0x30] sm:$0xf] %vm3026, %v2955
      %3040 = vst.msk [vmem:[#allocation2 + $0x34] sm:$0xf] %vm3026, %v2957
      %3041 = vst.msk [vmem:[#allocation2 + $0x38] sm:$0xf] %vm3026, %v2959
      %3042 = vst.msk [vmem:[#allocation2 + $0x3c] sm:$0xf] %vm3026, %v2961
      %3043 = vst.msk [vmem:[#allocation2 + $0x40] sm:$0xf] %vm3026, %v2963
      %3044 = vst.msk [vmem:[#allocation2 + $0x44] sm:$0xf] %vm3026, %v2965
      %3045 = vst.msk [vmem:[#allocation2 + $0x48] sm:$0xf] %vm3026, %v2967
      %3046 = vst.msk [vmem:[#allocation2 + $0x4c] sm:$0xf] %vm3026, %v2969
      %3047 = vst.msk [vmem:[#allocation2 + $0x50] sm:$0xf] %vm3026, %v2971
      %3048 = vst.msk [vmem:[#allocation2 + $0x54] sm:$0xf] %vm3026, %v2973
      %3049 = vst.msk [vmem:[#allocation2 + $0x58] sm:$0xf] %vm3026, %v2975
      %3050 = vst.msk [vmem:[#allocation2 + $0x5c] sm:$0xf] %vm3026, %v2977
      %3051 = vst.msk [vmem:[#allocation2 + $0x60] sm:$0xf] %vm3026, %v2979
      %3052 = vst.msk [vmem:[#allocation2 + $0x64] sm:$0xf] %vm3026, %v2981
      %3053 = vst.msk [vmem:[#allocation2 + $0x68] sm:$0xf] %vm3026, %v2983
      %3054 = vst.msk [vmem:[#allocation2 + $0x6c] sm:$0xf] %vm3026, %v2985
      %3055 = vst.msk [vmem:[#allocation2 + $0x70] sm:$0xf] %vm3026, %v2987
      %3056 = vst.msk [vmem:[#allocation2 + $0x74] sm:$0xf] %vm3026, %v2989
      %3057 = vst.msk [vmem:[#allocation2 + $0x78] sm:$0xf] %vm3026, %v2991
      %3058 = vst.msk [vmem:[#allocation2 + $0x7c] sm:$0xf] %vm3026, %v2993
      %v3059 = vld [vmem:[%s2304] sm:$0xe]
      %v3060 = vld [vmem:[%s2304 + $0x4] sm:$0xf]
      %v3061 = vld [vmem:[%s2304 + $0x8] sm:$0x1]
      %v3062 = vld [vmem:[%s2304 + $0xc] sm:$0xe]
      %v3063 = vld [vmem:[%s2304 + $0x10] sm:$0xf]
      %v3064 = vld [vmem:[%s2304 + $0x14] sm:$0x1]
      %v3065 = vld [vmem:[%s2304 + $0x18] sm:$0xe]
      %v3066 = vld [vmem:[%s2304 + $0x1c] sm:$0xf]
      %v3067 = vld [vmem:[%s2304 + $0x20] sm:$0x1]
      %v3068 = vld [vmem:[%s2304 + $0x24] sm:$0xe]
      %v3069 = vld [vmem:[%s2304 + $0x28] sm:$0xf]
      %v3070 = vld [vmem:[%s2304 + $0x2c] sm:$0x1]
      %v3071 = vld [vmem:[%s2304 + $0x30] sm:$0xe]
      %v3072 = vld [vmem:[%s2304 + $0x34] sm:$0xf]
      %v3073 = vld [vmem:[%s2304 + $0x38] sm:$0x1]
      %v3074 = vld [vmem:[%s2304 + $0x3c] sm:$0xe]
      %v3075 = vld [vmem:[%s2304 + $0x40] sm:$0xf]
      %v3076 = vld [vmem:[%s2304 + $0x44] sm:$0x1]
      %v3077 = vld [vmem:[%s2304 + $0x48] sm:$0xe]
      %v3078 = vld [vmem:[%s2304 + $0x4c] sm:$0xf]
      %v3079 = vld [vmem:[%s2304 + $0x50] sm:$0x1]
      %v3080 = vld [vmem:[%s2304 + $0x54] sm:$0xe]
      %v3081 = vld [vmem:[%s2304 + $0x58] sm:$0xf]
      %v3082 = vld [vmem:[%s2304 + $0x5c] sm:$0x1]
      %v3083 = vld [vmem:[%s2304 + $0x60] sm:$0xe]
      %v3084 = vld [vmem:[%s2304 + $0x64] sm:$0xf]
      %v3085 = vld [vmem:[%s2304 + $0x68] sm:$0x1]
      %v3086 = vld [vmem:[%s2304 + $0x6c] sm:$0xe]
      %v3087 = vld [vmem:[%s2304 + $0x70] sm:$0xf]
      %v3088 = vld [vmem:[%s2304 + $0x74] sm:$0x1]
      %v3089 = vld [vmem:[%s2304 + $0x78] sm:$0xe]
      %v3090 = vld [vmem:[%s2304 + $0x7c] sm:$0xf]
      %v3091 = vld [vmem:[%s2304 + $0x80] sm:$0x1]
      %v3092 = vld [vmem:[%s2304 + $0x84] sm:$0xe]
      %v3093 = vld [vmem:[%s2304 + $0x88] sm:$0xf]
      %v3094 = vld [vmem:[%s2304 + $0x8c] sm:$0x1]
      %v3095 = vld [vmem:[%s2304 + $0x90] sm:$0xe]
      %v3096 = vld [vmem:[%s2304 + $0x94] sm:$0xf]
      %v3097 = vld [vmem:[%s2304 + $0x98] sm:$0x1]
      %v3098 = vld [vmem:[%s2304 + $0x9c] sm:$0xe]
      %v3099 = vld [vmem:[%s2304 + $0xa0] sm:$0xf]
      %v3100 = vld [vmem:[%s2304 + $0xa4] sm:$0x1]
      %v3101 = vld [vmem:[%s2304 + $0xa8] sm:$0xe]
      %v3102 = vld [vmem:[%s2304 + $0xac] sm:$0xf]
      %v3103 = vld [vmem:[%s2304 + $0xb0] sm:$0x1]
      %v3104 = vld [vmem:[%s2304 + $0xb4] sm:$0xe]
      %v3105 = vld [vmem:[%s2304 + $0xb8] sm:$0xf]
      %v3106 = vld [vmem:[%s2304 + $0xbc] sm:$0x1]
      %v3155 = vrot.slane %v3059, 5
      %v3156 = vrot.slane %v3155, 4
      %v3157 = vrot.slane %v3060, 5
      %v3158 = vsel %vm970, %v3156, %v3157
      %v3159 = vrot.slane %v3157, 4
      %v3160 = vrot.slane %v3061, 5
      %v3161 = vsel %vm970, %v3159, %v3160
      %v3162 = vrot.slane %v3062, 5
      %v3163 = vrot.slane %v3162, 4
      %v3164 = vrot.slane %v3063, 5
      %v3165 = vsel %vm970, %v3163, %v3164
      %v3166 = vrot.slane %v3164, 4
      %v3167 = vrot.slane %v3064, 5
      %v3168 = vsel %vm970, %v3166, %v3167
      %v3169 = vrot.slane %v3065, 5
      %v3170 = vrot.slane %v3169, 4
      %v3171 = vrot.slane %v3066, 5
      %v3172 = vsel %vm970, %v3170, %v3171
      %v3173 = vrot.slane %v3171, 4
      %v3174 = vrot.slane %v3067, 5
      %v3175 = vsel %vm970, %v3173, %v3174
      %v3176 = vrot.slane %v3068, 5
      %v3177 = vrot.slane %v3176, 4
      %v3178 = vrot.slane %v3069, 5
      %v3179 = vsel %vm970, %v3177, %v3178
      %v3180 = vrot.slane %v3178, 4
      %v3181 = vrot.slane %v3070, 5
      %v3182 = vsel %vm970, %v3180, %v3181
      %v3183 = vrot.slane %v3071, 5
      %v3184 = vrot.slane %v3183, 4
      %v3185 = vrot.slane %v3072, 5
      %v3186 = vsel %vm970, %v3184, %v3185
      %v3187 = vrot.slane %v3185, 4
      %v3188 = vrot.slane %v3073, 5
      %v3189 = vsel %vm970, %v3187, %v3188
      %v3190 = vrot.slane %v3074, 5
      %v3191 = vrot.slane %v3190, 4
      %v3192 = vrot.slane %v3075, 5
      %v3193 = vsel %vm970, %v3191, %v3192
      %v3194 = vrot.slane %v3192, 4
      %v3195 = vrot.slane %v3076, 5
      %v3196 = vsel %vm970, %v3194, %v3195
      %v3197 = vrot.slane %v3077, 5
      %v3198 = vrot.slane %v3197, 4
      %v3199 = vrot.slane %v3078, 5
      %v3200 = vsel %vm970, %v3198, %v3199
      %v3201 = vrot.slane %v3199, 4
      %v3202 = vrot.slane %v3079, 5
      %v3203 = vsel %vm970, %v3201, %v3202
      %v3204 = vrot.slane %v3080, 5
      %v3205 = vrot.slane %v3204, 4
      %v3206 = vrot.slane %v3081, 5
      %v3207 = vsel %vm970, %v3205, %v3206
      %v3208 = vrot.slane %v3206, 4
      %v3209 = vrot.slane %v3082, 5
      %v3210 = vsel %vm970, %v3208, %v3209
      %v3211 = vrot.slane %v3083, 5
      %v3212 = vrot.slane %v3211, 4
      %v3213 = vrot.slane %v3084, 5
      %v3214 = vsel %vm970, %v3212, %v3213
      %v3215 = vrot.slane %v3213, 4
      %v3216 = vrot.slane %v3085, 5
      %v3217 = vsel %vm970, %v3215, %v3216
      %v3218 = vrot.slane %v3086, 5
      %v3219 = vrot.slane %v3218, 4
      %v3220 = vrot.slane %v3087, 5
      %v3221 = vsel %vm970, %v3219, %v3220
      %v3222 = vrot.slane %v3220, 4
      %v3223 = vrot.slane %v3088, 5
      %v3224 = vsel %vm970, %v3222, %v3223
      %v3225 = vrot.slane %v3089, 5
      %v3226 = vrot.slane %v3225, 4
      %v3227 = vrot.slane %v3090, 5
      %v3228 = vsel %vm970, %v3226, %v3227
      %v3229 = vrot.slane %v3227, 4
      %v3230 = vrot.slane %v3091, 5
      %v3231 = vsel %vm970, %v3229, %v3230
      %v3232 = vrot.slane %v3092, 5
      %v3233 = vrot.slane %v3232, 4
      %v3234 = vrot.slane %v3093, 5
      %v3235 = vsel %vm970, %v3233, %v3234
      %v3236 = vrot.slane %v3234, 4
      %v3237 = vrot.slane %v3094, 5
      %v3238 = vsel %vm970, %v3236, %v3237
      %v3239 = vrot.slane %v3095, 5
      %v3240 = vrot.slane %v3239, 4
      %v3241 = vrot.slane %v3096, 5
      %v3242 = vsel %vm970, %v3240, %v3241
      %v3243 = vrot.slane %v3241, 4
      %v3244 = vrot.slane %v3097, 5
      %v3245 = vsel %vm970, %v3243, %v3244
      %v3246 = vrot.slane %v3098, 5
      %v3247 = vrot.slane %v3246, 4
      %v3248 = vrot.slane %v3099, 5
      %v3249 = vsel %vm970, %v3247, %v3248
      %v3250 = vrot.slane %v3248, 4
      %v3251 = vrot.slane %v3100, 5
      %v3252 = vsel %vm970, %v3250, %v3251
      %v3253 = vrot.slane %v3101, 5
      %v3254 = vrot.slane %v3253, 4
      %v3255 = vrot.slane %v3102, 5
      %v3256 = vsel %vm970, %v3254, %v3255
      %v3257 = vrot.slane %v3255, 4
      %v3258 = vrot.slane %v3103, 5
      %v3259 = vsel %vm970, %v3257, %v3258
      %v3260 = vrot.slane %v3104, 5
      %v3261 = vrot.slane %v3260, 4
      %v3262 = vrot.slane %v3105, 5
      %v3263 = vsel %vm970, %v3261, %v3262
      %v3264 = vrot.slane %v3262, 4
      %v3265 = vrot.slane %v3106, 5
      %v3266 = vsel %vm970, %v3264, %v3265
      %3267 = vrot.lane.b32.xlu0 %v3158, 32
      %v3268 = vpop.permute.xlu0 %3267
      %3269 = vrot.lane.b32.xlu0 %v3161, 32
      %v3270 = vpop.permute.xlu0 %3269
      %3271 = vrot.lane.b32.xlu0 %v3165, 32
      %v3272 = vpop.permute.xlu0 %3271
      %3273 = vrot.lane.b32.xlu0 %v3168, 32
      %v3274 = vpop.permute.xlu0 %3273
      %3275 = vrot.lane.b32.xlu0 %v3172, 32
      %v3276 = vpop.permute.xlu0 %3275
      %3277 = vrot.lane.b32.xlu0 %v3175, 32
      %v3278 = vpop.permute.xlu0 %3277
      %3279 = vrot.lane.b32.xlu0 %v3179, 32
      %v3280 = vpop.permute.xlu0 %3279
      %3281 = vrot.lane.b32.xlu0 %v3182, 32
      %v3282 = vpop.permute.xlu0 %3281
      %3283 = vrot.lane.b32.xlu0 %v3186, 32
      %v3284 = vpop.permute.xlu0 %3283
      %3285 = vrot.lane.b32.xlu0 %v3189, 32
      %v3286 = vpop.permute.xlu0 %3285
      %3287 = vrot.lane.b32.xlu0 %v3193, 32
      %v3288 = vpop.permute.xlu0 %3287
      %3289 = vrot.lane.b32.xlu0 %v3196, 32
      %v3290 = vpop.permute.xlu0 %3289
      %3291 = vrot.lane.b32.xlu0 %v3200, 32
      %v3292 = vpop.permute.xlu0 %3291
      %3293 = vrot.lane.b32.xlu0 %v3203, 32
      %v3294 = vpop.permute.xlu0 %3293
      %3295 = vrot.lane.b32.xlu0 %v3207, 32
      %v3296 = vpop.permute.xlu0 %3295
      %3297 = vrot.lane.b32.xlu0 %v3210, 32
      %v3298 = vpop.permute.xlu0 %3297
      %3299 = vrot.lane.b32.xlu0 %v3214, 32
      %v3300 = vpop.permute.xlu0 %3299
      %3301 = vrot.lane.b32.xlu0 %v3217, 32
      %v3302 = vpop.permute.xlu0 %3301
      %3303 = vrot.lane.b32.xlu0 %v3221, 32
      %v3304 = vpop.permute.xlu0 %3303
      %3305 = vrot.lane.b32.xlu0 %v3224, 32
      %v3306 = vpop.permute.xlu0 %3305
      %3307 = vrot.lane.b32.xlu0 %v3228, 32
      %v3308 = vpop.permute.xlu0 %3307
      %3309 = vrot.lane.b32.xlu0 %v3231, 32
      %v3310 = vpop.permute.xlu0 %3309
      %3311 = vrot.lane.b32.xlu0 %v3235, 32
      %v3312 = vpop.permute.xlu0 %3311
      %3313 = vrot.lane.b32.xlu0 %v3238, 32
      %v3314 = vpop.permute.xlu0 %3313
      %3315 = vrot.lane.b32.xlu0 %v3242, 32
      %v3316 = vpop.permute.xlu0 %3315
      %3317 = vrot.lane.b32.xlu0 %v3245, 32
      %v3318 = vpop.permute.xlu0 %3317
      %3319 = vrot.lane.b32.xlu0 %v3249, 32
      %v3320 = vpop.permute.xlu0 %3319
      %3321 = vrot.lane.b32.xlu0 %v3252, 32
      %v3322 = vpop.permute.xlu0 %3321
      %3323 = vrot.lane.b32.xlu0 %v3256, 32
      %v3324 = vpop.permute.xlu0 %3323
      %3325 = vrot.lane.b32.xlu0 %v3259, 32
      %v3326 = vpop.permute.xlu0 %3325
      %3327 = vrot.lane.b32.xlu0 %v3263, 32
      %v3328 = vpop.permute.xlu0 %3327
      %3329 = vrot.lane.b32.xlu0 %v3266, 32
      %v3330 = vpop.permute.xlu0 %3329
      %vm3363 = vcmask 290048
      %3364 = vst.msk [vmem:[#allocation2] sm:$0xf] %vm3363, %v3268
      %3365 = vst.msk [vmem:[#allocation2 + $0x4] sm:$0xf] %vm3363, %v3270
      %3366 = vst.msk [vmem:[#allocation2 + $0x8] sm:$0xf] %vm3363, %v3272
      %3367 = vst.msk [vmem:[#allocation2 + $0xc] sm:$0xf] %vm3363, %v3274
      %3368 = vst.msk [vmem:[#allocation2 + $0x10] sm:$0xf] %vm3363, %v3276
      %3369 = vst.msk [vmem:[#allocation2 + $0x14] sm:$0xf] %vm3363, %v3278
      %3370 = vst.msk [vmem:[#allocation2 + $0x18] sm:$0xf] %vm3363, %v3280
      %3371 = vst.msk [vmem:[#allocation2 + $0x1c] sm:$0xf] %vm3363, %v3282
      %3372 = vst.msk [vmem:[#allocation2 + $0x20] sm:$0xf] %vm3363, %v3284
      %3373 = vst.msk [vmem:[#allocation2 + $0x24] sm:$0xf] %vm3363, %v3286
      %3374 = vst.msk [vmem:[#allocation2 + $0x28] sm:$0xf] %vm3363, %v3288
      %3375 = vst.msk [vmem:[#allocation2 + $0x2c] sm:$0xf] %vm3363, %v3290
      %3376 = vst.msk [vmem:[#allocation2 + $0x30] sm:$0xf] %vm3363, %v3292
      %3377 = vst.msk [vmem:[#allocation2 + $0x34] sm:$0xf] %vm3363, %v3294
      %3378 = vst.msk [vmem:[#allocation2 + $0x38] sm:$0xf] %vm3363, %v3296
      %3379 = vst.msk [vmem:[#allocation2 + $0x3c] sm:$0xf] %vm3363, %v3298
      %3380 = vst.msk [vmem:[#allocation2 + $0x40] sm:$0xf] %vm3363, %v3300
      %3381 = vst.msk [vmem:[#allocation2 + $0x44] sm:$0xf] %vm3363, %v3302
      %3382 = vst.msk [vmem:[#allocation2 + $0x48] sm:$0xf] %vm3363, %v3304
      %3383 = vst.msk [vmem:[#allocation2 + $0x4c] sm:$0xf] %vm3363, %v3306
      %3384 = vst.msk [vmem:[#allocation2 + $0x50] sm:$0xf] %vm3363, %v3308
      %3385 = vst.msk [vmem:[#allocation2 + $0x54] sm:$0xf] %vm3363, %v3310
      %3386 = vst.msk [vmem:[#allocation2 + $0x58] sm:$0xf] %vm3363, %v3312
      %3387 = vst.msk [vmem:[#allocation2 + $0x5c] sm:$0xf] %vm3363, %v3314
      %3388 = vst.msk [vmem:[#allocation2 + $0x60] sm:$0xf] %vm3363, %v3316
      %3389 = vst.msk [vmem:[#allocation2 + $0x64] sm:$0xf] %vm3363, %v3318
      %3390 = vst.msk [vmem:[#allocation2 + $0x68] sm:$0xf] %vm3363, %v3320
      %3391 = vst.msk [vmem:[#allocation2 + $0x6c] sm:$0xf] %vm3363, %v3322
      %3392 = vst.msk [vmem:[#allocation2 + $0x70] sm:$0xf] %vm3363, %v3324
      %3393 = vst.msk [vmem:[#allocation2 + $0x74] sm:$0xf] %vm3363, %v3326
      %3394 = vst.msk [vmem:[#allocation2 + $0x78] sm:$0xf] %vm3363, %v3328
      %3395 = vst.msk [vmem:[#allocation2 + $0x7c] sm:$0xf] %vm3363, %v3330
      %v3396 = vld [vmem:[#allocation2] sm:$0xf]
      %v3397 = vld [vmem:[#allocation2 + $0x4] sm:$0xf]
      %v3398 = vld [vmem:[#allocation2 + $0x8] sm:$0xf]
      %v3399 = vld [vmem:[#allocation2 + $0xc] sm:$0xf]
      %v3400 = vld [vmem:[#allocation2 + $0x10] sm:$0xf]
      %v3401 = vld [vmem:[#allocation2 + $0x14] sm:$0xf]
      %v3402 = vld [vmem:[#allocation2 + $0x18] sm:$0xf]
      %v3403 = vld [vmem:[#allocation2 + $0x1c] sm:$0xf]
      %v3404 = vld [vmem:[#allocation2 + $0x20] sm:$0xf]
      %v3405 = vld [vmem:[#allocation2 + $0x24] sm:$0xf]
      %v3406 = vld [vmem:[#allocation2 + $0x28] sm:$0xf]
      %v3407 = vld [vmem:[#allocation2 + $0x2c] sm:$0xf]
      %v3408 = vld [vmem:[#allocation2 + $0x30] sm:$0xf]
      %v3409 = vld [vmem:[#allocation2 + $0x34] sm:$0xf]
      %v3410 = vld [vmem:[#allocation2 + $0x38] sm:$0xf]
      %v3411 = vld [vmem:[#allocation2 + $0x3c] sm:$0xf]
      %v3412 = vld [vmem:[#allocation2 + $0x40] sm:$0xf]
      %v3413 = vld [vmem:[#allocation2 + $0x44] sm:$0xf]
      %v3414 = vld [vmem:[#allocation2 + $0x48] sm:$0xf]
      %v3415 = vld [vmem:[#allocation2 + $0x4c] sm:$0xf]
      %v3416 = vld [vmem:[#allocation2 + $0x50] sm:$0xf]
      %v3417 = vld [vmem:[#allocation2 + $0x54] sm:$0xf]
      %v3418 = vld [vmem:[#allocation2 + $0x58] sm:$0xf]
      %v3419 = vld [vmem:[#allocation2 + $0x5c] sm:$0xf]
      %v3420 = vld [vmem:[#allocation2 + $0x60] sm:$0xf]
      %v3421 = vld [vmem:[#allocation2 + $0x64] sm:$0xf]
      %v3422 = vld [vmem:[#allocation2 + $0x68] sm:$0xf]
      %v3423 = vld [vmem:[#allocation2 + $0x6c] sm:$0xf]
      %v3424 = vld [vmem:[#allocation2 + $0x70] sm:$0xf]
      %v3425 = vld [vmem:[#allocation2 + $0x74] sm:$0xf]
      %v3426 = vld [vmem:[#allocation2 + $0x78] sm:$0xf]
      %v3427 = vld [vmem:[#allocation2 + $0x7c] sm:$0xf]
      %v3428 = vld [vmem:[%s1] sm:$0xf]
      %v3429 = vld [vmem:[%s1 + $0x4] sm:$0xf]
      %v3430 = vld [vmem:[%s1 + $0x8] sm:$0xf]
      %v3431 = vld [vmem:[%s1 + $0xc] sm:$0xf]
      %v3432 = vld [vmem:[%s1 + $0x10] sm:$0xf]
      %v3433 = vld [vmem:[%s1 + $0x14] sm:$0xf]
      %v3434 = vld [vmem:[%s1 + $0x18] sm:$0xf]
      %v3435 = vld [vmem:[%s1 + $0x1c] sm:$0xf]
      %v3436 = vld [vmem:[%s1 + $0x20] sm:$0xf]
      %v3437 = vld [vmem:[%s1 + $0x24] sm:$0xf]
      %v3438 = vld [vmem:[%s1 + $0x28] sm:$0xf]
      %v3439 = vld [vmem:[%s1 + $0x2c] sm:$0xf]
      %v3440 = vld [vmem:[%s1 + $0x30] sm:$0xf]
      %v3441 = vld [vmem:[%s1 + $0x34] sm:$0xf]
      %v3442 = vld [vmem:[%s1 + $0x38] sm:$0xf]
      %v3443 = vld [vmem:[%s1 + $0x3c] sm:$0xf]
      %v3444 = vld [vmem:[%s2] sm:$0x1]
      %v3446 = vlaneseq
      %v3447 = vshrl.u32 %v3446, 7
      %v3448 = vsub.s32 0, %v3447
      %v3449 = vrot.slane %v3444, %v3448
      %v3483 = vunpack.c.l.b16 %v3396
      %v3484 = vunpack.c.l.b16 %v3397
      %v3485 = vunpack.c.l.b16 %v3398
      %v3486 = vunpack.c.l.b16 %v3399
      %v3487 = vunpack.c.l.b16 %v3400
      %v3488 = vunpack.c.l.b16 %v3401
      %v3489 = vunpack.c.l.b16 %v3402
      %v3490 = vunpack.c.l.b16 %v3403
      %v3491 = vunpack.c.l.b16 %v3404
      %v3492 = vunpack.c.l.b16 %v3405
      %v3493 = vunpack.c.l.b16 %v3406
      %v3494 = vunpack.c.l.b16 %v3407
      %v3495 = vunpack.c.l.b16 %v3408
      %v3496 = vunpack.c.l.b16 %v3409
      %v3497 = vunpack.c.l.b16 %v3410
      %v3498 = vunpack.c.l.b16 %v3411
      %v3499 = vunpack.c.l.b16 %v3412
      %v3500 = vunpack.c.l.b16 %v3413
      %v3501 = vunpack.c.l.b16 %v3414
      %v3502 = vunpack.c.l.b16 %v3415
      %v3503 = vunpack.c.l.b16 %v3416
      %v3504 = vunpack.c.l.b16 %v3417
      %v3505 = vunpack.c.l.b16 %v3418
      %v3506 = vunpack.c.l.b16 %v3419
      %v3507 = vunpack.c.l.b16 %v3420
      %v3508 = vunpack.c.l.b16 %v3421
      %v3509 = vunpack.c.l.b16 %v3422
      %v3510 = vunpack.c.l.b16 %v3423
      %v3511 = vunpack.c.l.b16 %v3424
      %v3512 = vunpack.c.l.b16 %v3425
      %v3513 = vunpack.c.l.b16 %v3426
      %v3514 = vunpack.c.l.b16 %v3427
      %v3515 = vpack.c.b16 %v3484, %v3483
      %v3516 = vpack.c.b16 %v3486, %v3485
      %v3517 = vpack.c.b16 %v3488, %v3487
      %v3518 = vpack.c.b16 %v3490, %v3489
      %v3519 = vpack.c.b16 %v3492, %v3491
      %v3520 = vpack.c.b16 %v3494, %v3493
      %v3521 = vpack.c.b16 %v3496, %v3495
      %v3522 = vpack.c.b16 %v3498, %v3497
      %v3523 = vpack.c.b16 %v3500, %v3499
      %v3524 = vpack.c.b16 %v3502, %v3501
      %v3525 = vpack.c.b16 %v3504, %v3503
      %v3526 = vpack.c.b16 %v3506, %v3505
      %v3527 = vpack.c.b16 %v3508, %v3507
      %v3528 = vpack.c.b16 %v3510, %v3509
      %v3529 = vpack.c.b16 %v3512, %v3511
      %v3530 = vpack.c.b16 %v3514, %v3513
      %v3563 = vunpack.c.l.b16 %v3428
      %v3564 = vunpack.c.l.b16 %v3429
      %v3565 = vunpack.c.l.b16 %v3430
      %v3566 = vunpack.c.l.b16 %v3431
      %v3567 = vunpack.c.l.b16 %v3432
      %v3568 = vunpack.c.l.b16 %v3433
      %v3569 = vunpack.c.l.b16 %v3434
      %v3570 = vunpack.c.l.b16 %v3435
      %v3571 = vunpack.c.l.b16 %v3436
      %v3572 = vunpack.c.l.b16 %v3437
      %v3573 = vunpack.c.l.b16 %v3438
      %v3574 = vunpack.c.l.b16 %v3439
      %v3575 = vunpack.c.l.b16 %v3440
      %v3576 = vunpack.c.l.b16 %v3441
      %v3577 = vunpack.c.l.b16 %v3442
      %v3578 = vunpack.c.l.b16 %v3443
      %v3579 = vpack.c.b16 %v3564, %v3563
      %v3580 = vpack.c.b16 %v3566, %v3565
      %v3581 = vpack.c.b16 %v3568, %v3567
      %v3582 = vpack.c.b16 %v3570, %v3569
      %v3583 = vpack.c.b16 %v3572, %v3571
      %v3584 = vpack.c.b16 %v3574, %v3573
      %v3585 = vpack.c.b16 %v3576, %v3575
      %v3586 = vpack.c.b16 %v3578, %v3577
      %3595 = vmatprep.subr.bf16.mxu0 0
      %3596 = vmatpush1.bf16.msra.mxu0 %v3586
      %3597 = vmatprep.subr.bf16.mxu0 0
      %3598 = vmatpush1.bf16.msra.mxu0 %v3585
      %3599 = vmatprep.subr.bf16.mxu0 0
      %3600 = vmatpush1.bf16.msra.mxu0 %v3584
      %3601 = vmatprep.subr.bf16.mxu0 0
      %3602 = vmatpush1.bf16.msra.mxu0 %v3583
      %3603 = vmatprep.subr.bf16.mxu0 0
      %3604 = vmatpush1.bf16.msra.mxu0 %v3582
      %3605 = vmatprep.subr.bf16.mxu0 0
      %3606 = vmatpush1.bf16.msra.mxu0 %v3581
      %3607 = vmatprep.subr.bf16.mxu0 0
      %3608 = vmatpush1.bf16.msra.mxu0 %v3580
      %3609 = vmatprep.subr.bf16.mxu0 0
      %3610 = vmatpush1.bf16.msra.mxu0 %v3579
      %3611 = vmatprep.subr.bf16.mxu0 0
      %3612 = vmatpush2.bf16.msra.mxu0 0
      %3613 = vmatprep.subr.bf16.mxu0 0
      %3614 = vmatpush2.bf16.msra.mxu0 0
      %3615 = vmatprep.subr.bf16.mxu0 0
      %3616 = vmatpush2.bf16.msra.mxu0 0
      %3617 = vmatprep.subr.bf16.mxu0 0
      %3618 = vmatpush2.bf16.msra.mxu0 0
      %3619 = vmatprep.subr.bf16.mxu0 0
      %3620 = vmatpush2.bf16.msra.mxu0 0
      %3621 = vmatprep.subr.bf16.mxu0 0
      %3622 = vmatpush2.bf16.msra.mxu0 0
      %3623 = vmatprep.subr.bf16.mxu0 0
      %3624 = vmatpush2.bf16.msra.mxu0 0
      %3625 = vmatprep.subr.bf16.mxu0 0
      %3626 = vmatpush2.bf16.msra.mxu0 0
      %3627 = vmatprep.mubr.bf16.mxu0 0
      %3628 = vmatmul.mubr.bf16.gmra.mxu0 %v3515
      %v3629 = vpop.f32.mrf.mxu0
      %v3630 = vadd.f32 %v3449, %v3629
      %v3631 = vpop.f32.mrf.mxu0
      %v3632 = vpop.f32.mrf.mxu0
      %v3633 = vadd.f32 %v3449, %v3632
      %v3634 = vpop.f32.mrf.mxu0
      %3635 = vmatprep.mubr.bf16.mxu0 0
      %3636 = vmatmul.mubr.bf16.gmra.mxu0 %v3516
      %v3637 = vpop.f32.mrf.mxu0
      %v3638 = vadd.f32 %v3449, %v3637
      %v3639 = vpop.f32.mrf.mxu0
      %v3640 = vpop.f32.mrf.mxu0
      %v3641 = vadd.f32 %v3449, %v3640
      %v3642 = vpop.f32.mrf.mxu0
      %3643 = vmatprep.mubr.bf16.mxu0 0
      %3644 = vmatmul.mubr.bf16.gmra.mxu0 %v3517
      %v3645 = vpop.f32.mrf.mxu0
      %v3646 = vadd.f32 %v3449, %v3645
      %v3647 = vpop.f32.mrf.mxu0
      %v3648 = vpop.f32.mrf.mxu0
      %v3649 = vadd.f32 %v3449, %v3648
      %v3650 = vpop.f32.mrf.mxu0
      %3651 = vmatprep.mubr.bf16.mxu0 0
      %3652 = vmatmul.mubr.bf16.gmra.mxu0 %v3518
      %v3653 = vpop.f32.mrf.mxu0
      %v3654 = vadd.f32 %v3449, %v3653
      %v3655 = vpop.f32.mrf.mxu0
      %v3656 = vpop.f32.mrf.mxu0
      %v3657 = vadd.f32 %v3449, %v3656
      %v3658 = vpop.f32.mrf.mxu0
      %3659 = vmatprep.mubr.bf16.mxu0 0
      %3660 = vmatmul.mubr.bf16.gmra.mxu0 %v3519
      %v3661 = vpop.f32.mrf.mxu0
      %v3662 = vadd.f32 %v3449, %v3661
      %v3663 = vpop.f32.mrf.mxu0
      %v3664 = vpop.f32.mrf.mxu0
      %v3665 = vadd.f32 %v3449, %v3664
      %v3666 = vpop.f32.mrf.mxu0
      %3667 = vmatprep.mubr.bf16.mxu0 0
      %3668 = vmatmul.mubr.bf16.gmra.mxu0 %v3520
      %v3669 = vpop.f32.mrf.mxu0
      %v3670 = vadd.f32 %v3449, %v3669
      %v3671 = vpop.f32.mrf.mxu0
      %v3672 = vpop.f32.mrf.mxu0
      %v3673 = vadd.f32 %v3449, %v3672
      %v3674 = vpop.f32.mrf.mxu0
      %3675 = vmatprep.mubr.bf16.mxu0 0
      %3676 = vmatmul.mubr.bf16.gmra.mxu0 %v3521
      %v3677 = vpop.f32.mrf.mxu0
      %v3678 = vadd.f32 %v3449, %v3677
      %v3679 = vpop.f32.mrf.mxu0
      %v3680 = vpop.f32.mrf.mxu0
      %v3681 = vadd.f32 %v3449, %v3680
      %v3682 = vpop.f32.mrf.mxu0
      %3683 = vmatprep.mubr.bf16.mxu0 0
      %3684 = vmatmul.mubr.bf16.gmra.mxu0 %v3522
      %v3685 = vpop.f32.mrf.mxu0
      %v3686 = vadd.f32 %v3449, %v3685
      %v3687 = vpop.f32.mrf.mxu0
      %v3688 = vpop.f32.mrf.mxu0
      %v3689 = vadd.f32 %v3449, %v3688
      %v3690 = vpop.f32.mrf.mxu0
      %3691 = vmatprep.mubr.bf16.mxu0 0
      %3692 = vmatmul.mubr.bf16.gmra.mxu0 %v3523
      %v3693 = vpop.f32.mrf.mxu0
      %v3694 = vadd.f32 %v3449, %v3693
      %v3695 = vpop.f32.mrf.mxu0
      %v3696 = vpop.f32.mrf.mxu0
      %v3697 = vadd.f32 %v3449, %v3696
      %v3698 = vpop.f32.mrf.mxu0
      %3699 = vmatprep.mubr.bf16.mxu0 0
      %3700 = vmatmul.mubr.bf16.gmra.mxu0 %v3524
      %v3701 = vpop.f32.mrf.mxu0
      %v3702 = vadd.f32 %v3449, %v3701
      %v3703 = vpop.f32.mrf.mxu0
      %v3704 = vpop.f32.mrf.mxu0
      %v3705 = vadd.f32 %v3449, %v3704
      %v3706 = vpop.f32.mrf.mxu0
      %3707 = vmatprep.mubr.bf16.mxu0 0
      %3708 = vmatmul.mubr.bf16.gmra.mxu0 %v3525
      %v3709 = vpop.f32.mrf.mxu0
      %v3710 = vadd.f32 %v3449, %v3709
      %v3711 = vpop.f32.mrf.mxu0
      %v3712 = vpop.f32.mrf.mxu0
      %v3713 = vadd.f32 %v3449, %v3712
      %v3714 = vpop.f32.mrf.mxu0
      %3715 = vmatprep.mubr.bf16.mxu0 0
      %3716 = vmatmul.mubr.bf16.gmra.mxu0 %v3526
      %v3717 = vpop.f32.mrf.mxu0
      %v3718 = vadd.f32 %v3449, %v3717
      %v3719 = vpop.f32.mrf.mxu0
      %v3720 = vpop.f32.mrf.mxu0
      %v3721 = vadd.f32 %v3449, %v3720
      %v3722 = vpop.f32.mrf.mxu0
      %3723 = vmatprep.mubr.bf16.mxu0 0
      %3724 = vmatmul.mubr.bf16.gmra.mxu0 %v3527
      %v3725 = vpop.f32.mrf.mxu0
      %v3726 = vadd.f32 %v3449, %v3725
      %v3727 = vpop.f32.mrf.mxu0
      %v3728 = vpop.f32.mrf.mxu0
      %v3729 = vadd.f32 %v3449, %v3728
      %v3730 = vpop.f32.mrf.mxu0
      %3731 = vmatprep.mubr.bf16.mxu0 0
      %3732 = vmatmul.mubr.bf16.gmra.mxu0 %v3528
      %v3733 = vpop.f32.mrf.mxu0
      %v3734 = vadd.f32 %v3449, %v3733
      %v3735 = vpop.f32.mrf.mxu0
      %v3736 = vpop.f32.mrf.mxu0
      %v3737 = vadd.f32 %v3449, %v3736
      %v3738 = vpop.f32.mrf.mxu0
      %3739 = vmatprep.mubr.bf16.mxu0 0
      %3740 = vmatmul.mubr.bf16.gmra.mxu0 %v3529
      %v3741 = vpop.f32.mrf.mxu0
      %v3742 = vadd.f32 %v3449, %v3741
      %v3743 = vpop.f32.mrf.mxu0
      %v3744 = vpop.f32.mrf.mxu0
      %v3745 = vadd.f32 %v3449, %v3744
      %v3746 = vpop.f32.mrf.mxu0
      %3747 = vmatprep.mubr.bf16.mxu0 0
      %3748 = vmatmul.mubr.bf16.gmra.mxu0 %v3530
      %v3749 = vpop.f32.mrf.mxu0
      %v3750 = vadd.f32 %v3449, %v3749
      %v3751 = vpop.f32.mrf.mxu0
      %v3752 = vpop.f32.mrf.mxu0
      %v3753 = vadd.f32 %v3449, %v3752
      %v3754 = vpop.f32.mrf.mxu0
      %3755 = vdwg.mxu0
      %v3756 = vmax.f32 %v3630, 0.0
      %v3757 = vmax.f32 %v3633, 0.0
      %v3758 = vmax.f32 %v3638, 0.0
      %v3759 = vmax.f32 %v3641, 0.0
      %v3760 = vmax.f32 %v3646, 0.0
      %v3761 = vmax.f32 %v3649, 0.0
      %v3762 = vmax.f32 %v3654, 0.0
      %v3763 = vmax.f32 %v3657, 0.0
      %v3764 = vmax.f32 %v3662, 0.0
      %v3765 = vmax.f32 %v3665, 0.0
      %v3766 = vmax.f32 %v3670, 0.0
      %v3767 = vmax.f32 %v3673, 0.0
      %v3768 = vmax.f32 %v3678, 0.0
      %v3769 = vmax.f32 %v3681, 0.0
      %v3770 = vmax.f32 %v3686, 0.0
      %v3771 = vmax.f32 %v3689, 0.0
      %v3772 = vmax.f32 %v3694, 0.0
      %v3773 = vmax.f32 %v3697, 0.0
      %v3774 = vmax.f32 %v3702, 0.0
      %v3775 = vmax.f32 %v3705, 0.0
      %v3776 = vmax.f32 %v3710, 0.0
      %v3777 = vmax.f32 %v3713, 0.0
      %v3778 = vmax.f32 %v3718, 0.0
      %v3779 = vmax.f32 %v3721, 0.0
      %v3780 = vmax.f32 %v3726, 0.0
      %v3781 = vmax.f32 %v3729, 0.0
      %v3782 = vmax.f32 %v3734, 0.0
      %v3783 = vmax.f32 %v3737, 0.0
      %v3784 = vmax.f32 %v3742, 0.0
      %v3785 = vmax.f32 %v3745, 0.0
      %v3786 = vmax.f32 %v3750, 0.0
      %v3787 = vmax.f32 %v3753, 0.0
      %v3788 = vpack.c.bf16 %v3757, %v3756
      %v3789 = vpack.c.bf16 %v3759, %v3758
      %v3790 = vpack.c.bf16 %v3761, %v3760
      %v3791 = vpack.c.bf16 %v3763, %v3762
      %v3792 = vpack.c.bf16 %v3765, %v3764
      %v3793 = vpack.c.bf16 %v3767, %v3766
      %v3794 = vpack.c.bf16 %v3769, %v3768
      %v3795 = vpack.c.bf16 %v3771, %v3770
      %v3796 = vpack.c.bf16 %v3773, %v3772
      %v3797 = vpack.c.bf16 %v3775, %v3774
      %v3798 = vpack.c.bf16 %v3777, %v3776
      %v3799 = vpack.c.bf16 %v3779, %v3778
      %v3800 = vpack.c.bf16 %v3781, %v3780
      %v3801 = vpack.c.bf16 %v3783, %v3782
      %v3802 = vpack.c.bf16 %v3785, %v3784
      %v3803 = vpack.c.bf16 %v3787, %v3786
      %v3820 = vunpack.c.l.b16 %v3788
      %v3821 = vunpack.c.h.b16 %v3788
      %v3822 = vunpack.c.l.b16 %v3789
      %v3823 = vunpack.c.h.b16 %v3789
      %v3824 = vunpack.c.l.b16 %v3790
      %v3825 = vunpack.c.h.b16 %v3790
      %v3826 = vunpack.c.l.b16 %v3791
      %v3827 = vunpack.c.h.b16 %v3791
      %v3828 = vunpack.c.l.b16 %v3792
      %v3829 = vunpack.c.h.b16 %v3792
      %v3830 = vunpack.c.l.b16 %v3793
      %v3831 = vunpack.c.h.b16 %v3793
      %v3832 = vunpack.c.l.b16 %v3794
      %v3833 = vunpack.c.h.b16 %v3794
      %v3834 = vunpack.c.l.b16 %v3795
      %v3835 = vunpack.c.h.b16 %v3795
      %v3836 = vunpack.c.l.b16 %v3796
      %v3837 = vunpack.c.h.b16 %v3796
      %v3838 = vunpack.c.l.b16 %v3797
      %v3839 = vunpack.c.h.b16 %v3797
      %v3840 = vunpack.c.l.b16 %v3798
      %v3841 = vunpack.c.h.b16 %v3798
      %v3842 = vunpack.c.l.b16 %v3799
      %v3843 = vunpack.c.h.b16 %v3799
      %v3844 = vunpack.c.l.b16 %v3800
      %v3845 = vunpack.c.h.b16 %v3800
      %v3846 = vunpack.c.l.b16 %v3801
      %v3847 = vunpack.c.h.b16 %v3801
      %v3848 = vunpack.c.l.b16 %v3802
      %v3849 = vunpack.c.h.b16 %v3802
      %v3850 = vunpack.c.l.b16 %v3803
      %v3851 = vunpack.c.h.b16 %v3803
      %v3852 = vpack.c.b16 %v3820, %v3820
      %v3853 = vpack.c.b16 %v3821, %v3821
      %v3854 = vpack.c.b16 %v3822, %v3822
      %v3855 = vpack.c.b16 %v3823, %v3823
      %v3856 = vpack.c.b16 %v3824, %v3824
      %v3857 = vpack.c.b16 %v3825, %v3825
      %v3858 = vpack.c.b16 %v3826, %v3826
      %v3859 = vpack.c.b16 %v3827, %v3827
      %v3860 = vpack.c.b16 %v3828, %v3828
      %v3861 = vpack.c.b16 %v3829, %v3829
      %v3862 = vpack.c.b16 %v3830, %v3830
      %v3863 = vpack.c.b16 %v3831, %v3831
      %v3864 = vpack.c.b16 %v3832, %v3832
      %v3865 = vpack.c.b16 %v3833, %v3833
      %v3866 = vpack.c.b16 %v3834, %v3834
      %v3867 = vpack.c.b16 %v3835, %v3835
      %v3868 = vpack.c.b16 %v3836, %v3836
      %v3869 = vpack.c.b16 %v3837, %v3837
      %v3870 = vpack.c.b16 %v3838, %v3838
      %v3871 = vpack.c.b16 %v3839, %v3839
      %v3872 = vpack.c.b16 %v3840, %v3840
      %v3873 = vpack.c.b16 %v3841, %v3841
      %v3874 = vpack.c.b16 %v3842, %v3842
      %v3875 = vpack.c.b16 %v3843, %v3843
      %v3876 = vpack.c.b16 %v3844, %v3844
      %v3877 = vpack.c.b16 %v3845, %v3845
      %v3878 = vpack.c.b16 %v3846, %v3846
      %v3879 = vpack.c.b16 %v3847, %v3847
      %v3880 = vpack.c.b16 %v3848, %v3848
      %v3881 = vpack.c.b16 %v3849, %v3849
      %v3882 = vpack.c.b16 %v3850, %v3850
      %v3883 = vpack.c.b16 %v3851, %v3851
      %vm3916 = vcmask 60416
      %3917 = vst.msk [vmem:[%s208] sm:$0xf] %vm3916, %v3852
      %3918 = vst.msk [vmem:[%s208 + $0x4] sm:$0xf] %vm3916, %v3853
      %3919 = vst.msk [vmem:[%s208 + $0x8] sm:$0xf] %vm3916, %v3854
      %3920 = vst.msk [vmem:[%s208 + $0xc] sm:$0xf] %vm3916, %v3855
      %3921 = vst.msk [vmem:[%s208 + $0x10] sm:$0xf] %vm3916, %v3856
      %3922 = vst.msk [vmem:[%s208 + $0x14] sm:$0xf] %vm3916, %v3857
      %3923 = vst.msk [vmem:[%s208 + $0x18] sm:$0xf] %vm3916, %v3858
      %3924 = vst.msk [vmem:[%s208 + $0x1c] sm:$0xf] %vm3916, %v3859
      %3925 = vst.msk [vmem:[%s208 + $0x20] sm:$0xf] %vm3916, %v3860
      %3926 = vst.msk [vmem:[%s208 + $0x24] sm:$0xf] %vm3916, %v3861
      %3927 = vst.msk [vmem:[%s208 + $0x28] sm:$0xf] %vm3916, %v3862
      %3928 = vst.msk [vmem:[%s208 + $0x2c] sm:$0xf] %vm3916, %v3863
      %3929 = vst.msk [vmem:[%s208 + $0x30] sm:$0xf] %vm3916, %v3864
      %3930 = vst.msk [vmem:[%s208 + $0x34] sm:$0xf] %vm3916, %v3865
      %3931 = vst.msk [vmem:[%s208 + $0x38] sm:$0xf] %vm3916, %v3866
      %3932 = vst.msk [vmem:[%s208 + $0x3c] sm:$0xf] %vm3916, %v3867
      %3933 = vst.msk [vmem:[%s208 + $0x40] sm:$0xf] %vm3916, %v3868
      %3934 = vst.msk [vmem:[%s208 + $0x44] sm:$0xf] %vm3916, %v3869
      %3935 = vst.msk [vmem:[%s208 + $0x48] sm:$0xf] %vm3916, %v3870
      %3936 = vst.msk [vmem:[%s208 + $0x4c] sm:$0xf] %vm3916, %v3871
      %3937 = vst.msk [vmem:[%s208 + $0x50] sm:$0xf] %vm3916, %v3872
      %3938 = vst.msk [vmem:[%s208 + $0x54] sm:$0xf] %vm3916, %v3873
      %3939 = vst.msk [vmem:[%s208 + $0x58] sm:$0xf] %vm3916, %v3874
      %3940 = vst.msk [vmem:[%s208 + $0x5c] sm:$0xf] %vm3916, %v3875
      %3941 = vst.msk [vmem:[%s208 + $0x60] sm:$0xf] %vm3916, %v3876
      %3942 = vst.msk [vmem:[%s208 + $0x64] sm:$0xf] %vm3916, %v3877
      %3943 = vst.msk [vmem:[%s208 + $0x68] sm:$0xf] %vm3916, %v3878
      %3944 = vst.msk [vmem:[%s208 + $0x6c] sm:$0xf] %vm3916, %v3879
      %3945 = vst.msk [vmem:[%s208 + $0x70] sm:$0xf] %vm3916, %v3880
      %3946 = vst.msk [vmem:[%s208 + $0x74] sm:$0xf] %vm3916, %v3881
      %3947 = vst.msk [vmem:[%s208 + $0x78] sm:$0xf] %vm3916, %v3882
      %3948 = vst.msk [vmem:[%s208 + $0x7c] sm:$0xf] %vm3916, %v3883
      %s3949 = smul.u32 16, %s19
      %p3950 = scmp.lt.s32.totalorder %s18, 1
      %s3951 = scalar_select %p3950, %s18, 1
      %p3952 = scmp.lt.s32.totalorder %s3949, 15
      %s3953 = scalar_select %p3952, %s3949, 15
      %s3954 = smul.addr %s3953, 2
      %s3955 = smul.addr %s3951, 32
      %s3956 = sadd.s32 %s3954, %s3955
      %s3957 = smul.addr %s3956, 4
      %s3958 = scalar_lea.vmem %s3, %s3957
      // Predicated region
      $region33: #{tpu_custom_call.1} parent=31 // pred_check
        %p3959 = pneg %p116
      $region34: #{tpu_custom_call.1} parent=31 // pred_check_branch
        %3961 = sbr.rel (%p3959) target = $region36
      $region35: #{tpu_custom_call.1} parent=31 // pred_region
        %s3962 = smul.u32 16, %s19
      $region36: #{tpu_custom_call.1} parent=31 // pred_fallthru
        _
    $region32: #{tpu_custom_call.1} parent=5 // pred_fallthru
      _
    %p3963 = scmp.le.s32.totalorder 2, %s9
    // Predicated region
    $region37: #{tpu_custom_call.1} parent=5 // pred_check
      %p3964 = pneg %p3963
    $region38: #{tpu_custom_call.1} parent=5 // pred_check_branch
      %3966 = sbr.rel (%p3964) target = $region40
    $region39: #{tpu_custom_call.1} parent=5 // pred_region
      %s3967 = ssub.s32 %s9, 2
      // Predicated region
      $region41: #{tpu_custom_call.1} parent=39 // pred_check
        %p3968 = pneg %p122
      $region42: #{tpu_custom_call.1} parent=39 // pred_check_branch
        %3970 = sbr.rel (%p3968) target = $region44
      $region43: #{tpu_custom_call.1} parent=39 // pred_region
        %s3971 = smul.u32 16, %s21
        %p3972 = scmp.lt.s32.totalorder %s20, 1
        %s3973 = scalar_select %p3972, %s20, 1
        %p3974 = scmp.lt.s32.totalorder %s3971, 15
        %s3975 = scalar_select %p3974, %s3971, 15
        %s3976 = smul.addr %s3975, 2
        %s3977 = smul.addr %s3973, 32
        %s3978 = sadd.s32 %s3976, %s3977
        %s3979 = smul.addr %s3978, 4
        %s3980 = scalar_lea.vmem %s3, %s3979
      $region44: #{tpu_custom_call.1} parent=39 // pred_fallthru
        _
    $region40: #{tpu_custom_call.1} parent=5 // pred_fallthru
      _
  $region6: #{tpu_custom_call.1} parent=0 // loop_footer
    %s13 = sadd.s32 1, %s9
  $region7: #{tpu_custom_call.1} parent=0 // loop_footer_branch
    %8 = sbr.rel target = $region3
  $region8: #{tpu_custom_call.1} parent=0 // loop_exit
    _

</llo_original>
